<compile_context>
chip_gen: v5e
topology: v5e:2x2
jax: 0.10.0
libtpu: 0.0.40
codegen_flags: <defaults>
</compile_context>

<pallas_src>
import functools

import jax
import jax.numpy as jnp
from jax.experimental import pallas as pl
from jax.experimental.pallas import tpu as pltpu


# ------------------------------- tiling constants -------------------------------

LANE = 128          # lane width / feature padding granularity
TM = 512            # dst-node tile (sublane axis of A); keep n_pad//TM >= 2 for v7x
TK = 512            # src-node tile (lane axis of A, reduction axis)
TMP = 512           # node tile for the projection kernel
EDGE_SUB = 64       # edge-dot output tile: (64, 128) = 8192 edges per grid step
EDGE_LANE = 128


def _round_up(x, m):
    return ((x + m - 1) // m) * m


def _pad2(a, rows, cols):
    return jnp.pad(a, ((0, rows - a.shape[0]), (0, cols - a.shape[1])))


# --------------------------------- Pallas kernels ---------------------------------

def _proj_kernel(h_ref, ws_ref, wn_ref, b_ref, s_ref, p_ref):
    """Per-node projections: P = H @ W_neigh (bf16), S = H @ W_self + bias (f32)."""
    h = h_ref[...]
    p = jnp.dot(h, wn_ref[...], preferred_element_type=jnp.float32)
    s = jnp.dot(h, ws_ref[...], preferred_element_type=jnp.float32) + b_ref[...]
    p_ref[...] = p.astype(p_ref.dtype)
    s_ref[...] = s


def _agg_kernel(apply_relu, a_ref, p_ref, s_ref, dinv_ref, o_ref, acc_ref):
    """acc[i] = sum_k A_count[i,k] @ P[k]; finalize: out = acc * dinv[i] + S[i] (+ReLU)."""
    k = pl.program_id(1)

    @pl.when(k == 0)
    def _():
        acc_ref[...] = jnp.zeros_like(acc_ref)

    # int8 edge counts streamed from HBM (half the bytes of bf16). Upcast on the VPU
    # (i8 -> f32 -> bf16; small integer counts are exact in bf16) so the MXU sees bf16.
    a = a_ref[...].astype(jnp.float32).astype(jnp.bfloat16)
    acc_ref[...] += jnp.dot(a, p_ref[...], preferred_element_type=jnp.float32)

    @pl.when(k == pl.num_programs(1) - 1)
    def _():
        out = acc_ref[...] * dinv_ref[...] + s_ref[...]   # exact f32 1/deg row scale
        if apply_relu:
            out = jnp.maximum(out, 0.0)
        o_ref[...] = out.astype(o_ref.dtype)


def _edge_dot_kernel(hs_ref, hd_ref, o_ref):
    """u_dot_v over (F, 64, 128) endpoint blocks -> lane-dense (64, 128) score tile."""
    o_ref[...] = jnp.sum(hs_ref[...] * hd_ref[...], axis=0)


# --------------------------------- kernel wrappers ---------------------------------

def sage_layer(adj_i8, dinv, h_bf16, w_self, w_neigh, bias, *, apply_relu, out_dtype):
    """One SAGEConv('mean') layer on padded operands (n_pad, f_in) -> (n_pad, f_out)."""
    n_pad, f_in = h_bf16.shape
    f_out = w_self.shape[1]

    # 1) node-tiled projection (small matmuls, bf16 MXU, f32 accumulate)
    s, p = pl.pallas_call(
        _proj_kernel,
        out_shape=(jax.ShapeDtypeStruct((n_pad, f_out), jnp.float32),
                   jax.ShapeDtypeStruct((n_pad, f_out), jnp.bfloat16)),
        grid_spec=pltpu.PrefetchScalarGridSpec(
            num_scalar_prefetch=0,
            grid=(n_pad // TMP,),
            in_specs=[pl.BlockSpec((TMP, f_in), lambda i: (i, 0)),
                      pl.BlockSpec((f_in, f_out), lambda i: (0, 0)),
                      pl.BlockSpec((f_in, f_out), lambda i: (0, 0)),
                      pl.BlockSpec((1, f_out), lambda i: (0, 0))],
            out_specs=(pl.BlockSpec((TMP, f_out), lambda i: (i, 0)),
                       pl.BlockSpec((TMP, f_out), lambda i: (i, 0)))),
        compiler_params=pltpu.CompilerParams(dimension_semantics=("parallel",)),
    )(h_bf16, w_self, w_neigh, bias)

    # 2) tiled aggregation over the int8 edge-count adjacency, K-reduction last
    flops = 2 * n_pad * n_pad * f_out
    bytes_accessed = (adj_i8.size * 1 + p.size * 2 + s.size * 4 + dinv.size * 4
                      + n_pad * f_out * jnp.dtype(out_dtype).itemsize)
    out = pl.pallas_call(
        functools.partial(_agg_kernel, apply_relu),
        out_shape=jax.ShapeDtypeStruct((n_pad, f_out), out_dtype),
        grid_spec=pltpu.PrefetchScalarGridSpec(
            num_scalar_prefetch=0,
            grid=(n_pad // TM, n_pad // TK),
            in_specs=[pl.BlockSpec((TM, TK), lambda i, k: (i, k)),
                      pl.BlockSpec((TK, f_out), lambda i, k: (k, 0)),
                      pl.BlockSpec((TM, f_out), lambda i, k: (i, 0)),
                      pl.BlockSpec((TM, 1), lambda i, k: (i, 0))],
            out_specs=pl.BlockSpec((TM, f_out), lambda i, k: (i, 0)),
            scratch_shapes=[pltpu.VMEM((TM, f_out), jnp.float32)]),
        compiler_params=pltpu.CompilerParams(
            dimension_semantics=("parallel", "arbitrary")),
        cost_estimate=pl.CostEstimate(flops=int(flops), transcendentals=0,
                                      bytes_accessed=int(bytes_accessed)),
    )(adj_i8, p, s, dinv)
    return out


def edge_dot(hs_blk, hd_blk):
    """hs_blk/hd_blk: (f, e_pad//128, 128) f32 -> (e_pad//128, 128) f32 scores."""
    f_dim, n_rows, _ = hs_blk.shape
    grid = (n_rows // EDGE_SUB,)
    return pl.pallas_call(
        _edge_dot_kernel,
        out_shape=jax.ShapeDtypeStruct((n_rows, EDGE_LANE), jnp.float32),
        grid_spec=pltpu.PrefetchScalarGridSpec(
            num_scalar_prefetch=0,
            grid=grid,
            in_specs=[pl.BlockSpec((f_dim, EDGE_SUB, EDGE_LANE), lambda i: (0, i, 0)),
                      pl.BlockSpec((f_dim, EDGE_SUB, EDGE_LANE), lambda i: (0, i, 0))],
            out_specs=pl.BlockSpec((EDGE_SUB, EDGE_LANE), lambda i: (i, 0))),
        compiler_params=pltpu.CompilerParams(dimension_semantics=("parallel",)),
    )(hs_blk, hd_blk)


# ------------------------------------ model ------------------------------------

def init_params(key, in_feats, hid_feats, out_feats):
    ks = jax.random.split(key, 6)

    def lin(k, fi, fo):
        return jax.random.normal(k, (fi, fo), jnp.float32) / jnp.sqrt(fi)

    return {
        "w_self1": lin(ks[0], in_feats, hid_feats),
        "w_neigh1": lin(ks[1], in_feats, hid_feats),
        "b1": 0.1 * jax.random.normal(ks[2], (1, hid_feats), jnp.float32),
        "w_self2": lin(ks[3], hid_feats, out_feats),
        "w_neigh2": lin(ks[4], hid_feats, out_feats),
        "b2": 0.1 * jax.random.normal(ks[5], (1, out_feats), jnp.float32),
    }


def sage_e_net_forward(params, adj_i8, deg_inv, x, src, dst):
    """adj_i8: (N, N) int8 edge counts (dst, src); deg_inv: (N, 1) f32 = 1/max(in_deg,1)."""
    n, in_f = x.shape
    hid_f = params["w_self1"].shape[1]
    out_f = params["w_self2"].shape[1]

    n_pad = _round_up(n, max(TM, TK))
    in_p = _round_up(in_f, LANE)
    hid_p = _round_up(hid_f, LANE)
    out_p = _round_up(out_f, LANE)

    # pad; adjacency stays int8 end-to-end (no N^2 f32/bf16 intermediate)
    a_p = _pad2(adj_i8, n_pad, n_pad)
    dinv_p = _pad2(deg_inv, n_pad, 1)
    x_p = _pad2(x, n_pad, in_p).astype(jnp.bfloat16)
    ws1 = _pad2(params["w_self1"], in_p, hid_p).astype(jnp.bfloat16)
    wn1 = _pad2(params["w_neigh1"], in_p, hid_p).astype(jnp.bfloat16)
    b1 = _pad2(params["b1"], 1, hid_p)
    ws2 = _pad2(params["w_self2"], hid_p, out_p).astype(jnp.bfloat16)
    wn2 = _pad2(params["w_neigh2"], hid_p, out_p).astype(jnp.bfloat16)
    b2 = _pad2(params["b2"], 1, out_p)

    # SageNNet: layer1 output stays bf16 (it only feeds the next bf16 matmuls)
    h1 = sage_layer(a_p, dinv_p, x_p, ws1, wn1, b1,
                    apply_relu=True, out_dtype=jnp.bfloat16)
    h2 = sage_layer(a_p, dinv_p, h1, ws2, wn2, b2,
                    apply_relu=False, out_dtype=jnp.float32)

    # DotProductPredictor: slice away the zero-padded feature columns (exactly zero)
    # before the transpose/gather, then feed the edge kernel lane-dense blocks.
    # Padded edges (index 0) compute a harmless node0.node0 score that the final [:e]
    # slice drops -- do not remove that slice.
    e = src.shape[0]
    e_pad = _round_up(e, EDGE_SUB * EDGE_LANE)
    src_p = jnp.pad(src, (0, e_pad - e))
    dst_p = jnp.pad(dst, (0, e_pad - e))
    h2t = h2[:, :out_f].T                                   # (out_f, n_pad) f32
    hs = jnp.take(h2t, src_p, axis=1).reshape(out_f, e_pad // EDGE_LANE, EDGE_LANE)
    hd = jnp.take(h2t, dst_p, axis=1).reshape(out_f, e_pad // EDGE_LANE, EDGE_LANE)

    scores = edge_dot(hs, hd).reshape(-1)                   # (e_pad,)
    return scores[:e, None]


def reference_forward(params, adj_i8, deg_inv, x, src, dst):
    """Pure-JAX reference emulating the kernels' bf16-input / f32-accumulate numerics."""
    bf16, f32 = jnp.bfloat16, jnp.float32
    a = adj_i8.astype(bf16)           # small integer counts are exact in bf16

    def layer(h_bf, ws, wn, b, relu):
        p = jnp.dot(h_bf, wn.astype(bf16), preferred_element_type=f32).astype(bf16)
        s = jnp.dot(h_bf, ws.astype(bf16), preferred_element_type=f32) + b
        out = jnp.dot(a, p, preferred_element_type=f32) * deg_inv + s
        return jnp.maximum(out, 0.0) if relu else out

    h1 = layer(x.astype(bf16), params["w_self1"], params["w_neigh1"],
               params["b1"], True).astype(bf16)
    h2 = layer(h1, params["w_self2"], params["w_neigh2"], params["b2"], False)
    return jnp.sum(h2[src] * h2[dst], axis=-1, keepdims=True)


# ------------------------------------- main -------------------------------------

if __name__ == "__main__":
    key = jax.random.PRNGKey(0)
    k_feat, k_src, k_dst, k_param = jax.random.split(key, 4)

    # small but big enough to exercise multi-tile grids (N_pad=1024 -> 2x2 agg grid)
    N, E = 600, 1500
    IN_F, HID_F, OUT_F = 8, 16, 8

    x = jax.random.normal(k_feat, (N, IN_F), jnp.float32)
    src = jax.random.randint(k_src, (E,), 0, N)
    dst = jax.random.randint(k_dst, (E,), 0, N)

    # un-normalized int8 edge-count adjacency (built directly in the kernels'
    # streaming dtype, no N^2 f32 intermediate) + f32 per-dst 1/in_deg
    adj_i8 = jnp.zeros((N, N), jnp.int8).at[dst, src].add(jnp.ones(dst.shape, jnp.int8))
    deg = jnp.zeros((N,), jnp.float32).at[dst].add(1.0)
    deg_inv = (1.0 / jnp.maximum(deg, 1.0))[:, None]

    params = init_params(k_param, IN_F, HID_F, OUT_F)

    fwd = jax.jit(sage_e_net_forward)
    score = jax.block_until_ready(fwd(params, adj_i8, deg_inv, x, src, dst))

    ref = reference_forward(params, adj_i8, deg_inv, x, src, dst)
    assert score.shape == (E, 1)
    assert jnp.allclose(score, ref, atol=1e-3, rtol=1e-3), \
        float(jnp.max(jnp.abs(score - ref)))

    print("KERNEL_OK")
</pallas_src>

<mosaic_0001>
module attributes {stable_mosaic.version = 11 : i64} {
  func.func @_proj_kernel(%arg0: i32, %arg1: memref<512x128xbf16, #tpu.memory_space<vmem>>, %arg2: memref<128x128xbf16, #tpu.memory_space<vmem>>, %arg3: memref<128x128xbf16, #tpu.memory_space<vmem>>, %arg4: memref<1x128xf32, #tpu.memory_space<vmem>>, %arg5: memref<512x128xf32, #tpu.memory_space<vmem>>, %arg6: memref<512x128xbf16, #tpu.memory_space<vmem>>) attributes {dimension_semantics = [#tpu.dimension_semantics<parallel>], iteration_bounds = array<i64: 2>, scalar_prefetch = 0 : i64, scratch_operands = 0 : i64, tpu.core_type = #tpu.core_type<tc>, window_params = [{transform_indices = @transform_0, window_bounds = array<i64: 512, 128>}, {pipeline_mode = #tpu.pipeline_mode<synchronous>, transform_indices = @transform_1, window_bounds = array<i64: 128, 128>}, {pipeline_mode = #tpu.pipeline_mode<synchronous>, transform_indices = @transform_2, window_bounds = array<i64: 128, 128>}, {pipeline_mode = #tpu.pipeline_mode<synchronous>, transform_indices = @transform_3, window_bounds = array<i64: 1, 128>}, {transform_indices = @transform_4, window_bounds = array<i64: 512, 128>}, {transform_indices = @transform_5, window_bounds = array<i64: 512, 128>}]} {
    %c0 = arith.constant 0 : index
    %c0_0 = arith.constant 0 : index
    %0 = vector.load %arg1[%c0, %c0_0] : memref<512x128xbf16, #tpu.memory_space<vmem>>, vector<512x128xbf16>
    %c0_1 = arith.constant 0 : index
    %c0_2 = arith.constant 0 : index
    %1 = vector.load %arg3[%c0_1, %c0_2] : memref<128x128xbf16, #tpu.memory_space<vmem>>, vector<128x128xbf16>
    %cst = arith.constant dense<0.000000e+00> : vector<512x128xf32>
    %2 = tpu.matmul %0, %1, %cst {dimension_numbers = #tpu.dot_dimension_numbers<[1], [0], [0], [1], [0, 0, 1, 1], [], []>} : vector<512x128xbf16>, vector<128x128xbf16>, vector<512x128xf32> -> vector<512x128xf32>
    %c0_3 = arith.constant 0 : index
    %c0_4 = arith.constant 0 : index
    %3 = vector.load %arg2[%c0_3, %c0_4] : memref<128x128xbf16, #tpu.memory_space<vmem>>, vector<128x128xbf16>
    %cst_5 = arith.constant dense<0.000000e+00> : vector<512x128xf32>
    %4 = tpu.matmul %0, %3, %cst_5 {dimension_numbers = #tpu.dot_dimension_numbers<[1], [0], [0], [1], [0, 0, 1, 1], [], []>} : vector<512x128xbf16>, vector<128x128xbf16>, vector<512x128xf32> -> vector<512x128xf32>
    %c0_6 = arith.constant 0 : index
    %c0_7 = arith.constant 0 : index
    %5 = vector.load %arg4[%c0_6, %c0_7] : memref<1x128xf32, #tpu.memory_space<vmem>>, vector<1x128xf32>
    %6 = vector.broadcast %5 : vector<1x128xf32> to vector<512x128xf32>
    %7 = arith.addf %4, %6 : vector<512x128xf32>
    %8 = arith.truncf %2 : vector<512x128xf32> to vector<512x128xbf16>
    %c0_8 = arith.constant 0 : index
    %c0_9 = arith.constant 0 : index
    %9 = vector.load %arg6[%c0_8, %c0_9] : memref<512x128xbf16, #tpu.memory_space<vmem>>, vector<512x128xbf16>
    tpu.vector_store %arg6[%c0_8, %c0_9], %8 {strides = array<i32>} : memref<512x128xbf16, #tpu.memory_space<vmem>>, vector<512x128xbf16>,
    %c0_10 = arith.constant 0 : index
    %c0_11 = arith.constant 0 : index
    %10 = vector.load %arg5[%c0_10, %c0_11] : memref<512x128xf32, #tpu.memory_space<vmem>>, vector<512x128xf32>
    tpu.vector_store %arg5[%c0_10, %c0_11], %7 {strides = array<i32>} : memref<512x128xf32, #tpu.memory_space<vmem>>, vector<512x128xf32>,
    return
  }
  func.func @transform_0(%arg0: i32) -> (i32, i32) {
    %c0_i32 = arith.constant 0 : i32
    %c0_i32_0 = arith.constant 0 : i32
    return %arg0, %c0_i32 : i32, i32
  }
  func.func @transform_1(%arg0: i32) -> (i32, i32) {
    %c0_i32 = arith.constant 0 : i32
    %c0_i32_0 = arith.constant 0 : i32
    %c0_i32_1 = arith.constant 0 : i32
    return %c0_i32, %c0_i32_0 : i32, i32
  }
  func.func @transform_2(%arg0: i32) -> (i32, i32) {
    %c0_i32 = arith.constant 0 : i32
    %c0_i32_0 = arith.constant 0 : i32
    %c0_i32_1 = arith.constant 0 : i32
    return %c0_i32, %c0_i32_0 : i32, i32
  }
  func.func @transform_3(%arg0: i32) -> (i32, i32) {
    %c0_i32 = arith.constant 0 : i32
    %c0_i32_0 = arith.constant 0 : i32
    %c0_i32_1 = arith.constant 0 : i32
    return %c0_i32, %c0_i32_0 : i32, i32
  }
  func.func @transform_4(%arg0: i32) -> (i32, i32) {
    %c0_i32 = arith.constant 0 : i32
    %c0_i32_0 = arith.constant 0 : i32
    return %arg0, %c0_i32 : i32, i32
  }
  func.func @transform_5(%arg0: i32) -> (i32, i32) {
    %c0_i32 = arith.constant 0 : i32
    %c0_i32_0 = arith.constant 0 : i32
    return %arg0, %c0_i32 : i32, i32
  }
}

module attributes {stable_mosaic.version = 11 : i64} {
  func.func @_agg_kernel(%arg0: i32, %arg1: i32, %arg2: memref<512x512xi8, #tpu.memory_space<vmem>>, %arg3: memref<512x128xbf16, #tpu.memory_space<vmem>>, %arg4: memref<512x128xf32, #tpu.memory_space<vmem>>, %arg5: memref<512x1xf32, #tpu.memory_space<vmem>>, %arg6: memref<512x128xbf16, #tpu.memory_space<vmem>>, %arg7: memref<512x128xf32, #tpu.memory_space<vmem>>) attributes {dimension_semantics = [#tpu.dimension_semantics<parallel>, #tpu.dimension_semantics<arbitrary>], iteration_bounds = array<i64: 2, 2>, scalar_prefetch = 0 : i64, scratch_operands = 1 : i64, tpu.core_type = #tpu.core_type<tc>, window_params = [{transform_indices = @transform_0, window_bounds = array<i64: 512, 512>}, {transform_indices = @transform_1, window_bounds = array<i64: 512, 128>}, {transform_indices = @transform_2, window_bounds = array<i64: 512, 128>}, {transform_indices = @transform_3, window_bounds = array<i64: 512, 1>}, {transform_indices = @transform_4, window_bounds = array<i64: 512, 128>}]} {
    %c0_i32 = arith.constant 0 : i32
    %0 = arith.cmpi eq, %arg1, %c0_i32 : i32
    %1 = arith.extui %0 : i1 to i32
    %c0_i32_0 = arith.constant 0 : i32
    %2 = arith.cmpi ne, %1, %c0_i32_0 : i32
    scf.if %2 {
      %cst_9 = arith.constant 0.000000e+00 : f32
      %14 = vector.broadcast %cst_9 : f32 to vector<512x128xf32>
      %c0_10 = arith.constant 0 : index
      %c0_11 = arith.constant 0 : index
      %15 = vector.load %arg7[%c0_10, %c0_11] : memref<512x128xf32, #tpu.memory_space<vmem>>, vector<512x128xf32>
      tpu.vector_store %arg7[%c0_10, %c0_11], %14 {strides = array<i32>} : memref<512x128xf32, #tpu.memory_space<vmem>>, vector<512x128xf32>,
    } else {
    }
    %c0 = arith.constant 0 : index
    %c0_1 = arith.constant 0 : index
    %3 = vector.load %arg2[%c0, %c0_1] : memref<512x512xi8, #tpu.memory_space<vmem>>, vector<512x512xi8>
    %4 = arith.sitofp %3 : vector<512x512xi8> to vector<512x512xf32>
    %5 = arith.truncf %4 : vector<512x512xf32> to vector<512x512xbf16>
    %c0_2 = arith.constant 0 : index
    %c0_3 = arith.constant 0 : index
    %6 = vector.load %arg7[%c0_2, %c0_3] : memref<512x128xf32, #tpu.memory_space<vmem>>, vector<512x128xf32>
    %c0_4 = arith.constant 0 : index
    %c0_5 = arith.constant 0 : index
    %7 = vector.load %arg3[%c0_4, %c0_5] : memref<512x128xbf16, #tpu.memory_space<vmem>>, vector<512x128xbf16>
    %cst = arith.constant dense<0.000000e+00> : vector<512x128xf32>
    %8 = tpu.matmul %5, %7, %cst {dimension_numbers = #tpu.dot_dimension_numbers<[1], [0], [0], [1], [0, 0, 1, 1], [], []>} : vector<512x512xbf16>, vector<512x128xbf16>, vector<512x128xf32> -> vector<512x128xf32>
    %9 = arith.addf %6, %8 : vector<512x128xf32>
    %c0_6 = arith.constant 0 : index
    %c0_7 = arith.constant 0 : index
    %10 = vector.load %arg7[%c0_6, %c0_7] : memref<512x128xf32, #tpu.memory_space<vmem>>, vector<512x128xf32>
    tpu.vector_store %arg7[%c0_6, %c0_7], %9 {strides = array<i32>} : memref<512x128xf32, #tpu.memory_space<vmem>>, vector<512x128xf32>,
    %c1_i32 = arith.constant 1 : i32
    %11 = arith.cmpi eq, %arg1, %c1_i32 : i32
    %12 = arith.extui %11 : i1 to i32
    %c0_i32_8 = arith.constant 0 : i32
    %13 = arith.cmpi ne, %12, %c0_i32_8 : i32
    scf.if %13 {
      %c0_9 = arith.constant 0 : index
      %c0_10 = arith.constant 0 : index
      %14 = vector.load %arg7[%c0_9, %c0_10] : memref<512x128xf32, #tpu.memory_space<vmem>>, vector<512x128xf32>
      %c0_11 = arith.constant 0 : index
      %c0_12 = arith.constant 0 : index
      %15 = vector.load %arg5[%c0_11, %c0_12] : memref<512x1xf32, #tpu.memory_space<vmem>>, vector<512x1xf32>
      %16 = vector.broadcast %15 : vector<512x1xf32> to vector<512x128xf32>
      %17 = arith.mulf %14, %16 : vector<512x128xf32>
      %c0_13 = arith.constant 0 : index
      %c0_14 = arith.constant 0 : index
      %18 = vector.load %arg4[%c0_13, %c0_14] : memref<512x128xf32, #tpu.memory_space<vmem>>, vector<512x128xf32>
      %19 = arith.addf %17, %18 : vector<512x128xf32>
      %cst_15 = arith.constant 0.000000e+00 : f32
      %20 = vector.broadcast %cst_15 : f32 to vector<512x128xf32>
      %21 = arith.maximumf %19, %20 : vector<512x128xf32>
      %22 = arith.truncf %21 : vector<512x128xf32> to vector<512x128xbf16>
      %c0_16 = arith.constant 0 : index
      %c0_17 = arith.constant 0 : index
      %23 = vector.load %arg6[%c0_16, %c0_17] : memref<512x128xbf16, #tpu.memory_space<vmem>>, vector<512x128xbf16>
      tpu.vector_store %arg6[%c0_16, %c0_17], %22 {strides = array<i32>} : memref<512x128xbf16, #tpu.memory_space<vmem>>, vector<512x128xbf16>,
    } else {
    }
    return
  }
  func.func @transform_0(%arg0: i32, %arg1: i32) -> (i32, i32) {
    %c0_i32 = arith.constant 0 : i32
    return %arg0, %arg1 : i32, i32
  }
  func.func @transform_1(%arg0: i32, %arg1: i32) -> (i32, i32) {
    %c0_i32 = arith.constant 0 : i32
    %c0_i32_0 = arith.constant 0 : i32
    return %arg1, %c0_i32 : i32, i32
  }
  func.func @transform_2(%arg0: i32, %arg1: i32) -> (i32, i32) {
    %c0_i32 = arith.constant 0 : i32
    %c0_i32_0 = arith.constant 0 : i32
    return %arg0, %c0_i32 : i32, i32
  }
  func.func @transform_3(%arg0: i32, %arg1: i32) -> (i32, i32) {
    %c0_i32 = arith.constant 0 : i32
    %c0_i32_0 = arith.constant 0 : i32
    return %arg0, %c0_i32 : i32, i32
  }
  func.func @transform_4(%arg0: i32, %arg1: i32) -> (i32, i32) {
    %c0_i32 = arith.constant 0 : i32
    %c0_i32_0 = arith.constant 0 : i32
    return %arg0, %c0_i32 : i32, i32
  }
}

module attributes {stable_mosaic.version = 11 : i64} {
  func.func @_agg_kernel(%arg0: i32, %arg1: i32, %arg2: memref<512x512xi8, #tpu.memory_space<vmem>>, %arg3: memref<512x128xbf16, #tpu.memory_space<vmem>>, %arg4: memref<512x128xf32, #tpu.memory_space<vmem>>, %arg5: memref<512x1xf32, #tpu.memory_space<vmem>>, %arg6: memref<512x128xf32, #tpu.memory_space<vmem>>, %arg7: memref<512x128xf32, #tpu.memory_space<vmem>>) attributes {dimension_semantics = [#tpu.dimension_semantics<parallel>, #tpu.dimension_semantics<arbitrary>], iteration_bounds = array<i64: 2, 2>, scalar_prefetch = 0 : i64, scratch_operands = 1 : i64, tpu.core_type = #tpu.core_type<tc>, window_params = [{transform_indices = @transform_0, window_bounds = array<i64: 512, 512>}, {transform_indices = @transform_1, window_bounds = array<i64: 512, 128>}, {transform_indices = @transform_2, window_bounds = array<i64: 512, 128>}, {transform_indices = @transform_3, window_bounds = array<i64: 512, 1>}, {transform_indices = @transform_4, window_bounds = array<i64: 512, 128>}]} {
    %c0_i32 = arith.constant 0 : i32
    %0 = arith.cmpi eq, %arg1, %c0_i32 : i32
    %1 = arith.extui %0 : i1 to i32
    %c0_i32_0 = arith.constant 0 : i32
    %2 = arith.cmpi ne, %1, %c0_i32_0 : i32
    scf.if %2 {
      %cst_9 = arith.constant 0.000000e+00 : f32
      %14 = vector.broadcast %cst_9 : f32 to vector<512x128xf32>
      %c0_10 = arith.constant 0 : index
      %c0_11 = arith.constant 0 : index
      %15 = vector.load %arg7[%c0_10, %c0_11] : memref<512x128xf32, #tpu.memory_space<vmem>>, vector<512x128xf32>
      tpu.vector_store %arg7[%c0_10, %c0_11], %14 {strides = array<i32>} : memref<512x128xf32, #tpu.memory_space<vmem>>, vector<512x128xf32>,
    } else {
    }
    %c0 = arith.constant 0 : index
    %c0_1 = arith.constant 0 : index
    %3 = vector.load %arg2[%c0, %c0_1] : memref<512x512xi8, #tpu.memory_space<vmem>>, vector<512x512xi8>
    %4 = arith.sitofp %3 : vector<512x512xi8> to vector<512x512xf32>
    %5 = arith.truncf %4 : vector<512x512xf32> to vector<512x512xbf16>
    %c0_2 = arith.constant 0 : index
    %c0_3 = arith.constant 0 : index
    %6 = vector.load %arg7[%c0_2, %c0_3] : memref<512x128xf32, #tpu.memory_space<vmem>>, vector<512x128xf32>
    %c0_4 = arith.constant 0 : index
    %c0_5 = arith.constant 0 : index
    %7 = vector.load %arg3[%c0_4, %c0_5] : memref<512x128xbf16, #tpu.memory_space<vmem>>, vector<512x128xbf16>
    %cst = arith.constant dense<0.000000e+00> : vector<512x128xf32>
    %8 = tpu.matmul %5, %7, %cst {dimension_numbers = #tpu.dot_dimension_numbers<[1], [0], [0], [1], [0, 0, 1, 1], [], []>} : vector<512x512xbf16>, vector<512x128xbf16>, vector<512x128xf32> -> vector<512x128xf32>
    %9 = arith.addf %6, %8 : vector<512x128xf32>
    %c0_6 = arith.constant 0 : index
    %c0_7 = arith.constant 0 : index
    %10 = vector.load %arg7[%c0_6, %c0_7] : memref<512x128xf32, #tpu.memory_space<vmem>>, vector<512x128xf32>
    tpu.vector_store %arg7[%c0_6, %c0_7], %9 {strides = array<i32>} : memref<512x128xf32, #tpu.memory_space<vmem>>, vector<512x128xf32>,
    %c1_i32 = arith.constant 1 : i32
    %11 = arith.cmpi eq, %arg1, %c1_i32 : i32
    %12 = arith.extui %11 : i1 to i32
    %c0_i32_8 = arith.constant 0 : i32
    %13 = arith.cmpi ne, %12, %c0_i32_8 : i32
    scf.if %13 {
      %c0_9 = arith.constant 0 : index
      %c0_10 = arith.constant 0 : index
      %14 = vector.load %arg7[%c0_9, %c0_10] : memref<512x128xf32, #tpu.memory_space<vmem>>, vector<512x128xf32>
      %c0_11 = arith.constant 0 : index
      %c0_12 = arith.constant 0 : index
      %15 = vector.load %arg5[%c0_11, %c0_12] : memref<512x1xf32, #tpu.memory_space<vmem>>, vector<512x1xf32>
      %16 = vector.broadcast %15 : vector<512x1xf32> to vector<512x128xf32>
      %17 = arith.mulf %14, %16 : vector<512x128xf32>
      %c0_13 = arith.constant 0 : index
      %c0_14 = arith.constant 0 : index
      %18 = vector.load %arg4[%c0_13, %c0_14] : memref<512x128xf32, #tpu.memory_space<vmem>>, vector<512x128xf32>
      %19 = arith.addf %17, %18 : vector<512x128xf32>
      %c0_15 = arith.constant 0 : index
      %c0_16 = arith.constant 0 : index
      %20 = vector.load %arg6[%c0_15, %c0_16] : memref<512x128xf32, #tpu.memory_space<vmem>>, vector<512x128xf32>
      tpu.vector_store %arg6[%c0_15, %c0_16], %19 {strides = array<i32>} : memref<512x128xf32, #tpu.memory_space<vmem>>, vector<512x128xf32>,
    } else {
    }
    return
  }
  func.func @transform_0(%arg0: i32, %arg1: i32) -> (i32, i32) {
    %c0_i32 = arith.constant 0 : i32
    return %arg0, %arg1 : i32, i32
  }
  func.func @transform_1(%arg0: i32, %arg1: i32) -> (i32, i32) {
    %c0_i32 = arith.constant 0 : i32
    %c0_i32_0 = arith.constant 0 : i32
    return %arg1, %c0_i32 : i32, i32
  }
  func.func @transform_2(%arg0: i32, %arg1: i32) -> (i32, i32) {
    %c0_i32 = arith.constant 0 : i32
    %c0_i32_0 = arith.constant 0 : i32
    return %arg0, %c0_i32 : i32, i32
  }
  func.func @transform_3(%arg0: i32, %arg1: i32) -> (i32, i32) {
    %c0_i32 = arith.constant 0 : i32
    %c0_i32_0 = arith.constant 0 : i32
    return %arg0, %c0_i32 : i32, i32
  }
  func.func @transform_4(%arg0: i32, %arg1: i32) -> (i32, i32) {
    %c0_i32 = arith.constant 0 : i32
    %c0_i32_0 = arith.constant 0 : i32
    return %arg0, %c0_i32 : i32, i32
  }
}

module attributes {stable_mosaic.version = 11 : i64} {
  func.func @_edge_dot_kernel(%arg0: i32, %arg1: memref<8x64x128xf32, #tpu.memory_space<vmem>>, %arg2: memref<8x64x128xf32, #tpu.memory_space<vmem>>, %arg3: memref<64x128xf32, #tpu.memory_space<vmem>>) attributes {dimension_semantics = [#tpu.dimension_semantics<parallel>], iteration_bounds = array<i64: 1>, scalar_prefetch = 0 : i64, scratch_operands = 0 : i64, tpu.core_type = #tpu.core_type<tc>, window_params = [{transform_indices = @transform_0, window_bounds = array<i64: 8, 64, 128>}, {transform_indices = @transform_1, window_bounds = array<i64: 8, 64, 128>}, {transform_indices = @transform_2, window_bounds = array<i64: 64, 128>}]} {
    %c0 = arith.constant 0 : index
    %c0_0 = arith.constant 0 : index
    %c0_1 = arith.constant 0 : index
    %0 = vector.load %arg1[%c0, %c0_0, %c0_1] : memref<8x64x128xf32, #tpu.memory_space<vmem>>, vector<8x64x128xf32>
    %c0_2 = arith.constant 0 : index
    %c0_3 = arith.constant 0 : index
    %c0_4 = arith.constant 0 : index
    %1 = vector.load %arg2[%c0_2, %c0_3, %c0_4] : memref<8x64x128xf32, #tpu.memory_space<vmem>>, vector<8x64x128xf32>
    %2 = arith.mulf %0, %1 : vector<8x64x128xf32>
    %cst = arith.constant dense<0.000000e+00> : vector<64x128xf32>
    %3 = vector.multi_reduction <add>, %2, %cst [0] : vector<8x64x128xf32> to vector<64x128xf32>
    %c0_5 = arith.constant 0 : index
    %c0_6 = arith.constant 0 : index
    %4 = vector.load %arg3[%c0_5, %c0_6] : memref<64x128xf32, #tpu.memory_space<vmem>>, vector<64x128xf32>
    tpu.vector_store %arg3[%c0_5, %c0_6], %3 {strides = array<i32>} : memref<64x128xf32, #tpu.memory_space<vmem>>, vector<64x128xf32>,
    return
  }
  func.func @transform_0(%arg0: i32) -> (i32, i32, i32) {
    %c0_i32 = arith.constant 0 : i32
    %c0_i32_0 = arith.constant 0 : i32
    %c0_i32_1 = arith.constant 0 : i32
    return %c0_i32, %arg0, %c0_i32_0 : i32, i32, i32
  }
  func.func @transform_1(%arg0: i32) -> (i32, i32, i32) {
    %c0_i32 = arith.constant 0 : i32
    %c0_i32_0 = arith.constant 0 : i32
    %c0_i32_1 = arith.constant 0 : i32
    return %c0_i32, %arg0, %c0_i32_0 : i32, i32, i32
  }
  func.func @transform_2(%arg0: i32) -> (i32, i32) {
    %c0_i32 = arith.constant 0 : i32
    %c0_i32_0 = arith.constant 0 : i32
    return %arg0, %c0_i32 : i32, i32
  }
}

</mosaic_0001>

<llo_original>
// kernel: sage_e_net_forward.5
$region0: #{sage_e_net_forward.5}
  #allocation0 [shape = 'u32[]', space=smem, size = 0x4, offset = 0x4, fixed_abs, tag = 'smem constant byte address 0x4 - core index']
  #allocation1 [shape = 'u32[72,128]{1,0:T(1,128)}', space=vmem, size = 0x9000, scoped, tag = 'internal scratch']
  %s0 = inlined_call_operand.vmem [shape: bf16[1024,128], index: 0, kind: input, shape index: {}]
  %s1 = inlined_call_operand.vmem [shape: bf16[128,128], index: 1, kind: input, shape index: {}]
  %s2 = inlined_call_operand.vmem [shape: bf16[128,128], index: 2, kind: input, shape index: {}]
  %s3 = inlined_call_operand.vmem [shape: f32[1,128], index: 3, kind: input, shape index: {}]
  %s4 = inlined_call_operand.vmem [shape: f32[1024,128], index: 4, kind: output, shape index: {0}]
  %s5 = inlined_call_operand.vmem [shape: bf16[1024,128], index: 5, kind: output, shape index: {1}]
  %6 = xla_tuple %s4, %s5
  %s7 = sld [smem:[#allocation0]]
  $region57: #{sage_e_net_forward.5} parent=0
    _
  %s9 = ssub.s32 1, %s7
  %s10 = scalar_select 0, %s9, %s7
  loop: start=0, step=1, limit=4
  $region2: #{sage_e_net_forward.5} parent=0 // loop_pre_header
    _
  $region3: #{sage_e_net_forward.5} parent=0 // loop_header
    %s12 = sphi 0, %s16
    %p13 = scmp.ge.s32.totalorder %s12, 4
    %s22 = sphi 0, %s24
    %s25 = sphi 0, %s22
    %s26 = sphi 0, %s25
    %s42 = sphi 0, %s26
    %s46 = sphi 0, %s46
    %s48 = sphi 0, %s46
    %s49 = sphi 0, %s48
    %s63 = sphi 0, %s49
    %s67 = sphi 0, %s67
    %s69 = sphi 0, %s67
    %s70 = sphi 0, %s69
    %s84 = sphi 0, %s70
    %s88 = sphi 0, %s88
    %s90 = sphi 0, %s88
    %s91 = sphi 0, %s90
    %s105 = sphi 0, %s91
    %s111 = sphi 0, %s113
    %s114 = sphi 0, %s111
    %s115 = sphi 0, %s114
    %s131 = sphi 0, %s115
    %s137 = sphi 0, %s139
    %s140 = sphi 0, %s137
    %s141 = sphi 0, %s140
    %s157 = sphi 0, %s141
  $region4: #{sage_e_net_forward.5} parent=0 // loop_header_branch
    %15 = sbr.rel (%p13) target = $region8
  $region5: #{sage_e_net_forward.5} parent=0 // loop_body
    %s17 = ssub.s32 %s12, 1
    %s18 = ssub.s32 %s12, 2
    %s19 = sadd.s32 %s12, 1
    %s20 = ssub.s32 %s12, %s19
    %p21 = scmp.eq.s32.totalorder %s20, 0
    %s23 = sadd.s32 %s22, 1
    %s24 = scalar_select %p21, %s22, %s23
    %p27 = pneg %p21
    %p28 = scmp.eq.s32.totalorder %s12, 1
    %p29 = por %p27, %p28
    %p30 = scmp.ne.s32.totalorder %s22, %s25
    %p31 = scmp.eq.s32.totalorder %s12, 0
    %p32 = por %p30, %p31
    %p33 = scmp.ne.s32.totalorder %s22, %s25
    %p34 = scmp.eq.s32.totalorder %s17, 1
    %p35 = por %p33, %p34
    %p36 = scmp.ne.s32.totalorder %s25, %s26
    %p37 = scmp.eq.s32.totalorder %s17, 0
    %p38 = por %p36, %p37
    %p39 = scmp.ne.s32.totalorder %s25, %s26
    %p40 = scmp.eq.s32.totalorder %s18, 1
    %p41 = por %p39, %p40
    %p43 = scmp.ne.s32.totalorder %s26, %s42
    %p44 = scmp.eq.s32.totalorder %s18, 0
    %p45 = por %p43, %p44
    %s47 = sadd.s32 %s46, 1
    %p50 = scmp.eq.s32.totalorder %s12, 1
    %p51 = scmp.ne.s32.totalorder %s46, %s48
    %p52 = scmp.eq.s32.totalorder %s12, 0
    %p53 = por %p51, %p52
    %p54 = scmp.ne.s32.totalorder %s46, %s48
    %p55 = scmp.eq.s32.totalorder %s17, 1
    %p56 = por %p54, %p55
    %p57 = scmp.ne.s32.totalorder %s48, %s49
    %p58 = scmp.eq.s32.totalorder %s17, 0
    %p59 = por %p57, %p58
    %p60 = scmp.ne.s32.totalorder %s48, %s49
    %p61 = scmp.eq.s32.totalorder %s18, 1
    %p62 = por %p60, %p61
    %p64 = scmp.ne.s32.totalorder %s49, %s63
    %p65 = scmp.eq.s32.totalorder %s18, 0
    %p66 = por %p64, %p65
    %s68 = sadd.s32 %s67, 1
    %p71 = scmp.eq.s32.totalorder %s12, 1
    %p72 = scmp.ne.s32.totalorder %s67, %s69
    %p73 = scmp.eq.s32.totalorder %s12, 0
    %p74 = por %p72, %p73
    %p75 = scmp.ne.s32.totalorder %s67, %s69
    %p76 = scmp.eq.s32.totalorder %s17, 1
    %p77 = por %p75, %p76
    %p78 = scmp.ne.s32.totalorder %s69, %s70
    %p79 = scmp.eq.s32.totalorder %s17, 0
    %p80 = por %p78, %p79
    %p81 = scmp.ne.s32.totalorder %s69, %s70
    %p82 = scmp.eq.s32.totalorder %s18, 1
    %p83 = por %p81, %p82
    %p85 = scmp.ne.s32.totalorder %s70, %s84
    %p86 = scmp.eq.s32.totalorder %s18, 0
    %p87 = por %p85, %p86
    %s89 = sadd.s32 %s88, 1
    %p92 = scmp.eq.s32.totalorder %s12, 1
    %p93 = scmp.ne.s32.totalorder %s88, %s90
    %p94 = scmp.eq.s32.totalorder %s12, 0
    %p95 = por %p93, %p94
    %p96 = scmp.ne.s32.totalorder %s88, %s90
    %p97 = scmp.eq.s32.totalorder %s17, 1
    %p98 = por %p96, %p97
    %p99 = scmp.ne.s32.totalorder %s90, %s91
    %p100 = scmp.eq.s32.totalorder %s17, 0
    %p101 = por %p99, %p100
    %p102 = scmp.ne.s32.totalorder %s90, %s91
    %p103 = scmp.eq.s32.totalorder %s18, 1
    %p104 = por %p102, %p103
    %p106 = scmp.ne.s32.totalorder %s91, %s105
    %p107 = scmp.eq.s32.totalorder %s18, 0
    %p108 = por %p106, %p107
    %s109 = ssub.s32 %s12, %s19
    %p110 = scmp.eq.s32.totalorder %s109, 0
    %s112 = sadd.s32 %s111, 1
    %s113 = scalar_select %p110, %s111, %s112
    %p116 = pneg %p110
    %p117 = scmp.eq.s32.totalorder %s12, 1
    %p118 = por %p116, %p117
    %p119 = scmp.ne.s32.totalorder %s111, %s114
    %p120 = scmp.eq.s32.totalorder %s12, 0
    %p121 = por %p119, %p120
    %p122 = scmp.ne.s32.totalorder %s111, %s114
    %p123 = scmp.eq.s32.totalorder %s17, 1
    %p124 = por %p122, %p123
    %p125 = scmp.ne.s32.totalorder %s114, %s115
    %p126 = scmp.eq.s32.totalorder %s17, 0
    %p127 = por %p125, %p126
    %p128 = scmp.ne.s32.totalorder %s114, %s115
    %p129 = scmp.eq.s32.totalorder %s18, 1
    %p130 = por %p128, %p129
    %p132 = scmp.ne.s32.totalorder %s115, %s131
    %p133 = scmp.eq.s32.totalorder %s18, 0
    %p134 = por %p132, %p133
    %s135 = ssub.s32 %s12, %s19
    %p136 = scmp.eq.s32.totalorder %s135, 0
    %s138 = sadd.s32 %s137, 1
    %s139 = scalar_select %p136, %s137, %s138
    %p142 = pneg %p136
    %p143 = scmp.eq.s32.totalorder %s12, 1
    %p144 = por %p142, %p143
    %p145 = scmp.ne.s32.totalorder %s137, %s140
    %p146 = scmp.eq.s32.totalorder %s12, 0
    %p147 = por %p145, %p146
    %p148 = scmp.ne.s32.totalorder %s137, %s140
    %p149 = scmp.eq.s32.totalorder %s17, 1
    %p150 = por %p148, %p149
    %p151 = scmp.ne.s32.totalorder %s140, %s141
    %p152 = scmp.eq.s32.totalorder %s17, 0
    %p153 = por %p151, %p152
    %p154 = scmp.ne.s32.totalorder %s140, %s141
    %p155 = scmp.eq.s32.totalorder %s18, 1
    %p156 = por %p154, %p155
    %p158 = scmp.ne.s32.totalorder %s141, %s157
    %p159 = scmp.eq.s32.totalorder %s18, 0
    %p160 = por %p158, %p159
    %p161 = scmp.le.s32.totalorder 1, %s12
    %p162 = scmp.lt.s32.totalorder %s12, 3
    %p163 = pnand %p161, %p162
    %p164 = pneg %p163
    // Predicated region
    $region9: #{sage_e_net_forward.5} parent=5 // pred_check
      _
    $region10: #{sage_e_net_forward.5} parent=5 // pred_check_branch
      %166 = sbr.rel (%p163) target = $region12
    $region11: #{sage_e_net_forward.5} parent=5 // pred_region
      %s167 = ssub.s32 %s12, 1
      // Predicated region
      $region13: #{sage_e_net_forward.5} parent=11 // pred_check
        %p168 = pneg %p59
      $region14: #{sage_e_net_forward.5} parent=11 // pred_check_branch
        %170 = sbr.rel (%p168) target = $region16
      $region15: #{sage_e_net_forward.5} parent=11 // pred_region
        _
      $region16: #{sage_e_net_forward.5} parent=11 // pred_fallthru
        _
      // Predicated region
      $region17: #{sage_e_net_forward.5} parent=11 // pred_check
        %p171 = pneg %p80
      $region18: #{sage_e_net_forward.5} parent=11 // pred_check_branch
        %173 = sbr.rel (%p171) target = $region20
      $region19: #{sage_e_net_forward.5} parent=11 // pred_region
        _
      $region20: #{sage_e_net_forward.5} parent=11 // pred_fallthru
        _
      // Predicated region
      $region21: #{sage_e_net_forward.5} parent=11 // pred_check
        %p174 = pneg %p101
      $region22: #{sage_e_net_forward.5} parent=11 // pred_check_branch
        %176 = sbr.rel (%p174) target = $region24
      $region23: #{sage_e_net_forward.5} parent=11 // pred_region
        _
      $region24: #{sage_e_net_forward.5} parent=11 // pred_fallthru
        _
    $region12: #{sage_e_net_forward.5} parent=5 // pred_fallthru
      _
    %p177 = scmp.lt.s32.totalorder %s12, 2
    // Predicated region
    $region25: #{sage_e_net_forward.5} parent=5 // pred_check
      %p178 = pneg %p177
    $region26: #{sage_e_net_forward.5} parent=5 // pred_check_branch
      %180 = sbr.rel (%p178) target = $region28
    $region27: #{sage_e_net_forward.5} parent=5 // pred_region
      // Predicated region
      $region29: #{sage_e_net_forward.5} parent=27 // pred_check
        %p181 = pneg %p32
      $region30: #{sage_e_net_forward.5} parent=27 // pred_check_branch
        %183 = sbr.rel (%p181) target = $region32
      $region31: #{sage_e_net_forward.5} parent=27 // pred_region
        %s184 = smul.u32 64, %s12
        %p185 = scmp.lt.s32.totalorder %s184, 127
        %s186 = scalar_select %p185, %s184, 127
        %s187 = smul.addr %s186, 4
        %s188 = scalar_lea.vmem %s0, %s187
        %s189 = smul.u32 64, %s12
      $region32: #{sage_e_net_forward.5} parent=27 // pred_fallthru
        _
    $region28: #{sage_e_net_forward.5} parent=5 // pred_fallthru
      _
    %p190 = scmp.le.s32.totalorder 1, %s12
    %p191 = scmp.lt.s32.totalorder %s12, 3
    %p192 = pnand %p190, %p191
    %p193 = pneg %p192
    // Predicated region
    $region33: #{sage_e_net_forward.5} parent=5 // pred_check
      _
    $region34: #{sage_e_net_forward.5} parent=5 // pred_check_branch
      %195 = sbr.rel (%p192) target = $region36
    $region35: #{sage_e_net_forward.5} parent=5 // pred_region
      %s196 = ssub.s32 %s12, 1
      %s197 = smul.u32 64, %s17
      %p198 = scmp.lt.s32.totalorder %s197, 127
      %s199 = scalar_select %p198, %s197, 127
      %s200 = smul.addr %s199, 4
      %s201 = scalar_lea.vmem %s0, %s200
      %p202 = pneg %p38
      %p203 = pneg %p35
      %p204 = pneg %p59
      %p205 = pneg %p56
      %p206 = pneg %p80
      %p207 = pneg %p77
      %p208 = pneg %p101
      %p209 = pneg %p98
      %p210 = pneg %p127
      %p211 = pneg %p124
      %s212 = smul.u32 64, %s17
      %p213 = scmp.lt.s32.totalorder %s212, 127
      %s214 = scalar_select %p213, %s212, 127
      %s215 = smul.addr %s214, 8
      %s216 = scalar_lea.vmem %s4, %s215
      %p217 = pneg %p153
      %p218 = pneg %p150
      %s219 = smul.u32 64, %s17
      %p220 = scmp.lt.s32.totalorder %s219, 127
      %s221 = scalar_select %p220, %s219, 127
      %s222 = smul.addr %s221, 4
      %s223 = scalar_lea.vmem %s5, %s222
      %s224 = smul.u32 64, %s17
      %p225 = scmp.lt.s32.totalorder %s224, 127
      %s226 = scalar_select %p225, %s224, 127
      %s227 = smul.addr %s226, 4
      %s228 = scalar_lea.vmem %s0, %s227
      %s229 = smul.u32 64, %s17
      %s230 = smul.u32 64, %s17
      %p231 = scmp.lt.s32.totalorder %s230, 127
      %s232 = scalar_select %p231, %s230, 127
      %s233 = smul.addr %s232, 8
      %s234 = scalar_lea.vmem %s4, %s233
      %s235 = smul.u32 64, %s17
      %s236 = smul.u32 64, %s17
      %p237 = scmp.lt.s32.totalorder %s236, 127
      %s238 = scalar_select %p237, %s236, 127
      %s239 = smul.addr %s238, 4
      %s240 = scalar_lea.vmem %s5, %s239
      %s241 = smul.u32 64, %s17
      %v242 = vld [vmem:[%s228] sm:$0xf]
      %v243 = vld [vmem:[%s228 + $0x4] sm:$0xf]
      %v244 = vld [vmem:[%s228 + $0x8] sm:$0xf]
      %v245 = vld [vmem:[%s228 + $0xc] sm:$0xf]
      %v246 = vld [vmem:[%s228 + $0x10] sm:$0xf]
      %v247 = vld [vmem:[%s228 + $0x14] sm:$0xf]
      %v248 = vld [vmem:[%s228 + $0x18] sm:$0xf]
      %v249 = vld [vmem:[%s228 + $0x1c] sm:$0xf]
      %v250 = vld [vmem:[%s228 + $0x20] sm:$0xf]
      %v251 = vld [vmem:[%s228 + $0x24] sm:$0xf]
      %v252 = vld [vmem:[%s228 + $0x28] sm:$0xf]
      %v253 = vld [vmem:[%s228 + $0x2c] sm:$0xf]
      %v254 = vld [vmem:[%s228 + $0x30] sm:$0xf]
      %v255 = vld [vmem:[%s228 + $0x34] sm:$0xf]
      %v256 = vld [vmem:[%s228 + $0x38] sm:$0xf]
      %v257 = vld [vmem:[%s228 + $0x3c] sm:$0xf]
      %v258 = vld [vmem:[%s228 + $0x40] sm:$0xf]
      %v259 = vld [vmem:[%s228 + $0x44] sm:$0xf]
      %v260 = vld [vmem:[%s228 + $0x48] sm:$0xf]
      %v261 = vld [vmem:[%s228 + $0x4c] sm:$0xf]
      %v262 = vld [vmem:[%s228 + $0x50] sm:$0xf]
      %v263 = vld [vmem:[%s228 + $0x54] sm:$0xf]
      %v264 = vld [vmem:[%s228 + $0x58] sm:$0xf]
      %v265 = vld [vmem:[%s228 + $0x5c] sm:$0xf]
      %v266 = vld [vmem:[%s228 + $0x60] sm:$0xf]
      %v267 = vld [vmem:[%s228 + $0x64] sm:$0xf]
      %v268 = vld [vmem:[%s228 + $0x68] sm:$0xf]
      %v269 = vld [vmem:[%s228 + $0x6c] sm:$0xf]
      %v270 = vld [vmem:[%s228 + $0x70] sm:$0xf]
      %v271 = vld [vmem:[%s228 + $0x74] sm:$0xf]
      %v272 = vld [vmem:[%s228 + $0x78] sm:$0xf]
      %v273 = vld [vmem:[%s228 + $0x7c] sm:$0xf]
      %v274 = vld [vmem:[%s228 + $0x80] sm:$0xf]
      %v275 = vld [vmem:[%s228 + $0x84] sm:$0xf]
      %v276 = vld [vmem:[%s228 + $0x88] sm:$0xf]
      %v277 = vld [vmem:[%s228 + $0x8c] sm:$0xf]
      %v278 = vld [vmem:[%s228 + $0x90] sm:$0xf]
      %v279 = vld [vmem:[%s228 + $0x94] sm:$0xf]
      %v280 = vld [vmem:[%s228 + $0x98] sm:$0xf]
      %v281 = vld [vmem:[%s228 + $0x9c] sm:$0xf]
      %v282 = vld [vmem:[%s228 + $0xa0] sm:$0xf]
      %v283 = vld [vmem:[%s228 + $0xa4] sm:$0xf]
      %v284 = vld [vmem:[%s228 + $0xa8] sm:$0xf]
      %v285 = vld [vmem:[%s228 + $0xac] sm:$0xf]
      %v286 = vld [vmem:[%s228 + $0xb0] sm:$0xf]
      %v287 = vld [vmem:[%s228 + $0xb4] sm:$0xf]
      %v288 = vld [vmem:[%s228 + $0xb8] sm:$0xf]
      %v289 = vld [vmem:[%s228 + $0xbc] sm:$0xf]
      %v290 = vld [vmem:[%s228 + $0xc0] sm:$0xf]
      %v291 = vld [vmem:[%s228 + $0xc4] sm:$0xf]
      %v292 = vld [vmem:[%s228 + $0xc8] sm:$0xf]
      %v293 = vld [vmem:[%s228 + $0xcc] sm:$0xf]
      %v294 = vld [vmem:[%s228 + $0xd0] sm:$0xf]
      %v295 = vld [vmem:[%s228 + $0xd4] sm:$0xf]
      %v296 = vld [vmem:[%s228 + $0xd8] sm:$0xf]
      %v297 = vld [vmem:[%s228 + $0xdc] sm:$0xf]
      %v298 = vld [vmem:[%s228 + $0xe0] sm:$0xf]
      %v299 = vld [vmem:[%s228 + $0xe4] sm:$0xf]
      %v300 = vld [vmem:[%s228 + $0xe8] sm:$0xf]
      %v301 = vld [vmem:[%s228 + $0xec] sm:$0xf]
      %v302 = vld [vmem:[%s228 + $0xf0] sm:$0xf]
      %v303 = vld [vmem:[%s228 + $0xf4] sm:$0xf]
      %v304 = vld [vmem:[%s228 + $0xf8] sm:$0xf]
      %v305 = vld [vmem:[%s228 + $0xfc] sm:$0xf]
      %v306 = vld [vmem:[%s2] sm:$0xf]
      %v307 = vld [vmem:[%s2 + $0x4] sm:$0xf]
      %v308 = vld [vmem:[%s2 + $0x8] sm:$0xf]
      %v309 = vld [vmem:[%s2 + $0xc] sm:$0xf]
      %v310 = vld [vmem:[%s2 + $0x10] sm:$0xf]
      %v311 = vld [vmem:[%s2 + $0x14] sm:$0xf]
      %v312 = vld [vmem:[%s2 + $0x18] sm:$0xf]
      %v313 = vld [vmem:[%s2 + $0x1c] sm:$0xf]
      %v314 = vld [vmem:[%s2 + $0x20] sm:$0xf]
      %v315 = vld [vmem:[%s2 + $0x24] sm:$0xf]
      %v316 = vld [vmem:[%s2 + $0x28] sm:$0xf]
      %v317 = vld [vmem:[%s2 + $0x2c] sm:$0xf]
      %v318 = vld [vmem:[%s2 + $0x30] sm:$0xf]
      %v319 = vld [vmem:[%s2 + $0x34] sm:$0xf]
      %v320 = vld [vmem:[%s2 + $0x38] sm:$0xf]
      %v321 = vld [vmem:[%s2 + $0x3c] sm:$0xf]
      %v386 = vunpack.c.l.b16 %v242
      %v387 = vunpack.c.l.b16 %v243
      %v388 = vunpack.c.l.b16 %v244
      %v389 = vunpack.c.l.b16 %v245
      %v390 = vunpack.c.l.b16 %v246
      %v391 = vunpack.c.l.b16 %v247
      %v392 = vunpack.c.l.b16 %v248
      %v393 = vunpack.c.l.b16 %v249
      %v394 = vunpack.c.l.b16 %v250
      %v395 = vunpack.c.l.b16 %v251
      %v396 = vunpack.c.l.b16 %v252
      %v397 = vunpack.c.l.b16 %v253
      %v398 = vunpack.c.l.b16 %v254
      %v399 = vunpack.c.l.b16 %v255
      %v400 = vunpack.c.l.b16 %v256
      %v401 = vunpack.c.l.b16 %v257
      %v402 = vunpack.c.l.b16 %v258
      %v403 = vunpack.c.l.b16 %v259
      %v404 = vunpack.c.l.b16 %v260
      %v405 = vunpack.c.l.b16 %v261
      %v406 = vunpack.c.l.b16 %v262
      %v407 = vunpack.c.l.b16 %v263
      %v408 = vunpack.c.l.b16 %v264
      %v409 = vunpack.c.l.b16 %v265
      %v410 = vunpack.c.l.b16 %v266
      %v411 = vunpack.c.l.b16 %v267
      %v412 = vunpack.c.l.b16 %v268
      %v413 = vunpack.c.l.b16 %v269
      %v414 = vunpack.c.l.b16 %v270
      %v415 = vunpack.c.l.b16 %v271
      %v416 = vunpack.c.l.b16 %v272
      %v417 = vunpack.c.l.b16 %v273
      %v418 = vunpack.c.l.b16 %v274
      %v419 = vunpack.c.l.b16 %v275
      %v420 = vunpack.c.l.b16 %v276
      %v421 = vunpack.c.l.b16 %v277
      %v422 = vunpack.c.l.b16 %v278
      %v423 = vunpack.c.l.b16 %v279
      %v424 = vunpack.c.l.b16 %v280
      %v425 = vunpack.c.l.b16 %v281
      %v426 = vunpack.c.l.b16 %v282
      %v427 = vunpack.c.l.b16 %v283
      %v428 = vunpack.c.l.b16 %v284
      %v429 = vunpack.c.l.b16 %v285
      %v430 = vunpack.c.l.b16 %v286
      %v431 = vunpack.c.l.b16 %v287
      %v432 = vunpack.c.l.b16 %v288
      %v433 = vunpack.c.l.b16 %v289
      %v434 = vunpack.c.l.b16 %v290
      %v435 = vunpack.c.l.b16 %v291
      %v436 = vunpack.c.l.b16 %v292
      %v437 = vunpack.c.l.b16 %v293
      %v438 = vunpack.c.l.b16 %v294
      %v439 = vunpack.c.l.b16 %v295
      %v440 = vunpack.c.l.b16 %v296
      %v441 = vunpack.c.l.b16 %v297
      %v442 = vunpack.c.l.b16 %v298
      %v443 = vunpack.c.l.b16 %v299
      %v444 = vunpack.c.l.b16 %v300
      %v445 = vunpack.c.l.b16 %v301
      %v446 = vunpack.c.l.b16 %v302
      %v447 = vunpack.c.l.b16 %v303
      %v448 = vunpack.c.l.b16 %v304
      %v449 = vunpack.c.l.b16 %v305
      %v450 = vpack.c.b16 %v387, %v386
      %v451 = vpack.c.b16 %v389, %v388
      %v452 = vpack.c.b16 %v391, %v390
      %v453 = vpack.c.b16 %v393, %v392
      %v454 = vpack.c.b16 %v395, %v394
      %v455 = vpack.c.b16 %v397, %v396
      %v456 = vpack.c.b16 %v399, %v398
      %v457 = vpack.c.b16 %v401, %v400
      %v458 = vpack.c.b16 %v403, %v402
      %v459 = vpack.c.b16 %v405, %v404
      %v460 = vpack.c.b16 %v407, %v406
      %v461 = vpack.c.b16 %v409, %v408
      %v462 = vpack.c.b16 %v411, %v410
      %v463 = vpack.c.b16 %v413, %v412
      %v464 = vpack.c.b16 %v415, %v414
      %v465 = vpack.c.b16 %v417, %v416
      %v466 = vpack.c.b16 %v419, %v418
      %v467 = vpack.c.b16 %v421, %v420
      %v468 = vpack.c.b16 %v423, %v422
      %v469 = vpack.c.b16 %v425, %v424
      %v470 = vpack.c.b16 %v427, %v426
      %v471 = vpack.c.b16 %v429, %v428
      %v472 = vpack.c.b16 %v431, %v430
      %v473 = vpack.c.b16 %v433, %v432
      %v474 = vpack.c.b16 %v435, %v434
      %v475 = vpack.c.b16 %v437, %v436
      %v476 = vpack.c.b16 %v439, %v438
      %v477 = vpack.c.b16 %v441, %v440
      %v478 = vpack.c.b16 %v443, %v442
      %v479 = vpack.c.b16 %v445, %v444
      %v480 = vpack.c.b16 %v447, %v446
      %v481 = vpack.c.b16 %v449, %v448
      %v530 = vunpack.c.l.b16 %v306
      %v531 = vunpack.c.l.b16 %v307
      %v532 = vunpack.c.l.b16 %v308
      %v533 = vunpack.c.l.b16 %v309
      %v534 = vunpack.c.l.b16 %v310
      %v535 = vunpack.c.l.b16 %v311
      %v536 = vunpack.c.l.b16 %v312
      %v537 = vunpack.c.l.b16 %v313
      %v538 = vunpack.c.l.b16 %v314
      %v539 = vunpack.c.l.b16 %v315
      %v540 = vunpack.c.l.b16 %v316
      %v541 = vunpack.c.l.b16 %v317
      %v542 = vunpack.c.l.b16 %v318
      %v543 = vunpack.c.l.b16 %v319
      %v544 = vunpack.c.l.b16 %v320
      %v545 = vunpack.c.l.b16 %v321
      %v546 = vpack.c.b16 %v531, %v530
      %v547 = vpack.c.b16 %v533, %v532
      %v548 = vpack.c.b16 %v535, %v534
      %v549 = vpack.c.b16 %v537, %v536
      %v550 = vpack.c.b16 %v539, %v538
      %v551 = vpack.c.b16 %v541, %v540
      %v552 = vpack.c.b16 %v543, %v542
      %v553 = vpack.c.b16 %v545, %v544
      %562 = vmatpush.bf16.msra.mxu0 %v553
      %563 = vmatpush.bf16.msra.mxu0 %v552
      %564 = vmatpush.bf16.msra.mxu0 %v551
      %565 = vmatpush.bf16.msra.mxu0 %v550
      %566 = vmatpush.bf16.msra.mxu0 %v549
      %567 = vmatpush.bf16.msra.mxu0 %v548
      %568 = vmatpush.bf16.msra.mxu0 %v547
      %569 = vmatpush.bf16.msra.mxu0 %v546
      %570 = vmatmul.bf16.gmra.mxu0 %v450
      %v571 = vpop.f32.mrf.mxu0
      %v572 = vadd.f32 0.0, %v571
      %v573 = vpop.f32.mrf.mxu0
      %v574 = vadd.f32 0.0, %v573
      %575 = vmatmul.bf16.gmra.mxu0 %v451
      %v576 = vpop.f32.mrf.mxu0
      %v577 = vadd.f32 0.0, %v576
      %v578 = vpop.f32.mrf.mxu0
      %v579 = vadd.f32 0.0, %v578
      %580 = vmatmul.bf16.gmra.mxu0 %v452
      %v581 = vpop.f32.mrf.mxu0
      %v582 = vadd.f32 0.0, %v581
      %v583 = vpop.f32.mrf.mxu0
      %v584 = vadd.f32 0.0, %v583
      %585 = vmatmul.bf16.gmra.mxu0 %v453
      %v586 = vpop.f32.mrf.mxu0
      %v587 = vadd.f32 0.0, %v586
      %v588 = vpop.f32.mrf.mxu0
      %v589 = vadd.f32 0.0, %v588
      %590 = vmatmul.bf16.gmra.mxu0 %v454
      %v591 = vpop.f32.mrf.mxu0
      %v592 = vadd.f32 0.0, %v591
      %v593 = vpop.f32.mrf.mxu0
      %v594 = vadd.f32 0.0, %v593
      %595 = vmatmul.bf16.gmra.mxu0 %v455
      %v596 = vpop.f32.mrf.mxu0
      %v597 = vadd.f32 0.0, %v596
      %v598 = vpop.f32.mrf.mxu0
      %v599 = vadd.f32 0.0, %v598
      %600 = vmatmul.bf16.gmra.mxu0 %v456
      %v601 = vpop.f32.mrf.mxu0
      %v602 = vadd.f32 0.0, %v601
      %v603 = vpop.f32.mrf.mxu0
      %v604 = vadd.f32 0.0, %v603
      %605 = vmatmul.bf16.gmra.mxu0 %v457
      %v606 = vpop.f32.mrf.mxu0
      %v607 = vadd.f32 0.0, %v606
      %v608 = vpop.f32.mrf.mxu0
      %v609 = vadd.f32 0.0, %v608
      %610 = vmatmul.bf16.gmra.mxu0 %v458
      %v611 = vpop.f32.mrf.mxu0
      %v612 = vadd.f32 0.0, %v611
      %v613 = vpop.f32.mrf.mxu0
      %v614 = vadd.f32 0.0, %v613
      %615 = vmatmul.bf16.gmra.mxu0 %v459
      %v616 = vpop.f32.mrf.mxu0
      %v617 = vadd.f32 0.0, %v616
      %v618 = vpop.f32.mrf.mxu0
      %v619 = vadd.f32 0.0, %v618
      %620 = vmatmul.bf16.gmra.mxu0 %v460
      %v621 = vpop.f32.mrf.mxu0
      %v622 = vadd.f32 0.0, %v621
      %v623 = vpop.f32.mrf.mxu0
      %v624 = vadd.f32 0.0, %v623
      %625 = vmatmul.bf16.gmra.mxu0 %v461
      %v626 = vpop.f32.mrf.mxu0
      %v627 = vadd.f32 0.0, %v626
      %v628 = vpop.f32.mrf.mxu0
      %v629 = vadd.f32 0.0, %v628
      %630 = vmatmul.bf16.gmra.mxu0 %v462
      %v631 = vpop.f32.mrf.mxu0
      %v632 = vadd.f32 0.0, %v631
      %v633 = vpop.f32.mrf.mxu0
      %v634 = vadd.f32 0.0, %v633
      %635 = vmatmul.bf16.gmra.mxu0 %v463
      %v636 = vpop.f32.mrf.mxu0
      %v637 = vadd.f32 0.0, %v636
      %v638 = vpop.f32.mrf.mxu0
      %v639 = vadd.f32 0.0, %v638
      %640 = vmatmul.bf16.gmra.mxu0 %v464
      %v641 = vpop.f32.mrf.mxu0
      %v642 = vadd.f32 0.0, %v641
      %v643 = vpop.f32.mrf.mxu0
      %v644 = vadd.f32 0.0, %v643
      %645 = vmatmul.bf16.gmra.mxu0 %v465
      %v646 = vpop.f32.mrf.mxu0
      %v647 = vadd.f32 0.0, %v646
      %v648 = vpop.f32.mrf.mxu0
      %v649 = vadd.f32 0.0, %v648
      %650 = vmatmul.bf16.gmra.mxu0 %v466
      %v651 = vpop.f32.mrf.mxu0
      %v652 = vadd.f32 0.0, %v651
      %v653 = vpop.f32.mrf.mxu0
      %v654 = vadd.f32 0.0, %v653
      %655 = vmatmul.bf16.gmra.mxu0 %v467
      %v656 = vpop.f32.mrf.mxu0
      %v657 = vadd.f32 0.0, %v656
      %v658 = vpop.f32.mrf.mxu0
      %v659 = vadd.f32 0.0, %v658
      %660 = vmatmul.bf16.gmra.mxu0 %v468
      %v661 = vpop.f32.mrf.mxu0
      %v662 = vadd.f32 0.0, %v661
      %v663 = vpop.f32.mrf.mxu0
      %v664 = vadd.f32 0.0, %v663
      %665 = vmatmul.bf16.gmra.mxu0 %v469
      %v666 = vpop.f32.mrf.mxu0
      %v667 = vadd.f32 0.0, %v666
      %v668 = vpop.f32.mrf.mxu0
      %v669 = vadd.f32 0.0, %v668
      %670 = vmatmul.bf16.gmra.mxu0 %v470
      %v671 = vpop.f32.mrf.mxu0
      %v672 = vadd.f32 0.0, %v671
      %v673 = vpop.f32.mrf.mxu0
      %v674 = vadd.f32 0.0, %v673
      %675 = vmatmul.bf16.gmra.mxu0 %v471
      %v676 = vpop.f32.mrf.mxu0
      %v677 = vadd.f32 0.0, %v676
      %v678 = vpop.f32.mrf.mxu0
      %v679 = vadd.f32 0.0, %v678
      %680 = vmatmul.bf16.gmra.mxu0 %v472
      %v681 = vpop.f32.mrf.mxu0
      %v682 = vadd.f32 0.0, %v681
      %v683 = vpop.f32.mrf.mxu0
      %v684 = vadd.f32 0.0, %v683
      %685 = vmatmul.bf16.gmra.mxu0 %v473
      %v686 = vpop.f32.mrf.mxu0
      %v687 = vadd.f32 0.0, %v686
      %v688 = vpop.f32.mrf.mxu0
      %v689 = vadd.f32 0.0, %v688
      %690 = vmatmul.bf16.gmra.mxu0 %v474
      %v691 = vpop.f32.mrf.mxu0
      %v692 = vadd.f32 0.0, %v691
      %v693 = vpop.f32.mrf.mxu0
      %v694 = vadd.f32 0.0, %v693
      %695 = vmatmul.bf16.gmra.mxu0 %v475
      %v696 = vpop.f32.mrf.mxu0
      %v697 = vadd.f32 0.0, %v696
      %v698 = vpop.f32.mrf.mxu0
      %v699 = vadd.f32 0.0, %v698
      %700 = vmatmul.bf16.gmra.mxu0 %v476
      %v701 = vpop.f32.mrf.mxu0
      %v702 = vadd.f32 0.0, %v701
      %v703 = vpop.f32.mrf.mxu0
      %v704 = vadd.f32 0.0, %v703
      %705 = vmatmul.bf16.gmra.mxu0 %v477
      %v706 = vpop.f32.mrf.mxu0
      %v707 = vadd.f32 0.0, %v706
      %v708 = vpop.f32.mrf.mxu0
      %v709 = vadd.f32 0.0, %v708
      %710 = vmatmul.bf16.gmra.mxu0 %v478
      %v711 = vpop.f32.mrf.mxu0
      %v712 = vadd.f32 0.0, %v711
      %v713 = vpop.f32.mrf.mxu0
      %v714 = vadd.f32 0.0, %v713
      %715 = vmatmul.bf16.gmra.mxu0 %v479
      %v716 = vpop.f32.mrf.mxu0
      %v717 = vadd.f32 0.0, %v716
      %v718 = vpop.f32.mrf.mxu0
      %v719 = vadd.f32 0.0, %v718
      %720 = vmatmul.bf16.gmra.mxu0 %v480
      %v721 = vpop.f32.mrf.mxu0
      %v722 = vadd.f32 0.0, %v721
      %v723 = vpop.f32.mrf.mxu0
      %v724 = vadd.f32 0.0, %v723
      %725 = vmatmul.bf16.gmra.mxu0 %v481
      %v726 = vpop.f32.mrf.mxu0
      %v727 = vadd.f32 0.0, %v726
      %v728 = vpop.f32.mrf.mxu0
      %v729 = vadd.f32 0.0, %v728
      %730 = vdwg.mxu0
      %v731 = vld [vmem:[%s1] sm:$0xf]
      %v732 = vld [vmem:[%s1 + $0x4] sm:$0xf]
      %v733 = vld [vmem:[%s1 + $0x8] sm:$0xf]
      %v734 = vld [vmem:[%s1 + $0xc] sm:$0xf]
      %v735 = vld [vmem:[%s1 + $0x10] sm:$0xf]
      %v736 = vld [vmem:[%s1 + $0x14] sm:$0xf]
      %v737 = vld [vmem:[%s1 + $0x18] sm:$0xf]
      %v738 = vld [vmem:[%s1 + $0x1c] sm:$0xf]
      %v739 = vld [vmem:[%s1 + $0x20] sm:$0xf]
      %v740 = vld [vmem:[%s1 + $0x24] sm:$0xf]
      %v741 = vld [vmem:[%s1 + $0x28] sm:$0xf]
      %v742 = vld [vmem:[%s1 + $0x2c] sm:$0xf]
      %v743 = vld [vmem:[%s1 + $0x30] sm:$0xf]
      %v744 = vld [vmem:[%s1 + $0x34] sm:$0xf]
      %v745 = vld [vmem:[%s1 + $0x38] sm:$0xf]
      %v746 = vld [vmem:[%s1 + $0x3c] sm:$0xf]
      %v747 = vld [vmem:[%s3] sm:$0x1]
      %v749 = vperm.slane %v747, 0
      %v767 = vunpack.c.l.b16 %v731
      %v768 = vunpack.c.l.b16 %v732
      %v769 = vunpack.c.l.b16 %v733
      %v770 = vunpack.c.l.b16 %v734
      %v771 = vunpack.c.l.b16 %v735
      %v772 = vunpack.c.l.b16 %v736
      %v773 = vunpack.c.l.b16 %v737
      %v774 = vunpack.c.l.b16 %v738
      %v775 = vunpack.c.l.b16 %v739
      %v776 = vunpack.c.l.b16 %v740
      %v777 = vunpack.c.l.b16 %v741
      %v778 = vunpack.c.l.b16 %v742
      %v779 = vunpack.c.l.b16 %v743
      %v780 = vunpack.c.l.b16 %v744
      %v781 = vunpack.c.l.b16 %v745
      %v782 = vunpack.c.l.b16 %v746
      %v783 = vpack.c.b16 %v768, %v767
      %v784 = vpack.c.b16 %v770, %v769
      %v785 = vpack.c.b16 %v772, %v771
      %v786 = vpack.c.b16 %v774, %v773
      %v787 = vpack.c.b16 %v776, %v775
      %v788 = vpack.c.b16 %v778, %v777
      %v789 = vpack.c.b16 %v780, %v779
      %v790 = vpack.c.b16 %v782, %v781
      %799 = vmatpush.bf16.msra.mxu0 %v790
      %800 = vmatpush.bf16.msra.mxu0 %v789
      %801 = vmatpush.bf16.msra.mxu0 %v788
      %802 = vmatpush.bf16.msra.mxu0 %v787
      %803 = vmatpush.bf16.msra.mxu0 %v786
      %804 = vmatpush.bf16.msra.mxu0 %v785
      %805 = vmatpush.bf16.msra.mxu0 %v784
      %806 = vmatpush.bf16.msra.mxu0 %v783
      %807 = vmatmul.bf16.gmra.mxu0 %v450
      %v808 = vpop.f32.mrf.mxu0
      %v809 = vadd.f32 %v749, %v808
      %v810 = vpop.f32.mrf.mxu0
      %v811 = vadd.f32 %v749, %v810
      %812 = vmatmul.bf16.gmra.mxu0 %v451
      %v813 = vpop.f32.mrf.mxu0
      %v814 = vadd.f32 %v749, %v813
      %v815 = vpop.f32.mrf.mxu0
      %v816 = vadd.f32 %v749, %v815
      %817 = vmatmul.bf16.gmra.mxu0 %v452
      %v818 = vpop.f32.mrf.mxu0
      %v819 = vadd.f32 %v749, %v818
      %v820 = vpop.f32.mrf.mxu0
      %v821 = vadd.f32 %v749, %v820
      %822 = vmatmul.bf16.gmra.mxu0 %v453
      %v823 = vpop.f32.mrf.mxu0
      %v824 = vadd.f32 %v749, %v823
      %v825 = vpop.f32.mrf.mxu0
      %v826 = vadd.f32 %v749, %v825
      %827 = vmatmul.bf16.gmra.mxu0 %v454
      %v828 = vpop.f32.mrf.mxu0
      %v829 = vadd.f32 %v749, %v828
      %v830 = vpop.f32.mrf.mxu0
      %v831 = vadd.f32 %v749, %v830
      %832 = vmatmul.bf16.gmra.mxu0 %v455
      %v833 = vpop.f32.mrf.mxu0
      %v834 = vadd.f32 %v749, %v833
      %v835 = vpop.f32.mrf.mxu0
      %v836 = vadd.f32 %v749, %v835
      %837 = vmatmul.bf16.gmra.mxu0 %v456
      %v838 = vpop.f32.mrf.mxu0
      %v839 = vadd.f32 %v749, %v838
      %v840 = vpop.f32.mrf.mxu0
      %v841 = vadd.f32 %v749, %v840
      %842 = vmatmul.bf16.gmra.mxu0 %v457
      %v843 = vpop.f32.mrf.mxu0
      %v844 = vadd.f32 %v749, %v843
      %v845 = vpop.f32.mrf.mxu0
      %v846 = vadd.f32 %v749, %v845
      %847 = vmatmul.bf16.gmra.mxu0 %v458
      %v848 = vpop.f32.mrf.mxu0
      %v849 = vadd.f32 %v749, %v848
      %v850 = vpop.f32.mrf.mxu0
      %v851 = vadd.f32 %v749, %v850
      %852 = vmatmul.bf16.gmra.mxu0 %v459
      %v853 = vpop.f32.mrf.mxu0
      %v854 = vadd.f32 %v749, %v853
      %v855 = vpop.f32.mrf.mxu0
      %v856 = vadd.f32 %v749, %v855
      %857 = vmatmul.bf16.gmra.mxu0 %v460
      %v858 = vpop.f32.mrf.mxu0
      %v859 = vadd.f32 %v749, %v858
      %v860 = vpop.f32.mrf.mxu0
      %v861 = vadd.f32 %v749, %v860
      %862 = vmatmul.bf16.gmra.mxu0 %v461
      %v863 = vpop.f32.mrf.mxu0
      %v864 = vadd.f32 %v749, %v863
      %v865 = vpop.f32.mrf.mxu0
      %v866 = vadd.f32 %v749, %v865
      %867 = vmatmul.bf16.gmra.mxu0 %v462
      %v868 = vpop.f32.mrf.mxu0
      %v869 = vadd.f32 %v749, %v868
      %v870 = vpop.f32.mrf.mxu0
      %v871 = vadd.f32 %v749, %v870
      %872 = vmatmul.bf16.gmra.mxu0 %v463
      %v873 = vpop.f32.mrf.mxu0
      %v874 = vadd.f32 %v749, %v873
      %v875 = vpop.f32.mrf.mxu0
      %v876 = vadd.f32 %v749, %v875
      %877 = vmatmul.bf16.gmra.mxu0 %v464
      %v878 = vpop.f32.mrf.mxu0
      %v879 = vadd.f32 %v749, %v878
      %v880 = vpop.f32.mrf.mxu0
      %v881 = vadd.f32 %v749, %v880
      %882 = vmatmul.bf16.gmra.mxu0 %v465
      %v883 = vpop.f32.mrf.mxu0
      %v884 = vadd.f32 %v749, %v883
      %v885 = vpop.f32.mrf.mxu0
      %v886 = vadd.f32 %v749, %v885
      %887 = vmatmul.bf16.gmra.mxu0 %v466
      %v888 = vpop.f32.mrf.mxu0
      %v889 = vadd.f32 %v749, %v888
      %v890 = vpop.f32.mrf.mxu0
      %v891 = vadd.f32 %v749, %v890
      %892 = vmatmul.bf16.gmra.mxu0 %v467
      %v893 = vpop.f32.mrf.mxu0
      %v894 = vadd.f32 %v749, %v893
      %v895 = vpop.f32.mrf.mxu0
      %v896 = vadd.f32 %v749, %v895
      %897 = vmatmul.bf16.gmra.mxu0 %v468
      %v898 = vpop.f32.mrf.mxu0
      %v899 = vadd.f32 %v749, %v898
      %v900 = vpop.f32.mrf.mxu0
      %v901 = vadd.f32 %v749, %v900
      %902 = vmatmul.bf16.gmra.mxu0 %v469
      %v903 = vpop.f32.mrf.mxu0
      %v904 = vadd.f32 %v749, %v903
      %v905 = vpop.f32.mrf.mxu0
      %v906 = vadd.f32 %v749, %v905
      %907 = vmatmul.bf16.gmra.mxu0 %v470
      %v908 = vpop.f32.mrf.mxu0
      %v909 = vadd.f32 %v749, %v908
      %v910 = vpop.f32.mrf.mxu0
      %v911 = vadd.f32 %v749, %v910
      %912 = vmatmul.bf16.gmra.mxu0 %v471
      %v913 = vpop.f32.mrf.mxu0
      %v914 = vadd.f32 %v749, %v913
      %v915 = vpop.f32.mrf.mxu0
      %v916 = vadd.f32 %v749, %v915
      %917 = vmatmul.bf16.gmra.mxu0 %v472
      %v918 = vpop.f32.mrf.mxu0
      %v919 = vadd.f32 %v749, %v918
      %v920 = vpop.f32.mrf.mxu0
      %v921 = vadd.f32 %v749, %v920
      %922 = vmatmul.bf16.gmra.mxu0 %v473
      %v923 = vpop.f32.mrf.mxu0
      %v924 = vadd.f32 %v749, %v923
      %v925 = vpop.f32.mrf.mxu0
      %v926 = vadd.f32 %v749, %v925
      %927 = vmatmul.bf16.gmra.mxu0 %v474
      %v928 = vpop.f32.mrf.mxu0
      %v929 = vadd.f32 %v749, %v928
      %v930 = vpop.f32.mrf.mxu0
      %v931 = vadd.f32 %v749, %v930
      %932 = vmatmul.bf16.gmra.mxu0 %v475
      %v933 = vpop.f32.mrf.mxu0
      %v934 = vadd.f32 %v749, %v933
      %v935 = vpop.f32.mrf.mxu0
      %v936 = vadd.f32 %v749, %v935
      %937 = vmatmul.bf16.gmra.mxu0 %v476
      %v938 = vpop.f32.mrf.mxu0
      %v939 = vadd.f32 %v749, %v938
      %v940 = vpop.f32.mrf.mxu0
      %v941 = vadd.f32 %v749, %v940
      %942 = vmatmul.bf16.gmra.mxu0 %v477
      %v943 = vpop.f32.mrf.mxu0
      %v944 = vadd.f32 %v749, %v943
      %v945 = vpop.f32.mrf.mxu0
      %v946 = vadd.f32 %v749, %v945
      %947 = vmatmul.bf16.gmra.mxu0 %v478
      %v948 = vpop.f32.mrf.mxu0
      %v949 = vadd.f32 %v749, %v948
      %v950 = vpop.f32.mrf.mxu0
      %v951 = vadd.f32 %v749, %v950
      %952 = vmatmul.bf16.gmra.mxu0 %v479
      %v953 = vpop.f32.mrf.mxu0
      %v954 = vadd.f32 %v749, %v953
      %v955 = vpop.f32.mrf.mxu0
      %v956 = vadd.f32 %v749, %v955
      %957 = vmatmul.bf16.gmra.mxu0 %v480
      %v958 = vpop.f32.mrf.mxu0
      %v959 = vadd.f32 %v749, %v958
      %v960 = vpop.f32.mrf.mxu0
      %v961 = vadd.f32 %v749, %v960
      %962 = vmatmul.bf16.gmra.mxu0 %v481
      %v963 = vpop.f32.mrf.mxu0
      %v964 = vadd.f32 %v749, %v963
      %v965 = vpop.f32.mrf.mxu0
      %v966 = vadd.f32 %v749, %v965
      %967 = vdwg.mxu0
      %v968 = vpack.c.bf16 %v572, %v572
      %v969 = vpack.c.bf16 %v574, %v574
      %v970 = vpack.c.bf16 %v577, %v577
      %v971 = vpack.c.bf16 %v579, %v579
      %v972 = vpack.c.bf16 %v582, %v582
      %v973 = vpack.c.bf16 %v584, %v584
      %v974 = vpack.c.bf16 %v587, %v587
      %v975 = vpack.c.bf16 %v589, %v589
      %v976 = vpack.c.bf16 %v592, %v592
      %v977 = vpack.c.bf16 %v594, %v594
      %v978 = vpack.c.bf16 %v597, %v597
      %v979 = vpack.c.bf16 %v599, %v599
      %v980 = vpack.c.bf16 %v602, %v602
      %v981 = vpack.c.bf16 %v604, %v604
      %v982 = vpack.c.bf16 %v607, %v607
      %v983 = vpack.c.bf16 %v609, %v609
      %v984 = vpack.c.bf16 %v612, %v612
      %v985 = vpack.c.bf16 %v614, %v614
      %v986 = vpack.c.bf16 %v617, %v617
      %v987 = vpack.c.bf16 %v619, %v619
      %v988 = vpack.c.bf16 %v622, %v622
      %v989 = vpack.c.bf16 %v624, %v624
      %v990 = vpack.c.bf16 %v627, %v627
      %v991 = vpack.c.bf16 %v629, %v629
      %v992 = vpack.c.bf16 %v632, %v632
      %v993 = vpack.c.bf16 %v634, %v634
      %v994 = vpack.c.bf16 %v637, %v637
      %v995 = vpack.c.bf16 %v639, %v639
      %v996 = vpack.c.bf16 %v642, %v642
      %v997 = vpack.c.bf16 %v644, %v644
      %v998 = vpack.c.bf16 %v647, %v647
      %v999 = vpack.c.bf16 %v649, %v649
      %v1000 = vpack.c.bf16 %v652, %v652
      %v1001 = vpack.c.bf16 %v654, %v654
      %v1002 = vpack.c.bf16 %v657, %v657
      %v1003 = vpack.c.bf16 %v659, %v659
      %v1004 = vpack.c.bf16 %v662, %v662
      %v1005 = vpack.c.bf16 %v664, %v664
      %v1006 = vpack.c.bf16 %v667, %v667
      %v1007 = vpack.c.bf16 %v669, %v669
      %v1008 = vpack.c.bf16 %v672, %v672
      %v1009 = vpack.c.bf16 %v674, %v674
      %v1010 = vpack.c.bf16 %v677, %v677
      %v1011 = vpack.c.bf16 %v679, %v679
      %v1012 = vpack.c.bf16 %v682, %v682
      %v1013 = vpack.c.bf16 %v684, %v684
      %v1014 = vpack.c.bf16 %v687, %v687
      %v1015 = vpack.c.bf16 %v689, %v689
      %v1016 = vpack.c.bf16 %v692, %v692
      %v1017 = vpack.c.bf16 %v694, %v694
      %v1018 = vpack.c.bf16 %v697, %v697
      %v1019 = vpack.c.bf16 %v699, %v699
      %v1020 = vpack.c.bf16 %v702, %v702
      %v1021 = vpack.c.bf16 %v704, %v704
      %v1022 = vpack.c.bf16 %v707, %v707
      %v1023 = vpack.c.bf16 %v709, %v709
      %v1024 = vpack.c.bf16 %v712, %v712
      %v1025 = vpack.c.bf16 %v714, %v714
      %v1026 = vpack.c.bf16 %v717, %v717
      %v1027 = vpack.c.bf16 %v719, %v719
      %v1028 = vpack.c.bf16 %v722, %v722
      %v1029 = vpack.c.bf16 %v724, %v724
      %v1030 = vpack.c.bf16 %v727, %v727
      %v1031 = vpack.c.bf16 %v729, %v729
      %1032 = vst [vmem:[%s240] sm:$0xf] %v968
      %1033 = vst [vmem:[%s240 + $0x4] sm:$0xf] %v969
      %1034 = vst [vmem:[%s240 + $0x8] sm:$0xf] %v970
      %1035 = vst [vmem:[%s240 + $0xc] sm:$0xf] %v971
      %1036 = vst [vmem:[%s240 + $0x10] sm:$0xf] %v972
      %1037 = vst [vmem:[%s240 + $0x14] sm:$0xf] %v973
      %1038 = vst [vmem:[%s240 + $0x18] sm:$0xf] %v974
      %1039 = vst [vmem:[%s240 + $0x1c] sm:$0xf] %v975
      %1040 = vst [vmem:[%s240 + $0x20] sm:$0xf] %v976
      %1041 = vst [vmem:[%s240 + $0x24] sm:$0xf] %v977
      %1042 = vst [vmem:[%s240 + $0x28] sm:$0xf] %v978
      %1043 = vst [vmem:[%s240 + $0x2c] sm:$0xf] %v979
      %1044 = vst [vmem:[%s240 + $0x30] sm:$0xf] %v980
      %1045 = vst [vmem:[%s240 + $0x34] sm:$0xf] %v981
      %1046 = vst [vmem:[%s240 + $0x38] sm:$0xf] %v982
      %1047 = vst [vmem:[%s240 + $0x3c] sm:$0xf] %v983
      %1048 = vst [vmem:[%s240 + $0x40] sm:$0xf] %v984
      %1049 = vst [vmem:[%s240 + $0x44] sm:$0xf] %v985
      %1050 = vst [vmem:[%s240 + $0x48] sm:$0xf] %v986
      %1051 = vst [vmem:[%s240 + $0x4c] sm:$0xf] %v987
      %1052 = vst [vmem:[%s240 + $0x50] sm:$0xf] %v988
      %1053 = vst [vmem:[%s240 + $0x54] sm:$0xf] %v989
      %1054 = vst [vmem:[%s240 + $0x58] sm:$0xf] %v990
      %1055 = vst [vmem:[%s240 + $0x5c] sm:$0xf] %v991
      %1056 = vst [vmem:[%s240 + $0x60] sm:$0xf] %v992
      %1057 = vst [vmem:[%s240 + $0x64] sm:$0xf] %v993
      %1058 = vst [vmem:[%s240 + $0x68] sm:$0xf] %v994
      %1059 = vst [vmem:[%s240 + $0x6c] sm:$0xf] %v995
      %1060 = vst [vmem:[%s240 + $0x70] sm:$0xf] %v996
      %1061 = vst [vmem:[%s240 + $0x74] sm:$0xf] %v997
      %1062 = vst [vmem:[%s240 + $0x78] sm:$0xf] %v998
      %1063 = vst [vmem:[%s240 + $0x7c] sm:$0xf] %v999
      %1064 = vst [vmem:[%s240 + $0x80] sm:$0xf] %v1000
      %1065 = vst [vmem:[%s240 + $0x84] sm:$0xf] %v1001
      %1066 = vst [vmem:[%s240 + $0x88] sm:$0xf] %v1002
      %1067 = vst [vmem:[%s240 + $0x8c] sm:$0xf] %v1003
      %1068 = vst [vmem:[%s240 + $0x90] sm:$0xf] %v1004
      %1069 = vst [vmem:[%s240 + $0x94] sm:$0xf] %v1005
      %1070 = vst [vmem:[%s240 + $0x98] sm:$0xf] %v1006
      %1071 = vst [vmem:[%s240 + $0x9c] sm:$0xf] %v1007
      %1072 = vst [vmem:[%s240 + $0xa0] sm:$0xf] %v1008
      %1073 = vst [vmem:[%s240 + $0xa4] sm:$0xf] %v1009
      %1074 = vst [vmem:[%s240 + $0xa8] sm:$0xf] %v1010
      %1075 = vst [vmem:[%s240 + $0xac] sm:$0xf] %v1011
      %1076 = vst [vmem:[%s240 + $0xb0] sm:$0xf] %v1012
      %1077 = vst [vmem:[%s240 + $0xb4] sm:$0xf] %v1013
      %1078 = vst [vmem:[%s240 + $0xb8] sm:$0xf] %v1014
      %1079 = vst [vmem:[%s240 + $0xbc] sm:$0xf] %v1015
      %1080 = vst [vmem:[%s240 + $0xc0] sm:$0xf] %v1016
      %1081 = vst [vmem:[%s240 + $0xc4] sm:$0xf] %v1017
      %1082 = vst [vmem:[%s240 + $0xc8] sm:$0xf] %v1018
      %1083 = vst [vmem:[%s240 + $0xcc] sm:$0xf] %v1019
      %1084 = vst [vmem:[%s240 + $0xd0] sm:$0xf] %v1020
      %1085 = vst [vmem:[%s240 + $0xd4] sm:$0xf] %v1021
      %1086 = vst [vmem:[%s240 + $0xd8] sm:$0xf] %v1022
      %1087 = vst [vmem:[%s240 + $0xdc] sm:$0xf] %v1023
      %1088 = vst [vmem:[%s240 + $0xe0] sm:$0xf] %v1024
      %1089 = vst [vmem:[%s240 + $0xe4] sm:$0xf] %v1025
      %1090 = vst [vmem:[%s240 + $0xe8] sm:$0xf] %v1026
      %1091 = vst [vmem:[%s240 + $0xec] sm:$0xf] %v1027
      %1092 = vst [vmem:[%s240 + $0xf0] sm:$0xf] %v1028
      %1093 = vst [vmem:[%s240 + $0xf4] sm:$0xf] %v1029
      %1094 = vst [vmem:[%s240 + $0xf8] sm:$0xf] %v1030
      %1095 = vst [vmem:[%s240 + $0xfc] sm:$0xf] %v1031
      %1096 = vst [vmem:[%s234] sm:$0xff] %v809
      %1097 = vst [vmem:[%s234 + $0x8] sm:$0xff] %v811
      %1098 = vst [vmem:[%s234 + $0x10] sm:$0xff] %v814
      %1099 = vst [vmem:[%s234 + $0x18] sm:$0xff] %v816
      %1100 = vst [vmem:[%s234 + $0x20] sm:$0xff] %v819
      %1101 = vst [vmem:[%s234 + $0x28] sm:$0xff] %v821
      %1102 = vst [vmem:[%s234 + $0x30] sm:$0xff] %v824
      %1103 = vst [vmem:[%s234 + $0x38] sm:$0xff] %v826
      %1104 = vst [vmem:[%s234 + $0x40] sm:$0xff] %v829
      %1105 = vst [vmem:[%s234 + $0x48] sm:$0xff] %v831
      %1106 = vst [vmem:[%s234 + $0x50] sm:$0xff] %v834
      %1107 = vst [vmem:[%s234 + $0x58] sm:$0xff] %v836
      %1108 = vst [vmem:[%s234 + $0x60] sm:$0xff] %v839
      %1109 = vst [vmem:[%s234 + $0x68] sm:$0xff] %v841
      %1110 = vst [vmem:[%s234 + $0x70] sm:$0xff] %v844
      %1111 = vst [vmem:[%s234 + $0x78] sm:$0xff] %v846
      %1112 = vst [vmem:[%s234 + $0x80] sm:$0xff] %v849
      %1113 = vst [vmem:[%s234 + $0x88] sm:$0xff] %v851
      %1114 = vst [vmem:[%s234 + $0x90] sm:$0xff] %v854
      %1115 = vst [vmem:[%s234 + $0x98] sm:$0xff] %v856
      %1116 = vst [vmem:[%s234 + $0xa0] sm:$0xff] %v859
      %1117 = vst [vmem:[%s234 + $0xa8] sm:$0xff] %v861
      %1118 = vst [vmem:[%s234 + $0xb0] sm:$0xff] %v864
      %1119 = vst [vmem:[%s234 + $0xb8] sm:$0xff] %v866
      %1120 = vst [vmem:[%s234 + $0xc0] sm:$0xff] %v869
      %1121 = vst [vmem:[%s234 + $0xc8] sm:$0xff] %v871
      %1122 = vst [vmem:[%s234 + $0xd0] sm:$0xff] %v874
      %1123 = vst [vmem:[%s234 + $0xd8] sm:$0xff] %v876
      %1124 = vst [vmem:[%s234 + $0xe0] sm:$0xff] %v879
      %1125 = vst [vmem:[%s234 + $0xe8] sm:$0xff] %v881
      %1126 = vst [vmem:[%s234 + $0xf0] sm:$0xff] %v884
      %1127 = vst [vmem:[%s234 + $0xf8] sm:$0xff] %v886
      %1128 = vst [vmem:[%s234 + $0x100] sm:$0xff] %v889
      %1129 = vst [vmem:[%s234 + $0x108] sm:$0xff] %v891
      %1130 = vst [vmem:[%s234 + $0x110] sm:$0xff] %v894
      %1131 = vst [vmem:[%s234 + $0x118] sm:$0xff] %v896
      %1132 = vst [vmem:[%s234 + $0x120] sm:$0xff] %v899
      %1133 = vst [vmem:[%s234 + $0x128] sm:$0xff] %v901
      %1134 = vst [vmem:[%s234 + $0x130] sm:$0xff] %v904
      %1135 = vst [vmem:[%s234 + $0x138] sm:$0xff] %v906
      %1136 = vst [vmem:[%s234 + $0x140] sm:$0xff] %v909
      %1137 = vst [vmem:[%s234 + $0x148] sm:$0xff] %v911
      %1138 = vst [vmem:[%s234 + $0x150] sm:$0xff] %v914
      %1139 = vst [vmem:[%s234 + $0x158] sm:$0xff] %v916
      %1140 = vst [vmem:[%s234 + $0x160] sm:$0xff] %v919
      %1141 = vst [vmem:[%s234 + $0x168] sm:$0xff] %v921
      %1142 = vst [vmem:[%s234 + $0x170] sm:$0xff] %v924
      %1143 = vst [vmem:[%s234 + $0x178] sm:$0xff] %v926
      %1144 = vst [vmem:[%s234 + $0x180] sm:$0xff] %v929
      %1145 = vst [vmem:[%s234 + $0x188] sm:$0xff] %v931
      %1146 = vst [vmem:[%s234 + $0x190] sm:$0xff] %v934
      %1147 = vst [vmem:[%s234 + $0x198] sm:$0xff] %v936
      %1148 = vst [vmem:[%s234 + $0x1a0] sm:$0xff] %v939
      %1149 = vst [vmem:[%s234 + $0x1a8] sm:$0xff] %v941
      %1150 = vst [vmem:[%s234 + $0x1b0] sm:$0xff] %v944
      %1151 = vst [vmem:[%s234 + $0x1b8] sm:$0xff] %v946
      %1152 = vst [vmem:[%s234 + $0x1c0] sm:$0xff] %v949
      %1153 = vst [vmem:[%s234 + $0x1c8] sm:$0xff] %v951
      %1154 = vst [vmem:[%s234 + $0x1d0] sm:$0xff] %v954
      %1155 = vst [vmem:[%s234 + $0x1d8] sm:$0xff] %v956
      %1156 = vst [vmem:[%s234 + $0x1e0] sm:$0xff] %v959
      %1157 = vst [vmem:[%s234 + $0x1e8] sm:$0xff] %v961
      %1158 = vst [vmem:[%s234 + $0x1f0] sm:$0xff] %v964
      %1159 = vst [vmem:[%s234 + $0x1f8] sm:$0xff] %v966
      %s1160 = smul.u32 64, %s17
      %p1161 = scmp.lt.s32.totalorder %s1160, 127
      %s1162 = scalar_select %p1161, %s1160, 127
      %s1163 = smul.addr %s1162, 8
      %s1164 = scalar_lea.vmem %s4, %s1163
      %s1165 = smul.u32 64, %s17
      %p1166 = scmp.lt.s32.totalorder %s1165, 127
      %s1167 = scalar_select %p1166, %s1165, 127
      %s1168 = smul.addr %s1167, 4
      %s1169 = scalar_lea.vmem %s5, %s1168
      // Predicated region
      $region37: #{sage_e_net_forward.5} parent=35 // pred_check
        %p1170 = pneg %p124
      $region38: #{sage_e_net_forward.5} parent=35 // pred_check_branch
        %1172 = sbr.rel (%p1170) target = $region40
      $region39: #{sage_e_net_forward.5} parent=35 // pred_region
        %s1173 = smul.u32 64, %s17
      $region40: #{sage_e_net_forward.5} parent=35 // pred_fallthru
        _
      // Predicated region
      $region41: #{sage_e_net_forward.5} parent=35 // pred_check
        %p1174 = pneg %p150
      $region42: #{sage_e_net_forward.5} parent=35 // pred_check_branch
        %1176 = sbr.rel (%p1174) target = $region44
      $region43: #{sage_e_net_forward.5} parent=35 // pred_region
        %s1177 = smul.u32 64, %s17
      $region44: #{sage_e_net_forward.5} parent=35 // pred_fallthru
        _
    $region36: #{sage_e_net_forward.5} parent=5 // pred_fallthru
      _
    %p1178 = scmp.le.s32.totalorder 2, %s12
    // Predicated region
    $region45: #{sage_e_net_forward.5} parent=5 // pred_check
      %p1179 = pneg %p1178
    $region46: #{sage_e_net_forward.5} parent=5 // pred_check_branch
      %1181 = sbr.rel (%p1179) target = $region48
    $region47: #{sage_e_net_forward.5} parent=5 // pred_region
      %s1182 = ssub.s32 %s12, 2
      // Predicated region
      $region49: #{sage_e_net_forward.5} parent=47 // pred_check
        %p1183 = pneg %p130
      $region50: #{sage_e_net_forward.5} parent=47 // pred_check_branch
        %1185 = sbr.rel (%p1183) target = $region52
      $region51: #{sage_e_net_forward.5} parent=47 // pred_region
        %s1186 = smul.u32 64, %s18
        %p1187 = scmp.lt.s32.totalorder %s1186, 127
        %s1188 = scalar_select %p1187, %s1186, 127
        %s1189 = smul.addr %s1188, 8
        %s1190 = scalar_lea.vmem %s4, %s1189
      $region52: #{sage_e_net_forward.5} parent=47 // pred_fallthru
        _
      // Predicated region
      $region53: #{sage_e_net_forward.5} parent=47 // pred_check
        %p1191 = pneg %p156
      $region54: #{sage_e_net_forward.5} parent=47 // pred_check_branch
        %1193 = sbr.rel (%p1191) target = $region56
      $region55: #{sage_e_net_forward.5} parent=47 // pred_region
        %s1194 = smul.u32 64, %s18
        %p1195 = scmp.lt.s32.totalorder %s1194, 127
        %s1196 = scalar_select %p1195, %s1194, 127
        %s1197 = smul.addr %s1196, 4
        %s1198 = scalar_lea.vmem %s5, %s1197
      $region56: #{sage_e_net_forward.5} parent=47 // pred_fallthru
        _
    $region48: #{sage_e_net_forward.5} parent=5 // pred_fallthru
      _
  $region6: #{sage_e_net_forward.5} parent=0 // loop_footer
    %s16 = sadd.s32 1, %s12
  $region7: #{sage_e_net_forward.5} parent=0 // loop_footer_branch
    %11 = sbr.rel target = $region3
  $region8: #{sage_e_net_forward.5} parent=0 // loop_exit
    _

// kernel: sage_e_net_forward.8
$region0: #{sage_e_net_forward.8}
  #allocation0 [shape = 'u32[]', space=smem, size = 0x4, offset = 0x4, fixed_abs, tag = 'smem constant byte address 0x4 - core index']
  #allocation1 [shape = 'u32[72,128]{1,0:T(1,128)}', space=vmem, size = 0x9000, scoped, tag = 'internal scratch']
  #allocation2 [shape = 'f32[512,128]{1,0:T(8,128)}', space=vmem, size = 0x40000, scoped, tag = 'scratch operand']
  %s0 = inlined_call_operand.vmem [shape: s8[1024,1024], index: 0, kind: input, shape index: {}]
  %s1 = inlined_call_operand.vmem [shape: bf16[1024,128], index: 1, kind: input, shape index: {}]
  %s2 = inlined_call_operand.vmem [shape: f32[1024,128], index: 2, kind: input, shape index: {}]
  %s3 = inlined_call_operand.vmem [shape: f32[1024,1], index: 3, kind: input, shape index: {}]
  %s4 = inlined_call_operand.vmem [shape: f32[1024,128], index: 4, kind: output, shape index: {}]
  %s5 = sld [smem:[#allocation0]]
  $region80: #{sage_e_net_forward.8} parent=0
    _
  %s7 = ssub.s32 1, %s5
  %s8 = scalar_select 0, %s7, %s5
  $region1: #{sage_e_net_forward.8} parent=0
    #allocation3 [shape = 'u8[524288]{0}', space=vmem, size = 0x80000, scoped, tag = 'input window, operand 0']
    loop: start=0, step=1, limit=6
    $region2: #{sage_e_net_forward.8} parent=1 // loop_pre_header
      _
    $region3: #{sage_e_net_forward.8} parent=1 // loop_header
      %s10 = sphi 0, %s14
      %p11 = scmp.ge.s32.totalorder %s10, 6
      %s17 = sphi 0, %s29
      %s18 = sphi 0, %s25
      %s19 = sphi 0, %s17
      %s20 = sphi 0, %s18
      %s21 = sphi 0, %s19
      %s22 = sphi 0, %s20
      %s34 = sphi 0, %s36
      %s37 = sphi 0, %s34
      %s38 = sphi 0, %s37
      %s54 = sphi 0, %s38
      %s60 = sphi 0, %s62
      %s63 = sphi 0, %s60
      %s64 = sphi 0, %s63
      %s80 = sphi 0, %s64
      %s86 = sphi 0, %s88
      %s89 = sphi 0, %s86
      %s90 = sphi 0, %s89
      %s106 = sphi 0, %s90
      %s112 = sphi 0, %s114
      %s115 = sphi 0, %s112
      %s116 = sphi 0, %s115
      %s132 = sphi 0, %s116
      %s138 = sphi 0, %s140
      %s141 = sphi 0, %s138
      %s142 = sphi 0, %s141
      %s158 = sphi 0, %s142
    $region4: #{sage_e_net_forward.8} parent=1 // loop_header_branch
      %13 = sbr.rel (%p11) target = $region8
    $region5: #{sage_e_net_forward.8} parent=1 // loop_body
      %s15 = ssub.s32 %s10, 1
      %s16 = ssub.s32 %s10, 2
      %s23 = sadd.s32 1, %s18
      %p24 = scmp.ge.s32.totalorder %s23, 2
      %s25 = scalar_select %p24, 0, %s23
      %s26 = sadd.s32 1, %s17
      %s27 = scalar_select %p24, %s26, %s17
      %p28 = scmp.ge.s32.totalorder %s27, 2
      %s29 = scalar_select %p28, 0, %s27
      %s30 = ssub.s32 %s17, %s29
      %s31 = ssub.s32 %s18, %s25
      %s32 = sor.u32 %s30, %s31
      %p33 = scmp.eq.s32.totalorder %s32, 0
      %s35 = sadd.s32 %s34, 1
      %s36 = scalar_select %p33, %s34, %s35
      %p39 = pneg %p33
      %p40 = scmp.eq.s32.totalorder %s10, 3
      %p41 = por %p39, %p40
      %p42 = scmp.ne.s32.totalorder %s34, %s37
      %p43 = scmp.eq.s32.totalorder %s10, 0
      %p44 = por %p42, %p43
      %p45 = scmp.ne.s32.totalorder %s34, %s37
      %p46 = scmp.eq.s32.totalorder %s15, 3
      %p47 = por %p45, %p46
      %p48 = scmp.ne.s32.totalorder %s37, %s38
      %p49 = scmp.eq.s32.totalorder %s15, 0
      %p50 = por %p48, %p49
      %p51 = scmp.ne.s32.totalorder %s37, %s38
      %p52 = scmp.eq.s32.totalorder %s16, 3
      %p53 = por %p51, %p52
      %p55 = scmp.ne.s32.totalorder %s38, %s54
      %p56 = scmp.eq.s32.totalorder %s16, 0
      %p57 = por %p55, %p56
      %s58 = ssub.s32 %s18, %s25
      %p59 = scmp.eq.s32.totalorder %s58, 0
      %s61 = sadd.s32 %s60, 1
      %s62 = scalar_select %p59, %s60, %s61
      %p65 = pneg %p59
      %p66 = scmp.eq.s32.totalorder %s10, 3
      %p67 = por %p65, %p66
      %p68 = scmp.ne.s32.totalorder %s60, %s63
      %p69 = scmp.eq.s32.totalorder %s10, 0
      %p70 = por %p68, %p69
      %p71 = scmp.ne.s32.totalorder %s60, %s63
      %p72 = scmp.eq.s32.totalorder %s15, 3
      %p73 = por %p71, %p72
      %p74 = scmp.ne.s32.totalorder %s63, %s64
      %p75 = scmp.eq.s32.totalorder %s15, 0
      %p76 = por %p74, %p75
      %p77 = scmp.ne.s32.totalorder %s63, %s64
      %p78 = scmp.eq.s32.totalorder %s16, 3
      %p79 = por %p77, %p78
      %p81 = scmp.ne.s32.totalorder %s64, %s80
      %p82 = scmp.eq.s32.totalorder %s16, 0
      %p83 = por %p81, %p82
      %s84 = ssub.s32 %s17, %s29
      %p85 = scmp.eq.s32.totalorder %s84, 0
      %s87 = sadd.s32 %s86, 1
      %s88 = scalar_select %p85, %s86, %s87
      %p91 = pneg %p85
      %p92 = scmp.eq.s32.totalorder %s10, 3
      %p93 = por %p91, %p92
      %p94 = scmp.ne.s32.totalorder %s86, %s89
      %p95 = scmp.eq.s32.totalorder %s10, 0
      %p96 = por %p94, %p95
      %p97 = scmp.ne.s32.totalorder %s86, %s89
      %p98 = scmp.eq.s32.totalorder %s15, 3
      %p99 = por %p97, %p98
      %p100 = scmp.ne.s32.totalorder %s89, %s90
      %p101 = scmp.eq.s32.totalorder %s15, 0
      %p102 = por %p100, %p101
      %p103 = scmp.ne.s32.totalorder %s89, %s90
      %p104 = scmp.eq.s32.totalorder %s16, 3
      %p105 = por %p103, %p104
      %p107 = scmp.ne.s32.totalorder %s90, %s106
      %p108 = scmp.eq.s32.totalorder %s16, 0
      %p109 = por %p107, %p108
      %s110 = ssub.s32 %s17, %s29
      %p111 = scmp.eq.s32.totalorder %s110, 0
      %s113 = sadd.s32 %s112, 1
      %s114 = scalar_select %p111, %s112, %s113
      %p117 = pneg %p111
      %p118 = scmp.eq.s32.totalorder %s10, 3
      %p119 = por %p117, %p118
      %p120 = scmp.ne.s32.totalorder %s112, %s115
      %p121 = scmp.eq.s32.totalorder %s10, 0
      %p122 = por %p120, %p121
      %p123 = scmp.ne.s32.totalorder %s112, %s115
      %p124 = scmp.eq.s32.totalorder %s15, 3
      %p125 = por %p123, %p124
      %p126 = scmp.ne.s32.totalorder %s115, %s116
      %p127 = scmp.eq.s32.totalorder %s15, 0
      %p128 = por %p126, %p127
      %p129 = scmp.ne.s32.totalorder %s115, %s116
      %p130 = scmp.eq.s32.totalorder %s16, 3
      %p131 = por %p129, %p130
      %p133 = scmp.ne.s32.totalorder %s116, %s132
      %p134 = scmp.eq.s32.totalorder %s16, 0
      %p135 = por %p133, %p134
      %s136 = ssub.s32 %s17, %s29
      %p137 = scmp.eq.s32.totalorder %s136, 0
      %s139 = sadd.s32 %s138, 1
      %s140 = scalar_select %p137, %s138, %s139
      %p143 = pneg %p137
      %p144 = scmp.eq.s32.totalorder %s10, 3
      %p145 = por %p143, %p144
      %p146 = scmp.ne.s32.totalorder %s138, %s141
      %p147 = scmp.eq.s32.totalorder %s10, 0
      %p148 = por %p146, %p147
      %p149 = scmp.ne.s32.totalorder %s138, %s141
      %p150 = scmp.eq.s32.totalorder %s15, 3
      %p151 = por %p149, %p150
      %p152 = scmp.ne.s32.totalorder %s141, %s142
      %p153 = scmp.eq.s32.totalorder %s15, 0
      %p154 = por %p152, %p153
      %p155 = scmp.ne.s32.totalorder %s141, %s142
      %p156 = scmp.eq.s32.totalorder %s16, 3
      %p157 = por %p155, %p156
      %p159 = scmp.ne.s32.totalorder %s142, %s158
      %p160 = scmp.eq.s32.totalorder %s16, 0
      %p161 = por %p159, %p160
      %p162 = scmp.le.s32.totalorder 1, %s10
      %p163 = scmp.lt.s32.totalorder %s10, 5
      %p164 = pnand %p162, %p163
      %p165 = pneg %p164
      // Predicated region
      $region9: #{sage_e_net_forward.8} parent=5 // pred_check
        _
      $region10: #{sage_e_net_forward.8} parent=5 // pred_check_branch
        %167 = sbr.rel (%p164) target = $region12
      $region11: #{sage_e_net_forward.8} parent=5 // pred_region
        %s168 = ssub.s32 %s10, 1
      $region12: #{sage_e_net_forward.8} parent=5 // pred_fallthru
        _
      %p169 = scmp.lt.s32.totalorder %s10, 4
      // Predicated region
      $region13: #{sage_e_net_forward.8} parent=5 // pred_check
        %p170 = pneg %p169
      $region14: #{sage_e_net_forward.8} parent=5 // pred_check_branch
        %172 = sbr.rel (%p170) target = $region16
      $region15: #{sage_e_net_forward.8} parent=5 // pred_region
        // Predicated region
        $region17: #{sage_e_net_forward.8} parent=15 // pred_check
          %p173 = pneg %p44
        $region18: #{sage_e_net_forward.8} parent=15 // pred_check_branch
          %175 = sbr.rel (%p173) target = $region20
        $region19: #{sage_e_net_forward.8} parent=15 // pred_region
          %s176 = sand.u32 %s34, 1
          %s177 = sand.u32 %s34, 1
          %s178 = smul.addr %s177, 512
          %s179 = scalar_lea.vmem [#allocation3], %s178
          %s180 = smul.u32 16, %s17
          %s181 = smul.u32 4, %s18
          %s182 = smul.addr %s180, 8
          %s183 = sadd.s32 %s181, %s182
          %s184 = smul.addr %s183, 8
          %s185 = scalar_lea.vmem %s0, %s184
          // Predicated region
          $region21: #{sage_e_net_forward.8} parent=19 // pred_check
            _
          $region22: #{sage_e_net_forward.8} parent=19 // pred_check_branch
            %187 = sbr.rel (0) target = $region24
          $region23: #{sage_e_net_forward.8} parent=19 // pred_region
            // Predicated region
            $region25: #{sage_e_net_forward.8} parent=23 // pred_check
              _
            $region26: #{sage_e_net_forward.8} parent=23 // pred_check_branch
              %189 = sbr.rel (0) target = $region28
            $region27: #{sage_e_net_forward.8} parent=23 // pred_region
              loop: start=0, step=1, limit=1
              $region29: #{sage_e_net_forward.8} parent=27 // loop_pre_header
                _
              $region30: #{sage_e_net_forward.8} parent=27 // loop_header
                %s191 = sphi 0, %s195
                %p192 = scmp.ge.s32.totalorder %s191, 1
                %s196 = sphi %s185, %s185
                %s197 = sphi %s179, %s179
              $region31: #{sage_e_net_forward.8} parent=27 // loop_header_branch
                %194 = sbr.rel (%p192) target = $region35
              $region32: #{sage_e_net_forward.8} parent=27 // loop_body
                %v198 = vld [vmem:[%s196] sm:$0xff]
                %199 = vst [vmem:[%s197] sm:$0xff] %v198
                %v200 = vld [vmem:[%s196 + $0x8] sm:$0xff]
                %201 = vst [vmem:[%s197 + $0x8] sm:$0xff] %v200
                %v202 = vld [vmem:[%s196 + $0x10] sm:$0xff]
                %203 = vst [vmem:[%s197 + $0x10] sm:$0xff] %v202
                %v204 = vld [vmem:[%s196 + $0x18] sm:$0xff]
                %205 = vst [vmem:[%s197 + $0x18] sm:$0xff] %v204
                %v206 = vld [vmem:[%s196 + $0x40] sm:$0xff]
                %207 = vst [vmem:[%s197 + $0x20] sm:$0xff] %v206
                %v208 = vld [vmem:[%s196 + $0x48] sm:$0xff]
                %209 = vst [vmem:[%s197 + $0x28] sm:$0xff] %v208
                %v210 = vld [vmem:[%s196 + $0x50] sm:$0xff]
                %211 = vst [vmem:[%s197 + $0x30] sm:$0xff] %v210
                %v212 = vld [vmem:[%s196 + $0x58] sm:$0xff]
                %213 = vst [vmem:[%s197 + $0x38] sm:$0xff] %v212
                %v214 = vld [vmem:[%s196 + $0x80] sm:$0xff]
                %215 = vst [vmem:[%s197 + $0x40] sm:$0xff] %v214
                %v216 = vld [vmem:[%s196 + $0x88] sm:$0xff]
                %217 = vst [vmem:[%s197 + $0x48] sm:$0xff] %v216
                %v218 = vld [vmem:[%s196 + $0x90] sm:$0xff]
                %219 = vst [vmem:[%s197 + $0x50] sm:$0xff] %v218
                %v220 = vld [vmem:[%s196 + $0x98] sm:$0xff]
                %221 = vst [vmem:[%s197 + $0x58] sm:$0xff] %v220
                %v222 = vld [vmem:[%s196 + $0xc0] sm:$0xff]
                %223 = vst [vmem:[%s197 + $0x60] sm:$0xff] %v222
                %v224 = vld [vmem:[%s196 + $0xc8] sm:$0xff]
                %225 = vst [vmem:[%s197 + $0x68] sm:$0xff] %v224
                %v226 = vld [vmem:[%s196 + $0xd0] sm:$0xff]
                %227 = vst [vmem:[%s197 + $0x70] sm:$0xff] %v226
                %v228 = vld [vmem:[%s196 + $0xd8] sm:$0xff]
                %229 = vst [vmem:[%s197 + $0x78] sm:$0xff] %v228
                %v230 = vld [vmem:[%s196 + $0x100] sm:$0xff]
                %231 = vst [vmem:[%s197 + $0x80] sm:$0xff] %v230
                %v232 = vld [vmem:[%s196 + $0x108] sm:$0xff]
                %233 = vst [vmem:[%s197 + $0x88] sm:$0xff] %v232
                %v234 = vld [vmem:[%s196 + $0x110] sm:$0xff]
                %235 = vst [vmem:[%s197 + $0x90] sm:$0xff] %v234
                %v236 = vld [vmem:[%s196 + $0x118] sm:$0xff]
                %237 = vst [vmem:[%s197 + $0x98] sm:$0xff] %v236
                %v238 = vld [vmem:[%s196 + $0x140] sm:$0xff]
                %239 = vst [vmem:[%s197 + $0xa0] sm:$0xff] %v238
                %v240 = vld [vmem:[%s196 + $0x148] sm:$0xff]
                %241 = vst [vmem:[%s197 + $0xa8] sm:$0xff] %v240
                %v242 = vld [vmem:[%s196 + $0x150] sm:$0xff]
                %243 = vst [vmem:[%s197 + $0xb0] sm:$0xff] %v242
                %v244 = vld [vmem:[%s196 + $0x158] sm:$0xff]
                %245 = vst [vmem:[%s197 + $0xb8] sm:$0xff] %v244
                %v246 = vld [vmem:[%s196 + $0x180] sm:$0xff]
                %247 = vst [vmem:[%s197 + $0xc0] sm:$0xff] %v246
                %v248 = vld [vmem:[%s196 + $0x188] sm:$0xff]
                %249 = vst [vmem:[%s197 + $0xc8] sm:$0xff] %v248
                %v250 = vld [vmem:[%s196 + $0x190] sm:$0xff]
                %251 = vst [vmem:[%s197 + $0xd0] sm:$0xff] %v250
                %v252 = vld [vmem:[%s196 + $0x198] sm:$0xff]
                %253 = vst [vmem:[%s197 + $0xd8] sm:$0xff] %v252
                %v254 = vld [vmem:[%s196 + $0x1c0] sm:$0xff]
                %255 = vst [vmem:[%s197 + $0xe0] sm:$0xff] %v254
                %v256 = vld [vmem:[%s196 + $0x1c8] sm:$0xff]
                %257 = vst [vmem:[%s197 + $0xe8] sm:$0xff] %v256
                %v258 = vld [vmem:[%s196 + $0x1d0] sm:$0xff]
                %259 = vst [vmem:[%s197 + $0xf0] sm:$0xff] %v258
                %v260 = vld [vmem:[%s196 + $0x1d8] sm:$0xff]
                %261 = vst [vmem:[%s197 + $0xf8] sm:$0xff] %v260
                %v262 = vld [vmem:[%s196 + $0x200] sm:$0xff]
                %263 = vst [vmem:[%s197 + $0x100] sm:$0xff] %v262
                %v264 = vld [vmem:[%s196 + $0x208] sm:$0xff]
                %265 = vst [vmem:[%s197 + $0x108] sm:$0xff] %v264
                %v266 = vld [vmem:[%s196 + $0x210] sm:$0xff]
                %267 = vst [vmem:[%s197 + $0x110] sm:$0xff] %v266
                %v268 = vld [vmem:[%s196 + $0x218] sm:$0xff]
                %269 = vst [vmem:[%s197 + $0x118] sm:$0xff] %v268
                %v270 = vld [vmem:[%s196 + $0x240] sm:$0xff]
                %271 = vst [vmem:[%s197 + $0x120] sm:$0xff] %v270
                %v272 = vld [vmem:[%s196 + $0x248] sm:$0xff]
                %273 = vst [vmem:[%s197 + $0x128] sm:$0xff] %v272
                %v274 = vld [vmem:[%s196 + $0x250] sm:$0xff]
                %275 = vst [vmem:[%s197 + $0x130] sm:$0xff] %v274
                %v276 = vld [vmem:[%s196 + $0x258] sm:$0xff]
                %277 = vst [vmem:[%s197 + $0x138] sm:$0xff] %v276
                %v278 = vld [vmem:[%s196 + $0x280] sm:$0xff]
                %279 = vst [vmem:[%s197 + $0x140] sm:$0xff] %v278
                %v280 = vld [vmem:[%s196 + $0x288] sm:$0xff]
                %281 = vst [vmem:[%s197 + $0x148] sm:$0xff] %v280
                %v282 = vld [vmem:[%s196 + $0x290] sm:$0xff]
                %283 = vst [vmem:[%s197 + $0x150] sm:$0xff] %v282
                %v284 = vld [vmem:[%s196 + $0x298] sm:$0xff]
                %285 = vst [vmem:[%s197 + $0x158] sm:$0xff] %v284
                %v286 = vld [vmem:[%s196 + $0x2c0] sm:$0xff]
                %287 = vst [vmem:[%s197 + $0x160] sm:$0xff] %v286
                %v288 = vld [vmem:[%s196 + $0x2c8] sm:$0xff]
                %289 = vst [vmem:[%s197 + $0x168] sm:$0xff] %v288
                %v290 = vld [vmem:[%s196 + $0x2d0] sm:$0xff]
                %291 = vst [vmem:[%s197 + $0x170] sm:$0xff] %v290
                %v292 = vld [vmem:[%s196 + $0x2d8] sm:$0xff]
                %293 = vst [vmem:[%s197 + $0x178] sm:$0xff] %v292
                %v294 = vld [vmem:[%s196 + $0x300] sm:$0xff]
                %295 = vst [vmem:[%s197 + $0x180] sm:$0xff] %v294
                %v296 = vld [vmem:[%s196 + $0x308] sm:$0xff]
                %297 = vst [vmem:[%s197 + $0x188] sm:$0xff] %v296
                %v298 = vld [vmem:[%s196 + $0x310] sm:$0xff]
                %299 = vst [vmem:[%s197 + $0x190] sm:$0xff] %v298
                %v300 = vld [vmem:[%s196 + $0x318] sm:$0xff]
                %301 = vst [vmem:[%s197 + $0x198] sm:$0xff] %v300
                %v302 = vld [vmem:[%s196 + $0x340] sm:$0xff]
                %303 = vst [vmem:[%s197 + $0x1a0] sm:$0xff] %v302
                %v304 = vld [vmem:[%s196 + $0x348] sm:$0xff]
                %305 = vst [vmem:[%s197 + $0x1a8] sm:$0xff] %v304
                %v306 = vld [vmem:[%s196 + $0x350] sm:$0xff]
                %307 = vst [vmem:[%s197 + $0x1b0] sm:$0xff] %v306
                %v308 = vld [vmem:[%s196 + $0x358] sm:$0xff]
                %309 = vst [vmem:[%s197 + $0x1b8] sm:$0xff] %v308
                %v310 = vld [vmem:[%s196 + $0x380] sm:$0xff]
                %311 = vst [vmem:[%s197 + $0x1c0] sm:$0xff] %v310
                %v312 = vld [vmem:[%s196 + $0x388] sm:$0xff]
                %313 = vst [vmem:[%s197 + $0x1c8] sm:$0xff] %v312
                %v314 = vld [vmem:[%s196 + $0x390] sm:$0xff]
                %315 = vst [vmem:[%s197 + $0x1d0] sm:$0xff] %v314
                %v316 = vld [vmem:[%s196 + $0x398] sm:$0xff]
                %317 = vst [vmem:[%s197 + $0x1d8] sm:$0xff] %v316
                %v318 = vld [vmem:[%s196 + $0x3c0] sm:$0xff]
                %319 = vst [vmem:[%s197 + $0x1e0] sm:$0xff] %v318
                %v320 = vld [vmem:[%s196 + $0x3c8] sm:$0xff]
                %321 = vst [vmem:[%s197 + $0x1e8] sm:$0xff] %v320
                %v322 = vld [vmem:[%s196 + $0x3d0] sm:$0xff]
                %323 = vst [vmem:[%s197 + $0x1f0] sm:$0xff] %v322
                %v324 = vld [vmem:[%s196 + $0x3d8] sm:$0xff]
                %325 = vst [vmem:[%s197 + $0x1f8] sm:$0xff] %v324
              $region33: #{sage_e_net_forward.8} parent=27 // loop_footer
                %s195 = sadd.s32 1, %s191
              $region34: #{sage_e_net_forward.8} parent=27 // loop_footer_branch
                %190 = sbr.rel target = $region30
              $region35: #{sage_e_net_forward.8} parent=27 // loop_exit
                _
            $region28: #{sage_e_net_forward.8} parent=23 // pred_fallthru
              _
            // Predicated region
            $region36: #{sage_e_net_forward.8} parent=23 // pred_check
              _
            $region37: #{sage_e_net_forward.8} parent=23 // pred_check_branch
              %327 = sbr.rel target = $region39
            $region38: #{sage_e_net_forward.8} parent=23 // pred_region
              _
            $region39: #{sage_e_net_forward.8} parent=23 // pred_fallthru
              _
          $region24: #{sage_e_net_forward.8} parent=19 // pred_fallthru
            _
          %328 = vnop
        $region20: #{sage_e_net_forward.8} parent=15 // pred_fallthru
          _
        // Predicated region
        $region40: #{sage_e_net_forward.8} parent=15 // pred_check
          %p329 = pneg %p70
        $region41: #{sage_e_net_forward.8} parent=15 // pred_check_branch
          %331 = sbr.rel (%p329) target = $region43
        $region42: #{sage_e_net_forward.8} parent=15 // pred_region
          %s332 = smul.u32 64, %s18
          %p333 = scmp.lt.s32.totalorder %s332, 127
          %s334 = scalar_select %p333, %s332, 127
          %s335 = smul.addr %s334, 4
          %s336 = scalar_lea.vmem %s1, %s335
          %s337 = smul.u32 64, %s18
        $region43: #{sage_e_net_forward.8} parent=15 // pred_fallthru
          _
        // Predicated region
        $region44: #{sage_e_net_forward.8} parent=15 // pred_check
          %p338 = pneg %p96
        $region45: #{sage_e_net_forward.8} parent=15 // pred_check_branch
          %340 = sbr.rel (%p338) target = $region47
        $region46: #{sage_e_net_forward.8} parent=15 // pred_region
          %s341 = smul.u32 64, %s17
          %p342 = scmp.lt.s32.totalorder %s341, 127
          %s343 = scalar_select %p342, %s341, 127
          %s344 = smul.addr %s343, 8
          %s345 = scalar_lea.vmem %s2, %s344
          %s346 = smul.u32 64, %s17
        $region47: #{sage_e_net_forward.8} parent=15 // pred_fallthru
          _
        // Predicated region
        $region48: #{sage_e_net_forward.8} parent=15 // pred_check
          %p347 = pneg %p122
        $region49: #{sage_e_net_forward.8} parent=15 // pred_check_branch
          %349 = sbr.rel (%p347) target = $region51
        $region50: #{sage_e_net_forward.8} parent=15 // pred_region
          %s350 = smul.u32 64, %s17
          %p351 = scmp.lt.s32.totalorder %s350, 127
          %s352 = scalar_select %p351, %s350, 127
          %s353 = smul.addr %s352, 8
          %s354 = scalar_lea.vmem %s3, %s353
          %s355 = smul.u32 64, %s17
        $region51: #{sage_e_net_forward.8} parent=15 // pred_fallthru
          _
      $region16: #{sage_e_net_forward.8} parent=5 // pred_fallthru
        _
      %p356 = scmp.le.s32.totalorder 1, %s10
      %p357 = scmp.lt.s32.totalorder %s10, 5
      %p358 = pnand %p356, %p357
      %p359 = pneg %p358
      // Predicated region
      $region52: #{sage_e_net_forward.8} parent=5 // pred_check
        _
      $region53: #{sage_e_net_forward.8} parent=5 // pred_check_branch
        %361 = sbr.rel (%p358) target = $region55
      $region54: #{sage_e_net_forward.8} parent=5 // pred_region
        %s362 = ssub.s32 %s10, 1
        %s363 = sand.u32 %s37, 1
        %s364 = sand.u32 %s37, 1
        %s365 = smul.addr %s364, 512
        %s366 = scalar_lea.vmem [#allocation3], %s365
        // Predicated region
        $region56: #{sage_e_net_forward.8} parent=54 // pred_check
          %p367 = pneg %p50
        $region57: #{sage_e_net_forward.8} parent=54 // pred_check_branch
          %369 = sbr.rel (%p367) target = $region59
        $region58: #{sage_e_net_forward.8} parent=54 // pred_region
          _
        $region59: #{sage_e_net_forward.8} parent=54 // pred_fallthru
          _
        %s370 = sand.u32 %s37, 1
        %s371 = sand.u32 %s37, 1
        %s372 = smul.addr %s371, 512
        %s373 = scalar_lea.vmem [#allocation3], %s372
        %p374 = pneg %p50
        %p375 = pneg %p47
        %s376 = smul.u32 64, %s20
        %p377 = scmp.lt.s32.totalorder %s376, 127
        %s378 = scalar_select %p377, %s376, 127
        %s379 = smul.addr %s378, 4
        %s380 = scalar_lea.vmem %s1, %s379
        %p381 = pneg %p76
        %p382 = pneg %p73
        %s383 = smul.u32 64, %s19
        %p384 = scmp.lt.s32.totalorder %s383, 127
        %s385 = scalar_select %p384, %s383, 127
        %s386 = smul.addr %s385, 8
        %s387 = scalar_lea.vmem %s2, %s386
        %p388 = pneg %p102
        %p389 = pneg %p99
        %s390 = smul.u32 64, %s19
        %p391 = scmp.lt.s32.totalorder %s390, 127
        %s392 = scalar_select %p391, %s390, 127
        %s393 = smul.addr %s392, 8
        %s394 = scalar_lea.vmem %s3, %s393
        %p395 = pneg %p128
        %p396 = pneg %p125
        %p397 = pneg %p154
        %p398 = pneg %p151
        %s399 = smul.u32 64, %s19
        %p400 = scmp.lt.s32.totalorder %s399, 127
        %s401 = scalar_select %p400, %s399, 127
        %s402 = smul.addr %s401, 8
        %s403 = scalar_lea.vmem %s4, %s402
        %s404 = smul.u32 16, %s19
        %s405 = smul.u32 4, %s20
        %s406 = smul.u32 64, %s20
        %p407 = scmp.lt.s32.totalorder %s406, 127
        %s408 = scalar_select %p407, %s406, 127
        %s409 = smul.addr %s408, 4
        %s410 = scalar_lea.vmem %s1, %s409
        %s411 = smul.u32 64, %s20
        %s412 = smul.u32 64, %s19
        %p413 = scmp.lt.s32.totalorder %s412, 127
        %s414 = scalar_select %p413, %s412, 127
        %s415 = smul.addr %s414, 8
        %s416 = scalar_lea.vmem %s2, %s415
        %s417 = smul.u32 64, %s19
        %s418 = smul.u32 64, %s19
        %p419 = scmp.lt.s32.totalorder %s418, 127
        %s420 = scalar_select %p419, %s418, 127
        %s421 = smul.addr %s420, 8
        %s422 = scalar_lea.vmem %s3, %s421
        %s423 = smul.u32 64, %s19
        %s424 = smul.u32 64, %s19
        %p425 = scmp.lt.s32.totalorder %s424, 127
        %s426 = scalar_select %p425, %s424, 127
        %s427 = smul.addr %s426, 8
        %s428 = scalar_lea.vmem %s4, %s427
        %s429 = smul.u32 64, %s19
        %p430 = scmp.eq.s32.totalorder %s20, 0
        // Predicated region
        $region60: #{sage_e_net_forward.8} parent=54 // pred_check
          %p431 = pneg %p430
        $region61: #{sage_e_net_forward.8} parent=54 // pred_check_branch
          %433 = sbr.rel (%p431) target = $region63
        $region62: #{sage_e_net_forward.8} parent=54 // pred_region
          %434 = vst [vmem:[#allocation2] sm:$0xff] 0.0
          %435 = vst [vmem:[#allocation2 + $0x8] sm:$0xff] 0.0
          %436 = vst [vmem:[#allocation2 + $0x10] sm:$0xff] 0.0
          %437 = vst [vmem:[#allocation2 + $0x18] sm:$0xff] 0.0
          %438 = vst [vmem:[#allocation2 + $0x20] sm:$0xff] 0.0
          %439 = vst [vmem:[#allocation2 + $0x28] sm:$0xff] 0.0
          %440 = vst [vmem:[#allocation2 + $0x30] sm:$0xff] 0.0
          %441 = vst [vmem:[#allocation2 + $0x38] sm:$0xff] 0.0
          %442 = vst [vmem:[#allocation2 + $0x40] sm:$0xff] 0.0
          %443 = vst [vmem:[#allocation2 + $0x48] sm:$0xff] 0.0
          %444 = vst [vmem:[#allocation2 + $0x50] sm:$0xff] 0.0
          %445 = vst [vmem:[#allocation2 + $0x58] sm:$0xff] 0.0
          %446 = vst [vmem:[#allocation2 + $0x60] sm:$0xff] 0.0
          %447 = vst [vmem:[#allocation2 + $0x68] sm:$0xff] 0.0
          %448 = vst [vmem:[#allocation2 + $0x70] sm:$0xff] 0.0
          %449 = vst [vmem:[#allocation2 + $0x78] sm:$0xff] 0.0
          %450 = vst [vmem:[#allocation2 + $0x80] sm:$0xff] 0.0
          %451 = vst [vmem:[#allocation2 + $0x88] sm:$0xff] 0.0
          %452 = vst [vmem:[#allocation2 + $0x90] sm:$0xff] 0.0
          %453 = vst [vmem:[#allocation2 + $0x98] sm:$0xff] 0.0
          %454 = vst [vmem:[#allocation2 + $0xa0] sm:$0xff] 0.0
          %455 = vst [vmem:[#allocation2 + $0xa8] sm:$0xff] 0.0
          %456 = vst [vmem:[#allocation2 + $0xb0] sm:$0xff] 0.0
          %457 = vst [vmem:[#allocation2 + $0xb8] sm:$0xff] 0.0
          %458 = vst [vmem:[#allocation2 + $0xc0] sm:$0xff] 0.0
          %459 = vst [vmem:[#allocation2 + $0xc8] sm:$0xff] 0.0
          %460 = vst [vmem:[#allocation2 + $0xd0] sm:$0xff] 0.0
          %461 = vst [vmem:[#allocation2 + $0xd8] sm:$0xff] 0.0
          %462 = vst [vmem:[#allocation2 + $0xe0] sm:$0xff] 0.0
          %463 = vst [vmem:[#allocation2 + $0xe8] sm:$0xff] 0.0
          %464 = vst [vmem:[#allocation2 + $0xf0] sm:$0xff] 0.0
          %465 = vst [vmem:[#allocation2 + $0xf8] sm:$0xff] 0.0
          %466 = vst [vmem:[#allocation2 + $0x100] sm:$0xff] 0.0
          %467 = vst [vmem:[#allocation2 + $0x108] sm:$0xff] 0.0
          %468 = vst [vmem:[#allocation2 + $0x110] sm:$0xff] 0.0
          %469 = vst [vmem:[#allocation2 + $0x118] sm:$0xff] 0.0
          %470 = vst [vmem:[#allocation2 + $0x120] sm:$0xff] 0.0
          %471 = vst [vmem:[#allocation2 + $0x128] sm:$0xff] 0.0
          %472 = vst [vmem:[#allocation2 + $0x130] sm:$0xff] 0.0
          %473 = vst [vmem:[#allocation2 + $0x138] sm:$0xff] 0.0
          %474 = vst [vmem:[#allocation2 + $0x140] sm:$0xff] 0.0
          %475 = vst [vmem:[#allocation2 + $0x148] sm:$0xff] 0.0
          %476 = vst [vmem:[#allocation2 + $0x150] sm:$0xff] 0.0
          %477 = vst [vmem:[#allocation2 + $0x158] sm:$0xff] 0.0
          %478 = vst [vmem:[#allocation2 + $0x160] sm:$0xff] 0.0
          %479 = vst [vmem:[#allocation2 + $0x168] sm:$0xff] 0.0
          %480 = vst [vmem:[#allocation2 + $0x170] sm:$0xff] 0.0
          %481 = vst [vmem:[#allocation2 + $0x178] sm:$0xff] 0.0
          %482 = vst [vmem:[#allocation2 + $0x180] sm:$0xff] 0.0
          %483 = vst [vmem:[#allocation2 + $0x188] sm:$0xff] 0.0
          %484 = vst [vmem:[#allocation2 + $0x190] sm:$0xff] 0.0
          %485 = vst [vmem:[#allocation2 + $0x198] sm:$0xff] 0.0
          %486 = vst [vmem:[#allocation2 + $0x1a0] sm:$0xff] 0.0
          %487 = vst [vmem:[#allocation2 + $0x1a8] sm:$0xff] 0.0
          %488 = vst [vmem:[#allocation2 + $0x1b0] sm:$0xff] 0.0
          %489 = vst [vmem:[#allocation2 + $0x1b8] sm:$0xff] 0.0
          %490 = vst [vmem:[#allocation2 + $0x1c0] sm:$0xff] 0.0
          %491 = vst [vmem:[#allocation2 + $0x1c8] sm:$0xff] 0.0
          %492 = vst [vmem:[#allocation2 + $0x1d0] sm:$0xff] 0.0
          %493 = vst [vmem:[#allocation2 + $0x1d8] sm:$0xff] 0.0
          %494 = vst [vmem:[#allocation2 + $0x1e0] sm:$0xff] 0.0
          %495 = vst [vmem:[#allocation2 + $0x1e8] sm:$0xff] 0.0
          %496 = vst [vmem:[#allocation2 + $0x1f0] sm:$0xff] 0.0
          %497 = vst [vmem:[#allocation2 + $0x1f8] sm:$0xff] 0.0
        $region63: #{sage_e_net_forward.8} parent=54 // pred_fallthru
          _
        %v498 = vld [vmem:[%s366] sm:$0xff]
        %v499 = vld [vmem:[%s366 + $0x8] sm:$0xff]
        %v500 = vld [vmem:[%s366 + $0x10] sm:$0xff]
        %v501 = vld [vmem:[%s366 + $0x18] sm:$0xff]
        %v502 = vld [vmem:[%s366 + $0x20] sm:$0xff]
        %v503 = vld [vmem:[%s366 + $0x28] sm:$0xff]
        %v504 = vld [vmem:[%s366 + $0x30] sm:$0xff]
        %v505 = vld [vmem:[%s366 + $0x38] sm:$0xff]
        %v506 = vld [vmem:[%s366 + $0x40] sm:$0xff]
        %v507 = vld [vmem:[%s366 + $0x48] sm:$0xff]
        %v508 = vld [vmem:[%s366 + $0x50] sm:$0xff]
        %v509 = vld [vmem:[%s366 + $0x58] sm:$0xff]
        %v510 = vld [vmem:[%s366 + $0x60] sm:$0xff]
        %v511 = vld [vmem:[%s366 + $0x68] sm:$0xff]
        %v512 = vld [vmem:[%s366 + $0x70] sm:$0xff]
        %v513 = vld [vmem:[%s366 + $0x78] sm:$0xff]
        %v514 = vld [vmem:[%s366 + $0x80] sm:$0xff]
        %v515 = vld [vmem:[%s366 + $0x88] sm:$0xff]
        %v516 = vld [vmem:[%s366 + $0x90] sm:$0xff]
        %v517 = vld [vmem:[%s366 + $0x98] sm:$0xff]
        %v518 = vld [vmem:[%s366 + $0xa0] sm:$0xff]
        %v519 = vld [vmem:[%s366 + $0xa8] sm:$0xff]
        %v520 = vld [vmem:[%s366 + $0xb0] sm:$0xff]
        %v521 = vld [vmem:[%s366 + $0xb8] sm:$0xff]
        %v522 = vld [vmem:[%s366 + $0xc0] sm:$0xff]
        %v523 = vld [vmem:[%s366 + $0xc8] sm:$0xff]
        %v524 = vld [vmem:[%s366 + $0xd0] sm:$0xff]
        %v525 = vld [vmem:[%s366 + $0xd8] sm:$0xff]
        %v526 = vld [vmem:[%s366 + $0xe0] sm:$0xff]
        %v527 = vld [vmem:[%s366 + $0xe8] sm:$0xff]
        %v528 = vld [vmem:[%s366 + $0xf0] sm:$0xff]
        %v529 = vld [vmem:[%s366 + $0xf8] sm:$0xff]
        %v530 = vld [vmem:[%s366 + $0x100] sm:$0xff]
        %v531 = vld [vmem:[%s366 + $0x108] sm:$0xff]
        %v532 = vld [vmem:[%s366 + $0x110] sm:$0xff]
        %v533 = vld [vmem:[%s366 + $0x118] sm:$0xff]
        %v534 = vld [vmem:[%s366 + $0x120] sm:$0xff]
        %v535 = vld [vmem:[%s366 + $0x128] sm:$0xff]
        %v536 = vld [vmem:[%s366 + $0x130] sm:$0xff]
        %v537 = vld [vmem:[%s366 + $0x138] sm:$0xff]
        %v538 = vld [vmem:[%s366 + $0x140] sm:$0xff]
        %v539 = vld [vmem:[%s366 + $0x148] sm:$0xff]
        %v540 = vld [vmem:[%s366 + $0x150] sm:$0xff]
        %v541 = vld [vmem:[%s366 + $0x158] sm:$0xff]
        %v542 = vld [vmem:[%s366 + $0x160] sm:$0xff]
        %v543 = vld [vmem:[%s366 + $0x168] sm:$0xff]
        %v544 = vld [vmem:[%s366 + $0x170] sm:$0xff]
        %v545 = vld [vmem:[%s366 + $0x178] sm:$0xff]
        %v546 = vld [vmem:[%s366 + $0x180] sm:$0xff]
        %v547 = vld [vmem:[%s366 + $0x188] sm:$0xff]
        %v548 = vld [vmem:[%s366 + $0x190] sm:$0xff]
        %v549 = vld [vmem:[%s366 + $0x198] sm:$0xff]
        %v550 = vld [vmem:[%s366 + $0x1a0] sm:$0xff]
        %v551 = vld [vmem:[%s366 + $0x1a8] sm:$0xff]
        %v552 = vld [vmem:[%s366 + $0x1b0] sm:$0xff]
        %v553 = vld [vmem:[%s366 + $0x1b8] sm:$0xff]
        %v554 = vld [vmem:[%s366 + $0x1c0] sm:$0xff]
        %v555 = vld [vmem:[%s366 + $0x1c8] sm:$0xff]
        %v556 = vld [vmem:[%s366 + $0x1d0] sm:$0xff]
        %v557 = vld [vmem:[%s366 + $0x1d8] sm:$0xff]
        %v558 = vld [vmem:[%s366 + $0x1e0] sm:$0xff]
        %v559 = vld [vmem:[%s366 + $0x1e8] sm:$0xff]
        %v560 = vld [vmem:[%s366 + $0x1f0] sm:$0xff]
        %v561 = vld [vmem:[%s366 + $0x1f8] sm:$0xff]
        %v562 = vunpack.c.0.s8 %v498
        %v563 = vunpack.c.0.s8 %v499
        %v564 = vunpack.c.0.s8 %v500
        %v565 = vunpack.c.0.s8 %v501
        %v566 = vunpack.c.1.s8 %v498
        %v567 = vunpack.c.1.s8 %v499
        %v568 = vunpack.c.1.s8 %v500
        %v569 = vunpack.c.1.s8 %v501
        %v570 = vunpack.c.2.s8 %v498
        %v571 = vunpack.c.2.s8 %v499
        %v572 = vunpack.c.2.s8 %v500
        %v573 = vunpack.c.2.s8 %v501
        %v574 = vunpack.c.3.s8 %v498
        %v575 = vunpack.c.3.s8 %v499
        %v576 = vunpack.c.3.s8 %v500
        %v577 = vunpack.c.3.s8 %v501
        %v578 = vunpack.c.0.s8 %v502
        %v579 = vunpack.c.0.s8 %v503
        %v580 = vunpack.c.0.s8 %v504
        %v581 = vunpack.c.0.s8 %v505
        %v582 = vunpack.c.1.s8 %v502
        %v583 = vunpack.c.1.s8 %v503
        %v584 = vunpack.c.1.s8 %v504
        %v585 = vunpack.c.1.s8 %v505
        %v586 = vunpack.c.2.s8 %v502
        %v587 = vunpack.c.2.s8 %v503
        %v588 = vunpack.c.2.s8 %v504
        %v589 = vunpack.c.2.s8 %v505
        %v590 = vunpack.c.3.s8 %v502
        %v591 = vunpack.c.3.s8 %v503
        %v592 = vunpack.c.3.s8 %v504
        %v593 = vunpack.c.3.s8 %v505
        %v594 = vunpack.c.0.s8 %v506
        %v595 = vunpack.c.0.s8 %v507
        %v596 = vunpack.c.0.s8 %v508
        %v597 = vunpack.c.0.s8 %v509
        %v598 = vunpack.c.1.s8 %v506
        %v599 = vunpack.c.1.s8 %v507
        %v600 = vunpack.c.1.s8 %v508
        %v601 = vunpack.c.1.s8 %v509
        %v602 = vunpack.c.2.s8 %v506
        %v603 = vunpack.c.2.s8 %v507
        %v604 = vunpack.c.2.s8 %v508
        %v605 = vunpack.c.2.s8 %v509
        %v606 = vunpack.c.3.s8 %v506
        %v607 = vunpack.c.3.s8 %v507
        %v608 = vunpack.c.3.s8 %v508
        %v609 = vunpack.c.3.s8 %v509
        %v610 = vunpack.c.0.s8 %v510
        %v611 = vunpack.c.0.s8 %v511
        %v612 = vunpack.c.0.s8 %v512
        %v613 = vunpack.c.0.s8 %v513
        %v614 = vunpack.c.1.s8 %v510
        %v615 = vunpack.c.1.s8 %v511
        %v616 = vunpack.c.1.s8 %v512
        %v617 = vunpack.c.1.s8 %v513
        %v618 = vunpack.c.2.s8 %v510
        %v619 = vunpack.c.2.s8 %v511
        %v620 = vunpack.c.2.s8 %v512
        %v621 = vunpack.c.2.s8 %v513
        %v622 = vunpack.c.3.s8 %v510
        %v623 = vunpack.c.3.s8 %v511
        %v624 = vunpack.c.3.s8 %v512
        %v625 = vunpack.c.3.s8 %v513
        %v626 = vunpack.c.0.s8 %v514
        %v627 = vunpack.c.0.s8 %v515
        %v628 = vunpack.c.0.s8 %v516
        %v629 = vunpack.c.0.s8 %v517
        %v630 = vunpack.c.1.s8 %v514
        %v631 = vunpack.c.1.s8 %v515
        %v632 = vunpack.c.1.s8 %v516
        %v633 = vunpack.c.1.s8 %v517
        %v634 = vunpack.c.2.s8 %v514
        %v635 = vunpack.c.2.s8 %v515
        %v636 = vunpack.c.2.s8 %v516
        %v637 = vunpack.c.2.s8 %v517
        %v638 = vunpack.c.3.s8 %v514
        %v639 = vunpack.c.3.s8 %v515
        %v640 = vunpack.c.3.s8 %v516
        %v641 = vunpack.c.3.s8 %v517
        %v642 = vunpack.c.0.s8 %v518
        %v643 = vunpack.c.0.s8 %v519
        %v644 = vunpack.c.0.s8 %v520
        %v645 = vunpack.c.0.s8 %v521
        %v646 = vunpack.c.1.s8 %v518
        %v647 = vunpack.c.1.s8 %v519
        %v648 = vunpack.c.1.s8 %v520
        %v649 = vunpack.c.1.s8 %v521
        %v650 = vunpack.c.2.s8 %v518
        %v651 = vunpack.c.2.s8 %v519
        %v652 = vunpack.c.2.s8 %v520
        %v653 = vunpack.c.2.s8 %v521
        %v654 = vunpack.c.3.s8 %v518
        %v655 = vunpack.c.3.s8 %v519
        %v656 = vunpack.c.3.s8 %v520
        %v657 = vunpack.c.3.s8 %v521
        %v658 = vunpack.c.0.s8 %v522
        %v659 = vunpack.c.0.s8 %v523
        %v660 = vunpack.c.0.s8 %v524
        %v661 = vunpack.c.0.s8 %v525
        %v662 = vunpack.c.1.s8 %v522
        %v663 = vunpack.c.1.s8 %v523
        %v664 = vunpack.c.1.s8 %v524
        %v665 = vunpack.c.1.s8 %v525
        %v666 = vunpack.c.2.s8 %v522
        %v667 = vunpack.c.2.s8 %v523
        %v668 = vunpack.c.2.s8 %v524
        %v669 = vunpack.c.2.s8 %v525
        %v670 = vunpack.c.3.s8 %v522
        %v671 = vunpack.c.3.s8 %v523
        %v672 = vunpack.c.3.s8 %v524
        %v673 = vunpack.c.3.s8 %v525
        %v674 = vunpack.c.0.s8 %v526
        %v675 = vunpack.c.0.s8 %v527
        %v676 = vunpack.c.0.s8 %v528
        %v677 = vunpack.c.0.s8 %v529
        %v678 = vunpack.c.1.s8 %v526
        %v679 = vunpack.c.1.s8 %v527
        %v680 = vunpack.c.1.s8 %v528
        %v681 = vunpack.c.1.s8 %v529
        %v682 = vunpack.c.2.s8 %v526
        %v683 = vunpack.c.2.s8 %v527
        %v684 = vunpack.c.2.s8 %v528
        %v685 = vunpack.c.2.s8 %v529
        %v686 = vunpack.c.3.s8 %v526
        %v687 = vunpack.c.3.s8 %v527
        %v688 = vunpack.c.3.s8 %v528
        %v689 = vunpack.c.3.s8 %v529
        %v690 = vunpack.c.0.s8 %v530
        %v691 = vunpack.c.0.s8 %v531
        %v692 = vunpack.c.0.s8 %v532
        %v693 = vunpack.c.0.s8 %v533
        %v694 = vunpack.c.1.s8 %v530
        %v695 = vunpack.c.1.s8 %v531
        %v696 = vunpack.c.1.s8 %v532
        %v697 = vunpack.c.1.s8 %v533
        %v698 = vunpack.c.2.s8 %v530
        %v699 = vunpack.c.2.s8 %v531
        %v700 = vunpack.c.2.s8 %v532
        %v701 = vunpack.c.2.s8 %v533
        %v702 = vunpack.c.3.s8 %v530
        %v703 = vunpack.c.3.s8 %v531
        %v704 = vunpack.c.3.s8 %v532
        %v705 = vunpack.c.3.s8 %v533
        %v706 = vunpack.c.0.s8 %v534
        %v707 = vunpack.c.0.s8 %v535
        %v708 = vunpack.c.0.s8 %v536
        %v709 = vunpack.c.0.s8 %v537
        %v710 = vunpack.c.1.s8 %v534
        %v711 = vunpack.c.1.s8 %v535
        %v712 = vunpack.c.1.s8 %v536
        %v713 = vunpack.c.1.s8 %v537
        %v714 = vunpack.c.2.s8 %v534
        %v715 = vunpack.c.2.s8 %v535
        %v716 = vunpack.c.2.s8 %v536
        %v717 = vunpack.c.2.s8 %v537
        %v718 = vunpack.c.3.s8 %v534
        %v719 = vunpack.c.3.s8 %v535
        %v720 = vunpack.c.3.s8 %v536
        %v721 = vunpack.c.3.s8 %v537
        %v722 = vunpack.c.0.s8 %v538
        %v723 = vunpack.c.0.s8 %v539
        %v724 = vunpack.c.0.s8 %v540
        %v725 = vunpack.c.0.s8 %v541
        %v726 = vunpack.c.1.s8 %v538
        %v727 = vunpack.c.1.s8 %v539
        %v728 = vunpack.c.1.s8 %v540
        %v729 = vunpack.c.1.s8 %v541
        %v730 = vunpack.c.2.s8 %v538
        %v731 = vunpack.c.2.s8 %v539
        %v732 = vunpack.c.2.s8 %v540
        %v733 = vunpack.c.2.s8 %v541
        %v734 = vunpack.c.3.s8 %v538
        %v735 = vunpack.c.3.s8 %v539
        %v736 = vunpack.c.3.s8 %v540
        %v737 = vunpack.c.3.s8 %v541
        %v738 = vunpack.c.0.s8 %v542
        %v739 = vunpack.c.0.s8 %v543
        %v740 = vunpack.c.0.s8 %v544
        %v741 = vunpack.c.0.s8 %v545
        %v742 = vunpack.c.1.s8 %v542
        %v743 = vunpack.c.1.s8 %v543
        %v744 = vunpack.c.1.s8 %v544
        %v745 = vunpack.c.1.s8 %v545
        %v746 = vunpack.c.2.s8 %v542
        %v747 = vunpack.c.2.s8 %v543
        %v748 = vunpack.c.2.s8 %v544
        %v749 = vunpack.c.2.s8 %v545
        %v750 = vunpack.c.3.s8 %v542
        %v751 = vunpack.c.3.s8 %v543
        %v752 = vunpack.c.3.s8 %v544
        %v753 = vunpack.c.3.s8 %v545
        %v754 = vunpack.c.0.s8 %v546
        %v755 = vunpack.c.0.s8 %v547
        %v756 = vunpack.c.0.s8 %v548
        %v757 = vunpack.c.0.s8 %v549
        %v758 = vunpack.c.1.s8 %v546
        %v759 = vunpack.c.1.s8 %v547
        %v760 = vunpack.c.1.s8 %v548
        %v761 = vunpack.c.1.s8 %v549
        %v762 = vunpack.c.2.s8 %v546
        %v763 = vunpack.c.2.s8 %v547
        %v764 = vunpack.c.2.s8 %v548
        %v765 = vunpack.c.2.s8 %v549
        %v766 = vunpack.c.3.s8 %v546
        %v767 = vunpack.c.3.s8 %v547
        %v768 = vunpack.c.3.s8 %v548
        %v769 = vunpack.c.3.s8 %v549
        %v770 = vunpack.c.0.s8 %v550
        %v771 = vunpack.c.0.s8 %v551
        %v772 = vunpack.c.0.s8 %v552
        %v773 = vunpack.c.0.s8 %v553
        %v774 = vunpack.c.1.s8 %v550
        %v775 = vunpack.c.1.s8 %v551
        %v776 = vunpack.c.1.s8 %v552
        %v777 = vunpack.c.1.s8 %v553
        %v778 = vunpack.c.2.s8 %v550
        %v779 = vunpack.c.2.s8 %v551
        %v780 = vunpack.c.2.s8 %v552
        %v781 = vunpack.c.2.s8 %v553
        %v782 = vunpack.c.3.s8 %v550
        %v783 = vunpack.c.3.s8 %v551
        %v784 = vunpack.c.3.s8 %v552
        %v785 = vunpack.c.3.s8 %v553
        %v786 = vunpack.c.0.s8 %v554
        %v787 = vunpack.c.0.s8 %v555
        %v788 = vunpack.c.0.s8 %v556
        %v789 = vunpack.c.0.s8 %v557
        %v790 = vunpack.c.1.s8 %v554
        %v791 = vunpack.c.1.s8 %v555
        %v792 = vunpack.c.1.s8 %v556
        %v793 = vunpack.c.1.s8 %v557
        %v794 = vunpack.c.2.s8 %v554
        %v795 = vunpack.c.2.s8 %v555
        %v796 = vunpack.c.2.s8 %v556
        %v797 = vunpack.c.2.s8 %v557
        %v798 = vunpack.c.3.s8 %v554
        %v799 = vunpack.c.3.s8 %v555
        %v800 = vunpack.c.3.s8 %v556
        %v801 = vunpack.c.3.s8 %v557
        %v802 = vunpack.c.0.s8 %v558
        %v803 = vunpack.c.0.s8 %v559
        %v804 = vunpack.c.0.s8 %v560
        %v805 = vunpack.c.0.s8 %v561
        %v806 = vunpack.c.1.s8 %v558
        %v807 = vunpack.c.1.s8 %v559
        %v808 = vunpack.c.1.s8 %v560
        %v809 = vunpack.c.1.s8 %v561
        %v810 = vunpack.c.2.s8 %v558
        %v811 = vunpack.c.2.s8 %v559
        %v812 = vunpack.c.2.s8 %v560
        %v813 = vunpack.c.2.s8 %v561
        %v814 = vunpack.c.3.s8 %v558
        %v815 = vunpack.c.3.s8 %v559
        %v816 = vunpack.c.3.s8 %v560
        %v817 = vunpack.c.3.s8 %v561
        %v818 = vcvt.s32.f32 %v562
        %v819 = vcvt.s32.f32 %v563
        %v820 = vcvt.s32.f32 %v564
        %v821 = vcvt.s32.f32 %v565
        %v822 = vcvt.s32.f32 %v566
        %v823 = vcvt.s32.f32 %v567
        %v824 = vcvt.s32.f32 %v568
        %v825 = vcvt.s32.f32 %v569
        %v826 = vcvt.s32.f32 %v570
        %v827 = vcvt.s32.f32 %v571
        %v828 = vcvt.s32.f32 %v572
        %v829 = vcvt.s32.f32 %v573
        %v830 = vcvt.s32.f32 %v574
        %v831 = vcvt.s32.f32 %v575
        %v832 = vcvt.s32.f32 %v576
        %v833 = vcvt.s32.f32 %v577
        %v834 = vcvt.s32.f32 %v578
        %v835 = vcvt.s32.f32 %v579
        %v836 = vcvt.s32.f32 %v580
        %v837 = vcvt.s32.f32 %v581
        %v838 = vcvt.s32.f32 %v582
        %v839 = vcvt.s32.f32 %v583
        %v840 = vcvt.s32.f32 %v584
        %v841 = vcvt.s32.f32 %v585
        %v842 = vcvt.s32.f32 %v586
        %v843 = vcvt.s32.f32 %v587
        %v844 = vcvt.s32.f32 %v588
        %v845 = vcvt.s32.f32 %v589
        %v846 = vcvt.s32.f32 %v590
        %v847 = vcvt.s32.f32 %v591
        %v848 = vcvt.s32.f32 %v592
        %v849 = vcvt.s32.f32 %v593
        %v850 = vcvt.s32.f32 %v594
        %v851 = vcvt.s32.f32 %v595
        %v852 = vcvt.s32.f32 %v596
        %v853 = vcvt.s32.f32 %v597
        %v854 = vcvt.s32.f32 %v598
        %v855 = vcvt.s32.f32 %v599
        %v856 = vcvt.s32.f32 %v600
        %v857 = vcvt.s32.f32 %v601
        %v858 = vcvt.s32.f32 %v602
        %v859 = vcvt.s32.f32 %v603
        %v860 = vcvt.s32.f32 %v604
        %v861 = vcvt.s32.f32 %v605
        %v862 = vcvt.s32.f32 %v606
        %v863 = vcvt.s32.f32 %v607
        %v864 = vcvt.s32.f32 %v608
        %v865 = vcvt.s32.f32 %v609
        %v866 = vcvt.s32.f32 %v610
        %v867 = vcvt.s32.f32 %v611
        %v868 = vcvt.s32.f32 %v612
        %v869 = vcvt.s32.f32 %v613
        %v870 = vcvt.s32.f32 %v614
        %v871 = vcvt.s32.f32 %v615
        %v872 = vcvt.s32.f32 %v616
        %v873 = vcvt.s32.f32 %v617
        %v874 = vcvt.s32.f32 %v618
        %v875 = vcvt.s32.f32 %v619
        %v876 = vcvt.s32.f32 %v620
        %v877 = vcvt.s32.f32 %v621
        %v878 = vcvt.s32.f32 %v622
        %v879 = vcvt.s32.f32 %v623
        %v880 = vcvt.s32.f32 %v624
        %v881 = vcvt.s32.f32 %v625
        %v882 = vcvt.s32.f32 %v626
        %v883 = vcvt.s32.f32 %v627
        %v884 = vcvt.s32.f32 %v628
        %v885 = vcvt.s32.f32 %v629
        %v886 = vcvt.s32.f32 %v630
        %v887 = vcvt.s32.f32 %v631
        %v888 = vcvt.s32.f32 %v632
        %v889 = vcvt.s32.f32 %v633
        %v890 = vcvt.s32.f32 %v634
        %v891 = vcvt.s32.f32 %v635
        %v892 = vcvt.s32.f32 %v636
        %v893 = vcvt.s32.f32 %v637
        %v894 = vcvt.s32.f32 %v638
        %v895 = vcvt.s32.f32 %v639
        %v896 = vcvt.s32.f32 %v640
        %v897 = vcvt.s32.f32 %v641
        %v898 = vcvt.s32.f32 %v642
        %v899 = vcvt.s32.f32 %v643
        %v900 = vcvt.s32.f32 %v644
        %v901 = vcvt.s32.f32 %v645
        %v902 = vcvt.s32.f32 %v646
        %v903 = vcvt.s32.f32 %v647
        %v904 = vcvt.s32.f32 %v648
        %v905 = vcvt.s32.f32 %v649
        %v906 = vcvt.s32.f32 %v650
        %v907 = vcvt.s32.f32 %v651
        %v908 = vcvt.s32.f32 %v652
        %v909 = vcvt.s32.f32 %v653
        %v910 = vcvt.s32.f32 %v654
        %v911 = vcvt.s32.f32 %v655
        %v912 = vcvt.s32.f32 %v656
        %v913 = vcvt.s32.f32 %v657
        %v914 = vcvt.s32.f32 %v658
        %v915 = vcvt.s32.f32 %v659
        %v916 = vcvt.s32.f32 %v660
        %v917 = vcvt.s32.f32 %v661
        %v918 = vcvt.s32.f32 %v662
        %v919 = vcvt.s32.f32 %v663
        %v920 = vcvt.s32.f32 %v664
        %v921 = vcvt.s32.f32 %v665
        %v922 = vcvt.s32.f32 %v666
        %v923 = vcvt.s32.f32 %v667
        %v924 = vcvt.s32.f32 %v668
        %v925 = vcvt.s32.f32 %v669
        %v926 = vcvt.s32.f32 %v670
        %v927 = vcvt.s32.f32 %v671
        %v928 = vcvt.s32.f32 %v672
        %v929 = vcvt.s32.f32 %v673
        %v930 = vcvt.s32.f32 %v674
        %v931 = vcvt.s32.f32 %v675
        %v932 = vcvt.s32.f32 %v676
        %v933 = vcvt.s32.f32 %v677
        %v934 = vcvt.s32.f32 %v678
        %v935 = vcvt.s32.f32 %v679
        %v936 = vcvt.s32.f32 %v680
        %v937 = vcvt.s32.f32 %v681
        %v938 = vcvt.s32.f32 %v682
        %v939 = vcvt.s32.f32 %v683
        %v940 = vcvt.s32.f32 %v684
        %v941 = vcvt.s32.f32 %v685
        %v942 = vcvt.s32.f32 %v686
        %v943 = vcvt.s32.f32 %v687
        %v944 = vcvt.s32.f32 %v688
        %v945 = vcvt.s32.f32 %v689
        %v946 = vcvt.s32.f32 %v690
        %v947 = vcvt.s32.f32 %v691
        %v948 = vcvt.s32.f32 %v692
        %v949 = vcvt.s32.f32 %v693
        %v950 = vcvt.s32.f32 %v694
        %v951 = vcvt.s32.f32 %v695
        %v952 = vcvt.s32.f32 %v696
        %v953 = vcvt.s32.f32 %v697
        %v954 = vcvt.s32.f32 %v698
        %v955 = vcvt.s32.f32 %v699
        %v956 = vcvt.s32.f32 %v700
        %v957 = vcvt.s32.f32 %v701
        %v958 = vcvt.s32.f32 %v702
        %v959 = vcvt.s32.f32 %v703
        %v960 = vcvt.s32.f32 %v704
        %v961 = vcvt.s32.f32 %v705
        %v962 = vcvt.s32.f32 %v706
        %v963 = vcvt.s32.f32 %v707
        %v964 = vcvt.s32.f32 %v708
        %v965 = vcvt.s32.f32 %v709
        %v966 = vcvt.s32.f32 %v710
        %v967 = vcvt.s32.f32 %v711
        %v968 = vcvt.s32.f32 %v712
        %v969 = vcvt.s32.f32 %v713
        %v970 = vcvt.s32.f32 %v714
        %v971 = vcvt.s32.f32 %v715
        %v972 = vcvt.s32.f32 %v716
        %v973 = vcvt.s32.f32 %v717
        %v974 = vcvt.s32.f32 %v718
        %v975 = vcvt.s32.f32 %v719
        %v976 = vcvt.s32.f32 %v720
        %v977 = vcvt.s32.f32 %v721
        %v978 = vcvt.s32.f32 %v722
        %v979 = vcvt.s32.f32 %v723
        %v980 = vcvt.s32.f32 %v724
        %v981 = vcvt.s32.f32 %v725
        %v982 = vcvt.s32.f32 %v726
        %v983 = vcvt.s32.f32 %v727
        %v984 = vcvt.s32.f32 %v728
        %v985 = vcvt.s32.f32 %v729
        %v986 = vcvt.s32.f32 %v730
        %v987 = vcvt.s32.f32 %v731
        %v988 = vcvt.s32.f32 %v732
        %v989 = vcvt.s32.f32 %v733
        %v990 = vcvt.s32.f32 %v734
        %v991 = vcvt.s32.f32 %v735
        %v992 = vcvt.s32.f32 %v736
        %v993 = vcvt.s32.f32 %v737
        %v994 = vcvt.s32.f32 %v738
        %v995 = vcvt.s32.f32 %v739
        %v996 = vcvt.s32.f32 %v740
        %v997 = vcvt.s32.f32 %v741
        %v998 = vcvt.s32.f32 %v742
        %v999 = vcvt.s32.f32 %v743
        %v1000 = vcvt.s32.f32 %v744
        %v1001 = vcvt.s32.f32 %v745
        %v1002 = vcvt.s32.f32 %v746
        %v1003 = vcvt.s32.f32 %v747
        %v1004 = vcvt.s32.f32 %v748
        %v1005 = vcvt.s32.f32 %v749
        %v1006 = vcvt.s32.f32 %v750
        %v1007 = vcvt.s32.f32 %v751
        %v1008 = vcvt.s32.f32 %v752
        %v1009 = vcvt.s32.f32 %v753
        %v1010 = vcvt.s32.f32 %v754
        %v1011 = vcvt.s32.f32 %v755
        %v1012 = vcvt.s32.f32 %v756
        %v1013 = vcvt.s32.f32 %v757
        %v1014 = vcvt.s32.f32 %v758
        %v1015 = vcvt.s32.f32 %v759
        %v1016 = vcvt.s32.f32 %v760
        %v1017 = vcvt.s32.f32 %v761
        %v1018 = vcvt.s32.f32 %v762
        %v1019 = vcvt.s32.f32 %v763
        %v1020 = vcvt.s32.f32 %v764
        %v1021 = vcvt.s32.f32 %v765
        %v1022 = vcvt.s32.f32 %v766
        %v1023 = vcvt.s32.f32 %v767
        %v1024 = vcvt.s32.f32 %v768
        %v1025 = vcvt.s32.f32 %v769
        %v1026 = vcvt.s32.f32 %v770
        %v1027 = vcvt.s32.f32 %v771
        %v1028 = vcvt.s32.f32 %v772
        %v1029 = vcvt.s32.f32 %v773
        %v1030 = vcvt.s32.f32 %v774
        %v1031 = vcvt.s32.f32 %v775
        %v1032 = vcvt.s32.f32 %v776
        %v1033 = vcvt.s32.f32 %v777
        %v1034 = vcvt.s32.f32 %v778
        %v1035 = vcvt.s32.f32 %v779
        %v1036 = vcvt.s32.f32 %v780
        %v1037 = vcvt.s32.f32 %v781
        %v1038 = vcvt.s32.f32 %v782
        %v1039 = vcvt.s32.f32 %v783
        %v1040 = vcvt.s32.f32 %v784
        %v1041 = vcvt.s32.f32 %v785
        %v1042 = vcvt.s32.f32 %v786
        %v1043 = vcvt.s32.f32 %v787
        %v1044 = vcvt.s32.f32 %v788
        %v1045 = vcvt.s32.f32 %v789
        %v1046 = vcvt.s32.f32 %v790
        %v1047 = vcvt.s32.f32 %v791
        %v1048 = vcvt.s32.f32 %v792
        %v1049 = vcvt.s32.f32 %v793
        %v1050 = vcvt.s32.f32 %v794
        %v1051 = vcvt.s32.f32 %v795
        %v1052 = vcvt.s32.f32 %v796
        %v1053 = vcvt.s32.f32 %v797
        %v1054 = vcvt.s32.f32 %v798
        %v1055 = vcvt.s32.f32 %v799
        %v1056 = vcvt.s32.f32 %v800
        %v1057 = vcvt.s32.f32 %v801
        %v1058 = vcvt.s32.f32 %v802
        %v1059 = vcvt.s32.f32 %v803
        %v1060 = vcvt.s32.f32 %v804
        %v1061 = vcvt.s32.f32 %v805
        %v1062 = vcvt.s32.f32 %v806
        %v1063 = vcvt.s32.f32 %v807
        %v1064 = vcvt.s32.f32 %v808
        %v1065 = vcvt.s32.f32 %v809
        %v1066 = vcvt.s32.f32 %v810
        %v1067 = vcvt.s32.f32 %v811
        %v1068 = vcvt.s32.f32 %v812
        %v1069 = vcvt.s32.f32 %v813
        %v1070 = vcvt.s32.f32 %v814
        %v1071 = vcvt.s32.f32 %v815
        %v1072 = vcvt.s32.f32 %v816
        %v1073 = vcvt.s32.f32 %v817
        %v1074 = vpack.c.bf16 %v822, %v818
        %v1075 = vpack.c.bf16 %v823, %v819
        %v1076 = vpack.c.bf16 %v824, %v820
        %v1077 = vpack.c.bf16 %v825, %v821
        %v1078 = vpack.c.bf16 %v830, %v826
        %v1079 = vpack.c.bf16 %v831, %v827
        %v1080 = vpack.c.bf16 %v832, %v828
        %v1081 = vpack.c.bf16 %v833, %v829
        %v1082 = vpack.c.bf16 %v838, %v834
        %v1083 = vpack.c.bf16 %v839, %v835
        %v1084 = vpack.c.bf16 %v840, %v836
        %v1085 = vpack.c.bf16 %v841, %v837
        %v1086 = vpack.c.bf16 %v846, %v842
        %v1087 = vpack.c.bf16 %v847, %v843
        %v1088 = vpack.c.bf16 %v848, %v844
        %v1089 = vpack.c.bf16 %v849, %v845
        %v1090 = vpack.c.bf16 %v854, %v850
        %v1091 = vpack.c.bf16 %v855, %v851
        %v1092 = vpack.c.bf16 %v856, %v852
        %v1093 = vpack.c.bf16 %v857, %v853
        %v1094 = vpack.c.bf16 %v862, %v858
        %v1095 = vpack.c.bf16 %v863, %v859
        %v1096 = vpack.c.bf16 %v864, %v860
        %v1097 = vpack.c.bf16 %v865, %v861
        %v1098 = vpack.c.bf16 %v870, %v866
        %v1099 = vpack.c.bf16 %v871, %v867
        %v1100 = vpack.c.bf16 %v872, %v868
        %v1101 = vpack.c.bf16 %v873, %v869
        %v1102 = vpack.c.bf16 %v878, %v874
        %v1103 = vpack.c.bf16 %v879, %v875
        %v1104 = vpack.c.bf16 %v880, %v876
        %v1105 = vpack.c.bf16 %v881, %v877
        %v1106 = vpack.c.bf16 %v886, %v882
        %v1107 = vpack.c.bf16 %v887, %v883
        %v1108 = vpack.c.bf16 %v888, %v884
        %v1109 = vpack.c.bf16 %v889, %v885
        %v1110 = vpack.c.bf16 %v894, %v890
        %v1111 = vpack.c.bf16 %v895, %v891
        %v1112 = vpack.c.bf16 %v896, %v892
        %v1113 = vpack.c.bf16 %v897, %v893
        %v1114 = vpack.c.bf16 %v902, %v898
        %v1115 = vpack.c.bf16 %v903, %v899
        %v1116 = vpack.c.bf16 %v904, %v900
        %v1117 = vpack.c.bf16 %v905, %v901
        %v1118 = vpack.c.bf16 %v910, %v906
        %v1119 = vpack.c.bf16 %v911, %v907
        %v1120 = vpack.c.bf16 %v912, %v908
        %v1121 = vpack.c.bf16 %v913, %v909
        %v1122 = vpack.c.bf16 %v918, %v914
        %v1123 = vpack.c.bf16 %v919, %v915
        %v1124 = vpack.c.bf16 %v920, %v916
        %v1125 = vpack.c.bf16 %v921, %v917
        %v1126 = vpack.c.bf16 %v926, %v922
        %v1127 = vpack.c.bf16 %v927, %v923
        %v1128 = vpack.c.bf16 %v928, %v924
        %v1129 = vpack.c.bf16 %v929, %v925
        %v1130 = vpack.c.bf16 %v934, %v930
        %v1131 = vpack.c.bf16 %v935, %v931
        %v1132 = vpack.c.bf16 %v936, %v932
        %v1133 = vpack.c.bf16 %v937, %v933
        %v1134 = vpack.c.bf16 %v942, %v938
        %v1135 = vpack.c.bf16 %v943, %v939
        %v1136 = vpack.c.bf16 %v944, %v940
        %v1137 = vpack.c.bf16 %v945, %v941
        %v1138 = vpack.c.bf16 %v950, %v946
        %v1139 = vpack.c.bf16 %v951, %v947
        %v1140 = vpack.c.bf16 %v952, %v948
        %v1141 = vpack.c.bf16 %v953, %v949
        %v1142 = vpack.c.bf16 %v958, %v954
        %v1143 = vpack.c.bf16 %v959, %v955
        %v1144 = vpack.c.bf16 %v960, %v956
        %v1145 = vpack.c.bf16 %v961, %v957
        %v1146 = vpack.c.bf16 %v966, %v962
        %v1147 = vpack.c.bf16 %v967, %v963
        %v1148 = vpack.c.bf16 %v968, %v964
        %v1149 = vpack.c.bf16 %v969, %v965
        %v1150 = vpack.c.bf16 %v974, %v970
        %v1151 = vpack.c.bf16 %v975, %v971
        %v1152 = vpack.c.bf16 %v976, %v972
        %v1153 = vpack.c.bf16 %v977, %v973
        %v1154 = vpack.c.bf16 %v982, %v978
        %v1155 = vpack.c.bf16 %v983, %v979
        %v1156 = vpack.c.bf16 %v984, %v980
        %v1157 = vpack.c.bf16 %v985, %v981
        %v1158 = vpack.c.bf16 %v990, %v986
        %v1159 = vpack.c.bf16 %v991, %v987
        %v1160 = vpack.c.bf16 %v992, %v988
        %v1161 = vpack.c.bf16 %v993, %v989
        %v1162 = vpack.c.bf16 %v998, %v994
        %v1163 = vpack.c.bf16 %v999, %v995
        %v1164 = vpack.c.bf16 %v1000, %v996
        %v1165 = vpack.c.bf16 %v1001, %v997
        %v1166 = vpack.c.bf16 %v1006, %v1002
        %v1167 = vpack.c.bf16 %v1007, %v1003
        %v1168 = vpack.c.bf16 %v1008, %v1004
        %v1169 = vpack.c.bf16 %v1009, %v1005
        %v1170 = vpack.c.bf16 %v1014, %v1010
        %v1171 = vpack.c.bf16 %v1015, %v1011
        %v1172 = vpack.c.bf16 %v1016, %v1012
        %v1173 = vpack.c.bf16 %v1017, %v1013
        %v1174 = vpack.c.bf16 %v1022, %v1018
        %v1175 = vpack.c.bf16 %v1023, %v1019
        %v1176 = vpack.c.bf16 %v1024, %v1020
        %v1177 = vpack.c.bf16 %v1025, %v1021
        %v1178 = vpack.c.bf16 %v1030, %v1026
        %v1179 = vpack.c.bf16 %v1031, %v1027
        %v1180 = vpack.c.bf16 %v1032, %v1028
        %v1181 = vpack.c.bf16 %v1033, %v1029
        %v1182 = vpack.c.bf16 %v1038, %v1034
        %v1183 = vpack.c.bf16 %v1039, %v1035
        %v1184 = vpack.c.bf16 %v1040, %v1036
        %v1185 = vpack.c.bf16 %v1041, %v1037
        %v1186 = vpack.c.bf16 %v1046, %v1042
        %v1187 = vpack.c.bf16 %v1047, %v1043
        %v1188 = vpack.c.bf16 %v1048, %v1044
        %v1189 = vpack.c.bf16 %v1049, %v1045
        %v1190 = vpack.c.bf16 %v1054, %v1050
        %v1191 = vpack.c.bf16 %v1055, %v1051
        %v1192 = vpack.c.bf16 %v1056, %v1052
        %v1193 = vpack.c.bf16 %v1057, %v1053
        %v1194 = vpack.c.bf16 %v1062, %v1058
        %v1195 = vpack.c.bf16 %v1063, %v1059
        %v1196 = vpack.c.bf16 %v1064, %v1060
        %v1197 = vpack.c.bf16 %v1065, %v1061
        %v1198 = vpack.c.bf16 %v1070, %v1066
        %v1199 = vpack.c.bf16 %v1071, %v1067
        %v1200 = vpack.c.bf16 %v1072, %v1068
        %v1201 = vpack.c.bf16 %v1073, %v1069
        %v1202 = vld [vmem:[#allocation2] sm:$0xff]
        %v1203 = vld [vmem:[#allocation2 + $0x8] sm:$0xff]
        %v1204 = vld [vmem:[#allocation2 + $0x10] sm:$0xff]
        %v1205 = vld [vmem:[#allocation2 + $0x18] sm:$0xff]
        %v1206 = vld [vmem:[#allocation2 + $0x20] sm:$0xff]
        %v1207 = vld [vmem:[#allocation2 + $0x28] sm:$0xff]
        %v1208 = vld [vmem:[#allocation2 + $0x30] sm:$0xff]
        %v1209 = vld [vmem:[#allocation2 + $0x38] sm:$0xff]
        %v1210 = vld [vmem:[#allocation2 + $0x40] sm:$0xff]
        %v1211 = vld [vmem:[#allocation2 + $0x48] sm:$0xff]
        %v1212 = vld [vmem:[#allocation2 + $0x50] sm:$0xff]
        %v1213 = vld [vmem:[#allocation2 + $0x58] sm:$0xff]
        %v1214 = vld [vmem:[#allocation2 + $0x60] sm:$0xff]
        %v1215 = vld [vmem:[#allocation2 + $0x68] sm:$0xff]
        %v1216 = vld [vmem:[#allocation2 + $0x70] sm:$0xff]
        %v1217 = vld [vmem:[#allocation2 + $0x78] sm:$0xff]
        %v1218 = vld [vmem:[#allocation2 + $0x80] sm:$0xff]
        %v1219 = vld [vmem:[#allocation2 + $0x88] sm:$0xff]
        %v1220 = vld [vmem:[#allocation2 + $0x90] sm:$0xff]
        %v1221 = vld [vmem:[#allocation2 + $0x98] sm:$0xff]
        %v1222 = vld [vmem:[#allocation2 + $0xa0] sm:$0xff]
        %v1223 = vld [vmem:[#allocation2 + $0xa8] sm:$0xff]
        %v1224 = vld [vmem:[#allocation2 + $0xb0] sm:$0xff]
        %v1225 = vld [vmem:[#allocation2 + $0xb8] sm:$0xff]
        %v1226 = vld [vmem:[#allocation2 + $0xc0] sm:$0xff]
        %v1227 = vld [vmem:[#allocation2 + $0xc8] sm:$0xff]
        %v1228 = vld [vmem:[#allocation2 + $0xd0] sm:$0xff]
        %v1229 = vld [vmem:[#allocation2 + $0xd8] sm:$0xff]
        %v1230 = vld [vmem:[#allocation2 + $0xe0] sm:$0xff]
        %v1231 = vld [vmem:[#allocation2 + $0xe8] sm:$0xff]
        %v1232 = vld [vmem:[#allocation2 + $0xf0] sm:$0xff]
        %v1233 = vld [vmem:[#allocation2 + $0xf8] sm:$0xff]
        %v1234 = vld [vmem:[#allocation2 + $0x100] sm:$0xff]
        %v1235 = vld [vmem:[#allocation2 + $0x108] sm:$0xff]
        %v1236 = vld [vmem:[#allocation2 + $0x110] sm:$0xff]
        %v1237 = vld [vmem:[#allocation2 + $0x118] sm:$0xff]
        %v1238 = vld [vmem:[#allocation2 + $0x120] sm:$0xff]
        %v1239 = vld [vmem:[#allocation2 + $0x128] sm:$0xff]
        %v1240 = vld [vmem:[#allocation2 + $0x130] sm:$0xff]
        %v1241 = vld [vmem:[#allocation2 + $0x138] sm:$0xff]
        %v1242 = vld [vmem:[#allocation2 + $0x140] sm:$0xff]
        %v1243 = vld [vmem:[#allocation2 + $0x148] sm:$0xff]
        %v1244 = vld [vmem:[#allocation2 + $0x150] sm:$0xff]
        %v1245 = vld [vmem:[#allocation2 + $0x158] sm:$0xff]
        %v1246 = vld [vmem:[#allocation2 + $0x160] sm:$0xff]
        %v1247 = vld [vmem:[#allocation2 + $0x168] sm:$0xff]
        %v1248 = vld [vmem:[#allocation2 + $0x170] sm:$0xff]
        %v1249 = vld [vmem:[#allocation2 + $0x178] sm:$0xff]
        %v1250 = vld [vmem:[#allocation2 + $0x180] sm:$0xff]
        %v1251 = vld [vmem:[#allocation2 + $0x188] sm:$0xff]
        %v1252 = vld [vmem:[#allocation2 + $0x190] sm:$0xff]
        %v1253 = vld [vmem:[#allocation2 + $0x198] sm:$0xff]
        %v1254 = vld [vmem:[#allocation2 + $0x1a0] sm:$0xff]
        %v1255 = vld [vmem:[#allocation2 + $0x1a8] sm:$0xff]
        %v1256 = vld [vmem:[#allocation2 + $0x1b0] sm:$0xff]
        %v1257 = vld [vmem:[#allocation2 + $0x1b8] sm:$0xff]
        %v1258 = vld [vmem:[#allocation2 + $0x1c0] sm:$0xff]
        %v1259 = vld [vmem:[#allocation2 + $0x1c8] sm:$0xff]
        %v1260 = vld [vmem:[#allocation2 + $0x1d0] sm:$0xff]
        %v1261 = vld [vmem:[#allocation2 + $0x1d8] sm:$0xff]
        %v1262 = vld [vmem:[#allocation2 + $0x1e0] sm:$0xff]
        %v1263 = vld [vmem:[#allocation2 + $0x1e8] sm:$0xff]
        %v1264 = vld [vmem:[#allocation2 + $0x1f0] sm:$0xff]
        %v1265 = vld [vmem:[#allocation2 + $0x1f8] sm:$0xff]
        %v1266 = vld [vmem:[%s410] sm:$0xf]
        %v1267 = vld [vmem:[%s410 + $0x4] sm:$0xf]
        %v1268 = vld [vmem:[%s410 + $0x8] sm:$0xf]
        %v1269 = vld [vmem:[%s410 + $0xc] sm:$0xf]
        %v1270 = vld [vmem:[%s410 + $0x10] sm:$0xf]
        %v1271 = vld [vmem:[%s410 + $0x14] sm:$0xf]
        %v1272 = vld [vmem:[%s410 + $0x18] sm:$0xf]
        %v1273 = vld [vmem:[%s410 + $0x1c] sm:$0xf]
        %v1274 = vld [vmem:[%s410 + $0x20] sm:$0xf]
        %v1275 = vld [vmem:[%s410 + $0x24] sm:$0xf]
        %v1276 = vld [vmem:[%s410 + $0x28] sm:$0xf]
        %v1277 = vld [vmem:[%s410 + $0x2c] sm:$0xf]
        %v1278 = vld [vmem:[%s410 + $0x30] sm:$0xf]
        %v1279 = vld [vmem:[%s410 + $0x34] sm:$0xf]
        %v1280 = vld [vmem:[%s410 + $0x38] sm:$0xf]
        %v1281 = vld [vmem:[%s410 + $0x3c] sm:$0xf]
        %v1282 = vld [vmem:[%s410 + $0x40] sm:$0xf]
        %v1283 = vld [vmem:[%s410 + $0x44] sm:$0xf]
        %v1284 = vld [vmem:[%s410 + $0x48] sm:$0xf]
        %v1285 = vld [vmem:[%s410 + $0x4c] sm:$0xf]
        %v1286 = vld [vmem:[%s410 + $0x50] sm:$0xf]
        %v1287 = vld [vmem:[%s410 + $0x54] sm:$0xf]
        %v1288 = vld [vmem:[%s410 + $0x58] sm:$0xf]
        %v1289 = vld [vmem:[%s410 + $0x5c] sm:$0xf]
        %v1290 = vld [vmem:[%s410 + $0x60] sm:$0xf]
        %v1291 = vld [vmem:[%s410 + $0x64] sm:$0xf]
        %v1292 = vld [vmem:[%s410 + $0x68] sm:$0xf]
        %v1293 = vld [vmem:[%s410 + $0x6c] sm:$0xf]
        %v1294 = vld [vmem:[%s410 + $0x70] sm:$0xf]
        %v1295 = vld [vmem:[%s410 + $0x74] sm:$0xf]
        %v1296 = vld [vmem:[%s410 + $0x78] sm:$0xf]
        %v1297 = vld [vmem:[%s410 + $0x7c] sm:$0xf]
        %v1298 = vld [vmem:[%s410 + $0x80] sm:$0xf]
        %v1299 = vld [vmem:[%s410 + $0x84] sm:$0xf]
        %v1300 = vld [vmem:[%s410 + $0x88] sm:$0xf]
        %v1301 = vld [vmem:[%s410 + $0x8c] sm:$0xf]
        %v1302 = vld [vmem:[%s410 + $0x90] sm:$0xf]
        %v1303 = vld [vmem:[%s410 + $0x94] sm:$0xf]
        %v1304 = vld [vmem:[%s410 + $0x98] sm:$0xf]
        %v1305 = vld [vmem:[%s410 + $0x9c] sm:$0xf]
        %v1306 = vld [vmem:[%s410 + $0xa0] sm:$0xf]
        %v1307 = vld [vmem:[%s410 + $0xa4] sm:$0xf]
        %v1308 = vld [vmem:[%s410 + $0xa8] sm:$0xf]
        %v1309 = vld [vmem:[%s410 + $0xac] sm:$0xf]
        %v1310 = vld [vmem:[%s410 + $0xb0] sm:$0xf]
        %v1311 = vld [vmem:[%s410 + $0xb4] sm:$0xf]
        %v1312 = vld [vmem:[%s410 + $0xb8] sm:$0xf]
        %v1313 = vld [vmem:[%s410 + $0xbc] sm:$0xf]
        %v1314 = vld [vmem:[%s410 + $0xc0] sm:$0xf]
        %v1315 = vld [vmem:[%s410 + $0xc4] sm:$0xf]
        %v1316 = vld [vmem:[%s410 + $0xc8] sm:$0xf]
        %v1317 = vld [vmem:[%s410 + $0xcc] sm:$0xf]
        %v1318 = vld [vmem:[%s410 + $0xd0] sm:$0xf]
        %v1319 = vld [vmem:[%s410 + $0xd4] sm:$0xf]
        %v1320 = vld [vmem:[%s410 + $0xd8] sm:$0xf]
        %v1321 = vld [vmem:[%s410 + $0xdc] sm:$0xf]
        %v1322 = vld [vmem:[%s410 + $0xe0] sm:$0xf]
        %v1323 = vld [vmem:[%s410 + $0xe4] sm:$0xf]
        %v1324 = vld [vmem:[%s410 + $0xe8] sm:$0xf]
        %v1325 = vld [vmem:[%s410 + $0xec] sm:$0xf]
        %v1326 = vld [vmem:[%s410 + $0xf0] sm:$0xf]
        %v1327 = vld [vmem:[%s410 + $0xf4] sm:$0xf]
        %v1328 = vld [vmem:[%s410 + $0xf8] sm:$0xf]
        %v1329 = vld [vmem:[%s410 + $0xfc] sm:$0xf]
        %v1394 = vunpack.c.l.b16 %v1266
        %v1395 = vunpack.c.l.b16 %v1267
        %v1396 = vunpack.c.l.b16 %v1268
        %v1397 = vunpack.c.l.b16 %v1269
        %v1398 = vunpack.c.l.b16 %v1270
        %v1399 = vunpack.c.l.b16 %v1271
        %v1400 = vunpack.c.l.b16 %v1272
        %v1401 = vunpack.c.l.b16 %v1273
        %v1402 = vunpack.c.l.b16 %v1274
        %v1403 = vunpack.c.l.b16 %v1275
        %v1404 = vunpack.c.l.b16 %v1276
        %v1405 = vunpack.c.l.b16 %v1277
        %v1406 = vunpack.c.l.b16 %v1278
        %v1407 = vunpack.c.l.b16 %v1279
        %v1408 = vunpack.c.l.b16 %v1280
        %v1409 = vunpack.c.l.b16 %v1281
        %v1410 = vunpack.c.l.b16 %v1282
        %v1411 = vunpack.c.l.b16 %v1283
        %v1412 = vunpack.c.l.b16 %v1284
        %v1413 = vunpack.c.l.b16 %v1285
        %v1414 = vunpack.c.l.b16 %v1286
        %v1415 = vunpack.c.l.b16 %v1287
        %v1416 = vunpack.c.l.b16 %v1288
        %v1417 = vunpack.c.l.b16 %v1289
        %v1418 = vunpack.c.l.b16 %v1290
        %v1419 = vunpack.c.l.b16 %v1291
        %v1420 = vunpack.c.l.b16 %v1292
        %v1421 = vunpack.c.l.b16 %v1293
        %v1422 = vunpack.c.l.b16 %v1294
        %v1423 = vunpack.c.l.b16 %v1295
        %v1424 = vunpack.c.l.b16 %v1296
        %v1425 = vunpack.c.l.b16 %v1297
        %v1426 = vunpack.c.l.b16 %v1298
        %v1427 = vunpack.c.l.b16 %v1299
        %v1428 = vunpack.c.l.b16 %v1300
        %v1429 = vunpack.c.l.b16 %v1301
        %v1430 = vunpack.c.l.b16 %v1302
        %v1431 = vunpack.c.l.b16 %v1303
        %v1432 = vunpack.c.l.b16 %v1304
        %v1433 = vunpack.c.l.b16 %v1305
        %v1434 = vunpack.c.l.b16 %v1306
        %v1435 = vunpack.c.l.b16 %v1307
        %v1436 = vunpack.c.l.b16 %v1308
        %v1437 = vunpack.c.l.b16 %v1309
        %v1438 = vunpack.c.l.b16 %v1310
        %v1439 = vunpack.c.l.b16 %v1311
        %v1440 = vunpack.c.l.b16 %v1312
        %v1441 = vunpack.c.l.b16 %v1313
        %v1442 = vunpack.c.l.b16 %v1314
        %v1443 = vunpack.c.l.b16 %v1315
        %v1444 = vunpack.c.l.b16 %v1316
        %v1445 = vunpack.c.l.b16 %v1317
        %v1446 = vunpack.c.l.b16 %v1318
        %v1447 = vunpack.c.l.b16 %v1319
        %v1448 = vunpack.c.l.b16 %v1320
        %v1449 = vunpack.c.l.b16 %v1321
        %v1450 = vunpack.c.l.b16 %v1322
        %v1451 = vunpack.c.l.b16 %v1323
        %v1452 = vunpack.c.l.b16 %v1324
        %v1453 = vunpack.c.l.b16 %v1325
        %v1454 = vunpack.c.l.b16 %v1326
        %v1455 = vunpack.c.l.b16 %v1327
        %v1456 = vunpack.c.l.b16 %v1328
        %v1457 = vunpack.c.l.b16 %v1329
        %v1458 = vpack.c.b16 %v1395, %v1394
        %v1459 = vpack.c.b16 %v1397, %v1396
        %v1460 = vpack.c.b16 %v1399, %v1398
        %v1461 = vpack.c.b16 %v1401, %v1400
        %v1462 = vpack.c.b16 %v1403, %v1402
        %v1463 = vpack.c.b16 %v1405, %v1404
        %v1464 = vpack.c.b16 %v1407, %v1406
        %v1465 = vpack.c.b16 %v1409, %v1408
        %v1466 = vpack.c.b16 %v1411, %v1410
        %v1467 = vpack.c.b16 %v1413, %v1412
        %v1468 = vpack.c.b16 %v1415, %v1414
        %v1469 = vpack.c.b16 %v1417, %v1416
        %v1470 = vpack.c.b16 %v1419, %v1418
        %v1471 = vpack.c.b16 %v1421, %v1420
        %v1472 = vpack.c.b16 %v1423, %v1422
        %v1473 = vpack.c.b16 %v1425, %v1424
        %v1474 = vpack.c.b16 %v1427, %v1426
        %v1475 = vpack.c.b16 %v1429, %v1428
        %v1476 = vpack.c.b16 %v1431, %v1430
        %v1477 = vpack.c.b16 %v1433, %v1432
        %v1478 = vpack.c.b16 %v1435, %v1434
        %v1479 = vpack.c.b16 %v1437, %v1436
        %v1480 = vpack.c.b16 %v1439, %v1438
        %v1481 = vpack.c.b16 %v1441, %v1440
        %v1482 = vpack.c.b16 %v1443, %v1442
        %v1483 = vpack.c.b16 %v1445, %v1444
        %v1484 = vpack.c.b16 %v1447, %v1446
        %v1485 = vpack.c.b16 %v1449, %v1448
        %v1486 = vpack.c.b16 %v1451, %v1450
        %v1487 = vpack.c.b16 %v1453, %v1452
        %v1488 = vpack.c.b16 %v1455, %v1454
        %v1489 = vpack.c.b16 %v1457, %v1456
        %1522 = vmatpush.bf16.msra.mxu0 %v1465
        %1523 = vmatpush.bf16.msra.mxu0 %v1464
        %1524 = vmatpush.bf16.msra.mxu0 %v1463
        %1525 = vmatpush.bf16.msra.mxu0 %v1462
        %1526 = vmatpush.bf16.msra.mxu0 %v1461
        %1527 = vmatpush.bf16.msra.mxu0 %v1460
        %1528 = vmatpush.bf16.msra.mxu0 %v1459
        %1529 = vmatpush.bf16.msra.mxu0 %v1458
        %1530 = vmatmul.bf16.gmra.mxu0 %v1074
        %v1531 = vpop.f32.mrf.mxu0
        %v1532 = vadd.f32 0.0, %v1531
        %v1533 = vpop.f32.mrf.mxu0
        %v1534 = vadd.f32 0.0, %v1533
        %1535 = vmatmul.bf16.gmra.mxu0 %v1078
        %v1536 = vpop.f32.mrf.mxu0
        %v1537 = vadd.f32 0.0, %v1536
        %v1538 = vpop.f32.mrf.mxu0
        %v1539 = vadd.f32 0.0, %v1538
        %1540 = vmatmul.bf16.gmra.mxu0 %v1082
        %v1541 = vpop.f32.mrf.mxu0
        %v1542 = vadd.f32 0.0, %v1541
        %v1543 = vpop.f32.mrf.mxu0
        %v1544 = vadd.f32 0.0, %v1543
        %1545 = vmatmul.bf16.gmra.mxu0 %v1086
        %v1546 = vpop.f32.mrf.mxu0
        %v1547 = vadd.f32 0.0, %v1546
        %v1548 = vpop.f32.mrf.mxu0
        %v1549 = vadd.f32 0.0, %v1548
        %1550 = vmatmul.bf16.gmra.mxu0 %v1090
        %v1551 = vpop.f32.mrf.mxu0
        %v1552 = vadd.f32 0.0, %v1551
        %v1553 = vpop.f32.mrf.mxu0
        %v1554 = vadd.f32 0.0, %v1553
        %1555 = vmatmul.bf16.gmra.mxu0 %v1094
        %v1556 = vpop.f32.mrf.mxu0
        %v1557 = vadd.f32 0.0, %v1556
        %v1558 = vpop.f32.mrf.mxu0
        %v1559 = vadd.f32 0.0, %v1558
        %1560 = vmatmul.bf16.gmra.mxu0 %v1098
        %v1561 = vpop.f32.mrf.mxu0
        %v1562 = vadd.f32 0.0, %v1561
        %v1563 = vpop.f32.mrf.mxu0
        %v1564 = vadd.f32 0.0, %v1563
        %1565 = vmatmul.bf16.gmra.mxu0 %v1102
        %v1566 = vpop.f32.mrf.mxu0
        %v1567 = vadd.f32 0.0, %v1566
        %v1568 = vpop.f32.mrf.mxu0
        %v1569 = vadd.f32 0.0, %v1568
        %1570 = vmatmul.bf16.gmra.mxu0 %v1106
        %v1571 = vpop.f32.mrf.mxu0
        %v1572 = vadd.f32 0.0, %v1571
        %v1573 = vpop.f32.mrf.mxu0
        %v1574 = vadd.f32 0.0, %v1573
        %1575 = vmatmul.bf16.gmra.mxu0 %v1110
        %v1576 = vpop.f32.mrf.mxu0
        %v1577 = vadd.f32 0.0, %v1576
        %v1578 = vpop.f32.mrf.mxu0
        %v1579 = vadd.f32 0.0, %v1578
        %1580 = vmatmul.bf16.gmra.mxu0 %v1114
        %v1581 = vpop.f32.mrf.mxu0
        %v1582 = vadd.f32 0.0, %v1581
        %v1583 = vpop.f32.mrf.mxu0
        %v1584 = vadd.f32 0.0, %v1583
        %1585 = vmatmul.bf16.gmra.mxu0 %v1118
        %v1586 = vpop.f32.mrf.mxu0
        %v1587 = vadd.f32 0.0, %v1586
        %v1588 = vpop.f32.mrf.mxu0
        %v1589 = vadd.f32 0.0, %v1588
        %1590 = vmatmul.bf16.gmra.mxu0 %v1122
        %v1591 = vpop.f32.mrf.mxu0
        %v1592 = vadd.f32 0.0, %v1591
        %v1593 = vpop.f32.mrf.mxu0
        %v1594 = vadd.f32 0.0, %v1593
        %1595 = vmatmul.bf16.gmra.mxu0 %v1126
        %v1596 = vpop.f32.mrf.mxu0
        %v1597 = vadd.f32 0.0, %v1596
        %v1598 = vpop.f32.mrf.mxu0
        %v1599 = vadd.f32 0.0, %v1598
        %1600 = vmatmul.bf16.gmra.mxu0 %v1130
        %v1601 = vpop.f32.mrf.mxu0
        %v1602 = vadd.f32 0.0, %v1601
        %v1603 = vpop.f32.mrf.mxu0
        %v1604 = vadd.f32 0.0, %v1603
        %1605 = vmatmul.bf16.gmra.mxu0 %v1134
        %v1606 = vpop.f32.mrf.mxu0
        %v1607 = vadd.f32 0.0, %v1606
        %v1608 = vpop.f32.mrf.mxu0
        %v1609 = vadd.f32 0.0, %v1608
        %1610 = vmatmul.bf16.gmra.mxu0 %v1138
        %v1611 = vpop.f32.mrf.mxu0
        %v1612 = vadd.f32 0.0, %v1611
        %v1613 = vpop.f32.mrf.mxu0
        %v1614 = vadd.f32 0.0, %v1613
        %1615 = vmatmul.bf16.gmra.mxu0 %v1142
        %v1616 = vpop.f32.mrf.mxu0
        %v1617 = vadd.f32 0.0, %v1616
        %v1618 = vpop.f32.mrf.mxu0
        %v1619 = vadd.f32 0.0, %v1618
        %1620 = vmatmul.bf16.gmra.mxu0 %v1146
        %v1621 = vpop.f32.mrf.mxu0
        %v1622 = vadd.f32 0.0, %v1621
        %v1623 = vpop.f32.mrf.mxu0
        %v1624 = vadd.f32 0.0, %v1623
        %1625 = vmatmul.bf16.gmra.mxu0 %v1150
        %v1626 = vpop.f32.mrf.mxu0
        %v1627 = vadd.f32 0.0, %v1626
        %v1628 = vpop.f32.mrf.mxu0
        %v1629 = vadd.f32 0.0, %v1628
        %1630 = vmatmul.bf16.gmra.mxu0 %v1154
        %v1631 = vpop.f32.mrf.mxu0
        %v1632 = vadd.f32 0.0, %v1631
        %v1633 = vpop.f32.mrf.mxu0
        %v1634 = vadd.f32 0.0, %v1633
        %1635 = vmatmul.bf16.gmra.mxu0 %v1158
        %v1636 = vpop.f32.mrf.mxu0
        %v1637 = vadd.f32 0.0, %v1636
        %v1638 = vpop.f32.mrf.mxu0
        %v1639 = vadd.f32 0.0, %v1638
        %1640 = vmatmul.bf16.gmra.mxu0 %v1162
        %v1641 = vpop.f32.mrf.mxu0
        %v1642 = vadd.f32 0.0, %v1641
        %v1643 = vpop.f32.mrf.mxu0
        %v1644 = vadd.f32 0.0, %v1643
        %1645 = vmatmul.bf16.gmra.mxu0 %v1166
        %v1646 = vpop.f32.mrf.mxu0
        %v1647 = vadd.f32 0.0, %v1646
        %v1648 = vpop.f32.mrf.mxu0
        %v1649 = vadd.f32 0.0, %v1648
        %1650 = vmatmul.bf16.gmra.mxu0 %v1170
        %v1651 = vpop.f32.mrf.mxu0
        %v1652 = vadd.f32 0.0, %v1651
        %v1653 = vpop.f32.mrf.mxu0
        %v1654 = vadd.f32 0.0, %v1653
        %1655 = vmatmul.bf16.gmra.mxu0 %v1174
        %v1656 = vpop.f32.mrf.mxu0
        %v1657 = vadd.f32 0.0, %v1656
        %v1658 = vpop.f32.mrf.mxu0
        %v1659 = vadd.f32 0.0, %v1658
        %1660 = vmatmul.bf16.gmra.mxu0 %v1178
        %v1661 = vpop.f32.mrf.mxu0
        %v1662 = vadd.f32 0.0, %v1661
        %v1663 = vpop.f32.mrf.mxu0
        %v1664 = vadd.f32 0.0, %v1663
        %1665 = vmatmul.bf16.gmra.mxu0 %v1182
        %v1666 = vpop.f32.mrf.mxu0
        %v1667 = vadd.f32 0.0, %v1666
        %v1668 = vpop.f32.mrf.mxu0
        %v1669 = vadd.f32 0.0, %v1668
        %1670 = vmatmul.bf16.gmra.mxu0 %v1186
        %v1671 = vpop.f32.mrf.mxu0
        %v1672 = vadd.f32 0.0, %v1671
        %v1673 = vpop.f32.mrf.mxu0
        %v1674 = vadd.f32 0.0, %v1673
        %1675 = vmatmul.bf16.gmra.mxu0 %v1190
        %v1676 = vpop.f32.mrf.mxu0
        %v1677 = vadd.f32 0.0, %v1676
        %v1678 = vpop.f32.mrf.mxu0
        %v1679 = vadd.f32 0.0, %v1678
        %1680 = vmatmul.bf16.gmra.mxu0 %v1194
        %v1681 = vpop.f32.mrf.mxu0
        %v1682 = vadd.f32 0.0, %v1681
        %v1683 = vpop.f32.mrf.mxu0
        %v1684 = vadd.f32 0.0, %v1683
        %1685 = vmatmul.bf16.gmra.mxu0 %v1198
        %v1686 = vpop.f32.mrf.mxu0
        %v1687 = vadd.f32 0.0, %v1686
        %v1688 = vpop.f32.mrf.mxu0
        %v1689 = vadd.f32 0.0, %v1688
        %1690 = vdwg.mxu0
        %1691 = vmatpush.bf16.msra.mxu0 %v1473
        %1692 = vmatpush.bf16.msra.mxu0 %v1472
        %1693 = vmatpush.bf16.msra.mxu0 %v1471
        %1694 = vmatpush.bf16.msra.mxu0 %v1470
        %1695 = vmatpush.bf16.msra.mxu0 %v1469
        %1696 = vmatpush.bf16.msra.mxu0 %v1468
        %1697 = vmatpush.bf16.msra.mxu0 %v1467
        %1698 = vmatpush.bf16.msra.mxu0 %v1466
        %1699 = vmatmul.bf16.gmra.mxu0 %v1075
        %v1700 = vpop.f32.mrf.mxu0
        %v1701 = vadd.f32 %v1532, %v1700
        %v1702 = vpop.f32.mrf.mxu0
        %v1703 = vadd.f32 %v1534, %v1702
        %1704 = vmatmul.bf16.gmra.mxu0 %v1079
        %v1705 = vpop.f32.mrf.mxu0
        %v1706 = vadd.f32 %v1537, %v1705
        %v1707 = vpop.f32.mrf.mxu0
        %v1708 = vadd.f32 %v1539, %v1707
        %1709 = vmatmul.bf16.gmra.mxu0 %v1083
        %v1710 = vpop.f32.mrf.mxu0
        %v1711 = vadd.f32 %v1542, %v1710
        %v1712 = vpop.f32.mrf.mxu0
        %v1713 = vadd.f32 %v1544, %v1712
        %1714 = vmatmul.bf16.gmra.mxu0 %v1087
        %v1715 = vpop.f32.mrf.mxu0
        %v1716 = vadd.f32 %v1547, %v1715
        %v1717 = vpop.f32.mrf.mxu0
        %v1718 = vadd.f32 %v1549, %v1717
        %1719 = vmatmul.bf16.gmra.mxu0 %v1091
        %v1720 = vpop.f32.mrf.mxu0
        %v1721 = vadd.f32 %v1552, %v1720
        %v1722 = vpop.f32.mrf.mxu0
        %v1723 = vadd.f32 %v1554, %v1722
        %1724 = vmatmul.bf16.gmra.mxu0 %v1095
        %v1725 = vpop.f32.mrf.mxu0
        %v1726 = vadd.f32 %v1557, %v1725
        %v1727 = vpop.f32.mrf.mxu0
        %v1728 = vadd.f32 %v1559, %v1727
        %1729 = vmatmul.bf16.gmra.mxu0 %v1099
        %v1730 = vpop.f32.mrf.mxu0
        %v1731 = vadd.f32 %v1562, %v1730
        %v1732 = vpop.f32.mrf.mxu0
        %v1733 = vadd.f32 %v1564, %v1732
        %1734 = vmatmul.bf16.gmra.mxu0 %v1103
        %v1735 = vpop.f32.mrf.mxu0
        %v1736 = vadd.f32 %v1567, %v1735
        %v1737 = vpop.f32.mrf.mxu0
        %v1738 = vadd.f32 %v1569, %v1737
        %1739 = vmatmul.bf16.gmra.mxu0 %v1107
        %v1740 = vpop.f32.mrf.mxu0
        %v1741 = vadd.f32 %v1572, %v1740
        %v1742 = vpop.f32.mrf.mxu0
        %v1743 = vadd.f32 %v1574, %v1742
        %1744 = vmatmul.bf16.gmra.mxu0 %v1111
        %v1745 = vpop.f32.mrf.mxu0
        %v1746 = vadd.f32 %v1577, %v1745
        %v1747 = vpop.f32.mrf.mxu0
        %v1748 = vadd.f32 %v1579, %v1747
        %1749 = vmatmul.bf16.gmra.mxu0 %v1115
        %v1750 = vpop.f32.mrf.mxu0
        %v1751 = vadd.f32 %v1582, %v1750
        %v1752 = vpop.f32.mrf.mxu0
        %v1753 = vadd.f32 %v1584, %v1752
        %1754 = vmatmul.bf16.gmra.mxu0 %v1119
        %v1755 = vpop.f32.mrf.mxu0
        %v1756 = vadd.f32 %v1587, %v1755
        %v1757 = vpop.f32.mrf.mxu0
        %v1758 = vadd.f32 %v1589, %v1757
        %1759 = vmatmul.bf16.gmra.mxu0 %v1123
        %v1760 = vpop.f32.mrf.mxu0
        %v1761 = vadd.f32 %v1592, %v1760
        %v1762 = vpop.f32.mrf.mxu0
        %v1763 = vadd.f32 %v1594, %v1762
        %1764 = vmatmul.bf16.gmra.mxu0 %v1127
        %v1765 = vpop.f32.mrf.mxu0
        %v1766 = vadd.f32 %v1597, %v1765
        %v1767 = vpop.f32.mrf.mxu0
        %v1768 = vadd.f32 %v1599, %v1767
        %1769 = vmatmul.bf16.gmra.mxu0 %v1131
        %v1770 = vpop.f32.mrf.mxu0
        %v1771 = vadd.f32 %v1602, %v1770
        %v1772 = vpop.f32.mrf.mxu0
        %v1773 = vadd.f32 %v1604, %v1772
        %1774 = vmatmul.bf16.gmra.mxu0 %v1135
        %v1775 = vpop.f32.mrf.mxu0
        %v1776 = vadd.f32 %v1607, %v1775
        %v1777 = vpop.f32.mrf.mxu0
        %v1778 = vadd.f32 %v1609, %v1777
        %1779 = vmatmul.bf16.gmra.mxu0 %v1139
        %v1780 = vpop.f32.mrf.mxu0
        %v1781 = vadd.f32 %v1612, %v1780
        %v1782 = vpop.f32.mrf.mxu0
        %v1783 = vadd.f32 %v1614, %v1782
        %1784 = vmatmul.bf16.gmra.mxu0 %v1143
        %v1785 = vpop.f32.mrf.mxu0
        %v1786 = vadd.f32 %v1617, %v1785
        %v1787 = vpop.f32.mrf.mxu0
        %v1788 = vadd.f32 %v1619, %v1787
        %1789 = vmatmul.bf16.gmra.mxu0 %v1147
        %v1790 = vpop.f32.mrf.mxu0
        %v1791 = vadd.f32 %v1622, %v1790
        %v1792 = vpop.f32.mrf.mxu0
        %v1793 = vadd.f32 %v1624, %v1792
        %1794 = vmatmul.bf16.gmra.mxu0 %v1151
        %v1795 = vpop.f32.mrf.mxu0
        %v1796 = vadd.f32 %v1627, %v1795
        %v1797 = vpop.f32.mrf.mxu0
        %v1798 = vadd.f32 %v1629, %v1797
        %1799 = vmatmul.bf16.gmra.mxu0 %v1155
        %v1800 = vpop.f32.mrf.mxu0
        %v1801 = vadd.f32 %v1632, %v1800
        %v1802 = vpop.f32.mrf.mxu0
        %v1803 = vadd.f32 %v1634, %v1802
        %1804 = vmatmul.bf16.gmra.mxu0 %v1159
        %v1805 = vpop.f32.mrf.mxu0
        %v1806 = vadd.f32 %v1637, %v1805
        %v1807 = vpop.f32.mrf.mxu0
        %v1808 = vadd.f32 %v1639, %v1807
        %1809 = vmatmul.bf16.gmra.mxu0 %v1163
        %v1810 = vpop.f32.mrf.mxu0
        %v1811 = vadd.f32 %v1642, %v1810
        %v1812 = vpop.f32.mrf.mxu0
        %v1813 = vadd.f32 %v1644, %v1812
        %1814 = vmatmul.bf16.gmra.mxu0 %v1167
        %v1815 = vpop.f32.mrf.mxu0
        %v1816 = vadd.f32 %v1647, %v1815
        %v1817 = vpop.f32.mrf.mxu0
        %v1818 = vadd.f32 %v1649, %v1817
        %1819 = vmatmul.bf16.gmra.mxu0 %v1171
        %v1820 = vpop.f32.mrf.mxu0
        %v1821 = vadd.f32 %v1652, %v1820
        %v1822 = vpop.f32.mrf.mxu0
        %v1823 = vadd.f32 %v1654, %v1822
        %1824 = vmatmul.bf16.gmra.mxu0 %v1175
        %v1825 = vpop.f32.mrf.mxu0
        %v1826 = vadd.f32 %v1657, %v1825
        %v1827 = vpop.f32.mrf.mxu0
        %v1828 = vadd.f32 %v1659, %v1827
        %1829 = vmatmul.bf16.gmra.mxu0 %v1179
        %v1830 = vpop.f32.mrf.mxu0
        %v1831 = vadd.f32 %v1662, %v1830
        %v1832 = vpop.f32.mrf.mxu0
        %v1833 = vadd.f32 %v1664, %v1832
        %1834 = vmatmul.bf16.gmra.mxu0 %v1183
        %v1835 = vpop.f32.mrf.mxu0
        %v1836 = vadd.f32 %v1667, %v1835
        %v1837 = vpop.f32.mrf.mxu0
        %v1838 = vadd.f32 %v1669, %v1837
        %1839 = vmatmul.bf16.gmra.mxu0 %v1187
        %v1840 = vpop.f32.mrf.mxu0
        %v1841 = vadd.f32 %v1672, %v1840
        %v1842 = vpop.f32.mrf.mxu0
        %v1843 = vadd.f32 %v1674, %v1842
        %1844 = vmatmul.bf16.gmra.mxu0 %v1191
        %v1845 = vpop.f32.mrf.mxu0
        %v1846 = vadd.f32 %v1677, %v1845
        %v1847 = vpop.f32.mrf.mxu0
        %v1848 = vadd.f32 %v1679, %v1847
        %1849 = vmatmul.bf16.gmra.mxu0 %v1195
        %v1850 = vpop.f32.mrf.mxu0
        %v1851 = vadd.f32 %v1682, %v1850
        %v1852 = vpop.f32.mrf.mxu0
        %v1853 = vadd.f32 %v1684, %v1852
        %1854 = vmatmul.bf16.gmra.mxu0 %v1199
        %v1855 = vpop.f32.mrf.mxu0
        %v1856 = vadd.f32 %v1687, %v1855
        %v1857 = vpop.f32.mrf.mxu0
        %v1858 = vadd.f32 %v1689, %v1857
        %1859 = vdwg.mxu0
        %1860 = vmatpush.bf16.msra.mxu0 %v1481
        %1861 = vmatpush.bf16.msra.mxu0 %v1480
        %1862 = vmatpush.bf16.msra.mxu0 %v1479
        %1863 = vmatpush.bf16.msra.mxu0 %v1478
        %1864 = vmatpush.bf16.msra.mxu0 %v1477
        %1865 = vmatpush.bf16.msra.mxu0 %v1476
        %1866 = vmatpush.bf16.msra.mxu0 %v1475
        %1867 = vmatpush.bf16.msra.mxu0 %v1474
        %1868 = vmatmul.bf16.gmra.mxu0 %v1076
        %v1869 = vpop.f32.mrf.mxu0
        %v1870 = vadd.f32 %v1701, %v1869
        %v1871 = vpop.f32.mrf.mxu0
        %v1872 = vadd.f32 %v1703, %v1871
        %1873 = vmatmul.bf16.gmra.mxu0 %v1080
        %v1874 = vpop.f32.mrf.mxu0
        %v1875 = vadd.f32 %v1706, %v1874
        %v1876 = vpop.f32.mrf.mxu0
        %v1877 = vadd.f32 %v1708, %v1876
        %1878 = vmatmul.bf16.gmra.mxu0 %v1084
        %v1879 = vpop.f32.mrf.mxu0
        %v1880 = vadd.f32 %v1711, %v1879
        %v1881 = vpop.f32.mrf.mxu0
        %v1882 = vadd.f32 %v1713, %v1881
        %1883 = vmatmul.bf16.gmra.mxu0 %v1088
        %v1884 = vpop.f32.mrf.mxu0
        %v1885 = vadd.f32 %v1716, %v1884
        %v1886 = vpop.f32.mrf.mxu0
        %v1887 = vadd.f32 %v1718, %v1886
        %1888 = vmatmul.bf16.gmra.mxu0 %v1092
        %v1889 = vpop.f32.mrf.mxu0
        %v1890 = vadd.f32 %v1721, %v1889
        %v1891 = vpop.f32.mrf.mxu0
        %v1892 = vadd.f32 %v1723, %v1891
        %1893 = vmatmul.bf16.gmra.mxu0 %v1096
        %v1894 = vpop.f32.mrf.mxu0
        %v1895 = vadd.f32 %v1726, %v1894
        %v1896 = vpop.f32.mrf.mxu0
        %v1897 = vadd.f32 %v1728, %v1896
        %1898 = vmatmul.bf16.gmra.mxu0 %v1100
        %v1899 = vpop.f32.mrf.mxu0
        %v1900 = vadd.f32 %v1731, %v1899
        %v1901 = vpop.f32.mrf.mxu0
        %v1902 = vadd.f32 %v1733, %v1901
        %1903 = vmatmul.bf16.gmra.mxu0 %v1104
        %v1904 = vpop.f32.mrf.mxu0
        %v1905 = vadd.f32 %v1736, %v1904
        %v1906 = vpop.f32.mrf.mxu0
        %v1907 = vadd.f32 %v1738, %v1906
        %1908 = vmatmul.bf16.gmra.mxu0 %v1108
        %v1909 = vpop.f32.mrf.mxu0
        %v1910 = vadd.f32 %v1741, %v1909
        %v1911 = vpop.f32.mrf.mxu0
        %v1912 = vadd.f32 %v1743, %v1911
        %1913 = vmatmul.bf16.gmra.mxu0 %v1112
        %v1914 = vpop.f32.mrf.mxu0
        %v1915 = vadd.f32 %v1746, %v1914
        %v1916 = vpop.f32.mrf.mxu0
        %v1917 = vadd.f32 %v1748, %v1916
        %1918 = vmatmul.bf16.gmra.mxu0 %v1116
        %v1919 = vpop.f32.mrf.mxu0
        %v1920 = vadd.f32 %v1751, %v1919
        %v1921 = vpop.f32.mrf.mxu0
        %v1922 = vadd.f32 %v1753, %v1921
        %1923 = vmatmul.bf16.gmra.mxu0 %v1120
        %v1924 = vpop.f32.mrf.mxu0
        %v1925 = vadd.f32 %v1756, %v1924
        %v1926 = vpop.f32.mrf.mxu0
        %v1927 = vadd.f32 %v1758, %v1926
        %1928 = vmatmul.bf16.gmra.mxu0 %v1124
        %v1929 = vpop.f32.mrf.mxu0
        %v1930 = vadd.f32 %v1761, %v1929
        %v1931 = vpop.f32.mrf.mxu0
        %v1932 = vadd.f32 %v1763, %v1931
        %1933 = vmatmul.bf16.gmra.mxu0 %v1128
        %v1934 = vpop.f32.mrf.mxu0
        %v1935 = vadd.f32 %v1766, %v1934
        %v1936 = vpop.f32.mrf.mxu0
        %v1937 = vadd.f32 %v1768, %v1936
        %1938 = vmatmul.bf16.gmra.mxu0 %v1132
        %v1939 = vpop.f32.mrf.mxu0
        %v1940 = vadd.f32 %v1771, %v1939
        %v1941 = vpop.f32.mrf.mxu0
        %v1942 = vadd.f32 %v1773, %v1941
        %1943 = vmatmul.bf16.gmra.mxu0 %v1136
        %v1944 = vpop.f32.mrf.mxu0
        %v1945 = vadd.f32 %v1776, %v1944
        %v1946 = vpop.f32.mrf.mxu0
        %v1947 = vadd.f32 %v1778, %v1946
        %1948 = vmatmul.bf16.gmra.mxu0 %v1140
        %v1949 = vpop.f32.mrf.mxu0
        %v1950 = vadd.f32 %v1781, %v1949
        %v1951 = vpop.f32.mrf.mxu0
        %v1952 = vadd.f32 %v1783, %v1951
        %1953 = vmatmul.bf16.gmra.mxu0 %v1144
        %v1954 = vpop.f32.mrf.mxu0
        %v1955 = vadd.f32 %v1786, %v1954
        %v1956 = vpop.f32.mrf.mxu0
        %v1957 = vadd.f32 %v1788, %v1956
        %1958 = vmatmul.bf16.gmra.mxu0 %v1148
        %v1959 = vpop.f32.mrf.mxu0
        %v1960 = vadd.f32 %v1791, %v1959
        %v1961 = vpop.f32.mrf.mxu0
        %v1962 = vadd.f32 %v1793, %v1961
        %1963 = vmatmul.bf16.gmra.mxu0 %v1152
        %v1964 = vpop.f32.mrf.mxu0
        %v1965 = vadd.f32 %v1796, %v1964
        %v1966 = vpop.f32.mrf.mxu0
        %v1967 = vadd.f32 %v1798, %v1966
        %1968 = vmatmul.bf16.gmra.mxu0 %v1156
        %v1969 = vpop.f32.mrf.mxu0
        %v1970 = vadd.f32 %v1801, %v1969
        %v1971 = vpop.f32.mrf.mxu0
        %v1972 = vadd.f32 %v1803, %v1971
        %1973 = vmatmul.bf16.gmra.mxu0 %v1160
        %v1974 = vpop.f32.mrf.mxu0
        %v1975 = vadd.f32 %v1806, %v1974
        %v1976 = vpop.f32.mrf.mxu0
        %v1977 = vadd.f32 %v1808, %v1976
        %1978 = vmatmul.bf16.gmra.mxu0 %v1164
        %v1979 = vpop.f32.mrf.mxu0
        %v1980 = vadd.f32 %v1811, %v1979
        %v1981 = vpop.f32.mrf.mxu0
        %v1982 = vadd.f32 %v1813, %v1981
        %1983 = vmatmul.bf16.gmra.mxu0 %v1168
        %v1984 = vpop.f32.mrf.mxu0
        %v1985 = vadd.f32 %v1816, %v1984
        %v1986 = vpop.f32.mrf.mxu0
        %v1987 = vadd.f32 %v1818, %v1986
        %1988 = vmatmul.bf16.gmra.mxu0 %v1172
        %v1989 = vpop.f32.mrf.mxu0
        %v1990 = vadd.f32 %v1821, %v1989
        %v1991 = vpop.f32.mrf.mxu0
        %v1992 = vadd.f32 %v1823, %v1991
        %1993 = vmatmul.bf16.gmra.mxu0 %v1176
        %v1994 = vpop.f32.mrf.mxu0
        %v1995 = vadd.f32 %v1826, %v1994
        %v1996 = vpop.f32.mrf.mxu0
        %v1997 = vadd.f32 %v1828, %v1996
        %1998 = vmatmul.bf16.gmra.mxu0 %v1180
        %v1999 = vpop.f32.mrf.mxu0
        %v2000 = vadd.f32 %v1831, %v1999
        %v2001 = vpop.f32.mrf.mxu0
        %v2002 = vadd.f32 %v1833, %v2001
        %2003 = vmatmul.bf16.gmra.mxu0 %v1184
        %v2004 = vpop.f32.mrf.mxu0
        %v2005 = vadd.f32 %v1836, %v2004
        %v2006 = vpop.f32.mrf.mxu0
        %v2007 = vadd.f32 %v1838, %v2006
        %2008 = vmatmul.bf16.gmra.mxu0 %v1188
        %v2009 = vpop.f32.mrf.mxu0
        %v2010 = vadd.f32 %v1841, %v2009
        %v2011 = vpop.f32.mrf.mxu0
        %v2012 = vadd.f32 %v1843, %v2011
        %2013 = vmatmul.bf16.gmra.mxu0 %v1192
        %v2014 = vpop.f32.mrf.mxu0
        %v2015 = vadd.f32 %v1846, %v2014
        %v2016 = vpop.f32.mrf.mxu0
        %v2017 = vadd.f32 %v1848, %v2016
        %2018 = vmatmul.bf16.gmra.mxu0 %v1196
        %v2019 = vpop.f32.mrf.mxu0
        %v2020 = vadd.f32 %v1851, %v2019
        %v2021 = vpop.f32.mrf.mxu0
        %v2022 = vadd.f32 %v1853, %v2021
        %2023 = vmatmul.bf16.gmra.mxu0 %v1200
        %v2024 = vpop.f32.mrf.mxu0
        %v2025 = vadd.f32 %v1856, %v2024
        %v2026 = vpop.f32.mrf.mxu0
        %v2027 = vadd.f32 %v1858, %v2026
        %2028 = vdwg.mxu0
        %2029 = vmatpush.bf16.msra.mxu0 %v1489
        %2030 = vmatpush.bf16.msra.mxu0 %v1488
        %2031 = vmatpush.bf16.msra.mxu0 %v1487
        %2032 = vmatpush.bf16.msra.mxu0 %v1486
        %2033 = vmatpush.bf16.msra.mxu0 %v1485
        %2034 = vmatpush.bf16.msra.mxu0 %v1484
        %2035 = vmatpush.bf16.msra.mxu0 %v1483
        %2036 = vmatpush.bf16.msra.mxu0 %v1482
        %2037 = vmatmul.bf16.gmra.mxu0 %v1077
        %v2038 = vpop.f32.mrf.mxu0
        %v2039 = vadd.f32 %v1870, %v2038
        %v2040 = vpop.f32.mrf.mxu0
        %v2041 = vadd.f32 %v1872, %v2040
        %2042 = vmatmul.bf16.gmra.mxu0 %v1081
        %v2043 = vpop.f32.mrf.mxu0
        %v2044 = vadd.f32 %v1875, %v2043
        %v2045 = vpop.f32.mrf.mxu0
        %v2046 = vadd.f32 %v1877, %v2045
        %2047 = vmatmul.bf16.gmra.mxu0 %v1085
        %v2048 = vpop.f32.mrf.mxu0
        %v2049 = vadd.f32 %v1880, %v2048
        %v2050 = vpop.f32.mrf.mxu0
        %v2051 = vadd.f32 %v1882, %v2050
        %2052 = vmatmul.bf16.gmra.mxu0 %v1089
        %v2053 = vpop.f32.mrf.mxu0
        %v2054 = vadd.f32 %v1885, %v2053
        %v2055 = vpop.f32.mrf.mxu0
        %v2056 = vadd.f32 %v1887, %v2055
        %2057 = vmatmul.bf16.gmra.mxu0 %v1093
        %v2058 = vpop.f32.mrf.mxu0
        %v2059 = vadd.f32 %v1890, %v2058
        %v2060 = vpop.f32.mrf.mxu0
        %v2061 = vadd.f32 %v1892, %v2060
        %2062 = vmatmul.bf16.gmra.mxu0 %v1097
        %v2063 = vpop.f32.mrf.mxu0
        %v2064 = vadd.f32 %v1895, %v2063
        %v2065 = vpop.f32.mrf.mxu0
        %v2066 = vadd.f32 %v1897, %v2065
        %2067 = vmatmul.bf16.gmra.mxu0 %v1101
        %v2068 = vpop.f32.mrf.mxu0
        %v2069 = vadd.f32 %v1900, %v2068
        %v2070 = vpop.f32.mrf.mxu0
        %v2071 = vadd.f32 %v1902, %v2070
        %2072 = vmatmul.bf16.gmra.mxu0 %v1105
        %v2073 = vpop.f32.mrf.mxu0
        %v2074 = vadd.f32 %v1905, %v2073
        %v2075 = vpop.f32.mrf.mxu0
        %v2076 = vadd.f32 %v1907, %v2075
        %2077 = vmatmul.bf16.gmra.mxu0 %v1109
        %v2078 = vpop.f32.mrf.mxu0
        %v2079 = vadd.f32 %v1910, %v2078
        %v2080 = vpop.f32.mrf.mxu0
        %v2081 = vadd.f32 %v1912, %v2080
        %2082 = vmatmul.bf16.gmra.mxu0 %v1113
        %v2083 = vpop.f32.mrf.mxu0
        %v2084 = vadd.f32 %v1915, %v2083
        %v2085 = vpop.f32.mrf.mxu0
        %v2086 = vadd.f32 %v1917, %v2085
        %2087 = vmatmul.bf16.gmra.mxu0 %v1117
        %v2088 = vpop.f32.mrf.mxu0
        %v2089 = vadd.f32 %v1920, %v2088
        %v2090 = vpop.f32.mrf.mxu0
        %v2091 = vadd.f32 %v1922, %v2090
        %2092 = vmatmul.bf16.gmra.mxu0 %v1121
        %v2093 = vpop.f32.mrf.mxu0
        %v2094 = vadd.f32 %v1925, %v2093
        %v2095 = vpop.f32.mrf.mxu0
        %v2096 = vadd.f32 %v1927, %v2095
        %2097 = vmatmul.bf16.gmra.mxu0 %v1125
        %v2098 = vpop.f32.mrf.mxu0
        %v2099 = vadd.f32 %v1930, %v2098
        %v2100 = vpop.f32.mrf.mxu0
        %v2101 = vadd.f32 %v1932, %v2100
        %2102 = vmatmul.bf16.gmra.mxu0 %v1129
        %v2103 = vpop.f32.mrf.mxu0
        %v2104 = vadd.f32 %v1935, %v2103
        %v2105 = vpop.f32.mrf.mxu0
        %v2106 = vadd.f32 %v1937, %v2105
        %2107 = vmatmul.bf16.gmra.mxu0 %v1133
        %v2108 = vpop.f32.mrf.mxu0
        %v2109 = vadd.f32 %v1940, %v2108
        %v2110 = vpop.f32.mrf.mxu0
        %v2111 = vadd.f32 %v1942, %v2110
        %2112 = vmatmul.bf16.gmra.mxu0 %v1137
        %v2113 = vpop.f32.mrf.mxu0
        %v2114 = vadd.f32 %v1945, %v2113
        %v2115 = vpop.f32.mrf.mxu0
        %v2116 = vadd.f32 %v1947, %v2115
        %2117 = vmatmul.bf16.gmra.mxu0 %v1141
        %v2118 = vpop.f32.mrf.mxu0
        %v2119 = vadd.f32 %v1950, %v2118
        %v2120 = vpop.f32.mrf.mxu0
        %v2121 = vadd.f32 %v1952, %v2120
        %2122 = vmatmul.bf16.gmra.mxu0 %v1145
        %v2123 = vpop.f32.mrf.mxu0
        %v2124 = vadd.f32 %v1955, %v2123
        %v2125 = vpop.f32.mrf.mxu0
        %v2126 = vadd.f32 %v1957, %v2125
        %2127 = vmatmul.bf16.gmra.mxu0 %v1149
        %v2128 = vpop.f32.mrf.mxu0
        %v2129 = vadd.f32 %v1960, %v2128
        %v2130 = vpop.f32.mrf.mxu0
        %v2131 = vadd.f32 %v1962, %v2130
        %2132 = vmatmul.bf16.gmra.mxu0 %v1153
        %v2133 = vpop.f32.mrf.mxu0
        %v2134 = vadd.f32 %v1965, %v2133
        %v2135 = vpop.f32.mrf.mxu0
        %v2136 = vadd.f32 %v1967, %v2135
        %2137 = vmatmul.bf16.gmra.mxu0 %v1157
        %v2138 = vpop.f32.mrf.mxu0
        %v2139 = vadd.f32 %v1970, %v2138
        %v2140 = vpop.f32.mrf.mxu0
        %v2141 = vadd.f32 %v1972, %v2140
        %2142 = vmatmul.bf16.gmra.mxu0 %v1161
        %v2143 = vpop.f32.mrf.mxu0
        %v2144 = vadd.f32 %v1975, %v2143
        %v2145 = vpop.f32.mrf.mxu0
        %v2146 = vadd.f32 %v1977, %v2145
        %2147 = vmatmul.bf16.gmra.mxu0 %v1165
        %v2148 = vpop.f32.mrf.mxu0
        %v2149 = vadd.f32 %v1980, %v2148
        %v2150 = vpop.f32.mrf.mxu0
        %v2151 = vadd.f32 %v1982, %v2150
        %2152 = vmatmul.bf16.gmra.mxu0 %v1169
        %v2153 = vpop.f32.mrf.mxu0
        %v2154 = vadd.f32 %v1985, %v2153
        %v2155 = vpop.f32.mrf.mxu0
        %v2156 = vadd.f32 %v1987, %v2155
        %2157 = vmatmul.bf16.gmra.mxu0 %v1173
        %v2158 = vpop.f32.mrf.mxu0
        %v2159 = vadd.f32 %v1990, %v2158
        %v2160 = vpop.f32.mrf.mxu0
        %v2161 = vadd.f32 %v1992, %v2160
        %2162 = vmatmul.bf16.gmra.mxu0 %v1177
        %v2163 = vpop.f32.mrf.mxu0
        %v2164 = vadd.f32 %v1995, %v2163
        %v2165 = vpop.f32.mrf.mxu0
        %v2166 = vadd.f32 %v1997, %v2165
        %2167 = vmatmul.bf16.gmra.mxu0 %v1181
        %v2168 = vpop.f32.mrf.mxu0
        %v2169 = vadd.f32 %v2000, %v2168
        %v2170 = vpop.f32.mrf.mxu0
        %v2171 = vadd.f32 %v2002, %v2170
        %2172 = vmatmul.bf16.gmra.mxu0 %v1185
        %v2173 = vpop.f32.mrf.mxu0
        %v2174 = vadd.f32 %v2005, %v2173
        %v2175 = vpop.f32.mrf.mxu0
        %v2176 = vadd.f32 %v2007, %v2175
        %2177 = vmatmul.bf16.gmra.mxu0 %v1189
        %v2178 = vpop.f32.mrf.mxu0
        %v2179 = vadd.f32 %v2010, %v2178
        %v2180 = vpop.f32.mrf.mxu0
        %v2181 = vadd.f32 %v2012, %v2180
        %2182 = vmatmul.bf16.gmra.mxu0 %v1193
        %v2183 = vpop.f32.mrf.mxu0
        %v2184 = vadd.f32 %v2015, %v2183
        %v2185 = vpop.f32.mrf.mxu0
        %v2186 = vadd.f32 %v2017, %v2185
        %2187 = vmatmul.bf16.gmra.mxu0 %v1197
        %v2188 = vpop.f32.mrf.mxu0
        %v2189 = vadd.f32 %v2020, %v2188
        %v2190 = vpop.f32.mrf.mxu0
        %v2191 = vadd.f32 %v2022, %v2190
        %2192 = vmatmul.bf16.gmra.mxu0 %v1201
        %v2193 = vpop.f32.mrf.mxu0
        %v2194 = vadd.f32 %v2025, %v2193
        %v2195 = vpop.f32.mrf.mxu0
        %v2196 = vadd.f32 %v2027, %v2195
        %2197 = vdwg.mxu0
        %v2198 = vadd.f32 %v1202, %v2039
        %v2199 = vadd.f32 %v1203, %v2041
        %v2200 = vadd.f32 %v1204, %v2044
        %v2201 = vadd.f32 %v1205, %v2046
        %v2202 = vadd.f32 %v1206, %v2049
        %v2203 = vadd.f32 %v1207, %v2051
        %v2204 = vadd.f32 %v1208, %v2054
        %v2205 = vadd.f32 %v1209, %v2056
        %v2206 = vadd.f32 %v1210, %v2059
        %v2207 = vadd.f32 %v1211, %v2061
        %v2208 = vadd.f32 %v1212, %v2064
        %v2209 = vadd.f32 %v1213, %v2066
        %v2210 = vadd.f32 %v1214, %v2069
        %v2211 = vadd.f32 %v1215, %v2071
        %v2212 = vadd.f32 %v1216, %v2074
        %v2213 = vadd.f32 %v1217, %v2076
        %v2214 = vadd.f32 %v1218, %v2079
        %v2215 = vadd.f32 %v1219, %v2081
        %v2216 = vadd.f32 %v1220, %v2084
        %v2217 = vadd.f32 %v1221, %v2086
        %v2218 = vadd.f32 %v1222, %v2089
        %v2219 = vadd.f32 %v1223, %v2091
        %v2220 = vadd.f32 %v1224, %v2094
        %v2221 = vadd.f32 %v1225, %v2096
        %v2222 = vadd.f32 %v1226, %v2099
        %v2223 = vadd.f32 %v1227, %v2101
        %v2224 = vadd.f32 %v1228, %v2104
        %v2225 = vadd.f32 %v1229, %v2106
        %v2226 = vadd.f32 %v1230, %v2109
        %v2227 = vadd.f32 %v1231, %v2111
        %v2228 = vadd.f32 %v1232, %v2114
        %v2229 = vadd.f32 %v1233, %v2116
        %v2230 = vadd.f32 %v1234, %v2119
        %v2231 = vadd.f32 %v1235, %v2121
        %v2232 = vadd.f32 %v1236, %v2124
        %v2233 = vadd.f32 %v1237, %v2126
        %v2234 = vadd.f32 %v1238, %v2129
        %v2235 = vadd.f32 %v1239, %v2131
        %v2236 = vadd.f32 %v1240, %v2134
        %v2237 = vadd.f32 %v1241, %v2136
        %v2238 = vadd.f32 %v1242, %v2139
        %v2239 = vadd.f32 %v1243, %v2141
        %v2240 = vadd.f32 %v1244, %v2144
        %v2241 = vadd.f32 %v1245, %v2146
        %v2242 = vadd.f32 %v1246, %v2149
        %v2243 = vadd.f32 %v1247, %v2151
        %v2244 = vadd.f32 %v1248, %v2154
        %v2245 = vadd.f32 %v1249, %v2156
        %v2246 = vadd.f32 %v1250, %v2159
        %v2247 = vadd.f32 %v1251, %v2161
        %v2248 = vadd.f32 %v1252, %v2164
        %v2249 = vadd.f32 %v1253, %v2166
        %v2250 = vadd.f32 %v1254, %v2169
        %v2251 = vadd.f32 %v1255, %v2171
        %v2252 = vadd.f32 %v1256, %v2174
        %v2253 = vadd.f32 %v1257, %v2176
        %v2254 = vadd.f32 %v1258, %v2179
        %v2255 = vadd.f32 %v1259, %v2181
        %v2256 = vadd.f32 %v1260, %v2184
        %v2257 = vadd.f32 %v1261, %v2186
        %v2258 = vadd.f32 %v1262, %v2189
        %v2259 = vadd.f32 %v1263, %v2191
        %v2260 = vadd.f32 %v1264, %v2194
        %v2261 = vadd.f32 %v1265, %v2196
        %2262 = vst [vmem:[#allocation2] sm:$0xff] %v2198
        %2263 = vst [vmem:[#allocation2 + $0x8] sm:$0xff] %v2199
        %2264 = vst [vmem:[#allocation2 + $0x10] sm:$0xff] %v2200
        %2265 = vst [vmem:[#allocation2 + $0x18] sm:$0xff] %v2201
        %2266 = vst [vmem:[#allocation2 + $0x20] sm:$0xff] %v2202
        %2267 = vst [vmem:[#allocation2 + $0x28] sm:$0xff] %v2203
        %2268 = vst [vmem:[#allocation2 + $0x30] sm:$0xff] %v2204
        %2269 = vst [vmem:[#allocation2 + $0x38] sm:$0xff] %v2205
        %2270 = vst [vmem:[#allocation2 + $0x40] sm:$0xff] %v2206
        %2271 = vst [vmem:[#allocation2 + $0x48] sm:$0xff] %v2207
        %2272 = vst [vmem:[#allocation2 + $0x50] sm:$0xff] %v2208
        %2273 = vst [vmem:[#allocation2 + $0x58] sm:$0xff] %v2209
        %2274 = vst [vmem:[#allocation2 + $0x60] sm:$0xff] %v2210
        %2275 = vst [vmem:[#allocation2 + $0x68] sm:$0xff] %v2211
        %2276 = vst [vmem:[#allocation2 + $0x70] sm:$0xff] %v2212
        %2277 = vst [vmem:[#allocation2 + $0x78] sm:$0xff] %v2213
        %2278 = vst [vmem:[#allocation2 + $0x80] sm:$0xff] %v2214
        %2279 = vst [vmem:[#allocation2 + $0x88] sm:$0xff] %v2215
        %2280 = vst [vmem:[#allocation2 + $0x90] sm:$0xff] %v2216
        %2281 = vst [vmem:[#allocation2 + $0x98] sm:$0xff] %v2217
        %2282 = vst [vmem:[#allocation2 + $0xa0] sm:$0xff] %v2218
        %2283 = vst [vmem:[#allocation2 + $0xa8] sm:$0xff] %v2219
        %2284 = vst [vmem:[#allocation2 + $0xb0] sm:$0xff] %v2220
        %2285 = vst [vmem:[#allocation2 + $0xb8] sm:$0xff] %v2221
        %2286 = vst [vmem:[#allocation2 + $0xc0] sm:$0xff] %v2222
        %2287 = vst [vmem:[#allocation2 + $0xc8] sm:$0xff] %v2223
        %2288 = vst [vmem:[#allocation2 + $0xd0] sm:$0xff] %v2224
        %2289 = vst [vmem:[#allocation2 + $0xd8] sm:$0xff] %v2225
        %2290 = vst [vmem:[#allocation2 + $0xe0] sm:$0xff] %v2226
        %2291 = vst [vmem:[#allocation2 + $0xe8] sm:$0xff] %v2227
        %2292 = vst [vmem:[#allocation2 + $0xf0] sm:$0xff] %v2228
        %2293 = vst [vmem:[#allocation2 + $0xf8] sm:$0xff] %v2229
        %2294 = vst [vmem:[#allocation2 + $0x100] sm:$0xff] %v2230
        %2295 = vst [vmem:[#allocation2 + $0x108] sm:$0xff] %v2231
        %2296 = vst [vmem:[#allocation2 + $0x110] sm:$0xff] %v2232
        %2297 = vst [vmem:[#allocation2 + $0x118] sm:$0xff] %v2233
        %2298 = vst [vmem:[#allocation2 + $0x120] sm:$0xff] %v2234
        %2299 = vst [vmem:[#allocation2 + $0x128] sm:$0xff] %v2235
        %2300 = vst [vmem:[#allocation2 + $0x130] sm:$0xff] %v2236
        %2301 = vst [vmem:[#allocation2 + $0x138] sm:$0xff] %v2237
        %2302 = vst [vmem:[#allocation2 + $0x140] sm:$0xff] %v2238
        %2303 = vst [vmem:[#allocation2 + $0x148] sm:$0xff] %v2239
        %2304 = vst [vmem:[#allocation2 + $0x150] sm:$0xff] %v2240
        %2305 = vst [vmem:[#allocation2 + $0x158] sm:$0xff] %v2241
        %2306 = vst [vmem:[#allocation2 + $0x160] sm:$0xff] %v2242
        %2307 = vst [vmem:[#allocation2 + $0x168] sm:$0xff] %v2243
        %2308 = vst [vmem:[#allocation2 + $0x170] sm:$0xff] %v2244
        %2309 = vst [vmem:[#allocation2 + $0x178] sm:$0xff] %v2245
        %2310 = vst [vmem:[#allocation2 + $0x180] sm:$0xff] %v2246
        %2311 = vst [vmem:[#allocation2 + $0x188] sm:$0xff] %v2247
        %2312 = vst [vmem:[#allocation2 + $0x190] sm:$0xff] %v2248
        %2313 = vst [vmem:[#allocation2 + $0x198] sm:$0xff] %v2249
        %2314 = vst [vmem:[#allocation2 + $0x1a0] sm:$0xff] %v2250
        %2315 = vst [vmem:[#allocation2 + $0x1a8] sm:$0xff] %v2251
        %2316 = vst [vmem:[#allocation2 + $0x1b0] sm:$0xff] %v2252
        %2317 = vst [vmem:[#allocation2 + $0x1b8] sm:$0xff] %v2253
        %2318 = vst [vmem:[#allocation2 + $0x1c0] sm:$0xff] %v2254
        %2319 = vst [vmem:[#allocation2 + $0x1c8] sm:$0xff] %v2255
        %2320 = vst [vmem:[#allocation2 + $0x1d0] sm:$0xff] %v2256
        %2321 = vst [vmem:[#allocation2 + $0x1d8] sm:$0xff] %v2257
        %2322 = vst [vmem:[#allocation2 + $0x1e0] sm:$0xff] %v2258
        %2323 = vst [vmem:[#allocation2 + $0x1e8] sm:$0xff] %v2259
        %2324 = vst [vmem:[#allocation2 + $0x1f0] sm:$0xff] %v2260
        %2325 = vst [vmem:[#allocation2 + $0x1f8] sm:$0xff] %v2261
        %p2326 = scmp.eq.s32.totalorder %s20, 1
        // Predicated region
        $region64: #{sage_e_net_forward.8} parent=54 // pred_check
          %p2327 = pneg %p2326
        $region65: #{sage_e_net_forward.8} parent=54 // pred_check_branch
          %2329 = sbr.rel (%p2327) target = $region67
        $region66: #{sage_e_net_forward.8} parent=54 // pred_region
          %v2330 = vld [vmem:[#allocation2] sm:$0xff]
          %v2331 = vld [vmem:[#allocation2 + $0x8] sm:$0xff]
          %v2332 = vld [vmem:[#allocation2 + $0x10] sm:$0xff]
          %v2333 = vld [vmem:[#allocation2 + $0x18] sm:$0xff]
          %v2334 = vld [vmem:[#allocation2 + $0x20] sm:$0xff]
          %v2335 = vld [vmem:[#allocation2 + $0x28] sm:$0xff]
          %v2336 = vld [vmem:[#allocation2 + $0x30] sm:$0xff]
          %v2337 = vld [vmem:[#allocation2 + $0x38] sm:$0xff]
          %v2338 = vld [vmem:[#allocation2 + $0x40] sm:$0xff]
          %v2339 = vld [vmem:[#allocation2 + $0x48] sm:$0xff]
          %v2340 = vld [vmem:[#allocation2 + $0x50] sm:$0xff]
          %v2341 = vld [vmem:[#allocation2 + $0x58] sm:$0xff]
          %v2342 = vld [vmem:[#allocation2 + $0x60] sm:$0xff]
          %v2343 = vld [vmem:[#allocation2 + $0x68] sm:$0xff]
          %v2344 = vld [vmem:[#allocation2 + $0x70] sm:$0xff]
          %v2345 = vld [vmem:[#allocation2 + $0x78] sm:$0xff]
          %v2346 = vld [vmem:[#allocation2 + $0x80] sm:$0xff]
          %v2347 = vld [vmem:[#allocation2 + $0x88] sm:$0xff]
          %v2348 = vld [vmem:[#allocation2 + $0x90] sm:$0xff]
          %v2349 = vld [vmem:[#allocation2 + $0x98] sm:$0xff]
          %v2350 = vld [vmem:[#allocation2 + $0xa0] sm:$0xff]
          %v2351 = vld [vmem:[#allocation2 + $0xa8] sm:$0xff]
          %v2352 = vld [vmem:[#allocation2 + $0xb0] sm:$0xff]
          %v2353 = vld [vmem:[#allocation2 + $0xb8] sm:$0xff]
          %v2354 = vld [vmem:[#allocation2 + $0xc0] sm:$0xff]
          %v2355 = vld [vmem:[#allocation2 + $0xc8] sm:$0xff]
          %v2356 = vld [vmem:[#allocation2 + $0xd0] sm:$0xff]
          %v2357 = vld [vmem:[#allocation2 + $0xd8] sm:$0xff]
          %v2358 = vld [vmem:[#allocation2 + $0xe0] sm:$0xff]
          %v2359 = vld [vmem:[#allocation2 + $0xe8] sm:$0xff]
          %v2360 = vld [vmem:[#allocation2 + $0xf0] sm:$0xff]
          %v2361 = vld [vmem:[#allocation2 + $0xf8] sm:$0xff]
          %v2362 = vld [vmem:[#allocation2 + $0x100] sm:$0xff]
          %v2363 = vld [vmem:[#allocation2 + $0x108] sm:$0xff]
          %v2364 = vld [vmem:[#allocation2 + $0x110] sm:$0xff]
          %v2365 = vld [vmem:[#allocation2 + $0x118] sm:$0xff]
          %v2366 = vld [vmem:[#allocation2 + $0x120] sm:$0xff]
          %v2367 = vld [vmem:[#allocation2 + $0x128] sm:$0xff]
          %v2368 = vld [vmem:[#allocation2 + $0x130] sm:$0xff]
          %v2369 = vld [vmem:[#allocation2 + $0x138] sm:$0xff]
          %v2370 = vld [vmem:[#allocation2 + $0x140] sm:$0xff]
          %v2371 = vld [vmem:[#allocation2 + $0x148] sm:$0xff]
          %v2372 = vld [vmem:[#allocation2 + $0x150] sm:$0xff]
          %v2373 = vld [vmem:[#allocation2 + $0x158] sm:$0xff]
          %v2374 = vld [vmem:[#allocation2 + $0x160] sm:$0xff]
          %v2375 = vld [vmem:[#allocation2 + $0x168] sm:$0xff]
          %v2376 = vld [vmem:[#allocation2 + $0x170] sm:$0xff]
          %v2377 = vld [vmem:[#allocation2 + $0x178] sm:$0xff]
          %v2378 = vld [vmem:[#allocation2 + $0x180] sm:$0xff]
          %v2379 = vld [vmem:[#allocation2 + $0x188] sm:$0xff]
          %v2380 = vld [vmem:[#allocation2 + $0x190] sm:$0xff]
          %v2381 = vld [vmem:[#allocation2 + $0x198] sm:$0xff]
          %v2382 = vld [vmem:[#allocation2 + $0x1a0] sm:$0xff]
          %v2383 = vld [vmem:[#allocation2 + $0x1a8] sm:$0xff]
          %v2384 = vld [vmem:[#allocation2 + $0x1b0] sm:$0xff]
          %v2385 = vld [vmem:[#allocation2 + $0x1b8] sm:$0xff]
          %v2386 = vld [vmem:[#allocation2 + $0x1c0] sm:$0xff]
          %v2387 = vld [vmem:[#allocation2 + $0x1c8] sm:$0xff]
          %v2388 = vld [vmem:[#allocation2 + $0x1d0] sm:$0xff]
          %v2389 = vld [vmem:[#allocation2 + $0x1d8] sm:$0xff]
          %v2390 = vld [vmem:[#allocation2 + $0x1e0] sm:$0xff]
          %v2391 = vld [vmem:[#allocation2 + $0x1e8] sm:$0xff]
          %v2392 = vld [vmem:[#allocation2 + $0x1f0] sm:$0xff]
          %v2393 = vld [vmem:[#allocation2 + $0x1f8] sm:$0xff]
          %v2394 = vld [vmem:[%s422] sm:$0xff]
          %v2395 = vld [vmem:[%s422 + $0x8] sm:$0xff]
          %v2396 = vld [vmem:[%s422 + $0x10] sm:$0xff]
          %v2397 = vld [vmem:[%s422 + $0x18] sm:$0xff]
          %v2398 = vld [vmem:[%s422 + $0x20] sm:$0xff]
          %v2399 = vld [vmem:[%s422 + $0x28] sm:$0xff]
          %v2400 = vld [vmem:[%s422 + $0x30] sm:$0xff]
          %v2401 = vld [vmem:[%s422 + $0x38] sm:$0xff]
          %v2402 = vld [vmem:[%s422 + $0x40] sm:$0xff]
          %v2403 = vld [vmem:[%s422 + $0x48] sm:$0xff]
          %v2404 = vld [vmem:[%s422 + $0x50] sm:$0xff]
          %v2405 = vld [vmem:[%s422 + $0x58] sm:$0xff]
          %v2406 = vld [vmem:[%s422 + $0x60] sm:$0xff]
          %v2407 = vld [vmem:[%s422 + $0x68] sm:$0xff]
          %v2408 = vld [vmem:[%s422 + $0x70] sm:$0xff]
          %v2409 = vld [vmem:[%s422 + $0x78] sm:$0xff]
          %v2410 = vld [vmem:[%s422 + $0x80] sm:$0xff]
          %v2411 = vld [vmem:[%s422 + $0x88] sm:$0xff]
          %v2412 = vld [vmem:[%s422 + $0x90] sm:$0xff]
          %v2413 = vld [vmem:[%s422 + $0x98] sm:$0xff]
          %v2414 = vld [vmem:[%s422 + $0xa0] sm:$0xff]
          %v2415 = vld [vmem:[%s422 + $0xa8] sm:$0xff]
          %v2416 = vld [vmem:[%s422 + $0xb0] sm:$0xff]
          %v2417 = vld [vmem:[%s422 + $0xb8] sm:$0xff]
          %v2418 = vld [vmem:[%s422 + $0xc0] sm:$0xff]
          %v2419 = vld [vmem:[%s422 + $0xc8] sm:$0xff]
          %v2420 = vld [vmem:[%s422 + $0xd0] sm:$0xff]
          %v2421 = vld [vmem:[%s422 + $0xd8] sm:$0xff]
          %v2422 = vld [vmem:[%s422 + $0xe0] sm:$0xff]
          %v2423 = vld [vmem:[%s422 + $0xe8] sm:$0xff]
          %v2424 = vld [vmem:[%s422 + $0xf0] sm:$0xff]
          %v2425 = vld [vmem:[%s422 + $0xf8] sm:$0xff]
          %v2426 = vld [vmem:[%s422 + $0x100] sm:$0xff]
          %v2427 = vld [vmem:[%s422 + $0x108] sm:$0xff]
          %v2428 = vld [vmem:[%s422 + $0x110] sm:$0xff]
          %v2429 = vld [vmem:[%s422 + $0x118] sm:$0xff]
          %v2430 = vld [vmem:[%s422 + $0x120] sm:$0xff]
          %v2431 = vld [vmem:[%s422 + $0x128] sm:$0xff]
          %v2432 = vld [vmem:[%s422 + $0x130] sm:$0xff]
          %v2433 = vld [vmem:[%s422 + $0x138] sm:$0xff]
          %v2434 = vld [vmem:[%s422 + $0x140] sm:$0xff]
          %v2435 = vld [vmem:[%s422 + $0x148] sm:$0xff]
          %v2436 = vld [vmem:[%s422 + $0x150] sm:$0xff]
          %v2437 = vld [vmem:[%s422 + $0x158] sm:$0xff]
          %v2438 = vld [vmem:[%s422 + $0x160] sm:$0xff]
          %v2439 = vld [vmem:[%s422 + $0x168] sm:$0xff]
          %v2440 = vld [vmem:[%s422 + $0x170] sm:$0xff]
          %v2441 = vld [vmem:[%s422 + $0x178] sm:$0xff]
          %v2442 = vld [vmem:[%s422 + $0x180] sm:$0xff]
          %v2443 = vld [vmem:[%s422 + $0x188] sm:$0xff]
          %v2444 = vld [vmem:[%s422 + $0x190] sm:$0xff]
          %v2445 = vld [vmem:[%s422 + $0x198] sm:$0xff]
          %v2446 = vld [vmem:[%s422 + $0x1a0] sm:$0xff]
          %v2447 = vld [vmem:[%s422 + $0x1a8] sm:$0xff]
          %v2448 = vld [vmem:[%s422 + $0x1b0] sm:$0xff]
          %v2449 = vld [vmem:[%s422 + $0x1b8] sm:$0xff]
          %v2450 = vld [vmem:[%s422 + $0x1c0] sm:$0xff]
          %v2451 = vld [vmem:[%s422 + $0x1c8] sm:$0xff]
          %v2452 = vld [vmem:[%s422 + $0x1d0] sm:$0xff]
          %v2453 = vld [vmem:[%s422 + $0x1d8] sm:$0xff]
          %v2454 = vld [vmem:[%s422 + $0x1e0] sm:$0xff]
          %v2455 = vld [vmem:[%s422 + $0x1e8] sm:$0xff]
          %v2456 = vld [vmem:[%s422 + $0x1f0] sm:$0xff]
          %v2457 = vld [vmem:[%s422 + $0x1f8] sm:$0xff]
          %2459 = vset.pattern.permute.xlu0 0
          %2460 = vperm.xlu0 %2459, %v2394
          %v2461 = vpop.permute.xlu0 %2460
          %2464 = vset.pattern.permute.xlu0 0
          %2465 = vperm.xlu0 %2464, %v2395
          %v2466 = vpop.permute.xlu0 %2465
          %2469 = vset.pattern.permute.xlu0 0
          %2470 = vperm.xlu0 %2469, %v2396
          %v2471 = vpop.permute.xlu0 %2470
          %2474 = vset.pattern.permute.xlu0 0
          %2475 = vperm.xlu0 %2474, %v2397
          %v2476 = vpop.permute.xlu0 %2475
          %2479 = vset.pattern.permute.xlu0 0
          %2480 = vperm.xlu0 %2479, %v2398
          %v2481 = vpop.permute.xlu0 %2480
          %2484 = vset.pattern.permute.xlu0 0
          %2485 = vperm.xlu0 %2484, %v2399
          %v2486 = vpop.permute.xlu0 %2485
          %2489 = vset.pattern.permute.xlu0 0
          %2490 = vperm.xlu0 %2489, %v2400
          %v2491 = vpop.permute.xlu0 %2490
          %2494 = vset.pattern.permute.xlu0 0
          %2495 = vperm.xlu0 %2494, %v2401
          %v2496 = vpop.permute.xlu0 %2495
          %2499 = vset.pattern.permute.xlu0 0
          %2500 = vperm.xlu0 %2499, %v2402
          %v2501 = vpop.permute.xlu0 %2500
          %2504 = vset.pattern.permute.xlu0 0
          %2505 = vperm.xlu0 %2504, %v2403
          %v2506 = vpop.permute.xlu0 %2505
          %2509 = vset.pattern.permute.xlu0 0
          %2510 = vperm.xlu0 %2509, %v2404
          %v2511 = vpop.permute.xlu0 %2510
          %2514 = vset.pattern.permute.xlu0 0
          %2515 = vperm.xlu0 %2514, %v2405
          %v2516 = vpop.permute.xlu0 %2515
          %2519 = vset.pattern.permute.xlu0 0
          %2520 = vperm.xlu0 %2519, %v2406
          %v2521 = vpop.permute.xlu0 %2520
          %2524 = vset.pattern.permute.xlu0 0
          %2525 = vperm.xlu0 %2524, %v2407
          %v2526 = vpop.permute.xlu0 %2525
          %2529 = vset.pattern.permute.xlu0 0
          %2530 = vperm.xlu0 %2529, %v2408
          %v2531 = vpop.permute.xlu0 %2530
          %2534 = vset.pattern.permute.xlu0 0
          %2535 = vperm.xlu0 %2534, %v2409
          %v2536 = vpop.permute.xlu0 %2535
          %2539 = vset.pattern.permute.xlu0 0
          %2540 = vperm.xlu0 %2539, %v2410
          %v2541 = vpop.permute.xlu0 %2540
          %2544 = vset.pattern.permute.xlu0 0
          %2545 = vperm.xlu0 %2544, %v2411
          %v2546 = vpop.permute.xlu0 %2545
          %2549 = vset.pattern.permute.xlu0 0
          %2550 = vperm.xlu0 %2549, %v2412
          %v2551 = vpop.permute.xlu0 %2550
          %2554 = vset.pattern.permute.xlu0 0
          %2555 = vperm.xlu0 %2554, %v2413
          %v2556 = vpop.permute.xlu0 %2555
          %2559 = vset.pattern.permute.xlu0 0
          %2560 = vperm.xlu0 %2559, %v2414
          %v2561 = vpop.permute.xlu0 %2560
          %2564 = vset.pattern.permute.xlu0 0
          %2565 = vperm.xlu0 %2564, %v2415
          %v2566 = vpop.permute.xlu0 %2565
          %2569 = vset.pattern.permute.xlu0 0
          %2570 = vperm.xlu0 %2569, %v2416
          %v2571 = vpop.permute.xlu0 %2570
          %2574 = vset.pattern.permute.xlu0 0
          %2575 = vperm.xlu0 %2574, %v2417
          %v2576 = vpop.permute.xlu0 %2575
          %2579 = vset.pattern.permute.xlu0 0
          %2580 = vperm.xlu0 %2579, %v2418
          %v2581 = vpop.permute.xlu0 %2580
          %2584 = vset.pattern.permute.xlu0 0
          %2585 = vperm.xlu0 %2584, %v2419
          %v2586 = vpop.permute.xlu0 %2585
          %2589 = vset.pattern.permute.xlu0 0
          %2590 = vperm.xlu0 %2589, %v2420
          %v2591 = vpop.permute.xlu0 %2590
          %2594 = vset.pattern.permute.xlu0 0
          %2595 = vperm.xlu0 %2594, %v2421
          %v2596 = vpop.permute.xlu0 %2595
          %2599 = vset.pattern.permute.xlu0 0
          %2600 = vperm.xlu0 %2599, %v2422
          %v2601 = vpop.permute.xlu0 %2600
          %2604 = vset.pattern.permute.xlu0 0
          %2605 = vperm.xlu0 %2604, %v2423
          %v2606 = vpop.permute.xlu0 %2605
          %2609 = vset.pattern.permute.xlu0 0
          %2610 = vperm.xlu0 %2609, %v2424
          %v2611 = vpop.permute.xlu0 %2610
          %2614 = vset.pattern.permute.xlu0 0
          %2615 = vperm.xlu0 %2614, %v2425
          %v2616 = vpop.permute.xlu0 %2615
          %2619 = vset.pattern.permute.xlu0 0
          %2620 = vperm.xlu0 %2619, %v2426
          %v2621 = vpop.permute.xlu0 %2620
          %2624 = vset.pattern.permute.xlu0 0
          %2625 = vperm.xlu0 %2624, %v2427
          %v2626 = vpop.permute.xlu0 %2625
          %2629 = vset.pattern.permute.xlu0 0
          %2630 = vperm.xlu0 %2629, %v2428
          %v2631 = vpop.permute.xlu0 %2630
          %2634 = vset.pattern.permute.xlu0 0
          %2635 = vperm.xlu0 %2634, %v2429
          %v2636 = vpop.permute.xlu0 %2635
          %2639 = vset.pattern.permute.xlu0 0
          %2640 = vperm.xlu0 %2639, %v2430
          %v2641 = vpop.permute.xlu0 %2640
          %2644 = vset.pattern.permute.xlu0 0
          %2645 = vperm.xlu0 %2644, %v2431
          %v2646 = vpop.permute.xlu0 %2645
          %2649 = vset.pattern.permute.xlu0 0
          %2650 = vperm.xlu0 %2649, %v2432
          %v2651 = vpop.permute.xlu0 %2650
          %2654 = vset.pattern.permute.xlu0 0
          %2655 = vperm.xlu0 %2654, %v2433
          %v2656 = vpop.permute.xlu0 %2655
          %2659 = vset.pattern.permute.xlu0 0
          %2660 = vperm.xlu0 %2659, %v2434
          %v2661 = vpop.permute.xlu0 %2660
          %2664 = vset.pattern.permute.xlu0 0
          %2665 = vperm.xlu0 %2664, %v2435
          %v2666 = vpop.permute.xlu0 %2665
          %2669 = vset.pattern.permute.xlu0 0
          %2670 = vperm.xlu0 %2669, %v2436
          %v2671 = vpop.permute.xlu0 %2670
          %2674 = vset.pattern.permute.xlu0 0
          %2675 = vperm.xlu0 %2674, %v2437
          %v2676 = vpop.permute.xlu0 %2675
          %2679 = vset.pattern.permute.xlu0 0
          %2680 = vperm.xlu0 %2679, %v2438
          %v2681 = vpop.permute.xlu0 %2680
          %2684 = vset.pattern.permute.xlu0 0
          %2685 = vperm.xlu0 %2684, %v2439
          %v2686 = vpop.permute.xlu0 %2685
          %2689 = vset.pattern.permute.xlu0 0
          %2690 = vperm.xlu0 %2689, %v2440
          %v2691 = vpop.permute.xlu0 %2690
          %2694 = vset.pattern.permute.xlu0 0
          %2695 = vperm.xlu0 %2694, %v2441
          %v2696 = vpop.permute.xlu0 %2695
          %2699 = vset.pattern.permute.xlu0 0
          %2700 = vperm.xlu0 %2699, %v2442
          %v2701 = vpop.permute.xlu0 %2700
          %2704 = vset.pattern.permute.xlu0 0
          %2705 = vperm.xlu0 %2704, %v2443
          %v2706 = vpop.permute.xlu0 %2705
          %2709 = vset.pattern.permute.xlu0 0
          %2710 = vperm.xlu0 %2709, %v2444
          %v2711 = vpop.permute.xlu0 %2710
          %2714 = vset.pattern.permute.xlu0 0
          %2715 = vperm.xlu0 %2714, %v2445
          %v2716 = vpop.permute.xlu0 %2715
          %2719 = vset.pattern.permute.xlu0 0
          %2720 = vperm.xlu0 %2719, %v2446
          %v2721 = vpop.permute.xlu0 %2720
          %2724 = vset.pattern.permute.xlu0 0
          %2725 = vperm.xlu0 %2724, %v2447
          %v2726 = vpop.permute.xlu0 %2725
          %2729 = vset.pattern.permute.xlu0 0
          %2730 = vperm.xlu0 %2729, %v2448
          %v2731 = vpop.permute.xlu0 %2730
          %2734 = vset.pattern.permute.xlu0 0
          %2735 = vperm.xlu0 %2734, %v2449
          %v2736 = vpop.permute.xlu0 %2735
          %2739 = vset.pattern.permute.xlu0 0
          %2740 = vperm.xlu0 %2739, %v2450
          %v2741 = vpop.permute.xlu0 %2740
          %2744 = vset.pattern.permute.xlu0 0
          %2745 = vperm.xlu0 %2744, %v2451
          %v2746 = vpop.permute.xlu0 %2745
          %2749 = vset.pattern.permute.xlu0 0
          %2750 = vperm.xlu0 %2749, %v2452
          %v2751 = vpop.permute.xlu0 %2750
          %2754 = vset.pattern.permute.xlu0 0
          %2755 = vperm.xlu0 %2754, %v2453
          %v2756 = vpop.permute.xlu0 %2755
          %2759 = vset.pattern.permute.xlu0 0
          %2760 = vperm.xlu0 %2759, %v2454
          %v2761 = vpop.permute.xlu0 %2760
          %2764 = vset.pattern.permute.xlu0 0
          %2765 = vperm.xlu0 %2764, %v2455
          %v2766 = vpop.permute.xlu0 %2765
          %2769 = vset.pattern.permute.xlu0 0
          %2770 = vperm.xlu0 %2769, %v2456
          %v2771 = vpop.permute.xlu0 %2770
          %2774 = vset.pattern.permute.xlu0 0
          %2775 = vperm.xlu0 %2774, %v2457
          %v2776 = vpop.permute.xlu0 %2775
          %v2778 = vmul.f32 %v2330, %v2461
          %v2779 = vmul.f32 %v2331, %v2466
          %v2780 = vmul.f32 %v2332, %v2471
          %v2781 = vmul.f32 %v2333, %v2476
          %v2782 = vmul.f32 %v2334, %v2481
          %v2783 = vmul.f32 %v2335, %v2486
          %v2784 = vmul.f32 %v2336, %v2491
          %v2785 = vmul.f32 %v2337, %v2496
          %v2786 = vmul.f32 %v2338, %v2501
          %v2787 = vmul.f32 %v2339, %v2506
          %v2788 = vmul.f32 %v2340, %v2511
          %v2789 = vmul.f32 %v2341, %v2516
          %v2790 = vmul.f32 %v2342, %v2521
          %v2791 = vmul.f32 %v2343, %v2526
          %v2792 = vmul.f32 %v2344, %v2531
          %v2793 = vmul.f32 %v2345, %v2536
          %v2794 = vmul.f32 %v2346, %v2541
          %v2795 = vmul.f32 %v2347, %v2546
          %v2796 = vmul.f32 %v2348, %v2551
          %v2797 = vmul.f32 %v2349, %v2556
          %v2798 = vmul.f32 %v2350, %v2561
          %v2799 = vmul.f32 %v2351, %v2566
          %v2800 = vmul.f32 %v2352, %v2571
          %v2801 = vmul.f32 %v2353, %v2576
          %v2802 = vmul.f32 %v2354, %v2581
          %v2803 = vmul.f32 %v2355, %v2586
          %v2804 = vmul.f32 %v2356, %v2591
          %v2805 = vmul.f32 %v2357, %v2596
          %v2806 = vmul.f32 %v2358, %v2601
          %v2807 = vmul.f32 %v2359, %v2606
          %v2808 = vmul.f32 %v2360, %v2611
          %v2809 = vmul.f32 %v2361, %v2616
          %v2810 = vmul.f32 %v2362, %v2621
          %v2811 = vmul.f32 %v2363, %v2626
          %v2812 = vmul.f32 %v2364, %v2631
          %v2813 = vmul.f32 %v2365, %v2636
          %v2814 = vmul.f32 %v2366, %v2641
          %v2815 = vmul.f32 %v2367, %v2646
          %v2816 = vmul.f32 %v2368, %v2651
          %v2817 = vmul.f32 %v2369, %v2656
          %v2818 = vmul.f32 %v2370, %v2661
          %v2819 = vmul.f32 %v2371, %v2666
          %v2820 = vmul.f32 %v2372, %v2671
          %v2821 = vmul.f32 %v2373, %v2676
          %v2822 = vmul.f32 %v2374, %v2681
          %v2823 = vmul.f32 %v2375, %v2686
          %v2824 = vmul.f32 %v2376, %v2691
          %v2825 = vmul.f32 %v2377, %v2696
          %v2826 = vmul.f32 %v2378, %v2701
          %v2827 = vmul.f32 %v2379, %v2706
          %v2828 = vmul.f32 %v2380, %v2711
          %v2829 = vmul.f32 %v2381, %v2716
          %v2830 = vmul.f32 %v2382, %v2721
          %v2831 = vmul.f32 %v2383, %v2726
          %v2832 = vmul.f32 %v2384, %v2731
          %v2833 = vmul.f32 %v2385, %v2736
          %v2834 = vmul.f32 %v2386, %v2741
          %v2835 = vmul.f32 %v2387, %v2746
          %v2836 = vmul.f32 %v2388, %v2751
          %v2837 = vmul.f32 %v2389, %v2756
          %v2838 = vmul.f32 %v2390, %v2761
          %v2839 = vmul.f32 %v2391, %v2766
          %v2840 = vmul.f32 %v2392, %v2771
          %v2841 = vmul.f32 %v2393, %v2776
          %v2842 = vld [vmem:[%s416] sm:$0xff]
          %v2843 = vld [vmem:[%s416 + $0x8] sm:$0xff]
          %v2844 = vld [vmem:[%s416 + $0x10] sm:$0xff]
          %v2845 = vld [vmem:[%s416 + $0x18] sm:$0xff]
          %v2846 = vld [vmem:[%s416 + $0x20] sm:$0xff]
          %v2847 = vld [vmem:[%s416 + $0x28] sm:$0xff]
          %v2848 = vld [vmem:[%s416 + $0x30] sm:$0xff]
          %v2849 = vld [vmem:[%s416 + $0x38] sm:$0xff]
          %v2850 = vld [vmem:[%s416 + $0x40] sm:$0xff]
          %v2851 = vld [vmem:[%s416 + $0x48] sm:$0xff]
          %v2852 = vld [vmem:[%s416 + $0x50] sm:$0xff]
          %v2853 = vld [vmem:[%s416 + $0x58] sm:$0xff]
          %v2854 = vld [vmem:[%s416 + $0x60] sm:$0xff]
          %v2855 = vld [vmem:[%s416 + $0x68] sm:$0xff]
          %v2856 = vld [vmem:[%s416 + $0x70] sm:$0xff]
          %v2857 = vld [vmem:[%s416 + $0x78] sm:$0xff]
          %v2858 = vld [vmem:[%s416 + $0x80] sm:$0xff]
          %v2859 = vld [vmem:[%s416 + $0x88] sm:$0xff]
          %v2860 = vld [vmem:[%s416 + $0x90] sm:$0xff]
          %v2861 = vld [vmem:[%s416 + $0x98] sm:$0xff]
          %v2862 = vld [vmem:[%s416 + $0xa0] sm:$0xff]
          %v2863 = vld [vmem:[%s416 + $0xa8] sm:$0xff]
          %v2864 = vld [vmem:[%s416 + $0xb0] sm:$0xff]
          %v2865 = vld [vmem:[%s416 + $0xb8] sm:$0xff]
          %v2866 = vld [vmem:[%s416 + $0xc0] sm:$0xff]
          %v2867 = vld [vmem:[%s416 + $0xc8] sm:$0xff]
          %v2868 = vld [vmem:[%s416 + $0xd0] sm:$0xff]
          %v2869 = vld [vmem:[%s416 + $0xd8] sm:$0xff]
          %v2870 = vld [vmem:[%s416 + $0xe0] sm:$0xff]
          %v2871 = vld [vmem:[%s416 + $0xe8] sm:$0xff]
          %v2872 = vld [vmem:[%s416 + $0xf0] sm:$0xff]
          %v2873 = vld [vmem:[%s416 + $0xf8] sm:$0xff]
          %v2874 = vld [vmem:[%s416 + $0x100] sm:$0xff]
          %v2875 = vld [vmem:[%s416 + $0x108] sm:$0xff]
          %v2876 = vld [vmem:[%s416 + $0x110] sm:$0xff]
          %v2877 = vld [vmem:[%s416 + $0x118] sm:$0xff]
          %v2878 = vld [vmem:[%s416 + $0x120] sm:$0xff]
          %v2879 = vld [vmem:[%s416 + $0x128] sm:$0xff]
          %v2880 = vld [vmem:[%s416 + $0x130] sm:$0xff]
          %v2881 = vld [vmem:[%s416 + $0x138] sm:$0xff]
          %v2882 = vld [vmem:[%s416 + $0x140] sm:$0xff]
          %v2883 = vld [vmem:[%s416 + $0x148] sm:$0xff]
          %v2884 = vld [vmem:[%s416 + $0x150] sm:$0xff]
          %v2885 = vld [vmem:[%s416 + $0x158] sm:$0xff]
          %v2886 = vld [vmem:[%s416 + $0x160] sm:$0xff]
          %v2887 = vld [vmem:[%s416 + $0x168] sm:$0xff]
          %v2888 = vld [vmem:[%s416 + $0x170] sm:$0xff]
          %v2889 = vld [vmem:[%s416 + $0x178] sm:$0xff]
          %v2890 = vld [vmem:[%s416 + $0x180] sm:$0xff]
          %v2891 = vld [vmem:[%s416 + $0x188] sm:$0xff]
          %v2892 = vld [vmem:[%s416 + $0x190] sm:$0xff]
          %v2893 = vld [vmem:[%s416 + $0x198] sm:$0xff]
          %v2894 = vld [vmem:[%s416 + $0x1a0] sm:$0xff]
          %v2895 = vld [vmem:[%s416 + $0x1a8] sm:$0xff]
          %v2896 = vld [vmem:[%s416 + $0x1b0] sm:$0xff]
          %v2897 = vld [vmem:[%s416 + $0x1b8] sm:$0xff]
          %v2898 = vld [vmem:[%s416 + $0x1c0] sm:$0xff]
          %v2899 = vld [vmem:[%s416 + $0x1c8] sm:$0xff]
          %v2900 = vld [vmem:[%s416 + $0x1d0] sm:$0xff]
          %v2901 = vld [vmem:[%s416 + $0x1d8] sm:$0xff]
          %v2902 = vld [vmem:[%s416 + $0x1e0] sm:$0xff]
          %v2903 = vld [vmem:[%s416 + $0x1e8] sm:$0xff]
          %v2904 = vld [vmem:[%s416 + $0x1f0] sm:$0xff]
          %v2905 = vld [vmem:[%s416 + $0x1f8] sm:$0xff]
          %v2906 = vadd.f32 %v2778, %v2842
          %v2907 = vadd.f32 %v2779, %v2843
          %v2908 = vadd.f32 %v2780, %v2844
          %v2909 = vadd.f32 %v2781, %v2845
          %v2910 = vadd.f32 %v2782, %v2846
          %v2911 = vadd.f32 %v2783, %v2847
          %v2912 = vadd.f32 %v2784, %v2848
          %v2913 = vadd.f32 %v2785, %v2849
          %v2914 = vadd.f32 %v2786, %v2850
          %v2915 = vadd.f32 %v2787, %v2851
          %v2916 = vadd.f32 %v2788, %v2852
          %v2917 = vadd.f32 %v2789, %v2853
          %v2918 = vadd.f32 %v2790, %v2854
          %v2919 = vadd.f32 %v2791, %v2855
          %v2920 = vadd.f32 %v2792, %v2856
          %v2921 = vadd.f32 %v2793, %v2857
          %v2922 = vadd.f32 %v2794, %v2858
          %v2923 = vadd.f32 %v2795, %v2859
          %v2924 = vadd.f32 %v2796, %v2860
          %v2925 = vadd.f32 %v2797, %v2861
          %v2926 = vadd.f32 %v2798, %v2862
          %v2927 = vadd.f32 %v2799, %v2863
          %v2928 = vadd.f32 %v2800, %v2864
          %v2929 = vadd.f32 %v2801, %v2865
          %v2930 = vadd.f32 %v2802, %v2866
          %v2931 = vadd.f32 %v2803, %v2867
          %v2932 = vadd.f32 %v2804, %v2868
          %v2933 = vadd.f32 %v2805, %v2869
          %v2934 = vadd.f32 %v2806, %v2870
          %v2935 = vadd.f32 %v2807, %v2871
          %v2936 = vadd.f32 %v2808, %v2872
          %v2937 = vadd.f32 %v2809, %v2873
          %v2938 = vadd.f32 %v2810, %v2874
          %v2939 = vadd.f32 %v2811, %v2875
          %v2940 = vadd.f32 %v2812, %v2876
          %v2941 = vadd.f32 %v2813, %v2877
          %v2942 = vadd.f32 %v2814, %v2878
          %v2943 = vadd.f32 %v2815, %v2879
          %v2944 = vadd.f32 %v2816, %v2880
          %v2945 = vadd.f32 %v2817, %v2881
          %v2946 = vadd.f32 %v2818, %v2882
          %v2947 = vadd.f32 %v2819, %v2883
          %v2948 = vadd.f32 %v2820, %v2884
          %v2949 = vadd.f32 %v2821, %v2885
          %v2950 = vadd.f32 %v2822, %v2886
          %v2951 = vadd.f32 %v2823, %v2887
          %v2952 = vadd.f32 %v2824, %v2888
          %v2953 = vadd.f32 %v2825, %v2889
          %v2954 = vadd.f32 %v2826, %v2890
          %v2955 = vadd.f32 %v2827, %v2891
          %v2956 = vadd.f32 %v2828, %v2892
          %v2957 = vadd.f32 %v2829, %v2893
          %v2958 = vadd.f32 %v2830, %v2894
          %v2959 = vadd.f32 %v2831, %v2895
          %v2960 = vadd.f32 %v2832, %v2896
          %v2961 = vadd.f32 %v2833, %v2897
          %v2962 = vadd.f32 %v2834, %v2898
          %v2963 = vadd.f32 %v2835, %v2899
          %v2964 = vadd.f32 %v2836, %v2900
          %v2965 = vadd.f32 %v2837, %v2901
          %v2966 = vadd.f32 %v2838, %v2902
          %v2967 = vadd.f32 %v2839, %v2903
          %v2968 = vadd.f32 %v2840, %v2904
          %v2969 = vadd.f32 %v2841, %v2905
          %2970 = vst [vmem:[%s428] sm:$0xff] %v2906
          %2971 = vst [vmem:[%s428 + $0x8] sm:$0xff] %v2907
          %2972 = vst [vmem:[%s428 + $0x10] sm:$0xff] %v2908
          %2973 = vst [vmem:[%s428 + $0x18] sm:$0xff] %v2909
          %2974 = vst [vmem:[%s428 + $0x20] sm:$0xff] %v2910
          %2975 = vst [vmem:[%s428 + $0x28] sm:$0xff] %v2911
          %2976 = vst [vmem:[%s428 + $0x30] sm:$0xff] %v2912
          %2977 = vst [vmem:[%s428 + $0x38] sm:$0xff] %v2913
          %2978 = vst [vmem:[%s428 + $0x40] sm:$0xff] %v2914
          %2979 = vst [vmem:[%s428 + $0x48] sm:$0xff] %v2915
          %2980 = vst [vmem:[%s428 + $0x50] sm:$0xff] %v2916
          %2981 = vst [vmem:[%s428 + $0x58] sm:$0xff] %v2917
          %2982 = vst [vmem:[%s428 + $0x60] sm:$0xff] %v2918
          %2983 = vst [vmem:[%s428 + $0x68] sm:$0xff] %v2919
          %2984 = vst [vmem:[%s428 + $0x70] sm:$0xff] %v2920
          %2985 = vst [vmem:[%s428 + $0x78] sm:$0xff] %v2921
          %2986 = vst [vmem:[%s428 + $0x80] sm:$0xff] %v2922
          %2987 = vst [vmem:[%s428 + $0x88] sm:$0xff] %v2923
          %2988 = vst [vmem:[%s428 + $0x90] sm:$0xff] %v2924
          %2989 = vst [vmem:[%s428 + $0x98] sm:$0xff] %v2925
          %2990 = vst [vmem:[%s428 + $0xa0] sm:$0xff] %v2926
          %2991 = vst [vmem:[%s428 + $0xa8] sm:$0xff] %v2927
          %2992 = vst [vmem:[%s428 + $0xb0] sm:$0xff] %v2928
          %2993 = vst [vmem:[%s428 + $0xb8] sm:$0xff] %v2929
          %2994 = vst [vmem:[%s428 + $0xc0] sm:$0xff] %v2930
          %2995 = vst [vmem:[%s428 + $0xc8] sm:$0xff] %v2931
          %2996 = vst [vmem:[%s428 + $0xd0] sm:$0xff] %v2932
          %2997 = vst [vmem:[%s428 + $0xd8] sm:$0xff] %v2933
          %2998 = vst [vmem:[%s428 + $0xe0] sm:$0xff] %v2934
          %2999 = vst [vmem:[%s428 + $0xe8] sm:$0xff] %v2935
          %3000 = vst [vmem:[%s428 + $0xf0] sm:$0xff] %v2936
          %3001 = vst [vmem:[%s428 + $0xf8] sm:$0xff] %v2937
          %3002 = vst [vmem:[%s428 + $0x100] sm:$0xff] %v2938
          %3003 = vst [vmem:[%s428 + $0x108] sm:$0xff] %v2939
          %3004 = vst [vmem:[%s428 + $0x110] sm:$0xff] %v2940
          %3005 = vst [vmem:[%s428 + $0x118] sm:$0xff] %v2941
          %3006 = vst [vmem:[%s428 + $0x120] sm:$0xff] %v2942
          %3007 = vst [vmem:[%s428 + $0x128] sm:$0xff] %v2943
          %3008 = vst [vmem:[%s428 + $0x130] sm:$0xff] %v2944
          %3009 = vst [vmem:[%s428 + $0x138] sm:$0xff] %v2945
          %3010 = vst [vmem:[%s428 + $0x140] sm:$0xff] %v2946
          %3011 = vst [vmem:[%s428 + $0x148] sm:$0xff] %v2947
          %3012 = vst [vmem:[%s428 + $0x150] sm:$0xff] %v2948
          %3013 = vst [vmem:[%s428 + $0x158] sm:$0xff] %v2949
          %3014 = vst [vmem:[%s428 + $0x160] sm:$0xff] %v2950
          %3015 = vst [vmem:[%s428 + $0x168] sm:$0xff] %v2951
          %3016 = vst [vmem:[%s428 + $0x170] sm:$0xff] %v2952
          %3017 = vst [vmem:[%s428 + $0x178] sm:$0xff] %v2953
          %3018 = vst [vmem:[%s428 + $0x180] sm:$0xff] %v2954
          %3019 = vst [vmem:[%s428 + $0x188] sm:$0xff] %v2955
          %3020 = vst [vmem:[%s428 + $0x190] sm:$0xff] %v2956
          %3021 = vst [vmem:[%s428 + $0x198] sm:$0xff] %v2957
          %3022 = vst [vmem:[%s428 + $0x1a0] sm:$0xff] %v2958
          %3023 = vst [vmem:[%s428 + $0x1a8] sm:$0xff] %v2959
          %3024 = vst [vmem:[%s428 + $0x1b0] sm:$0xff] %v2960
          %3025 = vst [vmem:[%s428 + $0x1b8] sm:$0xff] %v2961
          %3026 = vst [vmem:[%s428 + $0x1c0] sm:$0xff] %v2962
          %3027 = vst [vmem:[%s428 + $0x1c8] sm:$0xff] %v2963
          %3028 = vst [vmem:[%s428 + $0x1d0] sm:$0xff] %v2964
          %3029 = vst [vmem:[%s428 + $0x1d8] sm:$0xff] %v2965
          %3030 = vst [vmem:[%s428 + $0x1e0] sm:$0xff] %v2966
          %3031 = vst [vmem:[%s428 + $0x1e8] sm:$0xff] %v2967
          %3032 = vst [vmem:[%s428 + $0x1f0] sm:$0xff] %v2968
          %3033 = vst [vmem:[%s428 + $0x1f8] sm:$0xff] %v2969
        $region67: #{sage_e_net_forward.8} parent=54 // pred_fallthru
          _
        %s3034 = smul.u32 64, %s19
        %p3035 = scmp.lt.s32.totalorder %s3034, 127
        %s3036 = scalar_select %p3035, %s3034, 127
        %s3037 = smul.addr %s3036, 8
        %s3038 = scalar_lea.vmem %s4, %s3037
        // Predicated region
        $region68: #{sage_e_net_forward.8} parent=54 // pred_check
          %p3039 = pneg %p151
        $region69: #{sage_e_net_forward.8} parent=54 // pred_check_branch
          %3041 = sbr.rel (%p3039) target = $region71
        $region70: #{sage_e_net_forward.8} parent=54 // pred_region
          %s3042 = smul.u32 64, %s19
        $region71: #{sage_e_net_forward.8} parent=54 // pred_fallthru
          _
      $region55: #{sage_e_net_forward.8} parent=5 // pred_fallthru
        _
      %p3043 = scmp.le.s32.totalorder 2, %s10
      // Predicated region
      $region72: #{sage_e_net_forward.8} parent=5 // pred_check
        %p3044 = pneg %p3043
      $region73: #{sage_e_net_forward.8} parent=5 // pred_check_branch
        %3046 = sbr.rel (%p3044) target = $region75
      $region74: #{sage_e_net_forward.8} parent=5 // pred_region
        %s3047 = ssub.s32 %s10, 2
        // Predicated region
        $region76: #{sage_e_net_forward.8} parent=74 // pred_check
          %p3048 = pneg %p157
        $region77: #{sage_e_net_forward.8} parent=74 // pred_check_branch
          %3050 = sbr.rel (%p3048) target = $region79
        $region78: #{sage_e_net_forward.8} parent=74 // pred_region
          %s3051 = smul.u32 64, %s21
          %p3052 = scmp.lt.s32.totalorder %s3051, 127
          %s3053 = scalar_select %p3052, %s3051, 127
          %s3054 = smul.addr %s3053, 8
          %s3055 = scalar_lea.vmem %s4, %s3054
        $region79: #{sage_e_net_forward.8} parent=74 // pred_fallthru
          _
      $region75: #{sage_e_net_forward.8} parent=5 // pred_fallthru
        _
    $region6: #{sage_e_net_forward.8} parent=1 // loop_footer
      %s14 = sadd.s32 1, %s10
    $region7: #{sage_e_net_forward.8} parent=1 // loop_footer_branch
      %9 = sbr.rel target = $region3
    $region8: #{sage_e_net_forward.8} parent=1 // loop_exit
      _

// kernel: sage_e_net_forward.6
$region0: #{sage_e_net_forward.6}
  #allocation0 [shape = 'u32[]', space=smem, size = 0x4, offset = 0x4, fixed_abs, tag = 'smem constant byte address 0x4 - core index']
  #allocation1 [shape = 'u32[72,128]{1,0:T(1,128)}', space=vmem, size = 0x9000, scoped, tag = 'internal scratch']
  #allocation2 [shape = 'f32[512,128]{1,0:T(8,128)}', space=vmem, size = 0x40000, scoped, tag = 'scratch operand']
  %s0 = inlined_call_operand.vmem [shape: s8[1024,1024], index: 0, kind: input, shape index: {}]
  %s1 = inlined_call_operand.vmem [shape: bf16[1024,128], index: 1, kind: input, shape index: {}]
  %s2 = inlined_call_operand.vmem [shape: f32[1024,128], index: 2, kind: input, shape index: {}]
  %s3 = inlined_call_operand.vmem [shape: f32[1024,1], index: 3, kind: input, shape index: {}]
  %s4 = inlined_call_operand.vmem [shape: bf16[1024,128], index: 4, kind: output, shape index: {}]
  %s5 = sld [smem:[#allocation0]]
  $region80: #{sage_e_net_forward.6} parent=0
    _
  %s7 = ssub.s32 1, %s5
  %s8 = scalar_select 0, %s7, %s5
  $region1: #{sage_e_net_forward.6} parent=0
    #allocation3 [shape = 'u8[524288]{0}', space=vmem, size = 0x80000, scoped, tag = 'input window, operand 0']
    loop: start=0, step=1, limit=6
    $region2: #{sage_e_net_forward.6} parent=1 // loop_pre_header
      _
    $region3: #{sage_e_net_forward.6} parent=1 // loop_header
      %s10 = sphi 0, %s14
      %p11 = scmp.ge.s32.totalorder %s10, 6
      %s17 = sphi 0, %s29
      %s18 = sphi 0, %s25
      %s19 = sphi 0, %s17
      %s20 = sphi 0, %s18
      %s21 = sphi 0, %s19
      %s22 = sphi 0, %s20
      %s34 = sphi 0, %s36
      %s37 = sphi 0, %s34
      %s38 = sphi 0, %s37
      %s54 = sphi 0, %s38
      %s60 = sphi 0, %s62
      %s63 = sphi 0, %s60
      %s64 = sphi 0, %s63
      %s80 = sphi 0, %s64
      %s86 = sphi 0, %s88
      %s89 = sphi 0, %s86
      %s90 = sphi 0, %s89
      %s106 = sphi 0, %s90
      %s112 = sphi 0, %s114
      %s115 = sphi 0, %s112
      %s116 = sphi 0, %s115
      %s132 = sphi 0, %s116
      %s138 = sphi 0, %s140
      %s141 = sphi 0, %s138
      %s142 = sphi 0, %s141
      %s158 = sphi 0, %s142
    $region4: #{sage_e_net_forward.6} parent=1 // loop_header_branch
      %13 = sbr.rel (%p11) target = $region8
    $region5: #{sage_e_net_forward.6} parent=1 // loop_body
      %s15 = ssub.s32 %s10, 1
      %s16 = ssub.s32 %s10, 2
      %s23 = sadd.s32 1, %s18
      %p24 = scmp.ge.s32.totalorder %s23, 2
      %s25 = scalar_select %p24, 0, %s23
      %s26 = sadd.s32 1, %s17
      %s27 = scalar_select %p24, %s26, %s17
      %p28 = scmp.ge.s32.totalorder %s27, 2
      %s29 = scalar_select %p28, 0, %s27
      %s30 = ssub.s32 %s17, %s29
      %s31 = ssub.s32 %s18, %s25
      %s32 = sor.u32 %s30, %s31
      %p33 = scmp.eq.s32.totalorder %s32, 0
      %s35 = sadd.s32 %s34, 1
      %s36 = scalar_select %p33, %s34, %s35
      %p39 = pneg %p33
      %p40 = scmp.eq.s32.totalorder %s10, 3
      %p41 = por %p39, %p40
      %p42 = scmp.ne.s32.totalorder %s34, %s37
      %p43 = scmp.eq.s32.totalorder %s10, 0
      %p44 = por %p42, %p43
      %p45 = scmp.ne.s32.totalorder %s34, %s37
      %p46 = scmp.eq.s32.totalorder %s15, 3
      %p47 = por %p45, %p46
      %p48 = scmp.ne.s32.totalorder %s37, %s38
      %p49 = scmp.eq.s32.totalorder %s15, 0
      %p50 = por %p48, %p49
      %p51 = scmp.ne.s32.totalorder %s37, %s38
      %p52 = scmp.eq.s32.totalorder %s16, 3
      %p53 = por %p51, %p52
      %p55 = scmp.ne.s32.totalorder %s38, %s54
      %p56 = scmp.eq.s32.totalorder %s16, 0
      %p57 = por %p55, %p56
      %s58 = ssub.s32 %s18, %s25
      %p59 = scmp.eq.s32.totalorder %s58, 0
      %s61 = sadd.s32 %s60, 1
      %s62 = scalar_select %p59, %s60, %s61
      %p65 = pneg %p59
      %p66 = scmp.eq.s32.totalorder %s10, 3
      %p67 = por %p65, %p66
      %p68 = scmp.ne.s32.totalorder %s60, %s63
      %p69 = scmp.eq.s32.totalorder %s10, 0
      %p70 = por %p68, %p69
      %p71 = scmp.ne.s32.totalorder %s60, %s63
      %p72 = scmp.eq.s32.totalorder %s15, 3
      %p73 = por %p71, %p72
      %p74 = scmp.ne.s32.totalorder %s63, %s64
      %p75 = scmp.eq.s32.totalorder %s15, 0
      %p76 = por %p74, %p75
      %p77 = scmp.ne.s32.totalorder %s63, %s64
      %p78 = scmp.eq.s32.totalorder %s16, 3
      %p79 = por %p77, %p78
      %p81 = scmp.ne.s32.totalorder %s64, %s80
      %p82 = scmp.eq.s32.totalorder %s16, 0
      %p83 = por %p81, %p82
      %s84 = ssub.s32 %s17, %s29
      %p85 = scmp.eq.s32.totalorder %s84, 0
      %s87 = sadd.s32 %s86, 1
      %s88 = scalar_select %p85, %s86, %s87
      %p91 = pneg %p85
      %p92 = scmp.eq.s32.totalorder %s10, 3
      %p93 = por %p91, %p92
      %p94 = scmp.ne.s32.totalorder %s86, %s89
      %p95 = scmp.eq.s32.totalorder %s10, 0
      %p96 = por %p94, %p95
      %p97 = scmp.ne.s32.totalorder %s86, %s89
      %p98 = scmp.eq.s32.totalorder %s15, 3
      %p99 = por %p97, %p98
      %p100 = scmp.ne.s32.totalorder %s89, %s90
      %p101 = scmp.eq.s32.totalorder %s15, 0
      %p102 = por %p100, %p101
      %p103 = scmp.ne.s32.totalorder %s89, %s90
      %p104 = scmp.eq.s32.totalorder %s16, 3
      %p105 = por %p103, %p104
      %p107 = scmp.ne.s32.totalorder %s90, %s106
      %p108 = scmp.eq.s32.totalorder %s16, 0
      %p109 = por %p107, %p108
      %s110 = ssub.s32 %s17, %s29
      %p111 = scmp.eq.s32.totalorder %s110, 0
      %s113 = sadd.s32 %s112, 1
      %s114 = scalar_select %p111, %s112, %s113
      %p117 = pneg %p111
      %p118 = scmp.eq.s32.totalorder %s10, 3
      %p119 = por %p117, %p118
      %p120 = scmp.ne.s32.totalorder %s112, %s115
      %p121 = scmp.eq.s32.totalorder %s10, 0
      %p122 = por %p120, %p121
      %p123 = scmp.ne.s32.totalorder %s112, %s115
      %p124 = scmp.eq.s32.totalorder %s15, 3
      %p125 = por %p123, %p124
      %p126 = scmp.ne.s32.totalorder %s115, %s116
      %p127 = scmp.eq.s32.totalorder %s15, 0
      %p128 = por %p126, %p127
      %p129 = scmp.ne.s32.totalorder %s115, %s116
      %p130 = scmp.eq.s32.totalorder %s16, 3
      %p131 = por %p129, %p130
      %p133 = scmp.ne.s32.totalorder %s116, %s132
      %p134 = scmp.eq.s32.totalorder %s16, 0
      %p135 = por %p133, %p134
      %s136 = ssub.s32 %s17, %s29
      %p137 = scmp.eq.s32.totalorder %s136, 0
      %s139 = sadd.s32 %s138, 1
      %s140 = scalar_select %p137, %s138, %s139
      %p143 = pneg %p137
      %p144 = scmp.eq.s32.totalorder %s10, 3
      %p145 = por %p143, %p144
      %p146 = scmp.ne.s32.totalorder %s138, %s141
      %p147 = scmp.eq.s32.totalorder %s10, 0
      %p148 = por %p146, %p147
      %p149 = scmp.ne.s32.totalorder %s138, %s141
      %p150 = scmp.eq.s32.totalorder %s15, 3
      %p151 = por %p149, %p150
      %p152 = scmp.ne.s32.totalorder %s141, %s142
      %p153 = scmp.eq.s32.totalorder %s15, 0
      %p154 = por %p152, %p153
      %p155 = scmp.ne.s32.totalorder %s141, %s142
      %p156 = scmp.eq.s32.totalorder %s16, 3
      %p157 = por %p155, %p156
      %p159 = scmp.ne.s32.totalorder %s142, %s158
      %p160 = scmp.eq.s32.totalorder %s16, 0
      %p161 = por %p159, %p160
      %p162 = scmp.le.s32.totalorder 1, %s10
      %p163 = scmp.lt.s32.totalorder %s10, 5
      %p164 = pnand %p162, %p163
      %p165 = pneg %p164
      // Predicated region
      $region9: #{sage_e_net_forward.6} parent=5 // pred_check
        _
      $region10: #{sage_e_net_forward.6} parent=5 // pred_check_branch
        %167 = sbr.rel (%p164) target = $region12
      $region11: #{sage_e_net_forward.6} parent=5 // pred_region
        %s168 = ssub.s32 %s10, 1
      $region12: #{sage_e_net_forward.6} parent=5 // pred_fallthru
        _
      %p169 = scmp.lt.s32.totalorder %s10, 4
      // Predicated region
      $region13: #{sage_e_net_forward.6} parent=5 // pred_check
        %p170 = pneg %p169
      $region14: #{sage_e_net_forward.6} parent=5 // pred_check_branch
        %172 = sbr.rel (%p170) target = $region16
      $region15: #{sage_e_net_forward.6} parent=5 // pred_region
        // Predicated region
        $region17: #{sage_e_net_forward.6} parent=15 // pred_check
          %p173 = pneg %p44
        $region18: #{sage_e_net_forward.6} parent=15 // pred_check_branch
          %175 = sbr.rel (%p173) target = $region20
        $region19: #{sage_e_net_forward.6} parent=15 // pred_region
          %s176 = sand.u32 %s34, 1
          %s177 = sand.u32 %s34, 1
          %s178 = smul.addr %s177, 512
          %s179 = scalar_lea.vmem [#allocation3], %s178
          %s180 = smul.u32 16, %s17
          %s181 = smul.u32 4, %s18
          %s182 = smul.addr %s180, 8
          %s183 = sadd.s32 %s181, %s182
          %s184 = smul.addr %s183, 8
          %s185 = scalar_lea.vmem %s0, %s184
          // Predicated region
          $region21: #{sage_e_net_forward.6} parent=19 // pred_check
            _
          $region22: #{sage_e_net_forward.6} parent=19 // pred_check_branch
            %187 = sbr.rel (0) target = $region24
          $region23: #{sage_e_net_forward.6} parent=19 // pred_region
            // Predicated region
            $region25: #{sage_e_net_forward.6} parent=23 // pred_check
              _
            $region26: #{sage_e_net_forward.6} parent=23 // pred_check_branch
              %189 = sbr.rel (0) target = $region28
            $region27: #{sage_e_net_forward.6} parent=23 // pred_region
              loop: start=0, step=1, limit=1
              $region29: #{sage_e_net_forward.6} parent=27 // loop_pre_header
                _
              $region30: #{sage_e_net_forward.6} parent=27 // loop_header
                %s191 = sphi 0, %s195
                %p192 = scmp.ge.s32.totalorder %s191, 1
                %s196 = sphi %s185, %s185
                %s197 = sphi %s179, %s179
              $region31: #{sage_e_net_forward.6} parent=27 // loop_header_branch
                %194 = sbr.rel (%p192) target = $region35
              $region32: #{sage_e_net_forward.6} parent=27 // loop_body
                %v198 = vld [vmem:[%s196] sm:$0xff]
                %199 = vst [vmem:[%s197] sm:$0xff] %v198
                %v200 = vld [vmem:[%s196 + $0x8] sm:$0xff]
                %201 = vst [vmem:[%s197 + $0x8] sm:$0xff] %v200
                %v202 = vld [vmem:[%s196 + $0x10] sm:$0xff]
                %203 = vst [vmem:[%s197 + $0x10] sm:$0xff] %v202
                %v204 = vld [vmem:[%s196 + $0x18] sm:$0xff]
                %205 = vst [vmem:[%s197 + $0x18] sm:$0xff] %v204
                %v206 = vld [vmem:[%s196 + $0x40] sm:$0xff]
                %207 = vst [vmem:[%s197 + $0x20] sm:$0xff] %v206
                %v208 = vld [vmem:[%s196 + $0x48] sm:$0xff]
                %209 = vst [vmem:[%s197 + $0x28] sm:$0xff] %v208
                %v210 = vld [vmem:[%s196 + $0x50] sm:$0xff]
                %211 = vst [vmem:[%s197 + $0x30] sm:$0xff] %v210
                %v212 = vld [vmem:[%s196 + $0x58] sm:$0xff]
                %213 = vst [vmem:[%s197 + $0x38] sm:$0xff] %v212
                %v214 = vld [vmem:[%s196 + $0x80] sm:$0xff]
                %215 = vst [vmem:[%s197 + $0x40] sm:$0xff] %v214
                %v216 = vld [vmem:[%s196 + $0x88] sm:$0xff]
                %217 = vst [vmem:[%s197 + $0x48] sm:$0xff] %v216
                %v218 = vld [vmem:[%s196 + $0x90] sm:$0xff]
                %219 = vst [vmem:[%s197 + $0x50] sm:$0xff] %v218
                %v220 = vld [vmem:[%s196 + $0x98] sm:$0xff]
                %221 = vst [vmem:[%s197 + $0x58] sm:$0xff] %v220
                %v222 = vld [vmem:[%s196 + $0xc0] sm:$0xff]
                %223 = vst [vmem:[%s197 + $0x60] sm:$0xff] %v222
                %v224 = vld [vmem:[%s196 + $0xc8] sm:$0xff]
                %225 = vst [vmem:[%s197 + $0x68] sm:$0xff] %v224
                %v226 = vld [vmem:[%s196 + $0xd0] sm:$0xff]
                %227 = vst [vmem:[%s197 + $0x70] sm:$0xff] %v226
                %v228 = vld [vmem:[%s196 + $0xd8] sm:$0xff]
                %229 = vst [vmem:[%s197 + $0x78] sm:$0xff] %v228
                %v230 = vld [vmem:[%s196 + $0x100] sm:$0xff]
                %231 = vst [vmem:[%s197 + $0x80] sm:$0xff] %v230
                %v232 = vld [vmem:[%s196 + $0x108] sm:$0xff]
                %233 = vst [vmem:[%s197 + $0x88] sm:$0xff] %v232
                %v234 = vld [vmem:[%s196 + $0x110] sm:$0xff]
                %235 = vst [vmem:[%s197 + $0x90] sm:$0xff] %v234
                %v236 = vld [vmem:[%s196 + $0x118] sm:$0xff]
                %237 = vst [vmem:[%s197 + $0x98] sm:$0xff] %v236
                %v238 = vld [vmem:[%s196 + $0x140] sm:$0xff]
                %239 = vst [vmem:[%s197 + $0xa0] sm:$0xff] %v238
                %v240 = vld [vmem:[%s196 + $0x148] sm:$0xff]
                %241 = vst [vmem:[%s197 + $0xa8] sm:$0xff] %v240
                %v242 = vld [vmem:[%s196 + $0x150] sm:$0xff]
                %243 = vst [vmem:[%s197 + $0xb0] sm:$0xff] %v242
                %v244 = vld [vmem:[%s196 + $0x158] sm:$0xff]
                %245 = vst [vmem:[%s197 + $0xb8] sm:$0xff] %v244
                %v246 = vld [vmem:[%s196 + $0x180] sm:$0xff]
                %247 = vst [vmem:[%s197 + $0xc0] sm:$0xff] %v246
                %v248 = vld [vmem:[%s196 + $0x188] sm:$0xff]
                %249 = vst [vmem:[%s197 + $0xc8] sm:$0xff] %v248
                %v250 = vld [vmem:[%s196 + $0x190] sm:$0xff]
                %251 = vst [vmem:[%s197 + $0xd0] sm:$0xff] %v250
                %v252 = vld [vmem:[%s196 + $0x198] sm:$0xff]
                %253 = vst [vmem:[%s197 + $0xd8] sm:$0xff] %v252
                %v254 = vld [vmem:[%s196 + $0x1c0] sm:$0xff]
                %255 = vst [vmem:[%s197 + $0xe0] sm:$0xff] %v254
                %v256 = vld [vmem:[%s196 + $0x1c8] sm:$0xff]
                %257 = vst [vmem:[%s197 + $0xe8] sm:$0xff] %v256
                %v258 = vld [vmem:[%s196 + $0x1d0] sm:$0xff]
                %259 = vst [vmem:[%s197 + $0xf0] sm:$0xff] %v258
                %v260 = vld [vmem:[%s196 + $0x1d8] sm:$0xff]
                %261 = vst [vmem:[%s197 + $0xf8] sm:$0xff] %v260
                %v262 = vld [vmem:[%s196 + $0x200] sm:$0xff]
                %263 = vst [vmem:[%s197 + $0x100] sm:$0xff] %v262
                %v264 = vld [vmem:[%s196 + $0x208] sm:$0xff]
                %265 = vst [vmem:[%s197 + $0x108] sm:$0xff] %v264
                %v266 = vld [vmem:[%s196 + $0x210] sm:$0xff]
                %267 = vst [vmem:[%s197 + $0x110] sm:$0xff] %v266
                %v268 = vld [vmem:[%s196 + $0x218] sm:$0xff]
                %269 = vst [vmem:[%s197 + $0x118] sm:$0xff] %v268
                %v270 = vld [vmem:[%s196 + $0x240] sm:$0xff]
                %271 = vst [vmem:[%s197 + $0x120] sm:$0xff] %v270
                %v272 = vld [vmem:[%s196 + $0x248] sm:$0xff]
                %273 = vst [vmem:[%s197 + $0x128] sm:$0xff] %v272
                %v274 = vld [vmem:[%s196 + $0x250] sm:$0xff]
                %275 = vst [vmem:[%s197 + $0x130] sm:$0xff] %v274
                %v276 = vld [vmem:[%s196 + $0x258] sm:$0xff]
                %277 = vst [vmem:[%s197 + $0x138] sm:$0xff] %v276
                %v278 = vld [vmem:[%s196 + $0x280] sm:$0xff]
                %279 = vst [vmem:[%s197 + $0x140] sm:$0xff] %v278
                %v280 = vld [vmem:[%s196 + $0x288] sm:$0xff]
                %281 = vst [vmem:[%s197 + $0x148] sm:$0xff] %v280
                %v282 = vld [vmem:[%s196 + $0x290] sm:$0xff]
                %283 = vst [vmem:[%s197 + $0x150] sm:$0xff] %v282
                %v284 = vld [vmem:[%s196 + $0x298] sm:$0xff]
                %285 = vst [vmem:[%s197 + $0x158] sm:$0xff] %v284
                %v286 = vld [vmem:[%s196 + $0x2c0] sm:$0xff]
                %287 = vst [vmem:[%s197 + $0x160] sm:$0xff] %v286
                %v288 = vld [vmem:[%s196 + $0x2c8] sm:$0xff]
                %289 = vst [vmem:[%s197 + $0x168] sm:$0xff] %v288
                %v290 = vld [vmem:[%s196 + $0x2d0] sm:$0xff]
                %291 = vst [vmem:[%s197 + $0x170] sm:$0xff] %v290
                %v292 = vld [vmem:[%s196 + $0x2d8] sm:$0xff]
                %293 = vst [vmem:[%s197 + $0x178] sm:$0xff] %v292
                %v294 = vld [vmem:[%s196 + $0x300] sm:$0xff]
                %295 = vst [vmem:[%s197 + $0x180] sm:$0xff] %v294
                %v296 = vld [vmem:[%s196 + $0x308] sm:$0xff]
                %297 = vst [vmem:[%s197 + $0x188] sm:$0xff] %v296
                %v298 = vld [vmem:[%s196 + $0x310] sm:$0xff]
                %299 = vst [vmem:[%s197 + $0x190] sm:$0xff] %v298
                %v300 = vld [vmem:[%s196 + $0x318] sm:$0xff]
                %301 = vst [vmem:[%s197 + $0x198] sm:$0xff] %v300
                %v302 = vld [vmem:[%s196 + $0x340] sm:$0xff]
                %303 = vst [vmem:[%s197 + $0x1a0] sm:$0xff] %v302
                %v304 = vld [vmem:[%s196 + $0x348] sm:$0xff]
                %305 = vst [vmem:[%s197 + $0x1a8] sm:$0xff] %v304
                %v306 = vld [vmem:[%s196 + $0x350] sm:$0xff]
                %307 = vst [vmem:[%s197 + $0x1b0] sm:$0xff] %v306
                %v308 = vld [vmem:[%s196 + $0x358] sm:$0xff]
                %309 = vst [vmem:[%s197 + $0x1b8] sm:$0xff] %v308
                %v310 = vld [vmem:[%s196 + $0x380] sm:$0xff]
                %311 = vst [vmem:[%s197 + $0x1c0] sm:$0xff] %v310
                %v312 = vld [vmem:[%s196 + $0x388] sm:$0xff]
                %313 = vst [vmem:[%s197 + $0x1c8] sm:$0xff] %v312
                %v314 = vld [vmem:[%s196 + $0x390] sm:$0xff]
                %315 = vst [vmem:[%s197 + $0x1d0] sm:$0xff] %v314
                %v316 = vld [vmem:[%s196 + $0x398] sm:$0xff]
                %317 = vst [vmem:[%s197 + $0x1d8] sm:$0xff] %v316
                %v318 = vld [vmem:[%s196 + $0x3c0] sm:$0xff]
                %319 = vst [vmem:[%s197 + $0x1e0] sm:$0xff] %v318
                %v320 = vld [vmem:[%s196 + $0x3c8] sm:$0xff]
                %321 = vst [vmem:[%s197 + $0x1e8] sm:$0xff] %v320
                %v322 = vld [vmem:[%s196 + $0x3d0] sm:$0xff]
                %323 = vst [vmem:[%s197 + $0x1f0] sm:$0xff] %v322
                %v324 = vld [vmem:[%s196 + $0x3d8] sm:$0xff]
                %325 = vst [vmem:[%s197 + $0x1f8] sm:$0xff] %v324
              $region33: #{sage_e_net_forward.6} parent=27 // loop_footer
                %s195 = sadd.s32 1, %s191
              $region34: #{sage_e_net_forward.6} parent=27 // loop_footer_branch
                %190 = sbr.rel target = $region30
              $region35: #{sage_e_net_forward.6} parent=27 // loop_exit
                _
            $region28: #{sage_e_net_forward.6} parent=23 // pred_fallthru
              _
            // Predicated region
            $region36: #{sage_e_net_forward.6} parent=23 // pred_check
              _
            $region37: #{sage_e_net_forward.6} parent=23 // pred_check_branch
              %327 = sbr.rel target = $region39
            $region38: #{sage_e_net_forward.6} parent=23 // pred_region
              _
            $region39: #{sage_e_net_forward.6} parent=23 // pred_fallthru
              _
          $region24: #{sage_e_net_forward.6} parent=19 // pred_fallthru
            _
          %328 = vnop
        $region20: #{sage_e_net_forward.6} parent=15 // pred_fallthru
          _
        // Predicated region
        $region40: #{sage_e_net_forward.6} parent=15 // pred_check
          %p329 = pneg %p70
        $region41: #{sage_e_net_forward.6} parent=15 // pred_check_branch
          %331 = sbr.rel (%p329) target = $region43
        $region42: #{sage_e_net_forward.6} parent=15 // pred_region
          %s332 = smul.u32 64, %s18
          %p333 = scmp.lt.s32.totalorder %s332, 127
          %s334 = scalar_select %p333, %s332, 127
          %s335 = smul.addr %s334, 4
          %s336 = scalar_lea.vmem %s1, %s335
          %s337 = smul.u32 64, %s18
        $region43: #{sage_e_net_forward.6} parent=15 // pred_fallthru
          _
        // Predicated region
        $region44: #{sage_e_net_forward.6} parent=15 // pred_check
          %p338 = pneg %p96
        $region45: #{sage_e_net_forward.6} parent=15 // pred_check_branch
          %340 = sbr.rel (%p338) target = $region47
        $region46: #{sage_e_net_forward.6} parent=15 // pred_region
          %s341 = smul.u32 64, %s17
          %p342 = scmp.lt.s32.totalorder %s341, 127
          %s343 = scalar_select %p342, %s341, 127
          %s344 = smul.addr %s343, 8
          %s345 = scalar_lea.vmem %s2, %s344
          %s346 = smul.u32 64, %s17
        $region47: #{sage_e_net_forward.6} parent=15 // pred_fallthru
          _
        // Predicated region
        $region48: #{sage_e_net_forward.6} parent=15 // pred_check
          %p347 = pneg %p122
        $region49: #{sage_e_net_forward.6} parent=15 // pred_check_branch
          %349 = sbr.rel (%p347) target = $region51
        $region50: #{sage_e_net_forward.6} parent=15 // pred_region
          %s350 = smul.u32 64, %s17
          %p351 = scmp.lt.s32.totalorder %s350, 127
          %s352 = scalar_select %p351, %s350, 127
          %s353 = smul.addr %s352, 8
          %s354 = scalar_lea.vmem %s3, %s353
          %s355 = smul.u32 64, %s17
        $region51: #{sage_e_net_forward.6} parent=15 // pred_fallthru
          _
      $region16: #{sage_e_net_forward.6} parent=5 // pred_fallthru
        _
      %p356 = scmp.le.s32.totalorder 1, %s10
      %p357 = scmp.lt.s32.totalorder %s10, 5
      %p358 = pnand %p356, %p357
      %p359 = pneg %p358
      // Predicated region
      $region52: #{sage_e_net_forward.6} parent=5 // pred_check
        _
      $region53: #{sage_e_net_forward.6} parent=5 // pred_check_branch
        %361 = sbr.rel (%p358) target = $region55
      $region54: #{sage_e_net_forward.6} parent=5 // pred_region
        %s362 = ssub.s32 %s10, 1
        %s363 = sand.u32 %s37, 1
        %s364 = sand.u32 %s37, 1
        %s365 = smul.addr %s364, 512
        %s366 = scalar_lea.vmem [#allocation3], %s365
        // Predicated region
        $region56: #{sage_e_net_forward.6} parent=54 // pred_check
          %p367 = pneg %p50
        $region57: #{sage_e_net_forward.6} parent=54 // pred_check_branch
          %369 = sbr.rel (%p367) target = $region59
        $region58: #{sage_e_net_forward.6} parent=54 // pred_region
          _
        $region59: #{sage_e_net_forward.6} parent=54 // pred_fallthru
          _
        %s370 = sand.u32 %s37, 1
        %s371 = sand.u32 %s37, 1
        %s372 = smul.addr %s371, 512
        %s373 = scalar_lea.vmem [#allocation3], %s372
        %p374 = pneg %p50
        %p375 = pneg %p47
        %s376 = smul.u32 64, %s20
        %p377 = scmp.lt.s32.totalorder %s376, 127
        %s378 = scalar_select %p377, %s376, 127
        %s379 = smul.addr %s378, 4
        %s380 = scalar_lea.vmem %s1, %s379
        %p381 = pneg %p76
        %p382 = pneg %p73
        %s383 = smul.u32 64, %s19
        %p384 = scmp.lt.s32.totalorder %s383, 127
        %s385 = scalar_select %p384, %s383, 127
        %s386 = smul.addr %s385, 8
        %s387 = scalar_lea.vmem %s2, %s386
        %p388 = pneg %p102
        %p389 = pneg %p99
        %s390 = smul.u32 64, %s19
        %p391 = scmp.lt.s32.totalorder %s390, 127
        %s392 = scalar_select %p391, %s390, 127
        %s393 = smul.addr %s392, 8
        %s394 = scalar_lea.vmem %s3, %s393
        %p395 = pneg %p128
        %p396 = pneg %p125
        %p397 = pneg %p154
        %p398 = pneg %p151
        %s399 = smul.u32 64, %s19
        %p400 = scmp.lt.s32.totalorder %s399, 127
        %s401 = scalar_select %p400, %s399, 127
        %s402 = smul.addr %s401, 4
        %s403 = scalar_lea.vmem %s4, %s402
        %s404 = smul.u32 16, %s19
        %s405 = smul.u32 4, %s20
        %s406 = smul.u32 64, %s20
        %p407 = scmp.lt.s32.totalorder %s406, 127
        %s408 = scalar_select %p407, %s406, 127
        %s409 = smul.addr %s408, 4
        %s410 = scalar_lea.vmem %s1, %s409
        %s411 = smul.u32 64, %s20
        %s412 = smul.u32 64, %s19
        %p413 = scmp.lt.s32.totalorder %s412, 127
        %s414 = scalar_select %p413, %s412, 127
        %s415 = smul.addr %s414, 8
        %s416 = scalar_lea.vmem %s2, %s415
        %s417 = smul.u32 64, %s19
        %s418 = smul.u32 64, %s19
        %p419 = scmp.lt.s32.totalorder %s418, 127
        %s420 = scalar_select %p419, %s418, 127
        %s421 = smul.addr %s420, 8
        %s422 = scalar_lea.vmem %s3, %s421
        %s423 = smul.u32 64, %s19
        %s424 = smul.u32 64, %s19
        %p425 = scmp.lt.s32.totalorder %s424, 127
        %s426 = scalar_select %p425, %s424, 127
        %s427 = smul.addr %s426, 4
        %s428 = scalar_lea.vmem %s4, %s427
        %s429 = smul.u32 64, %s19
        %p430 = scmp.eq.s32.totalorder %s20, 0
        // Predicated region
        $region60: #{sage_e_net_forward.6} parent=54 // pred_check
          %p431 = pneg %p430
        $region61: #{sage_e_net_forward.6} parent=54 // pred_check_branch
          %433 = sbr.rel (%p431) target = $region63
        $region62: #{sage_e_net_forward.6} parent=54 // pred_region
          %434 = vst [vmem:[#allocation2] sm:$0xff] 0.0
          %435 = vst [vmem:[#allocation2 + $0x8] sm:$0xff] 0.0
          %436 = vst [vmem:[#allocation2 + $0x10] sm:$0xff] 0.0
          %437 = vst [vmem:[#allocation2 + $0x18] sm:$0xff] 0.0
          %438 = vst [vmem:[#allocation2 + $0x20] sm:$0xff] 0.0
          %439 = vst [vmem:[#allocation2 + $0x28] sm:$0xff] 0.0
          %440 = vst [vmem:[#allocation2 + $0x30] sm:$0xff] 0.0
          %441 = vst [vmem:[#allocation2 + $0x38] sm:$0xff] 0.0
          %442 = vst [vmem:[#allocation2 + $0x40] sm:$0xff] 0.0
          %443 = vst [vmem:[#allocation2 + $0x48] sm:$0xff] 0.0
          %444 = vst [vmem:[#allocation2 + $0x50] sm:$0xff] 0.0
          %445 = vst [vmem:[#allocation2 + $0x58] sm:$0xff] 0.0
          %446 = vst [vmem:[#allocation2 + $0x60] sm:$0xff] 0.0
          %447 = vst [vmem:[#allocation2 + $0x68] sm:$0xff] 0.0
          %448 = vst [vmem:[#allocation2 + $0x70] sm:$0xff] 0.0
          %449 = vst [vmem:[#allocation2 + $0x78] sm:$0xff] 0.0
          %450 = vst [vmem:[#allocation2 + $0x80] sm:$0xff] 0.0
          %451 = vst [vmem:[#allocation2 + $0x88] sm:$0xff] 0.0
          %452 = vst [vmem:[#allocation2 + $0x90] sm:$0xff] 0.0
          %453 = vst [vmem:[#allocation2 + $0x98] sm:$0xff] 0.0
          %454 = vst [vmem:[#allocation2 + $0xa0] sm:$0xff] 0.0
          %455 = vst [vmem:[#allocation2 + $0xa8] sm:$0xff] 0.0
          %456 = vst [vmem:[#allocation2 + $0xb0] sm:$0xff] 0.0
          %457 = vst [vmem:[#allocation2 + $0xb8] sm:$0xff] 0.0
          %458 = vst [vmem:[#allocation2 + $0xc0] sm:$0xff] 0.0
          %459 = vst [vmem:[#allocation2 + $0xc8] sm:$0xff] 0.0
          %460 = vst [vmem:[#allocation2 + $0xd0] sm:$0xff] 0.0
          %461 = vst [vmem:[#allocation2 + $0xd8] sm:$0xff] 0.0
          %462 = vst [vmem:[#allocation2 + $0xe0] sm:$0xff] 0.0
          %463 = vst [vmem:[#allocation2 + $0xe8] sm:$0xff] 0.0
          %464 = vst [vmem:[#allocation2 + $0xf0] sm:$0xff] 0.0
          %465 = vst [vmem:[#allocation2 + $0xf8] sm:$0xff] 0.0
          %466 = vst [vmem:[#allocation2 + $0x100] sm:$0xff] 0.0
          %467 = vst [vmem:[#allocation2 + $0x108] sm:$0xff] 0.0
          %468 = vst [vmem:[#allocation2 + $0x110] sm:$0xff] 0.0
          %469 = vst [vmem:[#allocation2 + $0x118] sm:$0xff] 0.0
          %470 = vst [vmem:[#allocation2 + $0x120] sm:$0xff] 0.0
          %471 = vst [vmem:[#allocation2 + $0x128] sm:$0xff] 0.0
          %472 = vst [vmem:[#allocation2 + $0x130] sm:$0xff] 0.0
          %473 = vst [vmem:[#allocation2 + $0x138] sm:$0xff] 0.0
          %474 = vst [vmem:[#allocation2 + $0x140] sm:$0xff] 0.0
          %475 = vst [vmem:[#allocation2 + $0x148] sm:$0xff] 0.0
          %476 = vst [vmem:[#allocation2 + $0x150] sm:$0xff] 0.0
          %477 = vst [vmem:[#allocation2 + $0x158] sm:$0xff] 0.0
          %478 = vst [vmem:[#allocation2 + $0x160] sm:$0xff] 0.0
          %479 = vst [vmem:[#allocation2 + $0x168] sm:$0xff] 0.0
          %480 = vst [vmem:[#allocation2 + $0x170] sm:$0xff] 0.0
          %481 = vst [vmem:[#allocation2 + $0x178] sm:$0xff] 0.0
          %482 = vst [vmem:[#allocation2 + $0x180] sm:$0xff] 0.0
          %483 = vst [vmem:[#allocation2 + $0x188] sm:$0xff] 0.0
          %484 = vst [vmem:[#allocation2 + $0x190] sm:$0xff] 0.0
          %485 = vst [vmem:[#allocation2 + $0x198] sm:$0xff] 0.0
          %486 = vst [vmem:[#allocation2 + $0x1a0] sm:$0xff] 0.0
          %487 = vst [vmem:[#allocation2 + $0x1a8] sm:$0xff] 0.0
          %488 = vst [vmem:[#allocation2 + $0x1b0] sm:$0xff] 0.0
          %489 = vst [vmem:[#allocation2 + $0x1b8] sm:$0xff] 0.0
          %490 = vst [vmem:[#allocation2 + $0x1c0] sm:$0xff] 0.0
          %491 = vst [vmem:[#allocation2 + $0x1c8] sm:$0xff] 0.0
          %492 = vst [vmem:[#allocation2 + $0x1d0] sm:$0xff] 0.0
          %493 = vst [vmem:[#allocation2 + $0x1d8] sm:$0xff] 0.0
          %494 = vst [vmem:[#allocation2 + $0x1e0] sm:$0xff] 0.0
          %495 = vst [vmem:[#allocation2 + $0x1e8] sm:$0xff] 0.0
          %496 = vst [vmem:[#allocation2 + $0x1f0] sm:$0xff] 0.0
          %497 = vst [vmem:[#allocation2 + $0x1f8] sm:$0xff] 0.0
        $region63: #{sage_e_net_forward.6} parent=54 // pred_fallthru
          _
        %v498 = vld [vmem:[%s366] sm:$0xff]
        %v499 = vld [vmem:[%s366 + $0x8] sm:$0xff]
        %v500 = vld [vmem:[%s366 + $0x10] sm:$0xff]
        %v501 = vld [vmem:[%s366 + $0x18] sm:$0xff]
        %v502 = vld [vmem:[%s366 + $0x20] sm:$0xff]
        %v503 = vld [vmem:[%s366 + $0x28] sm:$0xff]
        %v504 = vld [vmem:[%s366 + $0x30] sm:$0xff]
        %v505 = vld [vmem:[%s366 + $0x38] sm:$0xff]
        %v506 = vld [vmem:[%s366 + $0x40] sm:$0xff]
        %v507 = vld [vmem:[%s366 + $0x48] sm:$0xff]
        %v508 = vld [vmem:[%s366 + $0x50] sm:$0xff]
        %v509 = vld [vmem:[%s366 + $0x58] sm:$0xff]
        %v510 = vld [vmem:[%s366 + $0x60] sm:$0xff]
        %v511 = vld [vmem:[%s366 + $0x68] sm:$0xff]
        %v512 = vld [vmem:[%s366 + $0x70] sm:$0xff]
        %v513 = vld [vmem:[%s366 + $0x78] sm:$0xff]
        %v514 = vld [vmem:[%s366 + $0x80] sm:$0xff]
        %v515 = vld [vmem:[%s366 + $0x88] sm:$0xff]
        %v516 = vld [vmem:[%s366 + $0x90] sm:$0xff]
        %v517 = vld [vmem:[%s366 + $0x98] sm:$0xff]
        %v518 = vld [vmem:[%s366 + $0xa0] sm:$0xff]
        %v519 = vld [vmem:[%s366 + $0xa8] sm:$0xff]
        %v520 = vld [vmem:[%s366 + $0xb0] sm:$0xff]
        %v521 = vld [vmem:[%s366 + $0xb8] sm:$0xff]
        %v522 = vld [vmem:[%s366 + $0xc0] sm:$0xff]
        %v523 = vld [vmem:[%s366 + $0xc8] sm:$0xff]
        %v524 = vld [vmem:[%s366 + $0xd0] sm:$0xff]
        %v525 = vld [vmem:[%s366 + $0xd8] sm:$0xff]
        %v526 = vld [vmem:[%s366 + $0xe0] sm:$0xff]
        %v527 = vld [vmem:[%s366 + $0xe8] sm:$0xff]
        %v528 = vld [vmem:[%s366 + $0xf0] sm:$0xff]
        %v529 = vld [vmem:[%s366 + $0xf8] sm:$0xff]
        %v530 = vld [vmem:[%s366 + $0x100] sm:$0xff]
        %v531 = vld [vmem:[%s366 + $0x108] sm:$0xff]
        %v532 = vld [vmem:[%s366 + $0x110] sm:$0xff]
        %v533 = vld [vmem:[%s366 + $0x118] sm:$0xff]
        %v534 = vld [vmem:[%s366 + $0x120] sm:$0xff]
        %v535 = vld [vmem:[%s366 + $0x128] sm:$0xff]
        %v536 = vld [vmem:[%s366 + $0x130] sm:$0xff]
        %v537 = vld [vmem:[%s366 + $0x138] sm:$0xff]
        %v538 = vld [vmem:[%s366 + $0x140] sm:$0xff]
        %v539 = vld [vmem:[%s366 + $0x148] sm:$0xff]
        %v540 = vld [vmem:[%s366 + $0x150] sm:$0xff]
        %v541 = vld [vmem:[%s366 + $0x158] sm:$0xff]
        %v542 = vld [vmem:[%s366 + $0x160] sm:$0xff]
        %v543 = vld [vmem:[%s366 + $0x168] sm:$0xff]
        %v544 = vld [vmem:[%s366 + $0x170] sm:$0xff]
        %v545 = vld [vmem:[%s366 + $0x178] sm:$0xff]
        %v546 = vld [vmem:[%s366 + $0x180] sm:$0xff]
        %v547 = vld [vmem:[%s366 + $0x188] sm:$0xff]
        %v548 = vld [vmem:[%s366 + $0x190] sm:$0xff]
        %v549 = vld [vmem:[%s366 + $0x198] sm:$0xff]
        %v550 = vld [vmem:[%s366 + $0x1a0] sm:$0xff]
        %v551 = vld [vmem:[%s366 + $0x1a8] sm:$0xff]
        %v552 = vld [vmem:[%s366 + $0x1b0] sm:$0xff]
        %v553 = vld [vmem:[%s366 + $0x1b8] sm:$0xff]
        %v554 = vld [vmem:[%s366 + $0x1c0] sm:$0xff]
        %v555 = vld [vmem:[%s366 + $0x1c8] sm:$0xff]
        %v556 = vld [vmem:[%s366 + $0x1d0] sm:$0xff]
        %v557 = vld [vmem:[%s366 + $0x1d8] sm:$0xff]
        %v558 = vld [vmem:[%s366 + $0x1e0] sm:$0xff]
        %v559 = vld [vmem:[%s366 + $0x1e8] sm:$0xff]
        %v560 = vld [vmem:[%s366 + $0x1f0] sm:$0xff]
        %v561 = vld [vmem:[%s366 + $0x1f8] sm:$0xff]
        %v562 = vunpack.c.0.s8 %v498
        %v563 = vunpack.c.0.s8 %v499
        %v564 = vunpack.c.0.s8 %v500
        %v565 = vunpack.c.0.s8 %v501
        %v566 = vunpack.c.1.s8 %v498
        %v567 = vunpack.c.1.s8 %v499
        %v568 = vunpack.c.1.s8 %v500
        %v569 = vunpack.c.1.s8 %v501
        %v570 = vunpack.c.2.s8 %v498
        %v571 = vunpack.c.2.s8 %v499
        %v572 = vunpack.c.2.s8 %v500
        %v573 = vunpack.c.2.s8 %v501
        %v574 = vunpack.c.3.s8 %v498
        %v575 = vunpack.c.3.s8 %v499
        %v576 = vunpack.c.3.s8 %v500
        %v577 = vunpack.c.3.s8 %v501
        %v578 = vunpack.c.0.s8 %v502
        %v579 = vunpack.c.0.s8 %v503
        %v580 = vunpack.c.0.s8 %v504
        %v581 = vunpack.c.0.s8 %v505
        %v582 = vunpack.c.1.s8 %v502
        %v583 = vunpack.c.1.s8 %v503
        %v584 = vunpack.c.1.s8 %v504
        %v585 = vunpack.c.1.s8 %v505
        %v586 = vunpack.c.2.s8 %v502
        %v587 = vunpack.c.2.s8 %v503
        %v588 = vunpack.c.2.s8 %v504
        %v589 = vunpack.c.2.s8 %v505
        %v590 = vunpack.c.3.s8 %v502
        %v591 = vunpack.c.3.s8 %v503
        %v592 = vunpack.c.3.s8 %v504
        %v593 = vunpack.c.3.s8 %v505
        %v594 = vunpack.c.0.s8 %v506
        %v595 = vunpack.c.0.s8 %v507
        %v596 = vunpack.c.0.s8 %v508
        %v597 = vunpack.c.0.s8 %v509
        %v598 = vunpack.c.1.s8 %v506
        %v599 = vunpack.c.1.s8 %v507
        %v600 = vunpack.c.1.s8 %v508
        %v601 = vunpack.c.1.s8 %v509
        %v602 = vunpack.c.2.s8 %v506
        %v603 = vunpack.c.2.s8 %v507
        %v604 = vunpack.c.2.s8 %v508
        %v605 = vunpack.c.2.s8 %v509
        %v606 = vunpack.c.3.s8 %v506
        %v607 = vunpack.c.3.s8 %v507
        %v608 = vunpack.c.3.s8 %v508
        %v609 = vunpack.c.3.s8 %v509
        %v610 = vunpack.c.0.s8 %v510
        %v611 = vunpack.c.0.s8 %v511
        %v612 = vunpack.c.0.s8 %v512
        %v613 = vunpack.c.0.s8 %v513
        %v614 = vunpack.c.1.s8 %v510
        %v615 = vunpack.c.1.s8 %v511
        %v616 = vunpack.c.1.s8 %v512
        %v617 = vunpack.c.1.s8 %v513
        %v618 = vunpack.c.2.s8 %v510
        %v619 = vunpack.c.2.s8 %v511
        %v620 = vunpack.c.2.s8 %v512
        %v621 = vunpack.c.2.s8 %v513
        %v622 = vunpack.c.3.s8 %v510
        %v623 = vunpack.c.3.s8 %v511
        %v624 = vunpack.c.3.s8 %v512
        %v625 = vunpack.c.3.s8 %v513
        %v626 = vunpack.c.0.s8 %v514
        %v627 = vunpack.c.0.s8 %v515
        %v628 = vunpack.c.0.s8 %v516
        %v629 = vunpack.c.0.s8 %v517
        %v630 = vunpack.c.1.s8 %v514
        %v631 = vunpack.c.1.s8 %v515
        %v632 = vunpack.c.1.s8 %v516
        %v633 = vunpack.c.1.s8 %v517
        %v634 = vunpack.c.2.s8 %v514
        %v635 = vunpack.c.2.s8 %v515
        %v636 = vunpack.c.2.s8 %v516
        %v637 = vunpack.c.2.s8 %v517
        %v638 = vunpack.c.3.s8 %v514
        %v639 = vunpack.c.3.s8 %v515
        %v640 = vunpack.c.3.s8 %v516
        %v641 = vunpack.c.3.s8 %v517
        %v642 = vunpack.c.0.s8 %v518
        %v643 = vunpack.c.0.s8 %v519
        %v644 = vunpack.c.0.s8 %v520
        %v645 = vunpack.c.0.s8 %v521
        %v646 = vunpack.c.1.s8 %v518
        %v647 = vunpack.c.1.s8 %v519
        %v648 = vunpack.c.1.s8 %v520
        %v649 = vunpack.c.1.s8 %v521
        %v650 = vunpack.c.2.s8 %v518
        %v651 = vunpack.c.2.s8 %v519
        %v652 = vunpack.c.2.s8 %v520
        %v653 = vunpack.c.2.s8 %v521
        %v654 = vunpack.c.3.s8 %v518
        %v655 = vunpack.c.3.s8 %v519
        %v656 = vunpack.c.3.s8 %v520
        %v657 = vunpack.c.3.s8 %v521
        %v658 = vunpack.c.0.s8 %v522
        %v659 = vunpack.c.0.s8 %v523
        %v660 = vunpack.c.0.s8 %v524
        %v661 = vunpack.c.0.s8 %v525
        %v662 = vunpack.c.1.s8 %v522
        %v663 = vunpack.c.1.s8 %v523
        %v664 = vunpack.c.1.s8 %v524
        %v665 = vunpack.c.1.s8 %v525
        %v666 = vunpack.c.2.s8 %v522
        %v667 = vunpack.c.2.s8 %v523
        %v668 = vunpack.c.2.s8 %v524
        %v669 = vunpack.c.2.s8 %v525
        %v670 = vunpack.c.3.s8 %v522
        %v671 = vunpack.c.3.s8 %v523
        %v672 = vunpack.c.3.s8 %v524
        %v673 = vunpack.c.3.s8 %v525
        %v674 = vunpack.c.0.s8 %v526
        %v675 = vunpack.c.0.s8 %v527
        %v676 = vunpack.c.0.s8 %v528
        %v677 = vunpack.c.0.s8 %v529
        %v678 = vunpack.c.1.s8 %v526
        %v679 = vunpack.c.1.s8 %v527
        %v680 = vunpack.c.1.s8 %v528
        %v681 = vunpack.c.1.s8 %v529
        %v682 = vunpack.c.2.s8 %v526
        %v683 = vunpack.c.2.s8 %v527
        %v684 = vunpack.c.2.s8 %v528
        %v685 = vunpack.c.2.s8 %v529
        %v686 = vunpack.c.3.s8 %v526
        %v687 = vunpack.c.3.s8 %v527
        %v688 = vunpack.c.3.s8 %v528
        %v689 = vunpack.c.3.s8 %v529
        %v690 = vunpack.c.0.s8 %v530
        %v691 = vunpack.c.0.s8 %v531
        %v692 = vunpack.c.0.s8 %v532
        %v693 = vunpack.c.0.s8 %v533
        %v694 = vunpack.c.1.s8 %v530
        %v695 = vunpack.c.1.s8 %v531
        %v696 = vunpack.c.1.s8 %v532
        %v697 = vunpack.c.1.s8 %v533
        %v698 = vunpack.c.2.s8 %v530
        %v699 = vunpack.c.2.s8 %v531
        %v700 = vunpack.c.2.s8 %v532
        %v701 = vunpack.c.2.s8 %v533
        %v702 = vunpack.c.3.s8 %v530
        %v703 = vunpack.c.3.s8 %v531
        %v704 = vunpack.c.3.s8 %v532
        %v705 = vunpack.c.3.s8 %v533
        %v706 = vunpack.c.0.s8 %v534
        %v707 = vunpack.c.0.s8 %v535
        %v708 = vunpack.c.0.s8 %v536
        %v709 = vunpack.c.0.s8 %v537
        %v710 = vunpack.c.1.s8 %v534
        %v711 = vunpack.c.1.s8 %v535
        %v712 = vunpack.c.1.s8 %v536
        %v713 = vunpack.c.1.s8 %v537
        %v714 = vunpack.c.2.s8 %v534
        %v715 = vunpack.c.2.s8 %v535
        %v716 = vunpack.c.2.s8 %v536
        %v717 = vunpack.c.2.s8 %v537
        %v718 = vunpack.c.3.s8 %v534
        %v719 = vunpack.c.3.s8 %v535
        %v720 = vunpack.c.3.s8 %v536
        %v721 = vunpack.c.3.s8 %v537
        %v722 = vunpack.c.0.s8 %v538
        %v723 = vunpack.c.0.s8 %v539
        %v724 = vunpack.c.0.s8 %v540
        %v725 = vunpack.c.0.s8 %v541
        %v726 = vunpack.c.1.s8 %v538
        %v727 = vunpack.c.1.s8 %v539
        %v728 = vunpack.c.1.s8 %v540
        %v729 = vunpack.c.1.s8 %v541
        %v730 = vunpack.c.2.s8 %v538
        %v731 = vunpack.c.2.s8 %v539
        %v732 = vunpack.c.2.s8 %v540
        %v733 = vunpack.c.2.s8 %v541
        %v734 = vunpack.c.3.s8 %v538
        %v735 = vunpack.c.3.s8 %v539
        %v736 = vunpack.c.3.s8 %v540
        %v737 = vunpack.c.3.s8 %v541
        %v738 = vunpack.c.0.s8 %v542
        %v739 = vunpack.c.0.s8 %v543
        %v740 = vunpack.c.0.s8 %v544
        %v741 = vunpack.c.0.s8 %v545
        %v742 = vunpack.c.1.s8 %v542
        %v743 = vunpack.c.1.s8 %v543
        %v744 = vunpack.c.1.s8 %v544
        %v745 = vunpack.c.1.s8 %v545
        %v746 = vunpack.c.2.s8 %v542
        %v747 = vunpack.c.2.s8 %v543
        %v748 = vunpack.c.2.s8 %v544
        %v749 = vunpack.c.2.s8 %v545
        %v750 = vunpack.c.3.s8 %v542
        %v751 = vunpack.c.3.s8 %v543
        %v752 = vunpack.c.3.s8 %v544
        %v753 = vunpack.c.3.s8 %v545
        %v754 = vunpack.c.0.s8 %v546
        %v755 = vunpack.c.0.s8 %v547
        %v756 = vunpack.c.0.s8 %v548
        %v757 = vunpack.c.0.s8 %v549
        %v758 = vunpack.c.1.s8 %v546
        %v759 = vunpack.c.1.s8 %v547
        %v760 = vunpack.c.1.s8 %v548
        %v761 = vunpack.c.1.s8 %v549
        %v762 = vunpack.c.2.s8 %v546
        %v763 = vunpack.c.2.s8 %v547
        %v764 = vunpack.c.2.s8 %v548
        %v765 = vunpack.c.2.s8 %v549
        %v766 = vunpack.c.3.s8 %v546
        %v767 = vunpack.c.3.s8 %v547
        %v768 = vunpack.c.3.s8 %v548
        %v769 = vunpack.c.3.s8 %v549
        %v770 = vunpack.c.0.s8 %v550
        %v771 = vunpack.c.0.s8 %v551
        %v772 = vunpack.c.0.s8 %v552
        %v773 = vunpack.c.0.s8 %v553
        %v774 = vunpack.c.1.s8 %v550
        %v775 = vunpack.c.1.s8 %v551
        %v776 = vunpack.c.1.s8 %v552
        %v777 = vunpack.c.1.s8 %v553
        %v778 = vunpack.c.2.s8 %v550
        %v779 = vunpack.c.2.s8 %v551
        %v780 = vunpack.c.2.s8 %v552
        %v781 = vunpack.c.2.s8 %v553
        %v782 = vunpack.c.3.s8 %v550
        %v783 = vunpack.c.3.s8 %v551
        %v784 = vunpack.c.3.s8 %v552
        %v785 = vunpack.c.3.s8 %v553
        %v786 = vunpack.c.0.s8 %v554
        %v787 = vunpack.c.0.s8 %v555
        %v788 = vunpack.c.0.s8 %v556
        %v789 = vunpack.c.0.s8 %v557
        %v790 = vunpack.c.1.s8 %v554
        %v791 = vunpack.c.1.s8 %v555
        %v792 = vunpack.c.1.s8 %v556
        %v793 = vunpack.c.1.s8 %v557
        %v794 = vunpack.c.2.s8 %v554
        %v795 = vunpack.c.2.s8 %v555
        %v796 = vunpack.c.2.s8 %v556
        %v797 = vunpack.c.2.s8 %v557
        %v798 = vunpack.c.3.s8 %v554
        %v799 = vunpack.c.3.s8 %v555
        %v800 = vunpack.c.3.s8 %v556
        %v801 = vunpack.c.3.s8 %v557
        %v802 = vunpack.c.0.s8 %v558
        %v803 = vunpack.c.0.s8 %v559
        %v804 = vunpack.c.0.s8 %v560
        %v805 = vunpack.c.0.s8 %v561
        %v806 = vunpack.c.1.s8 %v558
        %v807 = vunpack.c.1.s8 %v559
        %v808 = vunpack.c.1.s8 %v560
        %v809 = vunpack.c.1.s8 %v561
        %v810 = vunpack.c.2.s8 %v558
        %v811 = vunpack.c.2.s8 %v559
        %v812 = vunpack.c.2.s8 %v560
        %v813 = vunpack.c.2.s8 %v561
        %v814 = vunpack.c.3.s8 %v558
        %v815 = vunpack.c.3.s8 %v559
        %v816 = vunpack.c.3.s8 %v560
        %v817 = vunpack.c.3.s8 %v561
        %v818 = vcvt.s32.f32 %v562
        %v819 = vcvt.s32.f32 %v563
        %v820 = vcvt.s32.f32 %v564
        %v821 = vcvt.s32.f32 %v565
        %v822 = vcvt.s32.f32 %v566
        %v823 = vcvt.s32.f32 %v567
        %v824 = vcvt.s32.f32 %v568
        %v825 = vcvt.s32.f32 %v569
        %v826 = vcvt.s32.f32 %v570
        %v827 = vcvt.s32.f32 %v571
        %v828 = vcvt.s32.f32 %v572
        %v829 = vcvt.s32.f32 %v573
        %v830 = vcvt.s32.f32 %v574
        %v831 = vcvt.s32.f32 %v575
        %v832 = vcvt.s32.f32 %v576
        %v833 = vcvt.s32.f32 %v577
        %v834 = vcvt.s32.f32 %v578
        %v835 = vcvt.s32.f32 %v579
        %v836 = vcvt.s32.f32 %v580
        %v837 = vcvt.s32.f32 %v581
        %v838 = vcvt.s32.f32 %v582
        %v839 = vcvt.s32.f32 %v583
        %v840 = vcvt.s32.f32 %v584
        %v841 = vcvt.s32.f32 %v585
        %v842 = vcvt.s32.f32 %v586
        %v843 = vcvt.s32.f32 %v587
        %v844 = vcvt.s32.f32 %v588
        %v845 = vcvt.s32.f32 %v589
        %v846 = vcvt.s32.f32 %v590
        %v847 = vcvt.s32.f32 %v591
        %v848 = vcvt.s32.f32 %v592
        %v849 = vcvt.s32.f32 %v593
        %v850 = vcvt.s32.f32 %v594
        %v851 = vcvt.s32.f32 %v595
        %v852 = vcvt.s32.f32 %v596
        %v853 = vcvt.s32.f32 %v597
        %v854 = vcvt.s32.f32 %v598
        %v855 = vcvt.s32.f32 %v599
        %v856 = vcvt.s32.f32 %v600
        %v857 = vcvt.s32.f32 %v601
        %v858 = vcvt.s32.f32 %v602
        %v859 = vcvt.s32.f32 %v603
        %v860 = vcvt.s32.f32 %v604
        %v861 = vcvt.s32.f32 %v605
        %v862 = vcvt.s32.f32 %v606
        %v863 = vcvt.s32.f32 %v607
        %v864 = vcvt.s32.f32 %v608
        %v865 = vcvt.s32.f32 %v609
        %v866 = vcvt.s32.f32 %v610
        %v867 = vcvt.s32.f32 %v611
        %v868 = vcvt.s32.f32 %v612
        %v869 = vcvt.s32.f32 %v613
        %v870 = vcvt.s32.f32 %v614
        %v871 = vcvt.s32.f32 %v615
        %v872 = vcvt.s32.f32 %v616
        %v873 = vcvt.s32.f32 %v617
        %v874 = vcvt.s32.f32 %v618
        %v875 = vcvt.s32.f32 %v619
        %v876 = vcvt.s32.f32 %v620
        %v877 = vcvt.s32.f32 %v621
        %v878 = vcvt.s32.f32 %v622
        %v879 = vcvt.s32.f32 %v623
        %v880 = vcvt.s32.f32 %v624
        %v881 = vcvt.s32.f32 %v625
        %v882 = vcvt.s32.f32 %v626
        %v883 = vcvt.s32.f32 %v627
        %v884 = vcvt.s32.f32 %v628
        %v885 = vcvt.s32.f32 %v629
        %v886 = vcvt.s32.f32 %v630
        %v887 = vcvt.s32.f32 %v631
        %v888 = vcvt.s32.f32 %v632
        %v889 = vcvt.s32.f32 %v633
        %v890 = vcvt.s32.f32 %v634
        %v891 = vcvt.s32.f32 %v635
        %v892 = vcvt.s32.f32 %v636
        %v893 = vcvt.s32.f32 %v637
        %v894 = vcvt.s32.f32 %v638
        %v895 = vcvt.s32.f32 %v639
        %v896 = vcvt.s32.f32 %v640
        %v897 = vcvt.s32.f32 %v641
        %v898 = vcvt.s32.f32 %v642
        %v899 = vcvt.s32.f32 %v643
        %v900 = vcvt.s32.f32 %v644
        %v901 = vcvt.s32.f32 %v645
        %v902 = vcvt.s32.f32 %v646
        %v903 = vcvt.s32.f32 %v647
        %v904 = vcvt.s32.f32 %v648
        %v905 = vcvt.s32.f32 %v649
        %v906 = vcvt.s32.f32 %v650
        %v907 = vcvt.s32.f32 %v651
        %v908 = vcvt.s32.f32 %v652
        %v909 = vcvt.s32.f32 %v653
        %v910 = vcvt.s32.f32 %v654
        %v911 = vcvt.s32.f32 %v655
        %v912 = vcvt.s32.f32 %v656
        %v913 = vcvt.s32.f32 %v657
        %v914 = vcvt.s32.f32 %v658
        %v915 = vcvt.s32.f32 %v659
        %v916 = vcvt.s32.f32 %v660
        %v917 = vcvt.s32.f32 %v661
        %v918 = vcvt.s32.f32 %v662
        %v919 = vcvt.s32.f32 %v663
        %v920 = vcvt.s32.f32 %v664
        %v921 = vcvt.s32.f32 %v665
        %v922 = vcvt.s32.f32 %v666
        %v923 = vcvt.s32.f32 %v667
        %v924 = vcvt.s32.f32 %v668
        %v925 = vcvt.s32.f32 %v669
        %v926 = vcvt.s32.f32 %v670
        %v927 = vcvt.s32.f32 %v671
        %v928 = vcvt.s32.f32 %v672
        %v929 = vcvt.s32.f32 %v673
        %v930 = vcvt.s32.f32 %v674
        %v931 = vcvt.s32.f32 %v675
        %v932 = vcvt.s32.f32 %v676
        %v933 = vcvt.s32.f32 %v677
        %v934 = vcvt.s32.f32 %v678
        %v935 = vcvt.s32.f32 %v679
        %v936 = vcvt.s32.f32 %v680
        %v937 = vcvt.s32.f32 %v681
        %v938 = vcvt.s32.f32 %v682
        %v939 = vcvt.s32.f32 %v683
        %v940 = vcvt.s32.f32 %v684
        %v941 = vcvt.s32.f32 %v685
        %v942 = vcvt.s32.f32 %v686
        %v943 = vcvt.s32.f32 %v687
        %v944 = vcvt.s32.f32 %v688
        %v945 = vcvt.s32.f32 %v689
        %v946 = vcvt.s32.f32 %v690
        %v947 = vcvt.s32.f32 %v691
        %v948 = vcvt.s32.f32 %v692
        %v949 = vcvt.s32.f32 %v693
        %v950 = vcvt.s32.f32 %v694
        %v951 = vcvt.s32.f32 %v695
        %v952 = vcvt.s32.f32 %v696
        %v953 = vcvt.s32.f32 %v697
        %v954 = vcvt.s32.f32 %v698
        %v955 = vcvt.s32.f32 %v699
        %v956 = vcvt.s32.f32 %v700
        %v957 = vcvt.s32.f32 %v701
        %v958 = vcvt.s32.f32 %v702
        %v959 = vcvt.s32.f32 %v703
        %v960 = vcvt.s32.f32 %v704
        %v961 = vcvt.s32.f32 %v705
        %v962 = vcvt.s32.f32 %v706
        %v963 = vcvt.s32.f32 %v707
        %v964 = vcvt.s32.f32 %v708
        %v965 = vcvt.s32.f32 %v709
        %v966 = vcvt.s32.f32 %v710
        %v967 = vcvt.s32.f32 %v711
        %v968 = vcvt.s32.f32 %v712
        %v969 = vcvt.s32.f32 %v713
        %v970 = vcvt.s32.f32 %v714
        %v971 = vcvt.s32.f32 %v715
        %v972 = vcvt.s32.f32 %v716
        %v973 = vcvt.s32.f32 %v717
        %v974 = vcvt.s32.f32 %v718
        %v975 = vcvt.s32.f32 %v719
        %v976 = vcvt.s32.f32 %v720
        %v977 = vcvt.s32.f32 %v721
        %v978 = vcvt.s32.f32 %v722
        %v979 = vcvt.s32.f32 %v723
        %v980 = vcvt.s32.f32 %v724
        %v981 = vcvt.s32.f32 %v725
        %v982 = vcvt.s32.f32 %v726
        %v983 = vcvt.s32.f32 %v727
        %v984 = vcvt.s32.f32 %v728
        %v985 = vcvt.s32.f32 %v729
        %v986 = vcvt.s32.f32 %v730
        %v987 = vcvt.s32.f32 %v731
        %v988 = vcvt.s32.f32 %v732
        %v989 = vcvt.s32.f32 %v733
        %v990 = vcvt.s32.f32 %v734
        %v991 = vcvt.s32.f32 %v735
        %v992 = vcvt.s32.f32 %v736
        %v993 = vcvt.s32.f32 %v737
        %v994 = vcvt.s32.f32 %v738
        %v995 = vcvt.s32.f32 %v739
        %v996 = vcvt.s32.f32 %v740
        %v997 = vcvt.s32.f32 %v741
        %v998 = vcvt.s32.f32 %v742
        %v999 = vcvt.s32.f32 %v743
        %v1000 = vcvt.s32.f32 %v744
        %v1001 = vcvt.s32.f32 %v745
        %v1002 = vcvt.s32.f32 %v746
        %v1003 = vcvt.s32.f32 %v747
        %v1004 = vcvt.s32.f32 %v748
        %v1005 = vcvt.s32.f32 %v749
        %v1006 = vcvt.s32.f32 %v750
        %v1007 = vcvt.s32.f32 %v751
        %v1008 = vcvt.s32.f32 %v752
        %v1009 = vcvt.s32.f32 %v753
        %v1010 = vcvt.s32.f32 %v754
        %v1011 = vcvt.s32.f32 %v755
        %v1012 = vcvt.s32.f32 %v756
        %v1013 = vcvt.s32.f32 %v757
        %v1014 = vcvt.s32.f32 %v758
        %v1015 = vcvt.s32.f32 %v759
        %v1016 = vcvt.s32.f32 %v760
        %v1017 = vcvt.s32.f32 %v761
        %v1018 = vcvt.s32.f32 %v762
        %v1019 = vcvt.s32.f32 %v763
        %v1020 = vcvt.s32.f32 %v764
        %v1021 = vcvt.s32.f32 %v765
        %v1022 = vcvt.s32.f32 %v766
        %v1023 = vcvt.s32.f32 %v767
        %v1024 = vcvt.s32.f32 %v768
        %v1025 = vcvt.s32.f32 %v769
        %v1026 = vcvt.s32.f32 %v770
        %v1027 = vcvt.s32.f32 %v771
        %v1028 = vcvt.s32.f32 %v772
        %v1029 = vcvt.s32.f32 %v773
        %v1030 = vcvt.s32.f32 %v774
        %v1031 = vcvt.s32.f32 %v775
        %v1032 = vcvt.s32.f32 %v776
        %v1033 = vcvt.s32.f32 %v777
        %v1034 = vcvt.s32.f32 %v778
        %v1035 = vcvt.s32.f32 %v779
        %v1036 = vcvt.s32.f32 %v780
        %v1037 = vcvt.s32.f32 %v781
        %v1038 = vcvt.s32.f32 %v782
        %v1039 = vcvt.s32.f32 %v783
        %v1040 = vcvt.s32.f32 %v784
        %v1041 = vcvt.s32.f32 %v785
        %v1042 = vcvt.s32.f32 %v786
        %v1043 = vcvt.s32.f32 %v787
        %v1044 = vcvt.s32.f32 %v788
        %v1045 = vcvt.s32.f32 %v789
        %v1046 = vcvt.s32.f32 %v790
        %v1047 = vcvt.s32.f32 %v791
        %v1048 = vcvt.s32.f32 %v792
        %v1049 = vcvt.s32.f32 %v793
        %v1050 = vcvt.s32.f32 %v794
        %v1051 = vcvt.s32.f32 %v795
        %v1052 = vcvt.s32.f32 %v796
        %v1053 = vcvt.s32.f32 %v797
        %v1054 = vcvt.s32.f32 %v798
        %v1055 = vcvt.s32.f32 %v799
        %v1056 = vcvt.s32.f32 %v800
        %v1057 = vcvt.s32.f32 %v801
        %v1058 = vcvt.s32.f32 %v802
        %v1059 = vcvt.s32.f32 %v803
        %v1060 = vcvt.s32.f32 %v804
        %v1061 = vcvt.s32.f32 %v805
        %v1062 = vcvt.s32.f32 %v806
        %v1063 = vcvt.s32.f32 %v807
        %v1064 = vcvt.s32.f32 %v808
        %v1065 = vcvt.s32.f32 %v809
        %v1066 = vcvt.s32.f32 %v810
        %v1067 = vcvt.s32.f32 %v811
        %v1068 = vcvt.s32.f32 %v812
        %v1069 = vcvt.s32.f32 %v813
        %v1070 = vcvt.s32.f32 %v814
        %v1071 = vcvt.s32.f32 %v815
        %v1072 = vcvt.s32.f32 %v816
        %v1073 = vcvt.s32.f32 %v817
        %v1074 = vpack.c.bf16 %v822, %v818
        %v1075 = vpack.c.bf16 %v823, %v819
        %v1076 = vpack.c.bf16 %v824, %v820
        %v1077 = vpack.c.bf16 %v825, %v821
        %v1078 = vpack.c.bf16 %v830, %v826
        %v1079 = vpack.c.bf16 %v831, %v827
        %v1080 = vpack.c.bf16 %v832, %v828
        %v1081 = vpack.c.bf16 %v833, %v829
        %v1082 = vpack.c.bf16 %v838, %v834
        %v1083 = vpack.c.bf16 %v839, %v835
        %v1084 = vpack.c.bf16 %v840, %v836
        %v1085 = vpack.c.bf16 %v841, %v837
        %v1086 = vpack.c.bf16 %v846, %v842
        %v1087 = vpack.c.bf16 %v847, %v843
        %v1088 = vpack.c.bf16 %v848, %v844
        %v1089 = vpack.c.bf16 %v849, %v845
        %v1090 = vpack.c.bf16 %v854, %v850
        %v1091 = vpack.c.bf16 %v855, %v851
        %v1092 = vpack.c.bf16 %v856, %v852
        %v1093 = vpack.c.bf16 %v857, %v853
        %v1094 = vpack.c.bf16 %v862, %v858
        %v1095 = vpack.c.bf16 %v863, %v859
        %v1096 = vpack.c.bf16 %v864, %v860
        %v1097 = vpack.c.bf16 %v865, %v861
        %v1098 = vpack.c.bf16 %v870, %v866
        %v1099 = vpack.c.bf16 %v871, %v867
        %v1100 = vpack.c.bf16 %v872, %v868
        %v1101 = vpack.c.bf16 %v873, %v869
        %v1102 = vpack.c.bf16 %v878, %v874
        %v1103 = vpack.c.bf16 %v879, %v875
        %v1104 = vpack.c.bf16 %v880, %v876
        %v1105 = vpack.c.bf16 %v881, %v877
        %v1106 = vpack.c.bf16 %v886, %v882
        %v1107 = vpack.c.bf16 %v887, %v883
        %v1108 = vpack.c.bf16 %v888, %v884
        %v1109 = vpack.c.bf16 %v889, %v885
        %v1110 = vpack.c.bf16 %v894, %v890
        %v1111 = vpack.c.bf16 %v895, %v891
        %v1112 = vpack.c.bf16 %v896, %v892
        %v1113 = vpack.c.bf16 %v897, %v893
        %v1114 = vpack.c.bf16 %v902, %v898
        %v1115 = vpack.c.bf16 %v903, %v899
        %v1116 = vpack.c.bf16 %v904, %v900
        %v1117 = vpack.c.bf16 %v905, %v901
        %v1118 = vpack.c.bf16 %v910, %v906
        %v1119 = vpack.c.bf16 %v911, %v907
        %v1120 = vpack.c.bf16 %v912, %v908
        %v1121 = vpack.c.bf16 %v913, %v909
        %v1122 = vpack.c.bf16 %v918, %v914
        %v1123 = vpack.c.bf16 %v919, %v915
        %v1124 = vpack.c.bf16 %v920, %v916
        %v1125 = vpack.c.bf16 %v921, %v917
        %v1126 = vpack.c.bf16 %v926, %v922
        %v1127 = vpack.c.bf16 %v927, %v923
        %v1128 = vpack.c.bf16 %v928, %v924
        %v1129 = vpack.c.bf16 %v929, %v925
        %v1130 = vpack.c.bf16 %v934, %v930
        %v1131 = vpack.c.bf16 %v935, %v931
        %v1132 = vpack.c.bf16 %v936, %v932
        %v1133 = vpack.c.bf16 %v937, %v933
        %v1134 = vpack.c.bf16 %v942, %v938
        %v1135 = vpack.c.bf16 %v943, %v939
        %v1136 = vpack.c.bf16 %v944, %v940
        %v1137 = vpack.c.bf16 %v945, %v941
        %v1138 = vpack.c.bf16 %v950, %v946
        %v1139 = vpack.c.bf16 %v951, %v947
        %v1140 = vpack.c.bf16 %v952, %v948
        %v1141 = vpack.c.bf16 %v953, %v949
        %v1142 = vpack.c.bf16 %v958, %v954
        %v1143 = vpack.c.bf16 %v959, %v955
        %v1144 = vpack.c.bf16 %v960, %v956
        %v1145 = vpack.c.bf16 %v961, %v957
        %v1146 = vpack.c.bf16 %v966, %v962
        %v1147 = vpack.c.bf16 %v967, %v963
        %v1148 = vpack.c.bf16 %v968, %v964
        %v1149 = vpack.c.bf16 %v969, %v965
        %v1150 = vpack.c.bf16 %v974, %v970
        %v1151 = vpack.c.bf16 %v975, %v971
        %v1152 = vpack.c.bf16 %v976, %v972
        %v1153 = vpack.c.bf16 %v977, %v973
        %v1154 = vpack.c.bf16 %v982, %v978
        %v1155 = vpack.c.bf16 %v983, %v979
        %v1156 = vpack.c.bf16 %v984, %v980
        %v1157 = vpack.c.bf16 %v985, %v981
        %v1158 = vpack.c.bf16 %v990, %v986
        %v1159 = vpack.c.bf16 %v991, %v987
        %v1160 = vpack.c.bf16 %v992, %v988
        %v1161 = vpack.c.bf16 %v993, %v989
        %v1162 = vpack.c.bf16 %v998, %v994
        %v1163 = vpack.c.bf16 %v999, %v995
        %v1164 = vpack.c.bf16 %v1000, %v996
        %v1165 = vpack.c.bf16 %v1001, %v997
        %v1166 = vpack.c.bf16 %v1006, %v1002
        %v1167 = vpack.c.bf16 %v1007, %v1003
        %v1168 = vpack.c.bf16 %v1008, %v1004
        %v1169 = vpack.c.bf16 %v1009, %v1005
        %v1170 = vpack.c.bf16 %v1014, %v1010
        %v1171 = vpack.c.bf16 %v1015, %v1011
        %v1172 = vpack.c.bf16 %v1016, %v1012
        %v1173 = vpack.c.bf16 %v1017, %v1013
        %v1174 = vpack.c.bf16 %v1022, %v1018
        %v1175 = vpack.c.bf16 %v1023, %v1019
        %v1176 = vpack.c.bf16 %v1024, %v1020
        %v1177 = vpack.c.bf16 %v1025, %v1021
        %v1178 = vpack.c.bf16 %v1030, %v1026
        %v1179 = vpack.c.bf16 %v1031, %v1027
        %v1180 = vpack.c.bf16 %v1032, %v1028
        %v1181 = vpack.c.bf16 %v1033, %v1029
        %v1182 = vpack.c.bf16 %v1038, %v1034
        %v1183 = vpack.c.bf16 %v1039, %v1035
        %v1184 = vpack.c.bf16 %v1040, %v1036
        %v1185 = vpack.c.bf16 %v1041, %v1037
        %v1186 = vpack.c.bf16 %v1046, %v1042
        %v1187 = vpack.c.bf16 %v1047, %v1043
        %v1188 = vpack.c.bf16 %v1048, %v1044
        %v1189 = vpack.c.bf16 %v1049, %v1045
        %v1190 = vpack.c.bf16 %v1054, %v1050
        %v1191 = vpack.c.bf16 %v1055, %v1051
        %v1192 = vpack.c.bf16 %v1056, %v1052
        %v1193 = vpack.c.bf16 %v1057, %v1053
        %v1194 = vpack.c.bf16 %v1062, %v1058
        %v1195 = vpack.c.bf16 %v1063, %v1059
        %v1196 = vpack.c.bf16 %v1064, %v1060
        %v1197 = vpack.c.bf16 %v1065, %v1061
        %v1198 = vpack.c.bf16 %v1070, %v1066
        %v1199 = vpack.c.bf16 %v1071, %v1067
        %v1200 = vpack.c.bf16 %v1072, %v1068
        %v1201 = vpack.c.bf16 %v1073, %v1069
        %v1202 = vld [vmem:[#allocation2] sm:$0xff]
        %v1203 = vld [vmem:[#allocation2 + $0x8] sm:$0xff]
        %v1204 = vld [vmem:[#allocation2 + $0x10] sm:$0xff]
        %v1205 = vld [vmem:[#allocation2 + $0x18] sm:$0xff]
        %v1206 = vld [vmem:[#allocation2 + $0x20] sm:$0xff]
        %v1207 = vld [vmem:[#allocation2 + $0x28] sm:$0xff]
        %v1208 = vld [vmem:[#allocation2 + $0x30] sm:$0xff]
        %v1209 = vld [vmem:[#allocation2 + $0x38] sm:$0xff]
        %v1210 = vld [vmem:[#allocation2 + $0x40] sm:$0xff]
        %v1211 = vld [vmem:[#allocation2 + $0x48] sm:$0xff]
        %v1212 = vld [vmem:[#allocation2 + $0x50] sm:$0xff]
        %v1213 = vld [vmem:[#allocation2 + $0x58] sm:$0xff]
        %v1214 = vld [vmem:[#allocation2 + $0x60] sm:$0xff]
        %v1215 = vld [vmem:[#allocation2 + $0x68] sm:$0xff]
        %v1216 = vld [vmem:[#allocation2 + $0x70] sm:$0xff]
        %v1217 = vld [vmem:[#allocation2 + $0x78] sm:$0xff]
        %v1218 = vld [vmem:[#allocation2 + $0x80] sm:$0xff]
        %v1219 = vld [vmem:[#allocation2 + $0x88] sm:$0xff]
        %v1220 = vld [vmem:[#allocation2 + $0x90] sm:$0xff]
        %v1221 = vld [vmem:[#allocation2 + $0x98] sm:$0xff]
        %v1222 = vld [vmem:[#allocation2 + $0xa0] sm:$0xff]
        %v1223 = vld [vmem:[#allocation2 + $0xa8] sm:$0xff]
        %v1224 = vld [vmem:[#allocation2 + $0xb0] sm:$0xff]
        %v1225 = vld [vmem:[#allocation2 + $0xb8] sm:$0xff]
        %v1226 = vld [vmem:[#allocation2 + $0xc0] sm:$0xff]
        %v1227 = vld [vmem:[#allocation2 + $0xc8] sm:$0xff]
        %v1228 = vld [vmem:[#allocation2 + $0xd0] sm:$0xff]
        %v1229 = vld [vmem:[#allocation2 + $0xd8] sm:$0xff]
        %v1230 = vld [vmem:[#allocation2 + $0xe0] sm:$0xff]
        %v1231 = vld [vmem:[#allocation2 + $0xe8] sm:$0xff]
        %v1232 = vld [vmem:[#allocation2 + $0xf0] sm:$0xff]
        %v1233 = vld [vmem:[#allocation2 + $0xf8] sm:$0xff]
        %v1234 = vld [vmem:[#allocation2 + $0x100] sm:$0xff]
        %v1235 = vld [vmem:[#allocation2 + $0x108] sm:$0xff]
        %v1236 = vld [vmem:[#allocation2 + $0x110] sm:$0xff]
        %v1237 = vld [vmem:[#allocation2 + $0x118] sm:$0xff]
        %v1238 = vld [vmem:[#allocation2 + $0x120] sm:$0xff]
        %v1239 = vld [vmem:[#allocation2 + $0x128] sm:$0xff]
        %v1240 = vld [vmem:[#allocation2 + $0x130] sm:$0xff]
        %v1241 = vld [vmem:[#allocation2 + $0x138] sm:$0xff]
        %v1242 = vld [vmem:[#allocation2 + $0x140] sm:$0xff]
        %v1243 = vld [vmem:[#allocation2 + $0x148] sm:$0xff]
        %v1244 = vld [vmem:[#allocation2 + $0x150] sm:$0xff]
        %v1245 = vld [vmem:[#allocation2 + $0x158] sm:$0xff]
        %v1246 = vld [vmem:[#allocation2 + $0x160] sm:$0xff]
        %v1247 = vld [vmem:[#allocation2 + $0x168] sm:$0xff]
        %v1248 = vld [vmem:[#allocation2 + $0x170] sm:$0xff]
        %v1249 = vld [vmem:[#allocation2 + $0x178] sm:$0xff]
        %v1250 = vld [vmem:[#allocation2 + $0x180] sm:$0xff]
        %v1251 = vld [vmem:[#allocation2 + $0x188] sm:$0xff]
        %v1252 = vld [vmem:[#allocation2 + $0x190] sm:$0xff]
        %v1253 = vld [vmem:[#allocation2 + $0x198] sm:$0xff]
        %v1254 = vld [vmem:[#allocation2 + $0x1a0] sm:$0xff]
        %v1255 = vld [vmem:[#allocation2 + $0x1a8] sm:$0xff]
        %v1256 = vld [vmem:[#allocation2 + $0x1b0] sm:$0xff]
        %v1257 = vld [vmem:[#allocation2 + $0x1b8] sm:$0xff]
        %v1258 = vld [vmem:[#allocation2 + $0x1c0] sm:$0xff]
        %v1259 = vld [vmem:[#allocation2 + $0x1c8] sm:$0xff]
        %v1260 = vld [vmem:[#allocation2 + $0x1d0] sm:$0xff]
        %v1261 = vld [vmem:[#allocation2 + $0x1d8] sm:$0xff]
        %v1262 = vld [vmem:[#allocation2 + $0x1e0] sm:$0xff]
        %v1263 = vld [vmem:[#allocation2 + $0x1e8] sm:$0xff]
        %v1264 = vld [vmem:[#allocation2 + $0x1f0] sm:$0xff]
        %v1265 = vld [vmem:[#allocation2 + $0x1f8] sm:$0xff]
        %v1266 = vld [vmem:[%s410] sm:$0xf]
        %v1267 = vld [vmem:[%s410 + $0x4] sm:$0xf]
        %v1268 = vld [vmem:[%s410 + $0x8] sm:$0xf]
        %v1269 = vld [vmem:[%s410 + $0xc] sm:$0xf]
        %v1270 = vld [vmem:[%s410 + $0x10] sm:$0xf]
        %v1271 = vld [vmem:[%s410 + $0x14] sm:$0xf]
        %v1272 = vld [vmem:[%s410 + $0x18] sm:$0xf]
        %v1273 = vld [vmem:[%s410 + $0x1c] sm:$0xf]
        %v1274 = vld [vmem:[%s410 + $0x20] sm:$0xf]
        %v1275 = vld [vmem:[%s410 + $0x24] sm:$0xf]
        %v1276 = vld [vmem:[%s410 + $0x28] sm:$0xf]
        %v1277 = vld [vmem:[%s410 + $0x2c] sm:$0xf]
        %v1278 = vld [vmem:[%s410 + $0x30] sm:$0xf]
        %v1279 = vld [vmem:[%s410 + $0x34] sm:$0xf]
        %v1280 = vld [vmem:[%s410 + $0x38] sm:$0xf]
        %v1281 = vld [vmem:[%s410 + $0x3c] sm:$0xf]
        %v1282 = vld [vmem:[%s410 + $0x40] sm:$0xf]
        %v1283 = vld [vmem:[%s410 + $0x44] sm:$0xf]
        %v1284 = vld [vmem:[%s410 + $0x48] sm:$0xf]
        %v1285 = vld [vmem:[%s410 + $0x4c] sm:$0xf]
        %v1286 = vld [vmem:[%s410 + $0x50] sm:$0xf]
        %v1287 = vld [vmem:[%s410 + $0x54] sm:$0xf]
        %v1288 = vld [vmem:[%s410 + $0x58] sm:$0xf]
        %v1289 = vld [vmem:[%s410 + $0x5c] sm:$0xf]
        %v1290 = vld [vmem:[%s410 + $0x60] sm:$0xf]
        %v1291 = vld [vmem:[%s410 + $0x64] sm:$0xf]
        %v1292 = vld [vmem:[%s410 + $0x68] sm:$0xf]
        %v1293 = vld [vmem:[%s410 + $0x6c] sm:$0xf]
        %v1294 = vld [vmem:[%s410 + $0x70] sm:$0xf]
        %v1295 = vld [vmem:[%s410 + $0x74] sm:$0xf]
        %v1296 = vld [vmem:[%s410 + $0x78] sm:$0xf]
        %v1297 = vld [vmem:[%s410 + $0x7c] sm:$0xf]
        %v1298 = vld [vmem:[%s410 + $0x80] sm:$0xf]
        %v1299 = vld [vmem:[%s410 + $0x84] sm:$0xf]
        %v1300 = vld [vmem:[%s410 + $0x88] sm:$0xf]
        %v1301 = vld [vmem:[%s410 + $0x8c] sm:$0xf]
        %v1302 = vld [vmem:[%s410 + $0x90] sm:$0xf]
        %v1303 = vld [vmem:[%s410 + $0x94] sm:$0xf]
        %v1304 = vld [vmem:[%s410 + $0x98] sm:$0xf]
        %v1305 = vld [vmem:[%s410 + $0x9c] sm:$0xf]
        %v1306 = vld [vmem:[%s410 + $0xa0] sm:$0xf]
        %v1307 = vld [vmem:[%s410 + $0xa4] sm:$0xf]
        %v1308 = vld [vmem:[%s410 + $0xa8] sm:$0xf]
        %v1309 = vld [vmem:[%s410 + $0xac] sm:$0xf]
        %v1310 = vld [vmem:[%s410 + $0xb0] sm:$0xf]
        %v1311 = vld [vmem:[%s410 + $0xb4] sm:$0xf]
        %v1312 = vld [vmem:[%s410 + $0xb8] sm:$0xf]
        %v1313 = vld [vmem:[%s410 + $0xbc] sm:$0xf]
        %v1314 = vld [vmem:[%s410 + $0xc0] sm:$0xf]
        %v1315 = vld [vmem:[%s410 + $0xc4] sm:$0xf]
        %v1316 = vld [vmem:[%s410 + $0xc8] sm:$0xf]
        %v1317 = vld [vmem:[%s410 + $0xcc] sm:$0xf]
        %v1318 = vld [vmem:[%s410 + $0xd0] sm:$0xf]
        %v1319 = vld [vmem:[%s410 + $0xd4] sm:$0xf]
        %v1320 = vld [vmem:[%s410 + $0xd8] sm:$0xf]
        %v1321 = vld [vmem:[%s410 + $0xdc] sm:$0xf]
        %v1322 = vld [vmem:[%s410 + $0xe0] sm:$0xf]
        %v1323 = vld [vmem:[%s410 + $0xe4] sm:$0xf]
        %v1324 = vld [vmem:[%s410 + $0xe8] sm:$0xf]
        %v1325 = vld [vmem:[%s410 + $0xec] sm:$0xf]
        %v1326 = vld [vmem:[%s410 + $0xf0] sm:$0xf]
        %v1327 = vld [vmem:[%s410 + $0xf4] sm:$0xf]
        %v1328 = vld [vmem:[%s410 + $0xf8] sm:$0xf]
        %v1329 = vld [vmem:[%s410 + $0xfc] sm:$0xf]
        %v1394 = vunpack.c.l.b16 %v1266
        %v1395 = vunpack.c.l.b16 %v1267
        %v1396 = vunpack.c.l.b16 %v1268
        %v1397 = vunpack.c.l.b16 %v1269
        %v1398 = vunpack.c.l.b16 %v1270
        %v1399 = vunpack.c.l.b16 %v1271
        %v1400 = vunpack.c.l.b16 %v1272
        %v1401 = vunpack.c.l.b16 %v1273
        %v1402 = vunpack.c.l.b16 %v1274
        %v1403 = vunpack.c.l.b16 %v1275
        %v1404 = vunpack.c.l.b16 %v1276
        %v1405 = vunpack.c.l.b16 %v1277
        %v1406 = vunpack.c.l.b16 %v1278
        %v1407 = vunpack.c.l.b16 %v1279
        %v1408 = vunpack.c.l.b16 %v1280
        %v1409 = vunpack.c.l.b16 %v1281
        %v1410 = vunpack.c.l.b16 %v1282
        %v1411 = vunpack.c.l.b16 %v1283
        %v1412 = vunpack.c.l.b16 %v1284
        %v1413 = vunpack.c.l.b16 %v1285
        %v1414 = vunpack.c.l.b16 %v1286
        %v1415 = vunpack.c.l.b16 %v1287
        %v1416 = vunpack.c.l.b16 %v1288
        %v1417 = vunpack.c.l.b16 %v1289
        %v1418 = vunpack.c.l.b16 %v1290
        %v1419 = vunpack.c.l.b16 %v1291
        %v1420 = vunpack.c.l.b16 %v1292
        %v1421 = vunpack.c.l.b16 %v1293
        %v1422 = vunpack.c.l.b16 %v1294
        %v1423 = vunpack.c.l.b16 %v1295
        %v1424 = vunpack.c.l.b16 %v1296
        %v1425 = vunpack.c.l.b16 %v1297
        %v1426 = vunpack.c.l.b16 %v1298
        %v1427 = vunpack.c.l.b16 %v1299
        %v1428 = vunpack.c.l.b16 %v1300
        %v1429 = vunpack.c.l.b16 %v1301
        %v1430 = vunpack.c.l.b16 %v1302
        %v1431 = vunpack.c.l.b16 %v1303
        %v1432 = vunpack.c.l.b16 %v1304
        %v1433 = vunpack.c.l.b16 %v1305
        %v1434 = vunpack.c.l.b16 %v1306
        %v1435 = vunpack.c.l.b16 %v1307
        %v1436 = vunpack.c.l.b16 %v1308
        %v1437 = vunpack.c.l.b16 %v1309
        %v1438 = vunpack.c.l.b16 %v1310
        %v1439 = vunpack.c.l.b16 %v1311
        %v1440 = vunpack.c.l.b16 %v1312
        %v1441 = vunpack.c.l.b16 %v1313
        %v1442 = vunpack.c.l.b16 %v1314
        %v1443 = vunpack.c.l.b16 %v1315
        %v1444 = vunpack.c.l.b16 %v1316
        %v1445 = vunpack.c.l.b16 %v1317
        %v1446 = vunpack.c.l.b16 %v1318
        %v1447 = vunpack.c.l.b16 %v1319
        %v1448 = vunpack.c.l.b16 %v1320
        %v1449 = vunpack.c.l.b16 %v1321
        %v1450 = vunpack.c.l.b16 %v1322
        %v1451 = vunpack.c.l.b16 %v1323
        %v1452 = vunpack.c.l.b16 %v1324
        %v1453 = vunpack.c.l.b16 %v1325
        %v1454 = vunpack.c.l.b16 %v1326
        %v1455 = vunpack.c.l.b16 %v1327
        %v1456 = vunpack.c.l.b16 %v1328
        %v1457 = vunpack.c.l.b16 %v1329
        %v1458 = vpack.c.b16 %v1395, %v1394
        %v1459 = vpack.c.b16 %v1397, %v1396
        %v1460 = vpack.c.b16 %v1399, %v1398
        %v1461 = vpack.c.b16 %v1401, %v1400
        %v1462 = vpack.c.b16 %v1403, %v1402
        %v1463 = vpack.c.b16 %v1405, %v1404
        %v1464 = vpack.c.b16 %v1407, %v1406
        %v1465 = vpack.c.b16 %v1409, %v1408
        %v1466 = vpack.c.b16 %v1411, %v1410
        %v1467 = vpack.c.b16 %v1413, %v1412
        %v1468 = vpack.c.b16 %v1415, %v1414
        %v1469 = vpack.c.b16 %v1417, %v1416
        %v1470 = vpack.c.b16 %v1419, %v1418
        %v1471 = vpack.c.b16 %v1421, %v1420
        %v1472 = vpack.c.b16 %v1423, %v1422
        %v1473 = vpack.c.b16 %v1425, %v1424
        %v1474 = vpack.c.b16 %v1427, %v1426
        %v1475 = vpack.c.b16 %v1429, %v1428
        %v1476 = vpack.c.b16 %v1431, %v1430
        %v1477 = vpack.c.b16 %v1433, %v1432
        %v1478 = vpack.c.b16 %v1435, %v1434
        %v1479 = vpack.c.b16 %v1437, %v1436
        %v1480 = vpack.c.b16 %v1439, %v1438
        %v1481 = vpack.c.b16 %v1441, %v1440
        %v1482 = vpack.c.b16 %v1443, %v1442
        %v1483 = vpack.c.b16 %v1445, %v1444
        %v1484 = vpack.c.b16 %v1447, %v1446
        %v1485 = vpack.c.b16 %v1449, %v1448
        %v1486 = vpack.c.b16 %v1451, %v1450
        %v1487 = vpack.c.b16 %v1453, %v1452
        %v1488 = vpack.c.b16 %v1455, %v1454
        %v1489 = vpack.c.b16 %v1457, %v1456
        %1522 = vmatpush.bf16.msra.mxu0 %v1465
        %1523 = vmatpush.bf16.msra.mxu0 %v1464
        %1524 = vmatpush.bf16.msra.mxu0 %v1463
        %1525 = vmatpush.bf16.msra.mxu0 %v1462
        %1526 = vmatpush.bf16.msra.mxu0 %v1461
        %1527 = vmatpush.bf16.msra.mxu0 %v1460
        %1528 = vmatpush.bf16.msra.mxu0 %v1459
        %1529 = vmatpush.bf16.msra.mxu0 %v1458
        %1530 = vmatmul.bf16.gmra.mxu0 %v1074
        %v1531 = vpop.f32.mrf.mxu0
        %v1532 = vadd.f32 0.0, %v1531
        %v1533 = vpop.f32.mrf.mxu0
        %v1534 = vadd.f32 0.0, %v1533
        %1535 = vmatmul.bf16.gmra.mxu0 %v1078
        %v1536 = vpop.f32.mrf.mxu0
        %v1537 = vadd.f32 0.0, %v1536
        %v1538 = vpop.f32.mrf.mxu0
        %v1539 = vadd.f32 0.0, %v1538
        %1540 = vmatmul.bf16.gmra.mxu0 %v1082
        %v1541 = vpop.f32.mrf.mxu0
        %v1542 = vadd.f32 0.0, %v1541
        %v1543 = vpop.f32.mrf.mxu0
        %v1544 = vadd.f32 0.0, %v1543
        %1545 = vmatmul.bf16.gmra.mxu0 %v1086
        %v1546 = vpop.f32.mrf.mxu0
        %v1547 = vadd.f32 0.0, %v1546
        %v1548 = vpop.f32.mrf.mxu0
        %v1549 = vadd.f32 0.0, %v1548
        %1550 = vmatmul.bf16.gmra.mxu0 %v1090
        %v1551 = vpop.f32.mrf.mxu0
        %v1552 = vadd.f32 0.0, %v1551
        %v1553 = vpop.f32.mrf.mxu0
        %v1554 = vadd.f32 0.0, %v1553
        %1555 = vmatmul.bf16.gmra.mxu0 %v1094
        %v1556 = vpop.f32.mrf.mxu0
        %v1557 = vadd.f32 0.0, %v1556
        %v1558 = vpop.f32.mrf.mxu0
        %v1559 = vadd.f32 0.0, %v1558
        %1560 = vmatmul.bf16.gmra.mxu0 %v1098
        %v1561 = vpop.f32.mrf.mxu0
        %v1562 = vadd.f32 0.0, %v1561
        %v1563 = vpop.f32.mrf.mxu0
        %v1564 = vadd.f32 0.0, %v1563
        %1565 = vmatmul.bf16.gmra.mxu0 %v1102
        %v1566 = vpop.f32.mrf.mxu0
        %v1567 = vadd.f32 0.0, %v1566
        %v1568 = vpop.f32.mrf.mxu0
        %v1569 = vadd.f32 0.0, %v1568
        %1570 = vmatmul.bf16.gmra.mxu0 %v1106
        %v1571 = vpop.f32.mrf.mxu0
        %v1572 = vadd.f32 0.0, %v1571
        %v1573 = vpop.f32.mrf.mxu0
        %v1574 = vadd.f32 0.0, %v1573
        %1575 = vmatmul.bf16.gmra.mxu0 %v1110
        %v1576 = vpop.f32.mrf.mxu0
        %v1577 = vadd.f32 0.0, %v1576
        %v1578 = vpop.f32.mrf.mxu0
        %v1579 = vadd.f32 0.0, %v1578
        %1580 = vmatmul.bf16.gmra.mxu0 %v1114
        %v1581 = vpop.f32.mrf.mxu0
        %v1582 = vadd.f32 0.0, %v1581
        %v1583 = vpop.f32.mrf.mxu0
        %v1584 = vadd.f32 0.0, %v1583
        %1585 = vmatmul.bf16.gmra.mxu0 %v1118
        %v1586 = vpop.f32.mrf.mxu0
        %v1587 = vadd.f32 0.0, %v1586
        %v1588 = vpop.f32.mrf.mxu0
        %v1589 = vadd.f32 0.0, %v1588
        %1590 = vmatmul.bf16.gmra.mxu0 %v1122
        %v1591 = vpop.f32.mrf.mxu0
        %v1592 = vadd.f32 0.0, %v1591
        %v1593 = vpop.f32.mrf.mxu0
        %v1594 = vadd.f32 0.0, %v1593
        %1595 = vmatmul.bf16.gmra.mxu0 %v1126
        %v1596 = vpop.f32.mrf.mxu0
        %v1597 = vadd.f32 0.0, %v1596
        %v1598 = vpop.f32.mrf.mxu0
        %v1599 = vadd.f32 0.0, %v1598
        %1600 = vmatmul.bf16.gmra.mxu0 %v1130
        %v1601 = vpop.f32.mrf.mxu0
        %v1602 = vadd.f32 0.0, %v1601
        %v1603 = vpop.f32.mrf.mxu0
        %v1604 = vadd.f32 0.0, %v1603
        %1605 = vmatmul.bf16.gmra.mxu0 %v1134
        %v1606 = vpop.f32.mrf.mxu0
        %v1607 = vadd.f32 0.0, %v1606
        %v1608 = vpop.f32.mrf.mxu0
        %v1609 = vadd.f32 0.0, %v1608
        %1610 = vmatmul.bf16.gmra.mxu0 %v1138
        %v1611 = vpop.f32.mrf.mxu0
        %v1612 = vadd.f32 0.0, %v1611
        %v1613 = vpop.f32.mrf.mxu0
        %v1614 = vadd.f32 0.0, %v1613
        %1615 = vmatmul.bf16.gmra.mxu0 %v1142
        %v1616 = vpop.f32.mrf.mxu0
        %v1617 = vadd.f32 0.0, %v1616
        %v1618 = vpop.f32.mrf.mxu0
        %v1619 = vadd.f32 0.0, %v1618
        %1620 = vmatmul.bf16.gmra.mxu0 %v1146
        %v1621 = vpop.f32.mrf.mxu0
        %v1622 = vadd.f32 0.0, %v1621
        %v1623 = vpop.f32.mrf.mxu0
        %v1624 = vadd.f32 0.0, %v1623
        %1625 = vmatmul.bf16.gmra.mxu0 %v1150
        %v1626 = vpop.f32.mrf.mxu0
        %v1627 = vadd.f32 0.0, %v1626
        %v1628 = vpop.f32.mrf.mxu0
        %v1629 = vadd.f32 0.0, %v1628
        %1630 = vmatmul.bf16.gmra.mxu0 %v1154
        %v1631 = vpop.f32.mrf.mxu0
        %v1632 = vadd.f32 0.0, %v1631
        %v1633 = vpop.f32.mrf.mxu0
        %v1634 = vadd.f32 0.0, %v1633
        %1635 = vmatmul.bf16.gmra.mxu0 %v1158
        %v1636 = vpop.f32.mrf.mxu0
        %v1637 = vadd.f32 0.0, %v1636
        %v1638 = vpop.f32.mrf.mxu0
        %v1639 = vadd.f32 0.0, %v1638
        %1640 = vmatmul.bf16.gmra.mxu0 %v1162
        %v1641 = vpop.f32.mrf.mxu0
        %v1642 = vadd.f32 0.0, %v1641
        %v1643 = vpop.f32.mrf.mxu0
        %v1644 = vadd.f32 0.0, %v1643
        %1645 = vmatmul.bf16.gmra.mxu0 %v1166
        %v1646 = vpop.f32.mrf.mxu0
        %v1647 = vadd.f32 0.0, %v1646
        %v1648 = vpop.f32.mrf.mxu0
        %v1649 = vadd.f32 0.0, %v1648
        %1650 = vmatmul.bf16.gmra.mxu0 %v1170
        %v1651 = vpop.f32.mrf.mxu0
        %v1652 = vadd.f32 0.0, %v1651
        %v1653 = vpop.f32.mrf.mxu0
        %v1654 = vadd.f32 0.0, %v1653
        %1655 = vmatmul.bf16.gmra.mxu0 %v1174
        %v1656 = vpop.f32.mrf.mxu0
        %v1657 = vadd.f32 0.0, %v1656
        %v1658 = vpop.f32.mrf.mxu0
        %v1659 = vadd.f32 0.0, %v1658
        %1660 = vmatmul.bf16.gmra.mxu0 %v1178
        %v1661 = vpop.f32.mrf.mxu0
        %v1662 = vadd.f32 0.0, %v1661
        %v1663 = vpop.f32.mrf.mxu0
        %v1664 = vadd.f32 0.0, %v1663
        %1665 = vmatmul.bf16.gmra.mxu0 %v1182
        %v1666 = vpop.f32.mrf.mxu0
        %v1667 = vadd.f32 0.0, %v1666
        %v1668 = vpop.f32.mrf.mxu0
        %v1669 = vadd.f32 0.0, %v1668
        %1670 = vmatmul.bf16.gmra.mxu0 %v1186
        %v1671 = vpop.f32.mrf.mxu0
        %v1672 = vadd.f32 0.0, %v1671
        %v1673 = vpop.f32.mrf.mxu0
        %v1674 = vadd.f32 0.0, %v1673
        %1675 = vmatmul.bf16.gmra.mxu0 %v1190
        %v1676 = vpop.f32.mrf.mxu0
        %v1677 = vadd.f32 0.0, %v1676
        %v1678 = vpop.f32.mrf.mxu0
        %v1679 = vadd.f32 0.0, %v1678
        %1680 = vmatmul.bf16.gmra.mxu0 %v1194
        %v1681 = vpop.f32.mrf.mxu0
        %v1682 = vadd.f32 0.0, %v1681
        %v1683 = vpop.f32.mrf.mxu0
        %v1684 = vadd.f32 0.0, %v1683
        %1685 = vmatmul.bf16.gmra.mxu0 %v1198
        %v1686 = vpop.f32.mrf.mxu0
        %v1687 = vadd.f32 0.0, %v1686
        %v1688 = vpop.f32.mrf.mxu0
        %v1689 = vadd.f32 0.0, %v1688
        %1690 = vdwg.mxu0
        %1691 = vmatpush.bf16.msra.mxu0 %v1473
        %1692 = vmatpush.bf16.msra.mxu0 %v1472
        %1693 = vmatpush.bf16.msra.mxu0 %v1471
        %1694 = vmatpush.bf16.msra.mxu0 %v1470
        %1695 = vmatpush.bf16.msra.mxu0 %v1469
        %1696 = vmatpush.bf16.msra.mxu0 %v1468
        %1697 = vmatpush.bf16.msra.mxu0 %v1467
        %1698 = vmatpush.bf16.msra.mxu0 %v1466
        %1699 = vmatmul.bf16.gmra.mxu0 %v1075
        %v1700 = vpop.f32.mrf.mxu0
        %v1701 = vadd.f32 %v1532, %v1700
        %v1702 = vpop.f32.mrf.mxu0
        %v1703 = vadd.f32 %v1534, %v1702
        %1704 = vmatmul.bf16.gmra.mxu0 %v1079
        %v1705 = vpop.f32.mrf.mxu0
        %v1706 = vadd.f32 %v1537, %v1705
        %v1707 = vpop.f32.mrf.mxu0
        %v1708 = vadd.f32 %v1539, %v1707
        %1709 = vmatmul.bf16.gmra.mxu0 %v1083
        %v1710 = vpop.f32.mrf.mxu0
        %v1711 = vadd.f32 %v1542, %v1710
        %v1712 = vpop.f32.mrf.mxu0
        %v1713 = vadd.f32 %v1544, %v1712
        %1714 = vmatmul.bf16.gmra.mxu0 %v1087
        %v1715 = vpop.f32.mrf.mxu0
        %v1716 = vadd.f32 %v1547, %v1715
        %v1717 = vpop.f32.mrf.mxu0
        %v1718 = vadd.f32 %v1549, %v1717
        %1719 = vmatmul.bf16.gmra.mxu0 %v1091
        %v1720 = vpop.f32.mrf.mxu0
        %v1721 = vadd.f32 %v1552, %v1720
        %v1722 = vpop.f32.mrf.mxu0
        %v1723 = vadd.f32 %v1554, %v1722
        %1724 = vmatmul.bf16.gmra.mxu0 %v1095
        %v1725 = vpop.f32.mrf.mxu0
        %v1726 = vadd.f32 %v1557, %v1725
        %v1727 = vpop.f32.mrf.mxu0
        %v1728 = vadd.f32 %v1559, %v1727
        %1729 = vmatmul.bf16.gmra.mxu0 %v1099
        %v1730 = vpop.f32.mrf.mxu0
        %v1731 = vadd.f32 %v1562, %v1730
        %v1732 = vpop.f32.mrf.mxu0
        %v1733 = vadd.f32 %v1564, %v1732
        %1734 = vmatmul.bf16.gmra.mxu0 %v1103
        %v1735 = vpop.f32.mrf.mxu0
        %v1736 = vadd.f32 %v1567, %v1735
        %v1737 = vpop.f32.mrf.mxu0
        %v1738 = vadd.f32 %v1569, %v1737
        %1739 = vmatmul.bf16.gmra.mxu0 %v1107
        %v1740 = vpop.f32.mrf.mxu0
        %v1741 = vadd.f32 %v1572, %v1740
        %v1742 = vpop.f32.mrf.mxu0
        %v1743 = vadd.f32 %v1574, %v1742
        %1744 = vmatmul.bf16.gmra.mxu0 %v1111
        %v1745 = vpop.f32.mrf.mxu0
        %v1746 = vadd.f32 %v1577, %v1745
        %v1747 = vpop.f32.mrf.mxu0
        %v1748 = vadd.f32 %v1579, %v1747
        %1749 = vmatmul.bf16.gmra.mxu0 %v1115
        %v1750 = vpop.f32.mrf.mxu0
        %v1751 = vadd.f32 %v1582, %v1750
        %v1752 = vpop.f32.mrf.mxu0
        %v1753 = vadd.f32 %v1584, %v1752
        %1754 = vmatmul.bf16.gmra.mxu0 %v1119
        %v1755 = vpop.f32.mrf.mxu0
        %v1756 = vadd.f32 %v1587, %v1755
        %v1757 = vpop.f32.mrf.mxu0
        %v1758 = vadd.f32 %v1589, %v1757
        %1759 = vmatmul.bf16.gmra.mxu0 %v1123
        %v1760 = vpop.f32.mrf.mxu0
        %v1761 = vadd.f32 %v1592, %v1760
        %v1762 = vpop.f32.mrf.mxu0
        %v1763 = vadd.f32 %v1594, %v1762
        %1764 = vmatmul.bf16.gmra.mxu0 %v1127
        %v1765 = vpop.f32.mrf.mxu0
        %v1766 = vadd.f32 %v1597, %v1765
        %v1767 = vpop.f32.mrf.mxu0
        %v1768 = vadd.f32 %v1599, %v1767
        %1769 = vmatmul.bf16.gmra.mxu0 %v1131
        %v1770 = vpop.f32.mrf.mxu0
        %v1771 = vadd.f32 %v1602, %v1770
        %v1772 = vpop.f32.mrf.mxu0
        %v1773 = vadd.f32 %v1604, %v1772
        %1774 = vmatmul.bf16.gmra.mxu0 %v1135
        %v1775 = vpop.f32.mrf.mxu0
        %v1776 = vadd.f32 %v1607, %v1775
        %v1777 = vpop.f32.mrf.mxu0
        %v1778 = vadd.f32 %v1609, %v1777
        %1779 = vmatmul.bf16.gmra.mxu0 %v1139
        %v1780 = vpop.f32.mrf.mxu0
        %v1781 = vadd.f32 %v1612, %v1780
        %v1782 = vpop.f32.mrf.mxu0
        %v1783 = vadd.f32 %v1614, %v1782
        %1784 = vmatmul.bf16.gmra.mxu0 %v1143
        %v1785 = vpop.f32.mrf.mxu0
        %v1786 = vadd.f32 %v1617, %v1785
        %v1787 = vpop.f32.mrf.mxu0
        %v1788 = vadd.f32 %v1619, %v1787
        %1789 = vmatmul.bf16.gmra.mxu0 %v1147
        %v1790 = vpop.f32.mrf.mxu0
        %v1791 = vadd.f32 %v1622, %v1790
        %v1792 = vpop.f32.mrf.mxu0
        %v1793 = vadd.f32 %v1624, %v1792
        %1794 = vmatmul.bf16.gmra.mxu0 %v1151
        %v1795 = vpop.f32.mrf.mxu0
        %v1796 = vadd.f32 %v1627, %v1795
        %v1797 = vpop.f32.mrf.mxu0
        %v1798 = vadd.f32 %v1629, %v1797
        %1799 = vmatmul.bf16.gmra.mxu0 %v1155
        %v1800 = vpop.f32.mrf.mxu0
        %v1801 = vadd.f32 %v1632, %v1800
        %v1802 = vpop.f32.mrf.mxu0
        %v1803 = vadd.f32 %v1634, %v1802
        %1804 = vmatmul.bf16.gmra.mxu0 %v1159
        %v1805 = vpop.f32.mrf.mxu0
        %v1806 = vadd.f32 %v1637, %v1805
        %v1807 = vpop.f32.mrf.mxu0
        %v1808 = vadd.f32 %v1639, %v1807
        %1809 = vmatmul.bf16.gmra.mxu0 %v1163
        %v1810 = vpop.f32.mrf.mxu0
        %v1811 = vadd.f32 %v1642, %v1810
        %v1812 = vpop.f32.mrf.mxu0
        %v1813 = vadd.f32 %v1644, %v1812
        %1814 = vmatmul.bf16.gmra.mxu0 %v1167
        %v1815 = vpop.f32.mrf.mxu0
        %v1816 = vadd.f32 %v1647, %v1815
        %v1817 = vpop.f32.mrf.mxu0
        %v1818 = vadd.f32 %v1649, %v1817
        %1819 = vmatmul.bf16.gmra.mxu0 %v1171
        %v1820 = vpop.f32.mrf.mxu0
        %v1821 = vadd.f32 %v1652, %v1820
        %v1822 = vpop.f32.mrf.mxu0
        %v1823 = vadd.f32 %v1654, %v1822
        %1824 = vmatmul.bf16.gmra.mxu0 %v1175
        %v1825 = vpop.f32.mrf.mxu0
        %v1826 = vadd.f32 %v1657, %v1825
        %v1827 = vpop.f32.mrf.mxu0
        %v1828 = vadd.f32 %v1659, %v1827
        %1829 = vmatmul.bf16.gmra.mxu0 %v1179
        %v1830 = vpop.f32.mrf.mxu0
        %v1831 = vadd.f32 %v1662, %v1830
        %v1832 = vpop.f32.mrf.mxu0
        %v1833 = vadd.f32 %v1664, %v1832
        %1834 = vmatmul.bf16.gmra.mxu0 %v1183
        %v1835 = vpop.f32.mrf.mxu0
        %v1836 = vadd.f32 %v1667, %v1835
        %v1837 = vpop.f32.mrf.mxu0
        %v1838 = vadd.f32 %v1669, %v1837
        %1839 = vmatmul.bf16.gmra.mxu0 %v1187
        %v1840 = vpop.f32.mrf.mxu0
        %v1841 = vadd.f32 %v1672, %v1840
        %v1842 = vpop.f32.mrf.mxu0
        %v1843 = vadd.f32 %v1674, %v1842
        %1844 = vmatmul.bf16.gmra.mxu0 %v1191
        %v1845 = vpop.f32.mrf.mxu0
        %v1846 = vadd.f32 %v1677, %v1845
        %v1847 = vpop.f32.mrf.mxu0
        %v1848 = vadd.f32 %v1679, %v1847
        %1849 = vmatmul.bf16.gmra.mxu0 %v1195
        %v1850 = vpop.f32.mrf.mxu0
        %v1851 = vadd.f32 %v1682, %v1850
        %v1852 = vpop.f32.mrf.mxu0
        %v1853 = vadd.f32 %v1684, %v1852
        %1854 = vmatmul.bf16.gmra.mxu0 %v1199
        %v1855 = vpop.f32.mrf.mxu0
        %v1856 = vadd.f32 %v1687, %v1855
        %v1857 = vpop.f32.mrf.mxu0
        %v1858 = vadd.f32 %v1689, %v1857
        %1859 = vdwg.mxu0
        %1860 = vmatpush.bf16.msra.mxu0 %v1481
        %1861 = vmatpush.bf16.msra.mxu0 %v1480
        %1862 = vmatpush.bf16.msra.mxu0 %v1479
        %1863 = vmatpush.bf16.msra.mxu0 %v1478
        %1864 = vmatpush.bf16.msra.mxu0 %v1477
        %1865 = vmatpush.bf16.msra.mxu0 %v1476
        %1866 = vmatpush.bf16.msra.mxu0 %v1475
        %1867 = vmatpush.bf16.msra.mxu0 %v1474
        %1868 = vmatmul.bf16.gmra.mxu0 %v1076
        %v1869 = vpop.f32.mrf.mxu0
        %v1870 = vadd.f32 %v1701, %v1869
        %v1871 = vpop.f32.mrf.mxu0
        %v1872 = vadd.f32 %v1703, %v1871
        %1873 = vmatmul.bf16.gmra.mxu0 %v1080
        %v1874 = vpop.f32.mrf.mxu0
        %v1875 = vadd.f32 %v1706, %v1874
        %v1876 = vpop.f32.mrf.mxu0
        %v1877 = vadd.f32 %v1708, %v1876
        %1878 = vmatmul.bf16.gmra.mxu0 %v1084
        %v1879 = vpop.f32.mrf.mxu0
        %v1880 = vadd.f32 %v1711, %v1879
        %v1881 = vpop.f32.mrf.mxu0
        %v1882 = vadd.f32 %v1713, %v1881
        %1883 = vmatmul.bf16.gmra.mxu0 %v1088
        %v1884 = vpop.f32.mrf.mxu0
        %v1885 = vadd.f32 %v1716, %v1884
        %v1886 = vpop.f32.mrf.mxu0
        %v1887 = vadd.f32 %v1718, %v1886
        %1888 = vmatmul.bf16.gmra.mxu0 %v1092
        %v1889 = vpop.f32.mrf.mxu0
        %v1890 = vadd.f32 %v1721, %v1889
        %v1891 = vpop.f32.mrf.mxu0
        %v1892 = vadd.f32 %v1723, %v1891
        %1893 = vmatmul.bf16.gmra.mxu0 %v1096
        %v1894 = vpop.f32.mrf.mxu0
        %v1895 = vadd.f32 %v1726, %v1894
        %v1896 = vpop.f32.mrf.mxu0
        %v1897 = vadd.f32 %v1728, %v1896
        %1898 = vmatmul.bf16.gmra.mxu0 %v1100
        %v1899 = vpop.f32.mrf.mxu0
        %v1900 = vadd.f32 %v1731, %v1899
        %v1901 = vpop.f32.mrf.mxu0
        %v1902 = vadd.f32 %v1733, %v1901
        %1903 = vmatmul.bf16.gmra.mxu0 %v1104
        %v1904 = vpop.f32.mrf.mxu0
        %v1905 = vadd.f32 %v1736, %v1904
        %v1906 = vpop.f32.mrf.mxu0
        %v1907 = vadd.f32 %v1738, %v1906
        %1908 = vmatmul.bf16.gmra.mxu0 %v1108
        %v1909 = vpop.f32.mrf.mxu0
        %v1910 = vadd.f32 %v1741, %v1909
        %v1911 = vpop.f32.mrf.mxu0
        %v1912 = vadd.f32 %v1743, %v1911
        %1913 = vmatmul.bf16.gmra.mxu0 %v1112
        %v1914 = vpop.f32.mrf.mxu0
        %v1915 = vadd.f32 %v1746, %v1914
        %v1916 = vpop.f32.mrf.mxu0
        %v1917 = vadd.f32 %v1748, %v1916
        %1918 = vmatmul.bf16.gmra.mxu0 %v1116
        %v1919 = vpop.f32.mrf.mxu0
        %v1920 = vadd.f32 %v1751, %v1919
        %v1921 = vpop.f32.mrf.mxu0
        %v1922 = vadd.f32 %v1753, %v1921
        %1923 = vmatmul.bf16.gmra.mxu0 %v1120
        %v1924 = vpop.f32.mrf.mxu0
        %v1925 = vadd.f32 %v1756, %v1924
        %v1926 = vpop.f32.mrf.mxu0
        %v1927 = vadd.f32 %v1758, %v1926
        %1928 = vmatmul.bf16.gmra.mxu0 %v1124
        %v1929 = vpop.f32.mrf.mxu0
        %v1930 = vadd.f32 %v1761, %v1929
        %v1931 = vpop.f32.mrf.mxu0
        %v1932 = vadd.f32 %v1763, %v1931
        %1933 = vmatmul.bf16.gmra.mxu0 %v1128
        %v1934 = vpop.f32.mrf.mxu0
        %v1935 = vadd.f32 %v1766, %v1934
        %v1936 = vpop.f32.mrf.mxu0
        %v1937 = vadd.f32 %v1768, %v1936
        %1938 = vmatmul.bf16.gmra.mxu0 %v1132
        %v1939 = vpop.f32.mrf.mxu0
        %v1940 = vadd.f32 %v1771, %v1939
        %v1941 = vpop.f32.mrf.mxu0
        %v1942 = vadd.f32 %v1773, %v1941
        %1943 = vmatmul.bf16.gmra.mxu0 %v1136
        %v1944 = vpop.f32.mrf.mxu0
        %v1945 = vadd.f32 %v1776, %v1944
        %v1946 = vpop.f32.mrf.mxu0
        %v1947 = vadd.f32 %v1778, %v1946
        %1948 = vmatmul.bf16.gmra.mxu0 %v1140
        %v1949 = vpop.f32.mrf.mxu0
        %v1950 = vadd.f32 %v1781, %v1949
        %v1951 = vpop.f32.mrf.mxu0
        %v1952 = vadd.f32 %v1783, %v1951
        %1953 = vmatmul.bf16.gmra.mxu0 %v1144
        %v1954 = vpop.f32.mrf.mxu0
        %v1955 = vadd.f32 %v1786, %v1954
        %v1956 = vpop.f32.mrf.mxu0
        %v1957 = vadd.f32 %v1788, %v1956
        %1958 = vmatmul.bf16.gmra.mxu0 %v1148
        %v1959 = vpop.f32.mrf.mxu0
        %v1960 = vadd.f32 %v1791, %v1959
        %v1961 = vpop.f32.mrf.mxu0
        %v1962 = vadd.f32 %v1793, %v1961
        %1963 = vmatmul.bf16.gmra.mxu0 %v1152
        %v1964 = vpop.f32.mrf.mxu0
        %v1965 = vadd.f32 %v1796, %v1964
        %v1966 = vpop.f32.mrf.mxu0
        %v1967 = vadd.f32 %v1798, %v1966
        %1968 = vmatmul.bf16.gmra.mxu0 %v1156
        %v1969 = vpop.f32.mrf.mxu0
        %v1970 = vadd.f32 %v1801, %v1969
        %v1971 = vpop.f32.mrf.mxu0
        %v1972 = vadd.f32 %v1803, %v1971
        %1973 = vmatmul.bf16.gmra.mxu0 %v1160
        %v1974 = vpop.f32.mrf.mxu0
        %v1975 = vadd.f32 %v1806, %v1974
        %v1976 = vpop.f32.mrf.mxu0
        %v1977 = vadd.f32 %v1808, %v1976
        %1978 = vmatmul.bf16.gmra.mxu0 %v1164
        %v1979 = vpop.f32.mrf.mxu0
        %v1980 = vadd.f32 %v1811, %v1979
        %v1981 = vpop.f32.mrf.mxu0
        %v1982 = vadd.f32 %v1813, %v1981
        %1983 = vmatmul.bf16.gmra.mxu0 %v1168
        %v1984 = vpop.f32.mrf.mxu0
        %v1985 = vadd.f32 %v1816, %v1984
        %v1986 = vpop.f32.mrf.mxu0
        %v1987 = vadd.f32 %v1818, %v1986
        %1988 = vmatmul.bf16.gmra.mxu0 %v1172
        %v1989 = vpop.f32.mrf.mxu0
        %v1990 = vadd.f32 %v1821, %v1989
        %v1991 = vpop.f32.mrf.mxu0
        %v1992 = vadd.f32 %v1823, %v1991
        %1993 = vmatmul.bf16.gmra.mxu0 %v1176
        %v1994 = vpop.f32.mrf.mxu0
        %v1995 = vadd.f32 %v1826, %v1994
        %v1996 = vpop.f32.mrf.mxu0
        %v1997 = vadd.f32 %v1828, %v1996
        %1998 = vmatmul.bf16.gmra.mxu0 %v1180
        %v1999 = vpop.f32.mrf.mxu0
        %v2000 = vadd.f32 %v1831, %v1999
        %v2001 = vpop.f32.mrf.mxu0
        %v2002 = vadd.f32 %v1833, %v2001
        %2003 = vmatmul.bf16.gmra.mxu0 %v1184
        %v2004 = vpop.f32.mrf.mxu0
        %v2005 = vadd.f32 %v1836, %v2004
        %v2006 = vpop.f32.mrf.mxu0
        %v2007 = vadd.f32 %v1838, %v2006
        %2008 = vmatmul.bf16.gmra.mxu0 %v1188
        %v2009 = vpop.f32.mrf.mxu0
        %v2010 = vadd.f32 %v1841, %v2009
        %v2011 = vpop.f32.mrf.mxu0
        %v2012 = vadd.f32 %v1843, %v2011
        %2013 = vmatmul.bf16.gmra.mxu0 %v1192
        %v2014 = vpop.f32.mrf.mxu0
        %v2015 = vadd.f32 %v1846, %v2014
        %v2016 = vpop.f32.mrf.mxu0
        %v2017 = vadd.f32 %v1848, %v2016
        %2018 = vmatmul.bf16.gmra.mxu0 %v1196
        %v2019 = vpop.f32.mrf.mxu0
        %v2020 = vadd.f32 %v1851, %v2019
        %v2021 = vpop.f32.mrf.mxu0
        %v2022 = vadd.f32 %v1853, %v2021
        %2023 = vmatmul.bf16.gmra.mxu0 %v1200
        %v2024 = vpop.f32.mrf.mxu0
        %v2025 = vadd.f32 %v1856, %v2024
        %v2026 = vpop.f32.mrf.mxu0
        %v2027 = vadd.f32 %v1858, %v2026
        %2028 = vdwg.mxu0
        %2029 = vmatpush.bf16.msra.mxu0 %v1489
        %2030 = vmatpush.bf16.msra.mxu0 %v1488
        %2031 = vmatpush.bf16.msra.mxu0 %v1487
        %2032 = vmatpush.bf16.msra.mxu0 %v1486
        %2033 = vmatpush.bf16.msra.mxu0 %v1485
        %2034 = vmatpush.bf16.msra.mxu0 %v1484
        %2035 = vmatpush.bf16.msra.mxu0 %v1483
        %2036 = vmatpush.bf16.msra.mxu0 %v1482
        %2037 = vmatmul.bf16.gmra.mxu0 %v1077
        %v2038 = vpop.f32.mrf.mxu0
        %v2039 = vadd.f32 %v1870, %v2038
        %v2040 = vpop.f32.mrf.mxu0
        %v2041 = vadd.f32 %v1872, %v2040
        %2042 = vmatmul.bf16.gmra.mxu0 %v1081
        %v2043 = vpop.f32.mrf.mxu0
        %v2044 = vadd.f32 %v1875, %v2043
        %v2045 = vpop.f32.mrf.mxu0
        %v2046 = vadd.f32 %v1877, %v2045
        %2047 = vmatmul.bf16.gmra.mxu0 %v1085
        %v2048 = vpop.f32.mrf.mxu0
        %v2049 = vadd.f32 %v1880, %v2048
        %v2050 = vpop.f32.mrf.mxu0
        %v2051 = vadd.f32 %v1882, %v2050
        %2052 = vmatmul.bf16.gmra.mxu0 %v1089
        %v2053 = vpop.f32.mrf.mxu0
        %v2054 = vadd.f32 %v1885, %v2053
        %v2055 = vpop.f32.mrf.mxu0
        %v2056 = vadd.f32 %v1887, %v2055
        %2057 = vmatmul.bf16.gmra.mxu0 %v1093
        %v2058 = vpop.f32.mrf.mxu0
        %v2059 = vadd.f32 %v1890, %v2058
        %v2060 = vpop.f32.mrf.mxu0
        %v2061 = vadd.f32 %v1892, %v2060
        %2062 = vmatmul.bf16.gmra.mxu0 %v1097
        %v2063 = vpop.f32.mrf.mxu0
        %v2064 = vadd.f32 %v1895, %v2063
        %v2065 = vpop.f32.mrf.mxu0
        %v2066 = vadd.f32 %v1897, %v2065
        %2067 = vmatmul.bf16.gmra.mxu0 %v1101
        %v2068 = vpop.f32.mrf.mxu0
        %v2069 = vadd.f32 %v1900, %v2068
        %v2070 = vpop.f32.mrf.mxu0
        %v2071 = vadd.f32 %v1902, %v2070
        %2072 = vmatmul.bf16.gmra.mxu0 %v1105
        %v2073 = vpop.f32.mrf.mxu0
        %v2074 = vadd.f32 %v1905, %v2073
        %v2075 = vpop.f32.mrf.mxu0
        %v2076 = vadd.f32 %v1907, %v2075
        %2077 = vmatmul.bf16.gmra.mxu0 %v1109
        %v2078 = vpop.f32.mrf.mxu0
        %v2079 = vadd.f32 %v1910, %v2078
        %v2080 = vpop.f32.mrf.mxu0
        %v2081 = vadd.f32 %v1912, %v2080
        %2082 = vmatmul.bf16.gmra.mxu0 %v1113
        %v2083 = vpop.f32.mrf.mxu0
        %v2084 = vadd.f32 %v1915, %v2083
        %v2085 = vpop.f32.mrf.mxu0
        %v2086 = vadd.f32 %v1917, %v2085
        %2087 = vmatmul.bf16.gmra.mxu0 %v1117
        %v2088 = vpop.f32.mrf.mxu0
        %v2089 = vadd.f32 %v1920, %v2088
        %v2090 = vpop.f32.mrf.mxu0
        %v2091 = vadd.f32 %v1922, %v2090
        %2092 = vmatmul.bf16.gmra.mxu0 %v1121
        %v2093 = vpop.f32.mrf.mxu0
        %v2094 = vadd.f32 %v1925, %v2093
        %v2095 = vpop.f32.mrf.mxu0
        %v2096 = vadd.f32 %v1927, %v2095
        %2097 = vmatmul.bf16.gmra.mxu0 %v1125
        %v2098 = vpop.f32.mrf.mxu0
        %v2099 = vadd.f32 %v1930, %v2098
        %v2100 = vpop.f32.mrf.mxu0
        %v2101 = vadd.f32 %v1932, %v2100
        %2102 = vmatmul.bf16.gmra.mxu0 %v1129
        %v2103 = vpop.f32.mrf.mxu0
        %v2104 = vadd.f32 %v1935, %v2103
        %v2105 = vpop.f32.mrf.mxu0
        %v2106 = vadd.f32 %v1937, %v2105
        %2107 = vmatmul.bf16.gmra.mxu0 %v1133
        %v2108 = vpop.f32.mrf.mxu0
        %v2109 = vadd.f32 %v1940, %v2108
        %v2110 = vpop.f32.mrf.mxu0
        %v2111 = vadd.f32 %v1942, %v2110
        %2112 = vmatmul.bf16.gmra.mxu0 %v1137
        %v2113 = vpop.f32.mrf.mxu0
        %v2114 = vadd.f32 %v1945, %v2113
        %v2115 = vpop.f32.mrf.mxu0
        %v2116 = vadd.f32 %v1947, %v2115
        %2117 = vmatmul.bf16.gmra.mxu0 %v1141
        %v2118 = vpop.f32.mrf.mxu0
        %v2119 = vadd.f32 %v1950, %v2118
        %v2120 = vpop.f32.mrf.mxu0
        %v2121 = vadd.f32 %v1952, %v2120
        %2122 = vmatmul.bf16.gmra.mxu0 %v1145
        %v2123 = vpop.f32.mrf.mxu0
        %v2124 = vadd.f32 %v1955, %v2123
        %v2125 = vpop.f32.mrf.mxu0
        %v2126 = vadd.f32 %v1957, %v2125
        %2127 = vmatmul.bf16.gmra.mxu0 %v1149
        %v2128 = vpop.f32.mrf.mxu0
        %v2129 = vadd.f32 %v1960, %v2128
        %v2130 = vpop.f32.mrf.mxu0
        %v2131 = vadd.f32 %v1962, %v2130
        %2132 = vmatmul.bf16.gmra.mxu0 %v1153
        %v2133 = vpop.f32.mrf.mxu0
        %v2134 = vadd.f32 %v1965, %v2133
        %v2135 = vpop.f32.mrf.mxu0
        %v2136 = vadd.f32 %v1967, %v2135
        %2137 = vmatmul.bf16.gmra.mxu0 %v1157
        %v2138 = vpop.f32.mrf.mxu0
        %v2139 = vadd.f32 %v1970, %v2138
        %v2140 = vpop.f32.mrf.mxu0
        %v2141 = vadd.f32 %v1972, %v2140
        %2142 = vmatmul.bf16.gmra.mxu0 %v1161
        %v2143 = vpop.f32.mrf.mxu0
        %v2144 = vadd.f32 %v1975, %v2143
        %v2145 = vpop.f32.mrf.mxu0
        %v2146 = vadd.f32 %v1977, %v2145
        %2147 = vmatmul.bf16.gmra.mxu0 %v1165
        %v2148 = vpop.f32.mrf.mxu0
        %v2149 = vadd.f32 %v1980, %v2148
        %v2150 = vpop.f32.mrf.mxu0
        %v2151 = vadd.f32 %v1982, %v2150
        %2152 = vmatmul.bf16.gmra.mxu0 %v1169
        %v2153 = vpop.f32.mrf.mxu0
        %v2154 = vadd.f32 %v1985, %v2153
        %v2155 = vpop.f32.mrf.mxu0
        %v2156 = vadd.f32 %v1987, %v2155
        %2157 = vmatmul.bf16.gmra.mxu0 %v1173
        %v2158 = vpop.f32.mrf.mxu0
        %v2159 = vadd.f32 %v1990, %v2158
        %v2160 = vpop.f32.mrf.mxu0
        %v2161 = vadd.f32 %v1992, %v2160
        %2162 = vmatmul.bf16.gmra.mxu0 %v1177
        %v2163 = vpop.f32.mrf.mxu0
        %v2164 = vadd.f32 %v1995, %v2163
        %v2165 = vpop.f32.mrf.mxu0
        %v2166 = vadd.f32 %v1997, %v2165
        %2167 = vmatmul.bf16.gmra.mxu0 %v1181
        %v2168 = vpop.f32.mrf.mxu0
        %v2169 = vadd.f32 %v2000, %v2168
        %v2170 = vpop.f32.mrf.mxu0
        %v2171 = vadd.f32 %v2002, %v2170
        %2172 = vmatmul.bf16.gmra.mxu0 %v1185
        %v2173 = vpop.f32.mrf.mxu0
        %v2174 = vadd.f32 %v2005, %v2173
        %v2175 = vpop.f32.mrf.mxu0
        %v2176 = vadd.f32 %v2007, %v2175
        %2177 = vmatmul.bf16.gmra.mxu0 %v1189
        %v2178 = vpop.f32.mrf.mxu0
        %v2179 = vadd.f32 %v2010, %v2178
        %v2180 = vpop.f32.mrf.mxu0
        %v2181 = vadd.f32 %v2012, %v2180
        %2182 = vmatmul.bf16.gmra.mxu0 %v1193
        %v2183 = vpop.f32.mrf.mxu0
        %v2184 = vadd.f32 %v2015, %v2183
        %v2185 = vpop.f32.mrf.mxu0
        %v2186 = vadd.f32 %v2017, %v2185
        %2187 = vmatmul.bf16.gmra.mxu0 %v1197
        %v2188 = vpop.f32.mrf.mxu0
        %v2189 = vadd.f32 %v2020, %v2188
        %v2190 = vpop.f32.mrf.mxu0
        %v2191 = vadd.f32 %v2022, %v2190
        %2192 = vmatmul.bf16.gmra.mxu0 %v1201
        %v2193 = vpop.f32.mrf.mxu0
        %v2194 = vadd.f32 %v2025, %v2193
        %v2195 = vpop.f32.mrf.mxu0
        %v2196 = vadd.f32 %v2027, %v2195
        %2197 = vdwg.mxu0
        %v2198 = vadd.f32 %v1202, %v2039
        %v2199 = vadd.f32 %v1203, %v2041
        %v2200 = vadd.f32 %v1204, %v2044
        %v2201 = vadd.f32 %v1205, %v2046
        %v2202 = vadd.f32 %v1206, %v2049
        %v2203 = vadd.f32 %v1207, %v2051
        %v2204 = vadd.f32 %v1208, %v2054
        %v2205 = vadd.f32 %v1209, %v2056
        %v2206 = vadd.f32 %v1210, %v2059
        %v2207 = vadd.f32 %v1211, %v2061
        %v2208 = vadd.f32 %v1212, %v2064
        %v2209 = vadd.f32 %v1213, %v2066
        %v2210 = vadd.f32 %v1214, %v2069
        %v2211 = vadd.f32 %v1215, %v2071
        %v2212 = vadd.f32 %v1216, %v2074
        %v2213 = vadd.f32 %v1217, %v2076
        %v2214 = vadd.f32 %v1218, %v2079
        %v2215 = vadd.f32 %v1219, %v2081
        %v2216 = vadd.f32 %v1220, %v2084
        %v2217 = vadd.f32 %v1221, %v2086
        %v2218 = vadd.f32 %v1222, %v2089
        %v2219 = vadd.f32 %v1223, %v2091
        %v2220 = vadd.f32 %v1224, %v2094
        %v2221 = vadd.f32 %v1225, %v2096
        %v2222 = vadd.f32 %v1226, %v2099
        %v2223 = vadd.f32 %v1227, %v2101
        %v2224 = vadd.f32 %v1228, %v2104
        %v2225 = vadd.f32 %v1229, %v2106
        %v2226 = vadd.f32 %v1230, %v2109
        %v2227 = vadd.f32 %v1231, %v2111
        %v2228 = vadd.f32 %v1232, %v2114
        %v2229 = vadd.f32 %v1233, %v2116
        %v2230 = vadd.f32 %v1234, %v2119
        %v2231 = vadd.f32 %v1235, %v2121
        %v2232 = vadd.f32 %v1236, %v2124
        %v2233 = vadd.f32 %v1237, %v2126
        %v2234 = vadd.f32 %v1238, %v2129
        %v2235 = vadd.f32 %v1239, %v2131
        %v2236 = vadd.f32 %v1240, %v2134
        %v2237 = vadd.f32 %v1241, %v2136
        %v2238 = vadd.f32 %v1242, %v2139
        %v2239 = vadd.f32 %v1243, %v2141
        %v2240 = vadd.f32 %v1244, %v2144
        %v2241 = vadd.f32 %v1245, %v2146
        %v2242 = vadd.f32 %v1246, %v2149
        %v2243 = vadd.f32 %v1247, %v2151
        %v2244 = vadd.f32 %v1248, %v2154
        %v2245 = vadd.f32 %v1249, %v2156
        %v2246 = vadd.f32 %v1250, %v2159
        %v2247 = vadd.f32 %v1251, %v2161
        %v2248 = vadd.f32 %v1252, %v2164
        %v2249 = vadd.f32 %v1253, %v2166
        %v2250 = vadd.f32 %v1254, %v2169
        %v2251 = vadd.f32 %v1255, %v2171
        %v2252 = vadd.f32 %v1256, %v2174
        %v2253 = vadd.f32 %v1257, %v2176
        %v2254 = vadd.f32 %v1258, %v2179
        %v2255 = vadd.f32 %v1259, %v2181
        %v2256 = vadd.f32 %v1260, %v2184
        %v2257 = vadd.f32 %v1261, %v2186
        %v2258 = vadd.f32 %v1262, %v2189
        %v2259 = vadd.f32 %v1263, %v2191
        %v2260 = vadd.f32 %v1264, %v2194
        %v2261 = vadd.f32 %v1265, %v2196
        %2262 = vst [vmem:[#allocation2] sm:$0xff] %v2198
        %2263 = vst [vmem:[#allocation2 + $0x8] sm:$0xff] %v2199
        %2264 = vst [vmem:[#allocation2 + $0x10] sm:$0xff] %v2200
        %2265 = vst [vmem:[#allocation2 + $0x18] sm:$0xff] %v2201
        %2266 = vst [vmem:[#allocation2 + $0x20] sm:$0xff] %v2202
        %2267 = vst [vmem:[#allocation2 + $0x28] sm:$0xff] %v2203
        %2268 = vst [vmem:[#allocation2 + $0x30] sm:$0xff] %v2204
        %2269 = vst [vmem:[#allocation2 + $0x38] sm:$0xff] %v2205
        %2270 = vst [vmem:[#allocation2 + $0x40] sm:$0xff] %v2206
        %2271 = vst [vmem:[#allocation2 + $0x48] sm:$0xff] %v2207
        %2272 = vst [vmem:[#allocation2 + $0x50] sm:$0xff] %v2208
        %2273 = vst [vmem:[#allocation2 + $0x58] sm:$0xff] %v2209
        %2274 = vst [vmem:[#allocation2 + $0x60] sm:$0xff] %v2210
        %2275 = vst [vmem:[#allocation2 + $0x68] sm:$0xff] %v2211
        %2276 = vst [vmem:[#allocation2 + $0x70] sm:$0xff] %v2212
        %2277 = vst [vmem:[#allocation2 + $0x78] sm:$0xff] %v2213
        %2278 = vst [vmem:[#allocation2 + $0x80] sm:$0xff] %v2214
        %2279 = vst [vmem:[#allocation2 + $0x88] sm:$0xff] %v2215
        %2280 = vst [vmem:[#allocation2 + $0x90] sm:$0xff] %v2216
        %2281 = vst [vmem:[#allocation2 + $0x98] sm:$0xff] %v2217
        %2282 = vst [vmem:[#allocation2 + $0xa0] sm:$0xff] %v2218
        %2283 = vst [vmem:[#allocation2 + $0xa8] sm:$0xff] %v2219
        %2284 = vst [vmem:[#allocation2 + $0xb0] sm:$0xff] %v2220
        %2285 = vst [vmem:[#allocation2 + $0xb8] sm:$0xff] %v2221
        %2286 = vst [vmem:[#allocation2 + $0xc0] sm:$0xff] %v2222
        %2287 = vst [vmem:[#allocation2 + $0xc8] sm:$0xff] %v2223
        %2288 = vst [vmem:[#allocation2 + $0xd0] sm:$0xff] %v2224
        %2289 = vst [vmem:[#allocation2 + $0xd8] sm:$0xff] %v2225
        %2290 = vst [vmem:[#allocation2 + $0xe0] sm:$0xff] %v2226
        %2291 = vst [vmem:[#allocation2 + $0xe8] sm:$0xff] %v2227
        %2292 = vst [vmem:[#allocation2 + $0xf0] sm:$0xff] %v2228
        %2293 = vst [vmem:[#allocation2 + $0xf8] sm:$0xff] %v2229
        %2294 = vst [vmem:[#allocation2 + $0x100] sm:$0xff] %v2230
        %2295 = vst [vmem:[#allocation2 + $0x108] sm:$0xff] %v2231
        %2296 = vst [vmem:[#allocation2 + $0x110] sm:$0xff] %v2232
        %2297 = vst [vmem:[#allocation2 + $0x118] sm:$0xff] %v2233
        %2298 = vst [vmem:[#allocation2 + $0x120] sm:$0xff] %v2234
        %2299 = vst [vmem:[#allocation2 + $0x128] sm:$0xff] %v2235
        %2300 = vst [vmem:[#allocation2 + $0x130] sm:$0xff] %v2236
        %2301 = vst [vmem:[#allocation2 + $0x138] sm:$0xff] %v2237
        %2302 = vst [vmem:[#allocation2 + $0x140] sm:$0xff] %v2238
        %2303 = vst [vmem:[#allocation2 + $0x148] sm:$0xff] %v2239
        %2304 = vst [vmem:[#allocation2 + $0x150] sm:$0xff] %v2240
        %2305 = vst [vmem:[#allocation2 + $0x158] sm:$0xff] %v2241
        %2306 = vst [vmem:[#allocation2 + $0x160] sm:$0xff] %v2242
        %2307 = vst [vmem:[#allocation2 + $0x168] sm:$0xff] %v2243
        %2308 = vst [vmem:[#allocation2 + $0x170] sm:$0xff] %v2244
        %2309 = vst [vmem:[#allocation2 + $0x178] sm:$0xff] %v2245
        %2310 = vst [vmem:[#allocation2 + $0x180] sm:$0xff] %v2246
        %2311 = vst [vmem:[#allocation2 + $0x188] sm:$0xff] %v2247
        %2312 = vst [vmem:[#allocation2 + $0x190] sm:$0xff] %v2248
        %2313 = vst [vmem:[#allocation2 + $0x198] sm:$0xff] %v2249
        %2314 = vst [vmem:[#allocation2 + $0x1a0] sm:$0xff] %v2250
        %2315 = vst [vmem:[#allocation2 + $0x1a8] sm:$0xff] %v2251
        %2316 = vst [vmem:[#allocation2 + $0x1b0] sm:$0xff] %v2252
        %2317 = vst [vmem:[#allocation2 + $0x1b8] sm:$0xff] %v2253
        %2318 = vst [vmem:[#allocation2 + $0x1c0] sm:$0xff] %v2254
        %2319 = vst [vmem:[#allocation2 + $0x1c8] sm:$0xff] %v2255
        %2320 = vst [vmem:[#allocation2 + $0x1d0] sm:$0xff] %v2256
        %2321 = vst [vmem:[#allocation2 + $0x1d8] sm:$0xff] %v2257
        %2322 = vst [vmem:[#allocation2 + $0x1e0] sm:$0xff] %v2258
        %2323 = vst [vmem:[#allocation2 + $0x1e8] sm:$0xff] %v2259
        %2324 = vst [vmem:[#allocation2 + $0x1f0] sm:$0xff] %v2260
        %2325 = vst [vmem:[#allocation2 + $0x1f8] sm:$0xff] %v2261
        %p2326 = scmp.eq.s32.totalorder %s20, 1
        // Predicated region
        $region64: #{sage_e_net_forward.6} parent=54 // pred_check
          %p2327 = pneg %p2326
        $region65: #{sage_e_net_forward.6} parent=54 // pred_check_branch
          %2329 = sbr.rel (%p2327) target = $region67
        $region66: #{sage_e_net_forward.6} parent=54 // pred_region
          %v2330 = vld [vmem:[#allocation2] sm:$0xff]
          %v2331 = vld [vmem:[#allocation2 + $0x8] sm:$0xff]
          %v2332 = vld [vmem:[#allocation2 + $0x10] sm:$0xff]
          %v2333 = vld [vmem:[#allocation2 + $0x18] sm:$0xff]
          %v2334 = vld [vmem:[#allocation2 + $0x20] sm:$0xff]
          %v2335 = vld [vmem:[#allocation2 + $0x28] sm:$0xff]
          %v2336 = vld [vmem:[#allocation2 + $0x30] sm:$0xff]
          %v2337 = vld [vmem:[#allocation2 + $0x38] sm:$0xff]
          %v2338 = vld [vmem:[#allocation2 + $0x40] sm:$0xff]
          %v2339 = vld [vmem:[#allocation2 + $0x48] sm:$0xff]
          %v2340 = vld [vmem:[#allocation2 + $0x50] sm:$0xff]
          %v2341 = vld [vmem:[#allocation2 + $0x58] sm:$0xff]
          %v2342 = vld [vmem:[#allocation2 + $0x60] sm:$0xff]
          %v2343 = vld [vmem:[#allocation2 + $0x68] sm:$0xff]
          %v2344 = vld [vmem:[#allocation2 + $0x70] sm:$0xff]
          %v2345 = vld [vmem:[#allocation2 + $0x78] sm:$0xff]
          %v2346 = vld [vmem:[#allocation2 + $0x80] sm:$0xff]
          %v2347 = vld [vmem:[#allocation2 + $0x88] sm:$0xff]
          %v2348 = vld [vmem:[#allocation2 + $0x90] sm:$0xff]
          %v2349 = vld [vmem:[#allocation2 + $0x98] sm:$0xff]
          %v2350 = vld [vmem:[#allocation2 + $0xa0] sm:$0xff]
          %v2351 = vld [vmem:[#allocation2 + $0xa8] sm:$0xff]
          %v2352 = vld [vmem:[#allocation2 + $0xb0] sm:$0xff]
          %v2353 = vld [vmem:[#allocation2 + $0xb8] sm:$0xff]
          %v2354 = vld [vmem:[#allocation2 + $0xc0] sm:$0xff]
          %v2355 = vld [vmem:[#allocation2 + $0xc8] sm:$0xff]
          %v2356 = vld [vmem:[#allocation2 + $0xd0] sm:$0xff]
          %v2357 = vld [vmem:[#allocation2 + $0xd8] sm:$0xff]
          %v2358 = vld [vmem:[#allocation2 + $0xe0] sm:$0xff]
          %v2359 = vld [vmem:[#allocation2 + $0xe8] sm:$0xff]
          %v2360 = vld [vmem:[#allocation2 + $0xf0] sm:$0xff]
          %v2361 = vld [vmem:[#allocation2 + $0xf8] sm:$0xff]
          %v2362 = vld [vmem:[#allocation2 + $0x100] sm:$0xff]
          %v2363 = vld [vmem:[#allocation2 + $0x108] sm:$0xff]
          %v2364 = vld [vmem:[#allocation2 + $0x110] sm:$0xff]
          %v2365 = vld [vmem:[#allocation2 + $0x118] sm:$0xff]
          %v2366 = vld [vmem:[#allocation2 + $0x120] sm:$0xff]
          %v2367 = vld [vmem:[#allocation2 + $0x128] sm:$0xff]
          %v2368 = vld [vmem:[#allocation2 + $0x130] sm:$0xff]
          %v2369 = vld [vmem:[#allocation2 + $0x138] sm:$0xff]
          %v2370 = vld [vmem:[#allocation2 + $0x140] sm:$0xff]
          %v2371 = vld [vmem:[#allocation2 + $0x148] sm:$0xff]
          %v2372 = vld [vmem:[#allocation2 + $0x150] sm:$0xff]
          %v2373 = vld [vmem:[#allocation2 + $0x158] sm:$0xff]
          %v2374 = vld [vmem:[#allocation2 + $0x160] sm:$0xff]
          %v2375 = vld [vmem:[#allocation2 + $0x168] sm:$0xff]
          %v2376 = vld [vmem:[#allocation2 + $0x170] sm:$0xff]
          %v2377 = vld [vmem:[#allocation2 + $0x178] sm:$0xff]
          %v2378 = vld [vmem:[#allocation2 + $0x180] sm:$0xff]
          %v2379 = vld [vmem:[#allocation2 + $0x188] sm:$0xff]
          %v2380 = vld [vmem:[#allocation2 + $0x190] sm:$0xff]
          %v2381 = vld [vmem:[#allocation2 + $0x198] sm:$0xff]
          %v2382 = vld [vmem:[#allocation2 + $0x1a0] sm:$0xff]
          %v2383 = vld [vmem:[#allocation2 + $0x1a8] sm:$0xff]
          %v2384 = vld [vmem:[#allocation2 + $0x1b0] sm:$0xff]
          %v2385 = vld [vmem:[#allocation2 + $0x1b8] sm:$0xff]
          %v2386 = vld [vmem:[#allocation2 + $0x1c0] sm:$0xff]
          %v2387 = vld [vmem:[#allocation2 + $0x1c8] sm:$0xff]
          %v2388 = vld [vmem:[#allocation2 + $0x1d0] sm:$0xff]
          %v2389 = vld [vmem:[#allocation2 + $0x1d8] sm:$0xff]
          %v2390 = vld [vmem:[#allocation2 + $0x1e0] sm:$0xff]
          %v2391 = vld [vmem:[#allocation2 + $0x1e8] sm:$0xff]
          %v2392 = vld [vmem:[#allocation2 + $0x1f0] sm:$0xff]
          %v2393 = vld [vmem:[#allocation2 + $0x1f8] sm:$0xff]
          %v2394 = vld [vmem:[%s422] sm:$0xff]
          %v2395 = vld [vmem:[%s422 + $0x8] sm:$0xff]
          %v2396 = vld [vmem:[%s422 + $0x10] sm:$0xff]
          %v2397 = vld [vmem:[%s422 + $0x18] sm:$0xff]
          %v2398 = vld [vmem:[%s422 + $0x20] sm:$0xff]
          %v2399 = vld [vmem:[%s422 + $0x28] sm:$0xff]
          %v2400 = vld [vmem:[%s422 + $0x30] sm:$0xff]
          %v2401 = vld [vmem:[%s422 + $0x38] sm:$0xff]
          %v2402 = vld [vmem:[%s422 + $0x40] sm:$0xff]
          %v2403 = vld [vmem:[%s422 + $0x48] sm:$0xff]
          %v2404 = vld [vmem:[%s422 + $0x50] sm:$0xff]
          %v2405 = vld [vmem:[%s422 + $0x58] sm:$0xff]
          %v2406 = vld [vmem:[%s422 + $0x60] sm:$0xff]
          %v2407 = vld [vmem:[%s422 + $0x68] sm:$0xff]
          %v2408 = vld [vmem:[%s422 + $0x70] sm:$0xff]
          %v2409 = vld [vmem:[%s422 + $0x78] sm:$0xff]
          %v2410 = vld [vmem:[%s422 + $0x80] sm:$0xff]
          %v2411 = vld [vmem:[%s422 + $0x88] sm:$0xff]
          %v2412 = vld [vmem:[%s422 + $0x90] sm:$0xff]
          %v2413 = vld [vmem:[%s422 + $0x98] sm:$0xff]
          %v2414 = vld [vmem:[%s422 + $0xa0] sm:$0xff]
          %v2415 = vld [vmem:[%s422 + $0xa8] sm:$0xff]
          %v2416 = vld [vmem:[%s422 + $0xb0] sm:$0xff]
          %v2417 = vld [vmem:[%s422 + $0xb8] sm:$0xff]
          %v2418 = vld [vmem:[%s422 + $0xc0] sm:$0xff]
          %v2419 = vld [vmem:[%s422 + $0xc8] sm:$0xff]
          %v2420 = vld [vmem:[%s422 + $0xd0] sm:$0xff]
          %v2421 = vld [vmem:[%s422 + $0xd8] sm:$0xff]
          %v2422 = vld [vmem:[%s422 + $0xe0] sm:$0xff]
          %v2423 = vld [vmem:[%s422 + $0xe8] sm:$0xff]
          %v2424 = vld [vmem:[%s422 + $0xf0] sm:$0xff]
          %v2425 = vld [vmem:[%s422 + $0xf8] sm:$0xff]
          %v2426 = vld [vmem:[%s422 + $0x100] sm:$0xff]
          %v2427 = vld [vmem:[%s422 + $0x108] sm:$0xff]
          %v2428 = vld [vmem:[%s422 + $0x110] sm:$0xff]
          %v2429 = vld [vmem:[%s422 + $0x118] sm:$0xff]
          %v2430 = vld [vmem:[%s422 + $0x120] sm:$0xff]
          %v2431 = vld [vmem:[%s422 + $0x128] sm:$0xff]
          %v2432 = vld [vmem:[%s422 + $0x130] sm:$0xff]
          %v2433 = vld [vmem:[%s422 + $0x138] sm:$0xff]
          %v2434 = vld [vmem:[%s422 + $0x140] sm:$0xff]
          %v2435 = vld [vmem:[%s422 + $0x148] sm:$0xff]
          %v2436 = vld [vmem:[%s422 + $0x150] sm:$0xff]
          %v2437 = vld [vmem:[%s422 + $0x158] sm:$0xff]
          %v2438 = vld [vmem:[%s422 + $0x160] sm:$0xff]
          %v2439 = vld [vmem:[%s422 + $0x168] sm:$0xff]
          %v2440 = vld [vmem:[%s422 + $0x170] sm:$0xff]
          %v2441 = vld [vmem:[%s422 + $0x178] sm:$0xff]
          %v2442 = vld [vmem:[%s422 + $0x180] sm:$0xff]
          %v2443 = vld [vmem:[%s422 + $0x188] sm:$0xff]
          %v2444 = vld [vmem:[%s422 + $0x190] sm:$0xff]
          %v2445 = vld [vmem:[%s422 + $0x198] sm:$0xff]
          %v2446 = vld [vmem:[%s422 + $0x1a0] sm:$0xff]
          %v2447 = vld [vmem:[%s422 + $0x1a8] sm:$0xff]
          %v2448 = vld [vmem:[%s422 + $0x1b0] sm:$0xff]
          %v2449 = vld [vmem:[%s422 + $0x1b8] sm:$0xff]
          %v2450 = vld [vmem:[%s422 + $0x1c0] sm:$0xff]
          %v2451 = vld [vmem:[%s422 + $0x1c8] sm:$0xff]
          %v2452 = vld [vmem:[%s422 + $0x1d0] sm:$0xff]
          %v2453 = vld [vmem:[%s422 + $0x1d8] sm:$0xff]
          %v2454 = vld [vmem:[%s422 + $0x1e0] sm:$0xff]
          %v2455 = vld [vmem:[%s422 + $0x1e8] sm:$0xff]
          %v2456 = vld [vmem:[%s422 + $0x1f0] sm:$0xff]
          %v2457 = vld [vmem:[%s422 + $0x1f8] sm:$0xff]
          %2459 = vset.pattern.permute.xlu0 0
          %2460 = vperm.xlu0 %2459, %v2394
          %v2461 = vpop.permute.xlu0 %2460
          %2464 = vset.pattern.permute.xlu0 0
          %2465 = vperm.xlu0 %2464, %v2395
          %v2466 = vpop.permute.xlu0 %2465
          %2469 = vset.pattern.permute.xlu0 0
          %2470 = vperm.xlu0 %2469, %v2396
          %v2471 = vpop.permute.xlu0 %2470
          %2474 = vset.pattern.permute.xlu0 0
          %2475 = vperm.xlu0 %2474, %v2397
          %v2476 = vpop.permute.xlu0 %2475
          %2479 = vset.pattern.permute.xlu0 0
          %2480 = vperm.xlu0 %2479, %v2398
          %v2481 = vpop.permute.xlu0 %2480
          %2484 = vset.pattern.permute.xlu0 0
          %2485 = vperm.xlu0 %2484, %v2399
          %v2486 = vpop.permute.xlu0 %2485
          %2489 = vset.pattern.permute.xlu0 0
          %2490 = vperm.xlu0 %2489, %v2400
          %v2491 = vpop.permute.xlu0 %2490
          %2494 = vset.pattern.permute.xlu0 0
          %2495 = vperm.xlu0 %2494, %v2401
          %v2496 = vpop.permute.xlu0 %2495
          %2499 = vset.pattern.permute.xlu0 0
          %2500 = vperm.xlu0 %2499, %v2402
          %v2501 = vpop.permute.xlu0 %2500
          %2504 = vset.pattern.permute.xlu0 0
          %2505 = vperm.xlu0 %2504, %v2403
          %v2506 = vpop.permute.xlu0 %2505
          %2509 = vset.pattern.permute.xlu0 0
          %2510 = vperm.xlu0 %2509, %v2404
          %v2511 = vpop.permute.xlu0 %2510
          %2514 = vset.pattern.permute.xlu0 0
          %2515 = vperm.xlu0 %2514, %v2405
          %v2516 = vpop.permute.xlu0 %2515
          %2519 = vset.pattern.permute.xlu0 0
          %2520 = vperm.xlu0 %2519, %v2406
          %v2521 = vpop.permute.xlu0 %2520
          %2524 = vset.pattern.permute.xlu0 0
          %2525 = vperm.xlu0 %2524, %v2407
          %v2526 = vpop.permute.xlu0 %2525
          %2529 = vset.pattern.permute.xlu0 0
          %2530 = vperm.xlu0 %2529, %v2408
          %v2531 = vpop.permute.xlu0 %2530
          %2534 = vset.pattern.permute.xlu0 0
          %2535 = vperm.xlu0 %2534, %v2409
          %v2536 = vpop.permute.xlu0 %2535
          %2539 = vset.pattern.permute.xlu0 0
          %2540 = vperm.xlu0 %2539, %v2410
          %v2541 = vpop.permute.xlu0 %2540
          %2544 = vset.pattern.permute.xlu0 0
          %2545 = vperm.xlu0 %2544, %v2411
          %v2546 = vpop.permute.xlu0 %2545
          %2549 = vset.pattern.permute.xlu0 0
          %2550 = vperm.xlu0 %2549, %v2412
          %v2551 = vpop.permute.xlu0 %2550
          %2554 = vset.pattern.permute.xlu0 0
          %2555 = vperm.xlu0 %2554, %v2413
          %v2556 = vpop.permute.xlu0 %2555
          %2559 = vset.pattern.permute.xlu0 0
          %2560 = vperm.xlu0 %2559, %v2414
          %v2561 = vpop.permute.xlu0 %2560
          %2564 = vset.pattern.permute.xlu0 0
          %2565 = vperm.xlu0 %2564, %v2415
          %v2566 = vpop.permute.xlu0 %2565
          %2569 = vset.pattern.permute.xlu0 0
          %2570 = vperm.xlu0 %2569, %v2416
          %v2571 = vpop.permute.xlu0 %2570
          %2574 = vset.pattern.permute.xlu0 0
          %2575 = vperm.xlu0 %2574, %v2417
          %v2576 = vpop.permute.xlu0 %2575
          %2579 = vset.pattern.permute.xlu0 0
          %2580 = vperm.xlu0 %2579, %v2418
          %v2581 = vpop.permute.xlu0 %2580
          %2584 = vset.pattern.permute.xlu0 0
          %2585 = vperm.xlu0 %2584, %v2419
          %v2586 = vpop.permute.xlu0 %2585
          %2589 = vset.pattern.permute.xlu0 0
          %2590 = vperm.xlu0 %2589, %v2420
          %v2591 = vpop.permute.xlu0 %2590
          %2594 = vset.pattern.permute.xlu0 0
          %2595 = vperm.xlu0 %2594, %v2421
          %v2596 = vpop.permute.xlu0 %2595
          %2599 = vset.pattern.permute.xlu0 0
          %2600 = vperm.xlu0 %2599, %v2422
          %v2601 = vpop.permute.xlu0 %2600
          %2604 = vset.pattern.permute.xlu0 0
          %2605 = vperm.xlu0 %2604, %v2423
          %v2606 = vpop.permute.xlu0 %2605
          %2609 = vset.pattern.permute.xlu0 0
          %2610 = vperm.xlu0 %2609, %v2424
          %v2611 = vpop.permute.xlu0 %2610
          %2614 = vset.pattern.permute.xlu0 0
          %2615 = vperm.xlu0 %2614, %v2425
          %v2616 = vpop.permute.xlu0 %2615
          %2619 = vset.pattern.permute.xlu0 0
          %2620 = vperm.xlu0 %2619, %v2426
          %v2621 = vpop.permute.xlu0 %2620
          %2624 = vset.pattern.permute.xlu0 0
          %2625 = vperm.xlu0 %2624, %v2427
          %v2626 = vpop.permute.xlu0 %2625
          %2629 = vset.pattern.permute.xlu0 0
          %2630 = vperm.xlu0 %2629, %v2428
          %v2631 = vpop.permute.xlu0 %2630
          %2634 = vset.pattern.permute.xlu0 0
          %2635 = vperm.xlu0 %2634, %v2429
          %v2636 = vpop.permute.xlu0 %2635
          %2639 = vset.pattern.permute.xlu0 0
          %2640 = vperm.xlu0 %2639, %v2430
          %v2641 = vpop.permute.xlu0 %2640
          %2644 = vset.pattern.permute.xlu0 0
          %2645 = vperm.xlu0 %2644, %v2431
          %v2646 = vpop.permute.xlu0 %2645
          %2649 = vset.pattern.permute.xlu0 0
          %2650 = vperm.xlu0 %2649, %v2432
          %v2651 = vpop.permute.xlu0 %2650
          %2654 = vset.pattern.permute.xlu0 0
          %2655 = vperm.xlu0 %2654, %v2433
          %v2656 = vpop.permute.xlu0 %2655
          %2659 = vset.pattern.permute.xlu0 0
          %2660 = vperm.xlu0 %2659, %v2434
          %v2661 = vpop.permute.xlu0 %2660
          %2664 = vset.pattern.permute.xlu0 0
          %2665 = vperm.xlu0 %2664, %v2435
          %v2666 = vpop.permute.xlu0 %2665
          %2669 = vset.pattern.permute.xlu0 0
          %2670 = vperm.xlu0 %2669, %v2436
          %v2671 = vpop.permute.xlu0 %2670
          %2674 = vset.pattern.permute.xlu0 0
          %2675 = vperm.xlu0 %2674, %v2437
          %v2676 = vpop.permute.xlu0 %2675
          %2679 = vset.pattern.permute.xlu0 0
          %2680 = vperm.xlu0 %2679, %v2438
          %v2681 = vpop.permute.xlu0 %2680
          %2684 = vset.pattern.permute.xlu0 0
          %2685 = vperm.xlu0 %2684, %v2439
          %v2686 = vpop.permute.xlu0 %2685
          %2689 = vset.pattern.permute.xlu0 0
          %2690 = vperm.xlu0 %2689, %v2440
          %v2691 = vpop.permute.xlu0 %2690
          %2694 = vset.pattern.permute.xlu0 0
          %2695 = vperm.xlu0 %2694, %v2441
          %v2696 = vpop.permute.xlu0 %2695
          %2699 = vset.pattern.permute.xlu0 0
          %2700 = vperm.xlu0 %2699, %v2442
          %v2701 = vpop.permute.xlu0 %2700
          %2704 = vset.pattern.permute.xlu0 0
          %2705 = vperm.xlu0 %2704, %v2443
          %v2706 = vpop.permute.xlu0 %2705
          %2709 = vset.pattern.permute.xlu0 0
          %2710 = vperm.xlu0 %2709, %v2444
          %v2711 = vpop.permute.xlu0 %2710
          %2714 = vset.pattern.permute.xlu0 0
          %2715 = vperm.xlu0 %2714, %v2445
          %v2716 = vpop.permute.xlu0 %2715
          %2719 = vset.pattern.permute.xlu0 0
          %2720 = vperm.xlu0 %2719, %v2446
          %v2721 = vpop.permute.xlu0 %2720
          %2724 = vset.pattern.permute.xlu0 0
          %2725 = vperm.xlu0 %2724, %v2447
          %v2726 = vpop.permute.xlu0 %2725
          %2729 = vset.pattern.permute.xlu0 0
          %2730 = vperm.xlu0 %2729, %v2448
          %v2731 = vpop.permute.xlu0 %2730
          %2734 = vset.pattern.permute.xlu0 0
          %2735 = vperm.xlu0 %2734, %v2449
          %v2736 = vpop.permute.xlu0 %2735
          %2739 = vset.pattern.permute.xlu0 0
          %2740 = vperm.xlu0 %2739, %v2450
          %v2741 = vpop.permute.xlu0 %2740
          %2744 = vset.pattern.permute.xlu0 0
          %2745 = vperm.xlu0 %2744, %v2451
          %v2746 = vpop.permute.xlu0 %2745
          %2749 = vset.pattern.permute.xlu0 0
          %2750 = vperm.xlu0 %2749, %v2452
          %v2751 = vpop.permute.xlu0 %2750
          %2754 = vset.pattern.permute.xlu0 0
          %2755 = vperm.xlu0 %2754, %v2453
          %v2756 = vpop.permute.xlu0 %2755
          %2759 = vset.pattern.permute.xlu0 0
          %2760 = vperm.xlu0 %2759, %v2454
          %v2761 = vpop.permute.xlu0 %2760
          %2764 = vset.pattern.permute.xlu0 0
          %2765 = vperm.xlu0 %2764, %v2455
          %v2766 = vpop.permute.xlu0 %2765
          %2769 = vset.pattern.permute.xlu0 0
          %2770 = vperm.xlu0 %2769, %v2456
          %v2771 = vpop.permute.xlu0 %2770
          %2774 = vset.pattern.permute.xlu0 0
          %2775 = vperm.xlu0 %2774, %v2457
          %v2776 = vpop.permute.xlu0 %2775
          %v2778 = vmul.f32 %v2330, %v2461
          %v2779 = vmul.f32 %v2331, %v2466
          %v2780 = vmul.f32 %v2332, %v2471
          %v2781 = vmul.f32 %v2333, %v2476
          %v2782 = vmul.f32 %v2334, %v2481
          %v2783 = vmul.f32 %v2335, %v2486
          %v2784 = vmul.f32 %v2336, %v2491
          %v2785 = vmul.f32 %v2337, %v2496
          %v2786 = vmul.f32 %v2338, %v2501
          %v2787 = vmul.f32 %v2339, %v2506
          %v2788 = vmul.f32 %v2340, %v2511
          %v2789 = vmul.f32 %v2341, %v2516
          %v2790 = vmul.f32 %v2342, %v2521
          %v2791 = vmul.f32 %v2343, %v2526
          %v2792 = vmul.f32 %v2344, %v2531
          %v2793 = vmul.f32 %v2345, %v2536
          %v2794 = vmul.f32 %v2346, %v2541
          %v2795 = vmul.f32 %v2347, %v2546
          %v2796 = vmul.f32 %v2348, %v2551
          %v2797 = vmul.f32 %v2349, %v2556
          %v2798 = vmul.f32 %v2350, %v2561
          %v2799 = vmul.f32 %v2351, %v2566
          %v2800 = vmul.f32 %v2352, %v2571
          %v2801 = vmul.f32 %v2353, %v2576
          %v2802 = vmul.f32 %v2354, %v2581
          %v2803 = vmul.f32 %v2355, %v2586
          %v2804 = vmul.f32 %v2356, %v2591
          %v2805 = vmul.f32 %v2357, %v2596
          %v2806 = vmul.f32 %v2358, %v2601
          %v2807 = vmul.f32 %v2359, %v2606
          %v2808 = vmul.f32 %v2360, %v2611
          %v2809 = vmul.f32 %v2361, %v2616
          %v2810 = vmul.f32 %v2362, %v2621
          %v2811 = vmul.f32 %v2363, %v2626
          %v2812 = vmul.f32 %v2364, %v2631
          %v2813 = vmul.f32 %v2365, %v2636
          %v2814 = vmul.f32 %v2366, %v2641
          %v2815 = vmul.f32 %v2367, %v2646
          %v2816 = vmul.f32 %v2368, %v2651
          %v2817 = vmul.f32 %v2369, %v2656
          %v2818 = vmul.f32 %v2370, %v2661
          %v2819 = vmul.f32 %v2371, %v2666
          %v2820 = vmul.f32 %v2372, %v2671
          %v2821 = vmul.f32 %v2373, %v2676
          %v2822 = vmul.f32 %v2374, %v2681
          %v2823 = vmul.f32 %v2375, %v2686
          %v2824 = vmul.f32 %v2376, %v2691
          %v2825 = vmul.f32 %v2377, %v2696
          %v2826 = vmul.f32 %v2378, %v2701
          %v2827 = vmul.f32 %v2379, %v2706
          %v2828 = vmul.f32 %v2380, %v2711
          %v2829 = vmul.f32 %v2381, %v2716
          %v2830 = vmul.f32 %v2382, %v2721
          %v2831 = vmul.f32 %v2383, %v2726
          %v2832 = vmul.f32 %v2384, %v2731
          %v2833 = vmul.f32 %v2385, %v2736
          %v2834 = vmul.f32 %v2386, %v2741
          %v2835 = vmul.f32 %v2387, %v2746
          %v2836 = vmul.f32 %v2388, %v2751
          %v2837 = vmul.f32 %v2389, %v2756
          %v2838 = vmul.f32 %v2390, %v2761
          %v2839 = vmul.f32 %v2391, %v2766
          %v2840 = vmul.f32 %v2392, %v2771
          %v2841 = vmul.f32 %v2393, %v2776
          %v2842 = vld [vmem:[%s416] sm:$0xff]
          %v2843 = vld [vmem:[%s416 + $0x8] sm:$0xff]
          %v2844 = vld [vmem:[%s416 + $0x10] sm:$0xff]
          %v2845 = vld [vmem:[%s416 + $0x18] sm:$0xff]
          %v2846 = vld [vmem:[%s416 + $0x20] sm:$0xff]
          %v2847 = vld [vmem:[%s416 + $0x28] sm:$0xff]
          %v2848 = vld [vmem:[%s416 + $0x30] sm:$0xff]
          %v2849 = vld [vmem:[%s416 + $0x38] sm:$0xff]
          %v2850 = vld [vmem:[%s416 + $0x40] sm:$0xff]
          %v2851 = vld [vmem:[%s416 + $0x48] sm:$0xff]
          %v2852 = vld [vmem:[%s416 + $0x50] sm:$0xff]
          %v2853 = vld [vmem:[%s416 + $0x58] sm:$0xff]
          %v2854 = vld [vmem:[%s416 + $0x60] sm:$0xff]
          %v2855 = vld [vmem:[%s416 + $0x68] sm:$0xff]
          %v2856 = vld [vmem:[%s416 + $0x70] sm:$0xff]
          %v2857 = vld [vmem:[%s416 + $0x78] sm:$0xff]
          %v2858 = vld [vmem:[%s416 + $0x80] sm:$0xff]
          %v2859 = vld [vmem:[%s416 + $0x88] sm:$0xff]
          %v2860 = vld [vmem:[%s416 + $0x90] sm:$0xff]
          %v2861 = vld [vmem:[%s416 + $0x98] sm:$0xff]
          %v2862 = vld [vmem:[%s416 + $0xa0] sm:$0xff]
          %v2863 = vld [vmem:[%s416 + $0xa8] sm:$0xff]
          %v2864 = vld [vmem:[%s416 + $0xb0] sm:$0xff]
          %v2865 = vld [vmem:[%s416 + $0xb8] sm:$0xff]
          %v2866 = vld [vmem:[%s416 + $0xc0] sm:$0xff]
          %v2867 = vld [vmem:[%s416 + $0xc8] sm:$0xff]
          %v2868 = vld [vmem:[%s416 + $0xd0] sm:$0xff]
          %v2869 = vld [vmem:[%s416 + $0xd8] sm:$0xff]
          %v2870 = vld [vmem:[%s416 + $0xe0] sm:$0xff]
          %v2871 = vld [vmem:[%s416 + $0xe8] sm:$0xff]
          %v2872 = vld [vmem:[%s416 + $0xf0] sm:$0xff]
          %v2873 = vld [vmem:[%s416 + $0xf8] sm:$0xff]
          %v2874 = vld [vmem:[%s416 + $0x100] sm:$0xff]
          %v2875 = vld [vmem:[%s416 + $0x108] sm:$0xff]
          %v2876 = vld [vmem:[%s416 + $0x110] sm:$0xff]
          %v2877 = vld [vmem:[%s416 + $0x118] sm:$0xff]
          %v2878 = vld [vmem:[%s416 + $0x120] sm:$0xff]
          %v2879 = vld [vmem:[%s416 + $0x128] sm:$0xff]
          %v2880 = vld [vmem:[%s416 + $0x130] sm:$0xff]
          %v2881 = vld [vmem:[%s416 + $0x138] sm:$0xff]
          %v2882 = vld [vmem:[%s416 + $0x140] sm:$0xff]
          %v2883 = vld [vmem:[%s416 + $0x148] sm:$0xff]
          %v2884 = vld [vmem:[%s416 + $0x150] sm:$0xff]
          %v2885 = vld [vmem:[%s416 + $0x158] sm:$0xff]
          %v2886 = vld [vmem:[%s416 + $0x160] sm:$0xff]
          %v2887 = vld [vmem:[%s416 + $0x168] sm:$0xff]
          %v2888 = vld [vmem:[%s416 + $0x170] sm:$0xff]
          %v2889 = vld [vmem:[%s416 + $0x178] sm:$0xff]
          %v2890 = vld [vmem:[%s416 + $0x180] sm:$0xff]
          %v2891 = vld [vmem:[%s416 + $0x188] sm:$0xff]
          %v2892 = vld [vmem:[%s416 + $0x190] sm:$0xff]
          %v2893 = vld [vmem:[%s416 + $0x198] sm:$0xff]
          %v2894 = vld [vmem:[%s416 + $0x1a0] sm:$0xff]
          %v2895 = vld [vmem:[%s416 + $0x1a8] sm:$0xff]
          %v2896 = vld [vmem:[%s416 + $0x1b0] sm:$0xff]
          %v2897 = vld [vmem:[%s416 + $0x1b8] sm:$0xff]
          %v2898 = vld [vmem:[%s416 + $0x1c0] sm:$0xff]
          %v2899 = vld [vmem:[%s416 + $0x1c8] sm:$0xff]
          %v2900 = vld [vmem:[%s416 + $0x1d0] sm:$0xff]
          %v2901 = vld [vmem:[%s416 + $0x1d8] sm:$0xff]
          %v2902 = vld [vmem:[%s416 + $0x1e0] sm:$0xff]
          %v2903 = vld [vmem:[%s416 + $0x1e8] sm:$0xff]
          %v2904 = vld [vmem:[%s416 + $0x1f0] sm:$0xff]
          %v2905 = vld [vmem:[%s416 + $0x1f8] sm:$0xff]
          %v2906 = vadd.f32 %v2778, %v2842
          %v2907 = vadd.f32 %v2779, %v2843
          %v2908 = vadd.f32 %v2780, %v2844
          %v2909 = vadd.f32 %v2781, %v2845
          %v2910 = vadd.f32 %v2782, %v2846
          %v2911 = vadd.f32 %v2783, %v2847
          %v2912 = vadd.f32 %v2784, %v2848
          %v2913 = vadd.f32 %v2785, %v2849
          %v2914 = vadd.f32 %v2786, %v2850
          %v2915 = vadd.f32 %v2787, %v2851
          %v2916 = vadd.f32 %v2788, %v2852
          %v2917 = vadd.f32 %v2789, %v2853
          %v2918 = vadd.f32 %v2790, %v2854
          %v2919 = vadd.f32 %v2791, %v2855
          %v2920 = vadd.f32 %v2792, %v2856
          %v2921 = vadd.f32 %v2793, %v2857
          %v2922 = vadd.f32 %v2794, %v2858
          %v2923 = vadd.f32 %v2795, %v2859
          %v2924 = vadd.f32 %v2796, %v2860
          %v2925 = vadd.f32 %v2797, %v2861
          %v2926 = vadd.f32 %v2798, %v2862
          %v2927 = vadd.f32 %v2799, %v2863
          %v2928 = vadd.f32 %v2800, %v2864
          %v2929 = vadd.f32 %v2801, %v2865
          %v2930 = vadd.f32 %v2802, %v2866
          %v2931 = vadd.f32 %v2803, %v2867
          %v2932 = vadd.f32 %v2804, %v2868
          %v2933 = vadd.f32 %v2805, %v2869
          %v2934 = vadd.f32 %v2806, %v2870
          %v2935 = vadd.f32 %v2807, %v2871
          %v2936 = vadd.f32 %v2808, %v2872
          %v2937 = vadd.f32 %v2809, %v2873
          %v2938 = vadd.f32 %v2810, %v2874
          %v2939 = vadd.f32 %v2811, %v2875
          %v2940 = vadd.f32 %v2812, %v2876
          %v2941 = vadd.f32 %v2813, %v2877
          %v2942 = vadd.f32 %v2814, %v2878
          %v2943 = vadd.f32 %v2815, %v2879
          %v2944 = vadd.f32 %v2816, %v2880
          %v2945 = vadd.f32 %v2817, %v2881
          %v2946 = vadd.f32 %v2818, %v2882
          %v2947 = vadd.f32 %v2819, %v2883
          %v2948 = vadd.f32 %v2820, %v2884
          %v2949 = vadd.f32 %v2821, %v2885
          %v2950 = vadd.f32 %v2822, %v2886
          %v2951 = vadd.f32 %v2823, %v2887
          %v2952 = vadd.f32 %v2824, %v2888
          %v2953 = vadd.f32 %v2825, %v2889
          %v2954 = vadd.f32 %v2826, %v2890
          %v2955 = vadd.f32 %v2827, %v2891
          %v2956 = vadd.f32 %v2828, %v2892
          %v2957 = vadd.f32 %v2829, %v2893
          %v2958 = vadd.f32 %v2830, %v2894
          %v2959 = vadd.f32 %v2831, %v2895
          %v2960 = vadd.f32 %v2832, %v2896
          %v2961 = vadd.f32 %v2833, %v2897
          %v2962 = vadd.f32 %v2834, %v2898
          %v2963 = vadd.f32 %v2835, %v2899
          %v2964 = vadd.f32 %v2836, %v2900
          %v2965 = vadd.f32 %v2837, %v2901
          %v2966 = vadd.f32 %v2838, %v2902
          %v2967 = vadd.f32 %v2839, %v2903
          %v2968 = vadd.f32 %v2840, %v2904
          %v2969 = vadd.f32 %v2841, %v2905
          %v2970 = vmax.f32 %v2906, 0.0
          %v2971 = vmax.f32 %v2907, 0.0
          %v2972 = vmax.f32 %v2908, 0.0
          %v2973 = vmax.f32 %v2909, 0.0
          %v2974 = vmax.f32 %v2910, 0.0
          %v2975 = vmax.f32 %v2911, 0.0
          %v2976 = vmax.f32 %v2912, 0.0
          %v2977 = vmax.f32 %v2913, 0.0
          %v2978 = vmax.f32 %v2914, 0.0
          %v2979 = vmax.f32 %v2915, 0.0
          %v2980 = vmax.f32 %v2916, 0.0
          %v2981 = vmax.f32 %v2917, 0.0
          %v2982 = vmax.f32 %v2918, 0.0
          %v2983 = vmax.f32 %v2919, 0.0
          %v2984 = vmax.f32 %v2920, 0.0
          %v2985 = vmax.f32 %v2921, 0.0
          %v2986 = vmax.f32 %v2922, 0.0
          %v2987 = vmax.f32 %v2923, 0.0
          %v2988 = vmax.f32 %v2924, 0.0
          %v2989 = vmax.f32 %v2925, 0.0
          %v2990 = vmax.f32 %v2926, 0.0
          %v2991 = vmax.f32 %v2927, 0.0
          %v2992 = vmax.f32 %v2928, 0.0
          %v2993 = vmax.f32 %v2929, 0.0
          %v2994 = vmax.f32 %v2930, 0.0
          %v2995 = vmax.f32 %v2931, 0.0
          %v2996 = vmax.f32 %v2932, 0.0
          %v2997 = vmax.f32 %v2933, 0.0
          %v2998 = vmax.f32 %v2934, 0.0
          %v2999 = vmax.f32 %v2935, 0.0
          %v3000 = vmax.f32 %v2936, 0.0
          %v3001 = vmax.f32 %v2937, 0.0
          %v3002 = vmax.f32 %v2938, 0.0
          %v3003 = vmax.f32 %v2939, 0.0
          %v3004 = vmax.f32 %v2940, 0.0
          %v3005 = vmax.f32 %v2941, 0.0
          %v3006 = vmax.f32 %v2942, 0.0
          %v3007 = vmax.f32 %v2943, 0.0
          %v3008 = vmax.f32 %v2944, 0.0
          %v3009 = vmax.f32 %v2945, 0.0
          %v3010 = vmax.f32 %v2946, 0.0
          %v3011 = vmax.f32 %v2947, 0.0
          %v3012 = vmax.f32 %v2948, 0.0
          %v3013 = vmax.f32 %v2949, 0.0
          %v3014 = vmax.f32 %v2950, 0.0
          %v3015 = vmax.f32 %v2951, 0.0
          %v3016 = vmax.f32 %v2952, 0.0
          %v3017 = vmax.f32 %v2953, 0.0
          %v3018 = vmax.f32 %v2954, 0.0
          %v3019 = vmax.f32 %v2955, 0.0
          %v3020 = vmax.f32 %v2956, 0.0
          %v3021 = vmax.f32 %v2957, 0.0
          %v3022 = vmax.f32 %v2958, 0.0
          %v3023 = vmax.f32 %v2959, 0.0
          %v3024 = vmax.f32 %v2960, 0.0
          %v3025 = vmax.f32 %v2961, 0.0
          %v3026 = vmax.f32 %v2962, 0.0
          %v3027 = vmax.f32 %v2963, 0.0
          %v3028 = vmax.f32 %v2964, 0.0
          %v3029 = vmax.f32 %v2965, 0.0
          %v3030 = vmax.f32 %v2966, 0.0
          %v3031 = vmax.f32 %v2967, 0.0
          %v3032 = vmax.f32 %v2968, 0.0
          %v3033 = vmax.f32 %v2969, 0.0
          %v3034 = vpack.c.bf16 %v2970, %v2970
          %v3035 = vpack.c.bf16 %v2971, %v2971
          %v3036 = vpack.c.bf16 %v2972, %v2972
          %v3037 = vpack.c.bf16 %v2973, %v2973
          %v3038 = vpack.c.bf16 %v2974, %v2974
          %v3039 = vpack.c.bf16 %v2975, %v2975
          %v3040 = vpack.c.bf16 %v2976, %v2976
          %v3041 = vpack.c.bf16 %v2977, %v2977
          %v3042 = vpack.c.bf16 %v2978, %v2978
          %v3043 = vpack.c.bf16 %v2979, %v2979
          %v3044 = vpack.c.bf16 %v2980, %v2980
          %v3045 = vpack.c.bf16 %v2981, %v2981
          %v3046 = vpack.c.bf16 %v2982, %v2982
          %v3047 = vpack.c.bf16 %v2983, %v2983
          %v3048 = vpack.c.bf16 %v2984, %v2984
          %v3049 = vpack.c.bf16 %v2985, %v2985
          %v3050 = vpack.c.bf16 %v2986, %v2986
          %v3051 = vpack.c.bf16 %v2987, %v2987
          %v3052 = vpack.c.bf16 %v2988, %v2988
          %v3053 = vpack.c.bf16 %v2989, %v2989
          %v3054 = vpack.c.bf16 %v2990, %v2990
          %v3055 = vpack.c.bf16 %v2991, %v2991
          %v3056 = vpack.c.bf16 %v2992, %v2992
          %v3057 = vpack.c.bf16 %v2993, %v2993
          %v3058 = vpack.c.bf16 %v2994, %v2994
          %v3059 = vpack.c.bf16 %v2995, %v2995
          %v3060 = vpack.c.bf16 %v2996, %v2996
          %v3061 = vpack.c.bf16 %v2997, %v2997
          %v3062 = vpack.c.bf16 %v2998, %v2998
          %v3063 = vpack.c.bf16 %v2999, %v2999
          %v3064 = vpack.c.bf16 %v3000, %v3000
          %v3065 = vpack.c.bf16 %v3001, %v3001
          %v3066 = vpack.c.bf16 %v3002, %v3002
          %v3067 = vpack.c.bf16 %v3003, %v3003
          %v3068 = vpack.c.bf16 %v3004, %v3004
          %v3069 = vpack.c.bf16 %v3005, %v3005
          %v3070 = vpack.c.bf16 %v3006, %v3006
          %v3071 = vpack.c.bf16 %v3007, %v3007
          %v3072 = vpack.c.bf16 %v3008, %v3008
          %v3073 = vpack.c.bf16 %v3009, %v3009
          %v3074 = vpack.c.bf16 %v3010, %v3010
          %v3075 = vpack.c.bf16 %v3011, %v3011
          %v3076 = vpack.c.bf16 %v3012, %v3012
          %v3077 = vpack.c.bf16 %v3013, %v3013
          %v3078 = vpack.c.bf16 %v3014, %v3014
          %v3079 = vpack.c.bf16 %v3015, %v3015
          %v3080 = vpack.c.bf16 %v3016, %v3016
          %v3081 = vpack.c.bf16 %v3017, %v3017
          %v3082 = vpack.c.bf16 %v3018, %v3018
          %v3083 = vpack.c.bf16 %v3019, %v3019
          %v3084 = vpack.c.bf16 %v3020, %v3020
          %v3085 = vpack.c.bf16 %v3021, %v3021
          %v3086 = vpack.c.bf16 %v3022, %v3022
          %v3087 = vpack.c.bf16 %v3023, %v3023
          %v3088 = vpack.c.bf16 %v3024, %v3024
          %v3089 = vpack.c.bf16 %v3025, %v3025
          %v3090 = vpack.c.bf16 %v3026, %v3026
          %v3091 = vpack.c.bf16 %v3027, %v3027
          %v3092 = vpack.c.bf16 %v3028, %v3028
          %v3093 = vpack.c.bf16 %v3029, %v3029
          %v3094 = vpack.c.bf16 %v3030, %v3030
          %v3095 = vpack.c.bf16 %v3031, %v3031
          %v3096 = vpack.c.bf16 %v3032, %v3032
          %v3097 = vpack.c.bf16 %v3033, %v3033
          %3098 = vst [vmem:[%s428] sm:$0xf] %v3034
          %3099 = vst [vmem:[%s428 + $0x4] sm:$0xf] %v3035
          %3100 = vst [vmem:[%s428 + $0x8] sm:$0xf] %v3036
          %3101 = vst [vmem:[%s428 + $0xc] sm:$0xf] %v3037
          %3102 = vst [vmem:[%s428 + $0x10] sm:$0xf] %v3038
          %3103 = vst [vmem:[%s428 + $0x14] sm:$0xf] %v3039
          %3104 = vst [vmem:[%s428 + $0x18] sm:$0xf] %v3040
          %3105 = vst [vmem:[%s428 + $0x1c] sm:$0xf] %v3041
          %3106 = vst [vmem:[%s428 + $0x20] sm:$0xf] %v3042
          %3107 = vst [vmem:[%s428 + $0x24] sm:$0xf] %v3043
          %3108 = vst [vmem:[%s428 + $0x28] sm:$0xf] %v3044
          %3109 = vst [vmem:[%s428 + $0x2c] sm:$0xf] %v3045
          %3110 = vst [vmem:[%s428 + $0x30] sm:$0xf] %v3046
          %3111 = vst [vmem:[%s428 + $0x34] sm:$0xf] %v3047
          %3112 = vst [vmem:[%s428 + $0x38] sm:$0xf] %v3048
          %3113 = vst [vmem:[%s428 + $0x3c] sm:$0xf] %v3049
          %3114 = vst [vmem:[%s428 + $0x40] sm:$0xf] %v3050
          %3115 = vst [vmem:[%s428 + $0x44] sm:$0xf] %v3051
          %3116 = vst [vmem:[%s428 + $0x48] sm:$0xf] %v3052
          %3117 = vst [vmem:[%s428 + $0x4c] sm:$0xf] %v3053
          %3118 = vst [vmem:[%s428 + $0x50] sm:$0xf] %v3054
          %3119 = vst [vmem:[%s428 + $0x54] sm:$0xf] %v3055
          %3120 = vst [vmem:[%s428 + $0x58] sm:$0xf] %v3056
          %3121 = vst [vmem:[%s428 + $0x5c] sm:$0xf] %v3057
          %3122 = vst [vmem:[%s428 + $0x60] sm:$0xf] %v3058
          %3123 = vst [vmem:[%s428 + $0x64] sm:$0xf] %v3059
          %3124 = vst [vmem:[%s428 + $0x68] sm:$0xf] %v3060
          %3125 = vst [vmem:[%s428 + $0x6c] sm:$0xf] %v3061
          %3126 = vst [vmem:[%s428 + $0x70] sm:$0xf] %v3062
          %3127 = vst [vmem:[%s428 + $0x74] sm:$0xf] %v3063
          %3128 = vst [vmem:[%s428 + $0x78] sm:$0xf] %v3064
          %3129 = vst [vmem:[%s428 + $0x7c] sm:$0xf] %v3065
          %3130 = vst [vmem:[%s428 + $0x80] sm:$0xf] %v3066
          %3131 = vst [vmem:[%s428 + $0x84] sm:$0xf] %v3067
          %3132 = vst [vmem:[%s428 + $0x88] sm:$0xf] %v3068
          %3133 = vst [vmem:[%s428 + $0x8c] sm:$0xf] %v3069
          %3134 = vst [vmem:[%s428 + $0x90] sm:$0xf] %v3070
          %3135 = vst [vmem:[%s428 + $0x94] sm:$0xf] %v3071
          %3136 = vst [vmem:[%s428 + $0x98] sm:$0xf] %v3072
          %3137 = vst [vmem:[%s428 + $0x9c] sm:$0xf] %v3073
          %3138 = vst [vmem:[%s428 + $0xa0] sm:$0xf] %v3074
          %3139 = vst [vmem:[%s428 + $0xa4] sm:$0xf] %v3075
          %3140 = vst [vmem:[%s428 + $0xa8] sm:$0xf] %v3076
          %3141 = vst [vmem:[%s428 + $0xac] sm:$0xf] %v3077
          %3142 = vst [vmem:[%s428 + $0xb0] sm:$0xf] %v3078
          %3143 = vst [vmem:[%s428 + $0xb4] sm:$0xf] %v3079
          %3144 = vst [vmem:[%s428 + $0xb8] sm:$0xf] %v3080
          %3145 = vst [vmem:[%s428 + $0xbc] sm:$0xf] %v3081
          %3146 = vst [vmem:[%s428 + $0xc0] sm:$0xf] %v3082
          %3147 = vst [vmem:[%s428 + $0xc4] sm:$0xf] %v3083
          %3148 = vst [vmem:[%s428 + $0xc8] sm:$0xf] %v3084
          %3149 = vst [vmem:[%s428 + $0xcc] sm:$0xf] %v3085
          %3150 = vst [vmem:[%s428 + $0xd0] sm:$0xf] %v3086
          %3151 = vst [vmem:[%s428 + $0xd4] sm:$0xf] %v3087
          %3152 = vst [vmem:[%s428 + $0xd8] sm:$0xf] %v3088
          %3153 = vst [vmem:[%s428 + $0xdc] sm:$0xf] %v3089
          %3154 = vst [vmem:[%s428 + $0xe0] sm:$0xf] %v3090
          %3155 = vst [vmem:[%s428 + $0xe4] sm:$0xf] %v3091
          %3156 = vst [vmem:[%s428 + $0xe8] sm:$0xf] %v3092
          %3157 = vst [vmem:[%s428 + $0xec] sm:$0xf] %v3093
          %3158 = vst [vmem:[%s428 + $0xf0] sm:$0xf] %v3094
          %3159 = vst [vmem:[%s428 + $0xf4] sm:$0xf] %v3095
          %3160 = vst [vmem:[%s428 + $0xf8] sm:$0xf] %v3096
          %3161 = vst [vmem:[%s428 + $0xfc] sm:$0xf] %v3097
        $region67: #{sage_e_net_forward.6} parent=54 // pred_fallthru
          _
        %s3162 = smul.u32 64, %s19
        %p3163 = scmp.lt.s32.totalorder %s3162, 127
        %s3164 = scalar_select %p3163, %s3162, 127
        %s3165 = smul.addr %s3164, 4
        %s3166 = scalar_lea.vmem %s4, %s3165
        // Predicated region
        $region68: #{sage_e_net_forward.6} parent=54 // pred_check
          %p3167 = pneg %p151
        $region69: #{sage_e_net_forward.6} parent=54 // pred_check_branch
          %3169 = sbr.rel (%p3167) target = $region71
        $region70: #{sage_e_net_forward.6} parent=54 // pred_region
          %s3170 = smul.u32 64, %s19
        $region71: #{sage_e_net_forward.6} parent=54 // pred_fallthru
          _
      $region55: #{sage_e_net_forward.6} parent=5 // pred_fallthru
        _
      %p3171 = scmp.le.s32.totalorder 2, %s10
      // Predicated region
      $region72: #{sage_e_net_forward.6} parent=5 // pred_check
        %p3172 = pneg %p3171
      $region73: #{sage_e_net_forward.6} parent=5 // pred_check_branch
        %3174 = sbr.rel (%p3172) target = $region75
      $region74: #{sage_e_net_forward.6} parent=5 // pred_region
        %s3175 = ssub.s32 %s10, 2
        // Predicated region
        $region76: #{sage_e_net_forward.6} parent=74 // pred_check
          %p3176 = pneg %p157
        $region77: #{sage_e_net_forward.6} parent=74 // pred_check_branch
          %3178 = sbr.rel (%p3176) target = $region79
        $region78: #{sage_e_net_forward.6} parent=74 // pred_region
          %s3179 = smul.u32 64, %s21
          %p3180 = scmp.lt.s32.totalorder %s3179, 127
          %s3181 = scalar_select %p3180, %s3179, 127
          %s3182 = smul.addr %s3181, 4
          %s3183 = scalar_lea.vmem %s4, %s3182
        $region79: #{sage_e_net_forward.6} parent=74 // pred_fallthru
          _
      $region75: #{sage_e_net_forward.6} parent=5 // pred_fallthru
        _
    $region6: #{sage_e_net_forward.6} parent=1 // loop_footer
      %s14 = sadd.s32 1, %s10
    $region7: #{sage_e_net_forward.6} parent=1 // loop_footer_branch
      %9 = sbr.rel target = $region3
    $region8: #{sage_e_net_forward.6} parent=1 // loop_exit
      _

// kernel: sage_e_net_forward.9
$region0: #{sage_e_net_forward.9}
  #allocation0 [shape = 'u32[]', space=smem, size = 0x4, offset = 0x4, fixed_abs, tag = 'smem constant byte address 0x4 - core index']
  #allocation1 [shape = 'u32[72,128]{1,0:T(1,128)}', space=vmem, size = 0x9000, scoped, tag = 'internal scratch']
  %s0 = inlined_call_operand.vmem [shape: f32[8,64,128], index: 0, kind: input, shape index: {}]
  %s1 = inlined_call_operand.vmem [shape: f32[8,64,128], index: 1, kind: input, shape index: {}]
  %s2 = inlined_call_operand.vmem [shape: f32[64,128], index: 2, kind: output, shape index: {}]
  %s3 = sld [smem:[#allocation0]]
  $region18: #{sage_e_net_forward.9} parent=0
    _
  %s5 = ssub.s32 1, %s3
  %s6 = scalar_select 0, %s5, %s3
  // Predicated region
  $region2: #{sage_e_net_forward.9} parent=0 // pred_check
    _
  $region3: #{sage_e_net_forward.9} parent=0 // pred_check_branch
    %8 = sbr.rel (0) target = $region5
  $region4: #{sage_e_net_forward.9} parent=0 // pred_region
    _
  $region5: #{sage_e_net_forward.9} parent=0 // pred_fallthru
    _
  // Predicated region
  $region6: #{sage_e_net_forward.9} parent=0 // pred_check
    _
  $region7: #{sage_e_net_forward.9} parent=0 // pred_check_branch
    %10 = sbr.rel (0) target = $region9
  $region8: #{sage_e_net_forward.9} parent=0 // pred_region
    _
  $region9: #{sage_e_net_forward.9} parent=0 // pred_fallthru
    _
  %v11 = vld [vmem:[%s0] sm:$0xff]
  %v12 = vld [vmem:[%s0 + $0x8] sm:$0xff]
  %v13 = vld [vmem:[%s0 + $0x10] sm:$0xff]
  %v14 = vld [vmem:[%s0 + $0x18] sm:$0xff]
  %v15 = vld [vmem:[%s0 + $0x20] sm:$0xff]
  %v16 = vld [vmem:[%s0 + $0x28] sm:$0xff]
  %v17 = vld [vmem:[%s0 + $0x30] sm:$0xff]
  %v18 = vld [vmem:[%s0 + $0x38] sm:$0xff]
  %v19 = vld [vmem:[%s0 + $0x40] sm:$0xff]
  %v20 = vld [vmem:[%s0 + $0x48] sm:$0xff]
  %v21 = vld [vmem:[%s0 + $0x50] sm:$0xff]
  %v22 = vld [vmem:[%s0 + $0x58] sm:$0xff]
  %v23 = vld [vmem:[%s0 + $0x60] sm:$0xff]
  %v24 = vld [vmem:[%s0 + $0x68] sm:$0xff]
  %v25 = vld [vmem:[%s0 + $0x70] sm:$0xff]
  %v26 = vld [vmem:[%s0 + $0x78] sm:$0xff]
  %v27 = vld [vmem:[%s0 + $0x80] sm:$0xff]
  %v28 = vld [vmem:[%s0 + $0x88] sm:$0xff]
  %v29 = vld [vmem:[%s0 + $0x90] sm:$0xff]
  %v30 = vld [vmem:[%s0 + $0x98] sm:$0xff]
  %v31 = vld [vmem:[%s0 + $0xa0] sm:$0xff]
  %v32 = vld [vmem:[%s0 + $0xa8] sm:$0xff]
  %v33 = vld [vmem:[%s0 + $0xb0] sm:$0xff]
  %v34 = vld [vmem:[%s0 + $0xb8] sm:$0xff]
  %v35 = vld [vmem:[%s0 + $0xc0] sm:$0xff]
  %v36 = vld [vmem:[%s0 + $0xc8] sm:$0xff]
  %v37 = vld [vmem:[%s0 + $0xd0] sm:$0xff]
  %v38 = vld [vmem:[%s0 + $0xd8] sm:$0xff]
  %v39 = vld [vmem:[%s0 + $0xe0] sm:$0xff]
  %v40 = vld [vmem:[%s0 + $0xe8] sm:$0xff]
  %v41 = vld [vmem:[%s0 + $0xf0] sm:$0xff]
  %v42 = vld [vmem:[%s0 + $0xf8] sm:$0xff]
  %v43 = vld [vmem:[%s0 + $0x100] sm:$0xff]
  %v44 = vld [vmem:[%s0 + $0x108] sm:$0xff]
  %v45 = vld [vmem:[%s0 + $0x110] sm:$0xff]
  %v46 = vld [vmem:[%s0 + $0x118] sm:$0xff]
  %v47 = vld [vmem:[%s0 + $0x120] sm:$0xff]
  %v48 = vld [vmem:[%s0 + $0x128] sm:$0xff]
  %v49 = vld [vmem:[%s0 + $0x130] sm:$0xff]
  %v50 = vld [vmem:[%s0 + $0x138] sm:$0xff]
  %v51 = vld [vmem:[%s0 + $0x140] sm:$0xff]
  %v52 = vld [vmem:[%s0 + $0x148] sm:$0xff]
  %v53 = vld [vmem:[%s0 + $0x150] sm:$0xff]
  %v54 = vld [vmem:[%s0 + $0x158] sm:$0xff]
  %v55 = vld [vmem:[%s0 + $0x160] sm:$0xff]
  %v56 = vld [vmem:[%s0 + $0x168] sm:$0xff]
  %v57 = vld [vmem:[%s0 + $0x170] sm:$0xff]
  %v58 = vld [vmem:[%s0 + $0x178] sm:$0xff]
  %v59 = vld [vmem:[%s0 + $0x180] sm:$0xff]
  %v60 = vld [vmem:[%s0 + $0x188] sm:$0xff]
  %v61 = vld [vmem:[%s0 + $0x190] sm:$0xff]
  %v62 = vld [vmem:[%s0 + $0x198] sm:$0xff]
  %v63 = vld [vmem:[%s0 + $0x1a0] sm:$0xff]
  %v64 = vld [vmem:[%s0 + $0x1a8] sm:$0xff]
  %v65 = vld [vmem:[%s0 + $0x1b0] sm:$0xff]
  %v66 = vld [vmem:[%s0 + $0x1b8] sm:$0xff]
  %v67 = vld [vmem:[%s0 + $0x1c0] sm:$0xff]
  %v68 = vld [vmem:[%s0 + $0x1c8] sm:$0xff]
  %v69 = vld [vmem:[%s0 + $0x1d0] sm:$0xff]
  %v70 = vld [vmem:[%s0 + $0x1d8] sm:$0xff]
  %v71 = vld [vmem:[%s0 + $0x1e0] sm:$0xff]
  %v72 = vld [vmem:[%s0 + $0x1e8] sm:$0xff]
  %v73 = vld [vmem:[%s0 + $0x1f0] sm:$0xff]
  %v74 = vld [vmem:[%s0 + $0x1f8] sm:$0xff]
  %v75 = vld [vmem:[%s1] sm:$0xff]
  %v76 = vld [vmem:[%s1 + $0x8] sm:$0xff]
  %v77 = vld [vmem:[%s1 + $0x10] sm:$0xff]
  %v78 = vld [vmem:[%s1 + $0x18] sm:$0xff]
  %v79 = vld [vmem:[%s1 + $0x20] sm:$0xff]
  %v80 = vld [vmem:[%s1 + $0x28] sm:$0xff]
  %v81 = vld [vmem:[%s1 + $0x30] sm:$0xff]
  %v82 = vld [vmem:[%s1 + $0x38] sm:$0xff]
  %v83 = vld [vmem:[%s1 + $0x40] sm:$0xff]
  %v84 = vld [vmem:[%s1 + $0x48] sm:$0xff]
  %v85 = vld [vmem:[%s1 + $0x50] sm:$0xff]
  %v86 = vld [vmem:[%s1 + $0x58] sm:$0xff]
  %v87 = vld [vmem:[%s1 + $0x60] sm:$0xff]
  %v88 = vld [vmem:[%s1 + $0x68] sm:$0xff]
  %v89 = vld [vmem:[%s1 + $0x70] sm:$0xff]
  %v90 = vld [vmem:[%s1 + $0x78] sm:$0xff]
  %v91 = vld [vmem:[%s1 + $0x80] sm:$0xff]
  %v92 = vld [vmem:[%s1 + $0x88] sm:$0xff]
  %v93 = vld [vmem:[%s1 + $0x90] sm:$0xff]
  %v94 = vld [vmem:[%s1 + $0x98] sm:$0xff]
  %v95 = vld [vmem:[%s1 + $0xa0] sm:$0xff]
  %v96 = vld [vmem:[%s1 + $0xa8] sm:$0xff]
  %v97 = vld [vmem:[%s1 + $0xb0] sm:$0xff]
  %v98 = vld [vmem:[%s1 + $0xb8] sm:$0xff]
  %v99 = vld [vmem:[%s1 + $0xc0] sm:$0xff]
  %v100 = vld [vmem:[%s1 + $0xc8] sm:$0xff]
  %v101 = vld [vmem:[%s1 + $0xd0] sm:$0xff]
  %v102 = vld [vmem:[%s1 + $0xd8] sm:$0xff]
  %v103 = vld [vmem:[%s1 + $0xe0] sm:$0xff]
  %v104 = vld [vmem:[%s1 + $0xe8] sm:$0xff]
  %v105 = vld [vmem:[%s1 + $0xf0] sm:$0xff]
  %v106 = vld [vmem:[%s1 + $0xf8] sm:$0xff]
  %v107 = vld [vmem:[%s1 + $0x100] sm:$0xff]
  %v108 = vld [vmem:[%s1 + $0x108] sm:$0xff]
  %v109 = vld [vmem:[%s1 + $0x110] sm:$0xff]
  %v110 = vld [vmem:[%s1 + $0x118] sm:$0xff]
  %v111 = vld [vmem:[%s1 + $0x120] sm:$0xff]
  %v112 = vld [vmem:[%s1 + $0x128] sm:$0xff]
  %v113 = vld [vmem:[%s1 + $0x130] sm:$0xff]
  %v114 = vld [vmem:[%s1 + $0x138] sm:$0xff]
  %v115 = vld [vmem:[%s1 + $0x140] sm:$0xff]
  %v116 = vld [vmem:[%s1 + $0x148] sm:$0xff]
  %v117 = vld [vmem:[%s1 + $0x150] sm:$0xff]
  %v118 = vld [vmem:[%s1 + $0x158] sm:$0xff]
  %v119 = vld [vmem:[%s1 + $0x160] sm:$0xff]
  %v120 = vld [vmem:[%s1 + $0x168] sm:$0xff]
  %v121 = vld [vmem:[%s1 + $0x170] sm:$0xff]
  %v122 = vld [vmem:[%s1 + $0x178] sm:$0xff]
  %v123 = vld [vmem:[%s1 + $0x180] sm:$0xff]
  %v124 = vld [vmem:[%s1 + $0x188] sm:$0xff]
  %v125 = vld [vmem:[%s1 + $0x190] sm:$0xff]
  %v126 = vld [vmem:[%s1 + $0x198] sm:$0xff]
  %v127 = vld [vmem:[%s1 + $0x1a0] sm:$0xff]
  %v128 = vld [vmem:[%s1 + $0x1a8] sm:$0xff]
  %v129 = vld [vmem:[%s1 + $0x1b0] sm:$0xff]
  %v130 = vld [vmem:[%s1 + $0x1b8] sm:$0xff]
  %v131 = vld [vmem:[%s1 + $0x1c0] sm:$0xff]
  %v132 = vld [vmem:[%s1 + $0x1c8] sm:$0xff]
  %v133 = vld [vmem:[%s1 + $0x1d0] sm:$0xff]
  %v134 = vld [vmem:[%s1 + $0x1d8] sm:$0xff]
  %v135 = vld [vmem:[%s1 + $0x1e0] sm:$0xff]
  %v136 = vld [vmem:[%s1 + $0x1e8] sm:$0xff]
  %v137 = vld [vmem:[%s1 + $0x1f0] sm:$0xff]
  %v138 = vld [vmem:[%s1 + $0x1f8] sm:$0xff]
  %v139 = vmul.f32 %v11, %v75
  %v140 = vmul.f32 %v12, %v76
  %v141 = vmul.f32 %v13, %v77
  %v142 = vmul.f32 %v14, %v78
  %v143 = vmul.f32 %v15, %v79
  %v144 = vmul.f32 %v16, %v80
  %v145 = vmul.f32 %v17, %v81
  %v146 = vmul.f32 %v18, %v82
  %v147 = vmul.f32 %v19, %v83
  %v148 = vmul.f32 %v20, %v84
  %v149 = vmul.f32 %v21, %v85
  %v150 = vmul.f32 %v22, %v86
  %v151 = vmul.f32 %v23, %v87
  %v152 = vmul.f32 %v24, %v88
  %v153 = vmul.f32 %v25, %v89
  %v154 = vmul.f32 %v26, %v90
  %v155 = vmul.f32 %v27, %v91
  %v156 = vmul.f32 %v28, %v92
  %v157 = vmul.f32 %v29, %v93
  %v158 = vmul.f32 %v30, %v94
  %v159 = vmul.f32 %v31, %v95
  %v160 = vmul.f32 %v32, %v96
  %v161 = vmul.f32 %v33, %v97
  %v162 = vmul.f32 %v34, %v98
  %v163 = vmul.f32 %v35, %v99
  %v164 = vmul.f32 %v36, %v100
  %v165 = vmul.f32 %v37, %v101
  %v166 = vmul.f32 %v38, %v102
  %v167 = vmul.f32 %v39, %v103
  %v168 = vmul.f32 %v40, %v104
  %v169 = vmul.f32 %v41, %v105
  %v170 = vmul.f32 %v42, %v106
  %v171 = vmul.f32 %v43, %v107
  %v172 = vmul.f32 %v44, %v108
  %v173 = vmul.f32 %v45, %v109
  %v174 = vmul.f32 %v46, %v110
  %v175 = vmul.f32 %v47, %v111
  %v176 = vmul.f32 %v48, %v112
  %v177 = vmul.f32 %v49, %v113
  %v178 = vmul.f32 %v50, %v114
  %v179 = vmul.f32 %v51, %v115
  %v180 = vmul.f32 %v52, %v116
  %v181 = vmul.f32 %v53, %v117
  %v182 = vmul.f32 %v54, %v118
  %v183 = vmul.f32 %v55, %v119
  %v184 = vmul.f32 %v56, %v120
  %v185 = vmul.f32 %v57, %v121
  %v186 = vmul.f32 %v58, %v122
  %v187 = vmul.f32 %v59, %v123
  %v188 = vmul.f32 %v60, %v124
  %v189 = vmul.f32 %v61, %v125
  %v190 = vmul.f32 %v62, %v126
  %v191 = vmul.f32 %v63, %v127
  %v192 = vmul.f32 %v64, %v128
  %v193 = vmul.f32 %v65, %v129
  %v194 = vmul.f32 %v66, %v130
  %v195 = vmul.f32 %v67, %v131
  %v196 = vmul.f32 %v68, %v132
  %v197 = vmul.f32 %v69, %v133
  %v198 = vmul.f32 %v70, %v134
  %v199 = vmul.f32 %v71, %v135
  %v200 = vmul.f32 %v72, %v136
  %v201 = vmul.f32 %v73, %v137
  %v202 = vmul.f32 %v74, %v138
  %v203 = vadd.f32 %v139, %v147
  %v204 = vadd.f32 %v203, %v155
  %v205 = vadd.f32 %v204, %v163
  %v206 = vadd.f32 %v205, %v171
  %v207 = vadd.f32 %v206, %v179
  %v208 = vadd.f32 %v207, %v187
  %v209 = vadd.f32 %v208, %v195
  %v210 = vadd.f32 %v140, %v148
  %v211 = vadd.f32 %v210, %v156
  %v212 = vadd.f32 %v211, %v164
  %v213 = vadd.f32 %v212, %v172
  %v214 = vadd.f32 %v213, %v180
  %v215 = vadd.f32 %v214, %v188
  %v216 = vadd.f32 %v215, %v196
  %v217 = vadd.f32 %v141, %v149
  %v218 = vadd.f32 %v217, %v157
  %v219 = vadd.f32 %v218, %v165
  %v220 = vadd.f32 %v219, %v173
  %v221 = vadd.f32 %v220, %v181
  %v222 = vadd.f32 %v221, %v189
  %v223 = vadd.f32 %v222, %v197
  %v224 = vadd.f32 %v142, %v150
  %v225 = vadd.f32 %v224, %v158
  %v226 = vadd.f32 %v225, %v166
  %v227 = vadd.f32 %v226, %v174
  %v228 = vadd.f32 %v227, %v182
  %v229 = vadd.f32 %v228, %v190
  %v230 = vadd.f32 %v229, %v198
  %v231 = vadd.f32 %v143, %v151
  %v232 = vadd.f32 %v231, %v159
  %v233 = vadd.f32 %v232, %v167
  %v234 = vadd.f32 %v233, %v175
  %v235 = vadd.f32 %v234, %v183
  %v236 = vadd.f32 %v235, %v191
  %v237 = vadd.f32 %v236, %v199
  %v238 = vadd.f32 %v144, %v152
  %v239 = vadd.f32 %v238, %v160
  %v240 = vadd.f32 %v239, %v168
  %v241 = vadd.f32 %v240, %v176
  %v242 = vadd.f32 %v241, %v184
  %v243 = vadd.f32 %v242, %v192
  %v244 = vadd.f32 %v243, %v200
  %v245 = vadd.f32 %v145, %v153
  %v246 = vadd.f32 %v245, %v161
  %v247 = vadd.f32 %v246, %v169
  %v248 = vadd.f32 %v247, %v177
  %v249 = vadd.f32 %v248, %v185
  %v250 = vadd.f32 %v249, %v193
  %v251 = vadd.f32 %v250, %v201
  %v252 = vadd.f32 %v146, %v154
  %v253 = vadd.f32 %v252, %v162
  %v254 = vadd.f32 %v253, %v170
  %v255 = vadd.f32 %v254, %v178
  %v256 = vadd.f32 %v255, %v186
  %v257 = vadd.f32 %v256, %v194
  %v258 = vadd.f32 %v257, %v202
  %259 = vst [vmem:[%s2] sm:$0xff] %v209
  %260 = vst [vmem:[%s2 + $0x8] sm:$0xff] %v216
  %261 = vst [vmem:[%s2 + $0x10] sm:$0xff] %v223
  %262 = vst [vmem:[%s2 + $0x18] sm:$0xff] %v230
  %263 = vst [vmem:[%s2 + $0x20] sm:$0xff] %v237
  %264 = vst [vmem:[%s2 + $0x28] sm:$0xff] %v244
  %265 = vst [vmem:[%s2 + $0x30] sm:$0xff] %v251
  %266 = vst [vmem:[%s2 + $0x38] sm:$0xff] %v258
  // Predicated region
  $region10: #{sage_e_net_forward.9} parent=0 // pred_check
    _
  $region11: #{sage_e_net_forward.9} parent=0 // pred_check_branch
    %268 = sbr.rel (0) target = $region13
  $region12: #{sage_e_net_forward.9} parent=0 // pred_region
    _
  $region13: #{sage_e_net_forward.9} parent=0 // pred_fallthru
    _
  // Predicated region
  $region14: #{sage_e_net_forward.9} parent=0 // pred_check
    _
  $region15: #{sage_e_net_forward.9} parent=0 // pred_check_branch
    %270 = sbr.rel (0) target = $region17
  $region16: #{sage_e_net_forward.9} parent=0 // pred_region
    _
  $region17: #{sage_e_net_forward.9} parent=0 // pred_fallthru
    _

</llo_original>
